<compile_context>
chip_gen: v5e
topology: v5e:2x2
jax: 0.10.0
libtpu: 0.0.40
codegen_flags: <defaults>
</compile_context>

<pallas_src>
import jax
import jax.numpy as jnp
from jax.experimental import pallas as pl
from jax.experimental.pallas import tpu as pltpu


def _round_up(a, b):
    return (a + b - 1) // b * b


def _sigmoid(x):
    # exp -> EUP, approximate reciprocal -> EUP; keeps VPU slots free.
    return pl.reciprocal(1.0 + jnp.exp(-x), approx=True)


def fcn_kernel(x_ref, w1_ref, b1_ref, w2_ref, b2_ref, w3_ref, b3_ref, o_ref):
    """Fused 3-layer MLP on one batch tile: sigmoid(x @ W + b) three times."""
    x = x_ref[...]                                                # (TILE_N, F) bf16

    h = jnp.dot(x, w1_ref[...], preferred_element_type=jnp.float32)
    h = _sigmoid(h + b1_ref[...])                                 # f32 (TILE_N, H)

    h = jnp.dot(h.astype(w2_ref.dtype), w2_ref[...],
                preferred_element_type=jnp.float32)
    h = _sigmoid(h + b2_ref[...])                                 # f32 (TILE_N, H)

    h = jnp.dot(h.astype(w3_ref.dtype), w3_ref[...],
                preferred_element_type=jnp.float32)
    h = _sigmoid(h + b3_ref[...])                                 # f32 (TILE_N, 128)

    o_ref[...] = h.astype(o_ref.dtype)


def fcn_forward(x_nchw, params, *, tile_n=128):
    """Flatten NCHW input and run the fused, batch-tiled Pallas kernel.

    params = (w1, b1, w2, b2, w3, b3); w_i has shape (fan_in, fan_out)
    (transposed vs. torch), b_i has shape (1, fan_out).
    """
    n = x_nchw.shape[0]
    x = x_nchw.reshape(n, -1)                                     # (N, F)
    f = x.shape[1]
    w1, b1, w2, b2, w3, b3 = params
    out_dim = w3.shape[1]

    # Lane-dense output: pad the final layer's columns up to a multiple of 128.
    out_pad = _round_up(max(out_dim, 128), 128)
    w3p = jnp.zeros((w3.shape[0], out_pad), w3.dtype).at[:, :out_dim].set(w3)
    b3p = jnp.zeros((1, out_pad), b3.dtype).at[:, :out_dim].set(b3)

    # bf16 on the MXU inputs; biases stay f32 (bias add + sigmoid run in f32).
    x_bf = x.astype(jnp.bfloat16)
    w1b = w1.astype(jnp.bfloat16)
    w2b = w2.astype(jnp.bfloat16)
    w3b = w3p.astype(jnp.bfloat16)
    b1f = b1.astype(jnp.float32)
    b2f = b2.astype(jnp.float32)
    b3f = b3p.astype(jnp.float32)

    # Tile the batch; pad N up so every tile is full.
    n8 = _round_up(n, 8)
    tn = min(tile_n, n8)
    n_pad = _round_up(n, tn)
    if n_pad != n:
        x_bf = jnp.pad(x_bf, ((0, n_pad - n), (0, 0)))
    grid = (n_pad // tn,)

    full0 = lambda shape: pl.BlockSpec(shape, lambda i: (0, 0))   # grid-invariant

    out = pl.pallas_call(
        fcn_kernel,
        out_shape=jax.ShapeDtypeStruct((n_pad, out_pad), jnp.float32),
        grid=grid,
        in_specs=[
            pl.BlockSpec((tn, f), lambda i: (i, 0)),              # x: blocked along N
            full0(w1b.shape), full0(b1f.shape),
            full0(w2b.shape), full0(b2f.shape),
            full0(w3b.shape), full0(b3f.shape),
        ],
        out_specs=pl.BlockSpec((tn, out_pad), lambda i: (i, 0)),
        compiler_params=pltpu.CompilerParams(
            dimension_semantics=("parallel",),
            vmem_limit_bytes=32 << 20,
        ),
    )(x_bf, w1b, b1f, w2b, b2f, w3b, b3f)

    return out[:n, :out_dim]


def init_fcn_params(key, in_dim, hidden, out_dim):
    """Deterministic init mimicking torch.nn.Linear (uniform +-1/sqrt(fan_in))."""
    dims = [(in_dim, hidden), (hidden, hidden), (hidden, out_dim)]
    params = []
    for fi, fo in dims:
        key, kw, kb = jax.random.split(key, 3)
        bound = 1.0 / (fi ** 0.5)
        w = jax.random.uniform(kw, (fi, fo), jnp.float32, -bound, bound)
        b = jax.random.uniform(kb, (1, fo), jnp.float32, -bound, bound)
        params += [w, b]
    return tuple(params)


def fcn_reference(x_nchw, params):
    """Pure-JAX reference that mirrors the kernel's bf16-input / f32-accumulate path."""
    bf = lambda a: a.astype(jnp.bfloat16).astype(jnp.float32)
    hi = jax.lax.Precision.HIGHEST
    n = x_nchw.shape[0]
    x = bf(x_nchw.reshape(n, -1))
    w1, b1, w2, b2, w3, b3 = params
    h = jax.nn.sigmoid(jnp.dot(x, bf(w1), precision=hi) + b1)
    h = jax.nn.sigmoid(jnp.dot(bf(h), bf(w2), precision=hi) + b2)
    h = jax.nn.sigmoid(jnp.dot(bf(h), bf(w3), precision=hi) + b3)
    return h


if __name__ == "__main__":
    # Shapes from the module defaults: NCHW (128, 3, 32, 32) -> in_dim=3072,
    # hidden=512, out_dim=10.
    N, C, H, W = 128, 3, 32, 32
    IN_DIM = C * H * W          # 3072
    HIDDEN = 512
    OUT_DIM = 10

    key = jax.random.PRNGKey(0)
    key, kx = jax.random.split(key)
    x = jax.random.normal(kx, (N, C, H, W), jnp.float32)

    params = init_fcn_params(key, IN_DIM, HIDDEN, OUT_DIM)

    out = fcn_forward(x, params)
    out = jax.block_until_ready(out)

    ref = fcn_reference(x, params)
    assert out.shape == (N, OUT_DIM)
    # bf16 inputs + approximate reciprocal in the sigmoid => loosened tolerance.
    assert jnp.allclose(out, ref, atol=5e-3, rtol=5e-3), "mismatch vs reference"

    print("KERNEL_OK")
</pallas_src>

<mosaic_0001>
module attributes {stable_mosaic.version = 11 : i64} {
  func.func @fcn_kernel(%arg0: i32, %arg1: memref<128x3072xbf16, #tpu.memory_space<vmem>>, %arg2: memref<3072x512xbf16, #tpu.memory_space<vmem>>, %arg3: memref<1x512xf32, #tpu.memory_space<vmem>>, %arg4: memref<512x512xbf16, #tpu.memory_space<vmem>>, %arg5: memref<1x512xf32, #tpu.memory_space<vmem>>, %arg6: memref<512x128xbf16, #tpu.memory_space<vmem>>, %arg7: memref<1x128xf32, #tpu.memory_space<vmem>>, %arg8: memref<128x128xf32, #tpu.memory_space<vmem>>) attributes {dimension_semantics = [#tpu.dimension_semantics<parallel>], iteration_bounds = array<i64: 1>, scalar_prefetch = 0 : i64, scratch_operands = 0 : i64, tpu.core_type = #tpu.core_type<tc>, window_params = [{transform_indices = @transform_0, window_bounds = array<i64: 128, 3072>}, {pipeline_mode = #tpu.pipeline_mode<synchronous>, transform_indices = @transform_1, window_bounds = array<i64: 3072, 512>}, {pipeline_mode = #tpu.pipeline_mode<synchronous>, transform_indices = @transform_2, window_bounds = array<i64: 1, 512>}, {pipeline_mode = #tpu.pipeline_mode<synchronous>, transform_indices = @transform_3, window_bounds = array<i64: 512, 512>}, {pipeline_mode = #tpu.pipeline_mode<synchronous>, transform_indices = @transform_4, window_bounds = array<i64: 1, 512>}, {pipeline_mode = #tpu.pipeline_mode<synchronous>, transform_indices = @transform_5, window_bounds = array<i64: 512, 128>}, {pipeline_mode = #tpu.pipeline_mode<synchronous>, transform_indices = @transform_6, window_bounds = array<i64: 1, 128>}, {transform_indices = @transform_7, window_bounds = array<i64: 128, 128>}]} {
    %c0 = arith.constant 0 : index
    %c0_0 = arith.constant 0 : index
    %0 = vector.load %arg1[%c0, %c0_0] : memref<128x3072xbf16, #tpu.memory_space<vmem>>, vector<128x3072xbf16>
    %c0_1 = arith.constant 0 : index
    %c0_2 = arith.constant 0 : index
    %1 = vector.load %arg2[%c0_1, %c0_2] : memref<3072x512xbf16, #tpu.memory_space<vmem>>, vector<3072x512xbf16>
    %cst = arith.constant dense<0.000000e+00> : vector<128x512xf32>
    %2 = tpu.matmul %0, %1, %cst {dimension_numbers = #tpu.dot_dimension_numbers<[1], [0], [0], [1], [0, 0, 1, 1], [], []>} : vector<128x3072xbf16>, vector<3072x512xbf16>, vector<128x512xf32> -> vector<128x512xf32>
    %c0_3 = arith.constant 0 : index
    %c0_4 = arith.constant 0 : index
    %3 = vector.load %arg3[%c0_3, %c0_4] : memref<1x512xf32, #tpu.memory_space<vmem>>, vector<1x512xf32>
    %4 = vector.broadcast %3 : vector<1x512xf32> to vector<128x512xf32>
    %5 = arith.addf %2, %4 : vector<128x512xf32>
    %cst_5 = arith.constant 0.000000e+00 : f32
    %6 = vector.broadcast %cst_5 : f32 to vector<128x512xf32>
    %7 = arith.subf %6, %5 : vector<128x512xf32>
    %8 = math.exp %7 : vector<128x512xf32>
    %cst_6 = arith.constant 1.000000e+00 : f32
    %9 = vector.broadcast %cst_6 : f32 to vector<128x512xf32>
    %10 = arith.addf %9, %8 : vector<128x512xf32>
    %11 = tpu.reciprocal %10 {approx = true} : vector<128x512xf32> -> vector<128x512xf32>
    %12 = arith.truncf %11 : vector<128x512xf32> to vector<128x512xbf16>
    %c0_7 = arith.constant 0 : index
    %c0_8 = arith.constant 0 : index
    %13 = vector.load %arg4[%c0_7, %c0_8] : memref<512x512xbf16, #tpu.memory_space<vmem>>, vector<512x512xbf16>
    %cst_9 = arith.constant dense<0.000000e+00> : vector<128x512xf32>
    %14 = tpu.matmul %12, %13, %cst_9 {dimension_numbers = #tpu.dot_dimension_numbers<[1], [0], [0], [1], [0, 0, 1, 1], [], []>} : vector<128x512xbf16>, vector<512x512xbf16>, vector<128x512xf32> -> vector<128x512xf32>
    %c0_10 = arith.constant 0 : index
    %c0_11 = arith.constant 0 : index
    %15 = vector.load %arg5[%c0_10, %c0_11] : memref<1x512xf32, #tpu.memory_space<vmem>>, vector<1x512xf32>
    %16 = vector.broadcast %15 : vector<1x512xf32> to vector<128x512xf32>
    %17 = arith.addf %14, %16 : vector<128x512xf32>
    %cst_12 = arith.constant 0.000000e+00 : f32
    %18 = vector.broadcast %cst_12 : f32 to vector<128x512xf32>
    %19 = arith.subf %18, %17 : vector<128x512xf32>
    %20 = math.exp %19 : vector<128x512xf32>
    %cst_13 = arith.constant 1.000000e+00 : f32
    %21 = vector.broadcast %cst_13 : f32 to vector<128x512xf32>
    %22 = arith.addf %21, %20 : vector<128x512xf32>
    %23 = tpu.reciprocal %22 {approx = true} : vector<128x512xf32> -> vector<128x512xf32>
    %24 = arith.truncf %23 : vector<128x512xf32> to vector<128x512xbf16>
    %c0_14 = arith.constant 0 : index
    %c0_15 = arith.constant 0 : index
    %25 = vector.load %arg6[%c0_14, %c0_15] : memref<512x128xbf16, #tpu.memory_space<vmem>>, vector<512x128xbf16>
    %cst_16 = arith.constant dense<0.000000e+00> : vector<128x128xf32>
    %26 = tpu.matmul %24, %25, %cst_16 {dimension_numbers = #tpu.dot_dimension_numbers<[1], [0], [0], [1], [0, 0, 1, 1], [], []>} : vector<128x512xbf16>, vector<512x128xbf16>, vector<128x128xf32> -> vector<128x128xf32>
    %c0_17 = arith.constant 0 : index
    %c0_18 = arith.constant 0 : index
    %27 = vector.load %arg7[%c0_17, %c0_18] : memref<1x128xf32, #tpu.memory_space<vmem>>, vector<1x128xf32>
    %28 = vector.broadcast %27 : vector<1x128xf32> to vector<128x128xf32>
    %29 = arith.addf %26, %28 : vector<128x128xf32>
    %cst_19 = arith.constant 0.000000e+00 : f32
    %30 = vector.broadcast %cst_19 : f32 to vector<128x128xf32>
    %31 = arith.subf %30, %29 : vector<128x128xf32>
    %32 = math.exp %31 : vector<128x128xf32>
    %cst_20 = arith.constant 1.000000e+00 : f32
    %33 = vector.broadcast %cst_20 : f32 to vector<128x128xf32>
    %34 = arith.addf %33, %32 : vector<128x128xf32>
    %35 = tpu.reciprocal %34 {approx = true} : vector<128x128xf32> -> vector<128x128xf32>
    %c0_21 = arith.constant 0 : index
    %c0_22 = arith.constant 0 : index
    %36 = vector.load %arg8[%c0_21, %c0_22] : memref<128x128xf32, #tpu.memory_space<vmem>>, vector<128x128xf32>
    tpu.vector_store %arg8[%c0_21, %c0_22], %35 {strides = array<i32>} : memref<128x128xf32, #tpu.memory_space<vmem>>, vector<128x128xf32>,
    return
  }
  func.func @transform_0(%arg0: i32) -> (i32, i32) {
    %c0_i32 = arith.constant 0 : i32
    %c0_i32_0 = arith.constant 0 : i32
    return %arg0, %c0_i32 : i32, i32
  }
  func.func @transform_1(%arg0: i32) -> (i32, i32) {
    %c0_i32 = arith.constant 0 : i32
    %c0_i32_0 = arith.constant 0 : i32
    %c0_i32_1 = arith.constant 0 : i32
    return %c0_i32, %c0_i32_0 : i32, i32
  }
  func.func @transform_2(%arg0: i32) -> (i32, i32) {
    %c0_i32 = arith.constant 0 : i32
    %c0_i32_0 = arith.constant 0 : i32
    %c0_i32_1 = arith.constant 0 : i32
    return %c0_i32, %c0_i32_0 : i32, i32
  }
  func.func @transform_3(%arg0: i32) -> (i32, i32) {
    %c0_i32 = arith.constant 0 : i32
    %c0_i32_0 = arith.constant 0 : i32
    %c0_i32_1 = arith.constant 0 : i32
    return %c0_i32, %c0_i32_0 : i32, i32
  }
  func.func @transform_4(%arg0: i32) -> (i32, i32) {
    %c0_i32 = arith.constant 0 : i32
    %c0_i32_0 = arith.constant 0 : i32
    %c0_i32_1 = arith.constant 0 : i32
    return %c0_i32, %c0_i32_0 : i32, i32
  }
  func.func @transform_5(%arg0: i32) -> (i32, i32) {
    %c0_i32 = arith.constant 0 : i32
    %c0_i32_0 = arith.constant 0 : i32
    %c0_i32_1 = arith.constant 0 : i32
    return %c0_i32, %c0_i32_0 : i32, i32
  }
  func.func @transform_6(%arg0: i32) -> (i32, i32) {
    %c0_i32 = arith.constant 0 : i32
    %c0_i32_0 = arith.constant 0 : i32
    %c0_i32_1 = arith.constant 0 : i32
    return %c0_i32, %c0_i32_0 : i32, i32
  }
  func.func @transform_7(%arg0: i32) -> (i32, i32) {
    %c0_i32 = arith.constant 0 : i32
    %c0_i32_0 = arith.constant 0 : i32
    return %arg0, %c0_i32 : i32, i32
  }
}

</mosaic_0001>

<llo_original>
// kernel: tpu_custom_call.1
$region0: #{tpu_custom_call.1}
  #allocation0 [shape = 'u32[]', space=smem, size = 0x4, offset = 0x4, fixed_abs, tag = 'smem constant byte address 0x4 - core index']
  #allocation1 [shape = 'u32[72,128]{1,0:T(1,128)}', space=vmem, size = 0x9000, scoped, tag = 'internal scratch']
  %s0 = inlined_call_operand.hbm [shape: bf16[128,3072], index: 0, kind: input, shape index: {}]
  %s1 = inlined_call_operand.hbm [shape: bf16[3072,512], index: 1, kind: input, shape index: {}]
  %s2 = inlined_call_operand.hbm [shape: f32[1,512], index: 2, kind: input, shape index: {}]
  %s3 = inlined_call_operand.hbm [shape: bf16[512,512], index: 3, kind: input, shape index: {}]
  %s4 = inlined_call_operand.hbm [shape: f32[1,512], index: 4, kind: input, shape index: {}]
  %s5 = inlined_call_operand.hbm [shape: bf16[512,128], index: 5, kind: input, shape index: {}]
  %s6 = inlined_call_operand.hbm [shape: f32[1,128], index: 6, kind: input, shape index: {}]
  %s7 = inlined_call_operand.hbm [shape: f32[128,128], index: 7, kind: output, shape index: {}]
  %s8 = sld [smem:[#allocation0]]
  $region66: #{tpu_custom_call.1} parent=0
    _
  %s10 = ssub.s32 1, %s8
  %s11 = scalar_select 0, %s10, %s8
  $region1: #{tpu_custom_call.1} parent=0
    #allocation2 [shape = 'u8[786432]{0}', space=vmem, size = 0xc0000, scoped, tag = 'input window, operand 0, single buffered']
    #allocation3 [shape = 's32[1]{0}', space=sflag, size = 0x4, scoped, tag = 'scoped memory for tpu_custom_call.1']
    #allocation4 [shape = 's32[1]{0}', space=sflag, size = 0x4, scoped, tag = 'scoped memory for tpu_custom_call.1']
    #allocation5 [shape = 'u8[3145728]{0}', space=vmem, size = 0x300000, scoped, tag = 'input window, operand 1, single buffered']
    #allocation6 [shape = 's32[1]{0}', space=sflag, size = 0x4, scoped, tag = 'scoped memory for tpu_custom_call.1']
    #allocation7 [shape = 'u8[2048]{0}', space=vmem, size = 0x800, scoped, tag = 'input window, operand 2, single buffered']
    #allocation8 [shape = 'u8[524288]{0}', space=vmem, size = 0x80000, scoped, tag = 'input window, operand 3, single buffered']
    #allocation9 [shape = 's32[1]{0}', space=sflag, size = 0x4, scoped, tag = 'scoped memory for tpu_custom_call.1']
    #allocation10 [shape = 'u8[2048]{0}', space=vmem, size = 0x800, scoped, tag = 'input window, operand 4, single buffered']
    #allocation11 [shape = 'u8[131072]{0}', space=vmem, size = 0x20000, scoped, tag = 'input window, operand 5, single buffered']
    #allocation12 [shape = 's32[1]{0}', space=sflag, size = 0x4, scoped, tag = 'scoped memory for tpu_custom_call.1']
    #allocation13 [shape = 'u8[512]{0}', space=vmem, size = 0x400, scoped, tag = 'input window, operand 6, single buffered']
    #allocation14 [shape = 'u8[65536]{0}', space=vmem, size = 0x10000, scoped, tag = 'output window, operand 0, single buffered']
    %12 = vsyncpa [#allocation3], 0
    %13 = vsyncpa [#allocation6], 0
    %14 = vsyncpa [#allocation9], 0
    %15 = vsyncpa [#allocation12], 0
    %16 = vsyncpa [#allocation4], 0
    // Predicated region
    $region2: #{tpu_custom_call.1} parent=1 // pred_check
      _
    $region3: #{tpu_custom_call.1} parent=1 // pred_check_branch
      %18 = sbr.rel (0) target = $region5
    $region4: #{tpu_custom_call.1} parent=1 // pred_region
      %20 = vsyncadd [#allocation3], 0
      %s21 = sshll.u32 %s0, 4
      %s22 = int_to_ptr.hbm [resolvable:$true] %s21
      %s23 = sshll.u32 [#allocation2], 4
      %s24 = int_to_ptr.vmem [resolvable:$true] %s23
      %29 = dma.hbm_to_vmem [thread:$0]  %s22, 24576, %s24, [#allocation3], 1536, 1536, 96
    $region5: #{tpu_custom_call.1} parent=1 // pred_fallthru
      _
    // Predicated region
    $region6: #{tpu_custom_call.1} parent=1 // pred_check
      _
    $region7: #{tpu_custom_call.1} parent=1 // pred_check_branch
      %31 = sbr.rel (0) target = $region9
    $region8: #{tpu_custom_call.1} parent=1 // pred_region
      %33 = vsyncadd [#allocation6], 0
      %s34 = sshll.u32 %s1, 4
      %s35 = int_to_ptr.hbm [resolvable:$true] %s34
      %s36 = sshll.u32 [#allocation5], 4
      %s37 = int_to_ptr.vmem [resolvable:$true] %s36
      %42 = dma.hbm_to_vmem [thread:$0]  %s35, 98304, %s37, [#allocation6], 256, 256, 16
    $region9: #{tpu_custom_call.1} parent=1 // pred_fallthru
      _
    // Predicated region
    $region10: #{tpu_custom_call.1} parent=1 // pred_check
      _
    $region11: #{tpu_custom_call.1} parent=1 // pred_check_branch
      %44 = sbr.rel (0) target = $region13
    $region12: #{tpu_custom_call.1} parent=1 // pred_region
      %46 = vsyncadd [#allocation6], 0
      %s48 = sshll.u32 %s2, 4
      %s49 = int_to_ptr.hbm [resolvable:$true] %s48
      %s50 = sshll.u32 [#allocation7], 4
      %s51 = int_to_ptr.vmem [resolvable:$true] %s50
      %53 = dma.hbm_to_vmem [thread:$0]  %s49, 64, %s51, [#allocation6]
    $region13: #{tpu_custom_call.1} parent=1 // pred_fallthru
      _
    // Predicated region
    $region14: #{tpu_custom_call.1} parent=1 // pred_check
      _
    $region15: #{tpu_custom_call.1} parent=1 // pred_check_branch
      %55 = sbr.rel (0) target = $region17
    $region16: #{tpu_custom_call.1} parent=1 // pred_region
      %57 = vsyncadd [#allocation9], 0
      %s58 = sshll.u32 %s3, 4
      %s59 = int_to_ptr.hbm [resolvable:$true] %s58
      %s60 = sshll.u32 [#allocation8], 4
      %s61 = int_to_ptr.vmem [resolvable:$true] %s60
      %66 = dma.hbm_to_vmem [thread:$0]  %s59, 16384, %s61, [#allocation9], 256, 256, 16
    $region17: #{tpu_custom_call.1} parent=1 // pred_fallthru
      _
    // Predicated region
    $region18: #{tpu_custom_call.1} parent=1 // pred_check
      _
    $region19: #{tpu_custom_call.1} parent=1 // pred_check_branch
      %68 = sbr.rel (0) target = $region21
    $region20: #{tpu_custom_call.1} parent=1 // pred_region
      %70 = vsyncadd [#allocation9], 0
      %s72 = sshll.u32 %s4, 4
      %s73 = int_to_ptr.hbm [resolvable:$true] %s72
      %s74 = sshll.u32 [#allocation10], 4
      %s75 = int_to_ptr.vmem [resolvable:$true] %s74
      %77 = dma.hbm_to_vmem [thread:$0]  %s73, 64, %s75, [#allocation9]
    $region21: #{tpu_custom_call.1} parent=1 // pred_fallthru
      _
    // Predicated region
    $region22: #{tpu_custom_call.1} parent=1 // pred_check
      _
    $region23: #{tpu_custom_call.1} parent=1 // pred_check_branch
      %79 = sbr.rel (0) target = $region25
    $region24: #{tpu_custom_call.1} parent=1 // pred_region
      %81 = vsyncadd [#allocation12], 0
      %s82 = sshll.u32 %s5, 4
      %s83 = int_to_ptr.hbm [resolvable:$true] %s82
      %s84 = sshll.u32 [#allocation11], 4
      %s85 = int_to_ptr.vmem [resolvable:$true] %s84
      %90 = dma.hbm_to_vmem [thread:$0]  %s83, 4096, %s85, [#allocation12], 64, 64, 4
    $region25: #{tpu_custom_call.1} parent=1 // pred_fallthru
      _
    // Predicated region
    $region26: #{tpu_custom_call.1} parent=1 // pred_check
      _
    $region27: #{tpu_custom_call.1} parent=1 // pred_check_branch
      %92 = sbr.rel (0) target = $region29
    $region28: #{tpu_custom_call.1} parent=1 // pred_region
      %94 = vsyncadd [#allocation12], 0
      %s96 = sshll.u32 %s6, 4
      %s97 = int_to_ptr.hbm [resolvable:$true] %s96
      %s98 = sshll.u32 [#allocation13], 4
      %s99 = int_to_ptr.vmem [resolvable:$true] %s98
      %101 = dma.hbm_to_vmem [thread:$0]  %s97, 16, %s99, [#allocation12]
    $region29: #{tpu_custom_call.1} parent=1 // pred_fallthru
      _
    // Predicated region
    $region30: #{tpu_custom_call.1} parent=1 // pred_check
      _
    $region31: #{tpu_custom_call.1} parent=1 // pred_check_branch
      %103 = sbr.rel (0) target = $region33
    $region32: #{tpu_custom_call.1} parent=1 // pred_region
      %105 = dma.done [#allocation3], 24576
    $region33: #{tpu_custom_call.1} parent=1 // pred_fallthru
      _
    // Predicated region
    $region34: #{tpu_custom_call.1} parent=1 // pred_check
      _
    $region35: #{tpu_custom_call.1} parent=1 // pred_check_branch
      %107 = sbr.rel (0) target = $region37
    $region36: #{tpu_custom_call.1} parent=1 // pred_region
      %109 = dma.done [#allocation6], 98304
    $region37: #{tpu_custom_call.1} parent=1 // pred_fallthru
      _
    // Predicated region
    $region38: #{tpu_custom_call.1} parent=1 // pred_check
      _
    $region39: #{tpu_custom_call.1} parent=1 // pred_check_branch
      %111 = sbr.rel (0) target = $region41
    $region40: #{tpu_custom_call.1} parent=1 // pred_region
      %113 = dma.done [#allocation6], 64
    $region41: #{tpu_custom_call.1} parent=1 // pred_fallthru
      _
    // Predicated region
    $region42: #{tpu_custom_call.1} parent=1 // pred_check
      _
    $region43: #{tpu_custom_call.1} parent=1 // pred_check_branch
      %115 = sbr.rel (0) target = $region45
    $region44: #{tpu_custom_call.1} parent=1 // pred_region
      %117 = dma.done [#allocation9], 16384
    $region45: #{tpu_custom_call.1} parent=1 // pred_fallthru
      _
    // Predicated region
    $region46: #{tpu_custom_call.1} parent=1 // pred_check
      _
    $region47: #{tpu_custom_call.1} parent=1 // pred_check_branch
      %119 = sbr.rel (0) target = $region49
    $region48: #{tpu_custom_call.1} parent=1 // pred_region
      %121 = dma.done [#allocation9], 64
    $region49: #{tpu_custom_call.1} parent=1 // pred_fallthru
      _
    // Predicated region
    $region50: #{tpu_custom_call.1} parent=1 // pred_check
      _
    $region51: #{tpu_custom_call.1} parent=1 // pred_check_branch
      %123 = sbr.rel (0) target = $region53
    $region52: #{tpu_custom_call.1} parent=1 // pred_region
      %125 = dma.done [#allocation12], 4096
    $region53: #{tpu_custom_call.1} parent=1 // pred_fallthru
      _
    // Predicated region
    $region54: #{tpu_custom_call.1} parent=1 // pred_check
      _
    $region55: #{tpu_custom_call.1} parent=1 // pred_check_branch
      %127 = sbr.rel (0) target = $region57
    $region56: #{tpu_custom_call.1} parent=1 // pred_region
      %129 = dma.done [#allocation12], 16
    $region57: #{tpu_custom_call.1} parent=1 // pred_fallthru
      _
    %v130 = vld [vmem:[#allocation2] sm:$0xff]
    %v131 = vld [vmem:[#allocation2 + $0x8] sm:$0xff]
    %v132 = vld [vmem:[#allocation2 + $0x10] sm:$0xff]
    %v133 = vld [vmem:[#allocation2 + $0x18] sm:$0xff]
    %v134 = vld [vmem:[#allocation2 + $0x20] sm:$0xff]
    %v135 = vld [vmem:[#allocation2 + $0x28] sm:$0xff]
    %v136 = vld [vmem:[#allocation2 + $0x30] sm:$0xff]
    %v137 = vld [vmem:[#allocation2 + $0x38] sm:$0xff]
    %v138 = vld [vmem:[#allocation2 + $0x40] sm:$0xff]
    %v139 = vld [vmem:[#allocation2 + $0x48] sm:$0xff]
    %v140 = vld [vmem:[#allocation2 + $0x50] sm:$0xff]
    %v141 = vld [vmem:[#allocation2 + $0x58] sm:$0xff]
    %v142 = vld [vmem:[#allocation2 + $0x60] sm:$0xff]
    %v143 = vld [vmem:[#allocation2 + $0x68] sm:$0xff]
    %v144 = vld [vmem:[#allocation2 + $0x70] sm:$0xff]
    %v145 = vld [vmem:[#allocation2 + $0x78] sm:$0xff]
    %v146 = vld [vmem:[#allocation2 + $0x80] sm:$0xff]
    %v147 = vld [vmem:[#allocation2 + $0x88] sm:$0xff]
    %v148 = vld [vmem:[#allocation2 + $0x90] sm:$0xff]
    %v149 = vld [vmem:[#allocation2 + $0x98] sm:$0xff]
    %v150 = vld [vmem:[#allocation2 + $0xa0] sm:$0xff]
    %v151 = vld [vmem:[#allocation2 + $0xa8] sm:$0xff]
    %v152 = vld [vmem:[#allocation2 + $0xb0] sm:$0xff]
    %v153 = vld [vmem:[#allocation2 + $0xb8] sm:$0xff]
    %v154 = vld [vmem:[#allocation2 + $0xc0] sm:$0xff]
    %v155 = vld [vmem:[#allocation2 + $0xc8] sm:$0xff]
    %v156 = vld [vmem:[#allocation2 + $0xd0] sm:$0xff]
    %v157 = vld [vmem:[#allocation2 + $0xd8] sm:$0xff]
    %v158 = vld [vmem:[#allocation2 + $0xe0] sm:$0xff]
    %v159 = vld [vmem:[#allocation2 + $0xe8] sm:$0xff]
    %v160 = vld [vmem:[#allocation2 + $0xf0] sm:$0xff]
    %v161 = vld [vmem:[#allocation2 + $0xf8] sm:$0xff]
    %v162 = vld [vmem:[#allocation2 + $0x100] sm:$0xff]
    %v163 = vld [vmem:[#allocation2 + $0x108] sm:$0xff]
    %v164 = vld [vmem:[#allocation2 + $0x110] sm:$0xff]
    %v165 = vld [vmem:[#allocation2 + $0x118] sm:$0xff]
    %v166 = vld [vmem:[#allocation2 + $0x120] sm:$0xff]
    %v167 = vld [vmem:[#allocation2 + $0x128] sm:$0xff]
    %v168 = vld [vmem:[#allocation2 + $0x130] sm:$0xff]
    %v169 = vld [vmem:[#allocation2 + $0x138] sm:$0xff]
    %v170 = vld [vmem:[#allocation2 + $0x140] sm:$0xff]
    %v171 = vld [vmem:[#allocation2 + $0x148] sm:$0xff]
    %v172 = vld [vmem:[#allocation2 + $0x150] sm:$0xff]
    %v173 = vld [vmem:[#allocation2 + $0x158] sm:$0xff]
    %v174 = vld [vmem:[#allocation2 + $0x160] sm:$0xff]
    %v175 = vld [vmem:[#allocation2 + $0x168] sm:$0xff]
    %v176 = vld [vmem:[#allocation2 + $0x170] sm:$0xff]
    %v177 = vld [vmem:[#allocation2 + $0x178] sm:$0xff]
    %v178 = vld [vmem:[#allocation2 + $0x180] sm:$0xff]
    %v179 = vld [vmem:[#allocation2 + $0x188] sm:$0xff]
    %v180 = vld [vmem:[#allocation2 + $0x190] sm:$0xff]
    %v181 = vld [vmem:[#allocation2 + $0x198] sm:$0xff]
    %v182 = vld [vmem:[#allocation2 + $0x1a0] sm:$0xff]
    %v183 = vld [vmem:[#allocation2 + $0x1a8] sm:$0xff]
    %v184 = vld [vmem:[#allocation2 + $0x1b0] sm:$0xff]
    %v185 = vld [vmem:[#allocation2 + $0x1b8] sm:$0xff]
    %v186 = vld [vmem:[#allocation2 + $0x1c0] sm:$0xff]
    %v187 = vld [vmem:[#allocation2 + $0x1c8] sm:$0xff]
    %v188 = vld [vmem:[#allocation2 + $0x1d0] sm:$0xff]
    %v189 = vld [vmem:[#allocation2 + $0x1d8] sm:$0xff]
    %v190 = vld [vmem:[#allocation2 + $0x1e0] sm:$0xff]
    %v191 = vld [vmem:[#allocation2 + $0x1e8] sm:$0xff]
    %v192 = vld [vmem:[#allocation2 + $0x1f0] sm:$0xff]
    %v193 = vld [vmem:[#allocation2 + $0x1f8] sm:$0xff]
    %v194 = vld [vmem:[#allocation2 + $0x200] sm:$0xff]
    %v195 = vld [vmem:[#allocation2 + $0x208] sm:$0xff]
    %v196 = vld [vmem:[#allocation2 + $0x210] sm:$0xff]
    %v197 = vld [vmem:[#allocation2 + $0x218] sm:$0xff]
    %v198 = vld [vmem:[#allocation2 + $0x220] sm:$0xff]
    %v199 = vld [vmem:[#allocation2 + $0x228] sm:$0xff]
    %v200 = vld [vmem:[#allocation2 + $0x230] sm:$0xff]
    %v201 = vld [vmem:[#allocation2 + $0x238] sm:$0xff]
    %v202 = vld [vmem:[#allocation2 + $0x240] sm:$0xff]
    %v203 = vld [vmem:[#allocation2 + $0x248] sm:$0xff]
    %v204 = vld [vmem:[#allocation2 + $0x250] sm:$0xff]
    %v205 = vld [vmem:[#allocation2 + $0x258] sm:$0xff]
    %v206 = vld [vmem:[#allocation2 + $0x260] sm:$0xff]
    %v207 = vld [vmem:[#allocation2 + $0x268] sm:$0xff]
    %v208 = vld [vmem:[#allocation2 + $0x270] sm:$0xff]
    %v209 = vld [vmem:[#allocation2 + $0x278] sm:$0xff]
    %v210 = vld [vmem:[#allocation2 + $0x280] sm:$0xff]
    %v211 = vld [vmem:[#allocation2 + $0x288] sm:$0xff]
    %v212 = vld [vmem:[#allocation2 + $0x290] sm:$0xff]
    %v213 = vld [vmem:[#allocation2 + $0x298] sm:$0xff]
    %v214 = vld [vmem:[#allocation2 + $0x2a0] sm:$0xff]
    %v215 = vld [vmem:[#allocation2 + $0x2a8] sm:$0xff]
    %v216 = vld [vmem:[#allocation2 + $0x2b0] sm:$0xff]
    %v217 = vld [vmem:[#allocation2 + $0x2b8] sm:$0xff]
    %v218 = vld [vmem:[#allocation2 + $0x2c0] sm:$0xff]
    %v219 = vld [vmem:[#allocation2 + $0x2c8] sm:$0xff]
    %v220 = vld [vmem:[#allocation2 + $0x2d0] sm:$0xff]
    %v221 = vld [vmem:[#allocation2 + $0x2d8] sm:$0xff]
    %v222 = vld [vmem:[#allocation2 + $0x2e0] sm:$0xff]
    %v223 = vld [vmem:[#allocation2 + $0x2e8] sm:$0xff]
    %v224 = vld [vmem:[#allocation2 + $0x2f0] sm:$0xff]
    %v225 = vld [vmem:[#allocation2 + $0x2f8] sm:$0xff]
    %v226 = vld [vmem:[#allocation2 + $0x300] sm:$0xff]
    %v227 = vld [vmem:[#allocation2 + $0x308] sm:$0xff]
    %v228 = vld [vmem:[#allocation2 + $0x310] sm:$0xff]
    %v229 = vld [vmem:[#allocation2 + $0x318] sm:$0xff]
    %v230 = vld [vmem:[#allocation2 + $0x320] sm:$0xff]
    %v231 = vld [vmem:[#allocation2 + $0x328] sm:$0xff]
    %v232 = vld [vmem:[#allocation2 + $0x330] sm:$0xff]
    %v233 = vld [vmem:[#allocation2 + $0x338] sm:$0xff]
    %v234 = vld [vmem:[#allocation2 + $0x340] sm:$0xff]
    %v235 = vld [vmem:[#allocation2 + $0x348] sm:$0xff]
    %v236 = vld [vmem:[#allocation2 + $0x350] sm:$0xff]
    %v237 = vld [vmem:[#allocation2 + $0x358] sm:$0xff]
    %v238 = vld [vmem:[#allocation2 + $0x360] sm:$0xff]
    %v239 = vld [vmem:[#allocation2 + $0x368] sm:$0xff]
    %v240 = vld [vmem:[#allocation2 + $0x370] sm:$0xff]
    %v241 = vld [vmem:[#allocation2 + $0x378] sm:$0xff]
    %v242 = vld [vmem:[#allocation2 + $0x380] sm:$0xff]
    %v243 = vld [vmem:[#allocation2 + $0x388] sm:$0xff]
    %v244 = vld [vmem:[#allocation2 + $0x390] sm:$0xff]
    %v245 = vld [vmem:[#allocation2 + $0x398] sm:$0xff]
    %v246 = vld [vmem:[#allocation2 + $0x3a0] sm:$0xff]
    %v247 = vld [vmem:[#allocation2 + $0x3a8] sm:$0xff]
    %v248 = vld [vmem:[#allocation2 + $0x3b0] sm:$0xff]
    %v249 = vld [vmem:[#allocation2 + $0x3b8] sm:$0xff]
    %v250 = vld [vmem:[#allocation2 + $0x3c0] sm:$0xff]
    %v251 = vld [vmem:[#allocation2 + $0x3c8] sm:$0xff]
    %v252 = vld [vmem:[#allocation2 + $0x3d0] sm:$0xff]
    %v253 = vld [vmem:[#allocation2 + $0x3d8] sm:$0xff]
    %v254 = vld [vmem:[#allocation2 + $0x3e0] sm:$0xff]
    %v255 = vld [vmem:[#allocation2 + $0x3e8] sm:$0xff]
    %v256 = vld [vmem:[#allocation2 + $0x3f0] sm:$0xff]
    %v257 = vld [vmem:[#allocation2 + $0x3f8] sm:$0xff]
    %v258 = vld [vmem:[#allocation2 + $0x400] sm:$0xff]
    %v259 = vld [vmem:[#allocation2 + $0x408] sm:$0xff]
    %v260 = vld [vmem:[#allocation2 + $0x410] sm:$0xff]
    %v261 = vld [vmem:[#allocation2 + $0x418] sm:$0xff]
    %v262 = vld [vmem:[#allocation2 + $0x420] sm:$0xff]
    %v263 = vld [vmem:[#allocation2 + $0x428] sm:$0xff]
    %v264 = vld [vmem:[#allocation2 + $0x430] sm:$0xff]
    %v265 = vld [vmem:[#allocation2 + $0x438] sm:$0xff]
    %v266 = vld [vmem:[#allocation2 + $0x440] sm:$0xff]
    %v267 = vld [vmem:[#allocation2 + $0x448] sm:$0xff]
    %v268 = vld [vmem:[#allocation2 + $0x450] sm:$0xff]
    %v269 = vld [vmem:[#allocation2 + $0x458] sm:$0xff]
    %v270 = vld [vmem:[#allocation2 + $0x460] sm:$0xff]
    %v271 = vld [vmem:[#allocation2 + $0x468] sm:$0xff]
    %v272 = vld [vmem:[#allocation2 + $0x470] sm:$0xff]
    %v273 = vld [vmem:[#allocation2 + $0x478] sm:$0xff]
    %v274 = vld [vmem:[#allocation2 + $0x480] sm:$0xff]
    %v275 = vld [vmem:[#allocation2 + $0x488] sm:$0xff]
    %v276 = vld [vmem:[#allocation2 + $0x490] sm:$0xff]
    %v277 = vld [vmem:[#allocation2 + $0x498] sm:$0xff]
    %v278 = vld [vmem:[#allocation2 + $0x4a0] sm:$0xff]
    %v279 = vld [vmem:[#allocation2 + $0x4a8] sm:$0xff]
    %v280 = vld [vmem:[#allocation2 + $0x4b0] sm:$0xff]
    %v281 = vld [vmem:[#allocation2 + $0x4b8] sm:$0xff]
    %v282 = vld [vmem:[#allocation2 + $0x4c0] sm:$0xff]
    %v283 = vld [vmem:[#allocation2 + $0x4c8] sm:$0xff]
    %v284 = vld [vmem:[#allocation2 + $0x4d0] sm:$0xff]
    %v285 = vld [vmem:[#allocation2 + $0x4d8] sm:$0xff]
    %v286 = vld [vmem:[#allocation2 + $0x4e0] sm:$0xff]
    %v287 = vld [vmem:[#allocation2 + $0x4e8] sm:$0xff]
    %v288 = vld [vmem:[#allocation2 + $0x4f0] sm:$0xff]
    %v289 = vld [vmem:[#allocation2 + $0x4f8] sm:$0xff]
    %v290 = vld [vmem:[#allocation2 + $0x500] sm:$0xff]
    %v291 = vld [vmem:[#allocation2 + $0x508] sm:$0xff]
    %v292 = vld [vmem:[#allocation2 + $0x510] sm:$0xff]
    %v293 = vld [vmem:[#allocation2 + $0x518] sm:$0xff]
    %v294 = vld [vmem:[#allocation2 + $0x520] sm:$0xff]
    %v295 = vld [vmem:[#allocation2 + $0x528] sm:$0xff]
    %v296 = vld [vmem:[#allocation2 + $0x530] sm:$0xff]
    %v297 = vld [vmem:[#allocation2 + $0x538] sm:$0xff]
    %v298 = vld [vmem:[#allocation2 + $0x540] sm:$0xff]
    %v299 = vld [vmem:[#allocation2 + $0x548] sm:$0xff]
    %v300 = vld [vmem:[#allocation2 + $0x550] sm:$0xff]
    %v301 = vld [vmem:[#allocation2 + $0x558] sm:$0xff]
    %v302 = vld [vmem:[#allocation2 + $0x560] sm:$0xff]
    %v303 = vld [vmem:[#allocation2 + $0x568] sm:$0xff]
    %v304 = vld [vmem:[#allocation2 + $0x570] sm:$0xff]
    %v305 = vld [vmem:[#allocation2 + $0x578] sm:$0xff]
    %v306 = vld [vmem:[#allocation2 + $0x580] sm:$0xff]
    %v307 = vld [vmem:[#allocation2 + $0x588] sm:$0xff]
    %v308 = vld [vmem:[#allocation2 + $0x590] sm:$0xff]
    %v309 = vld [vmem:[#allocation2 + $0x598] sm:$0xff]
    %v310 = vld [vmem:[#allocation2 + $0x5a0] sm:$0xff]
    %v311 = vld [vmem:[#allocation2 + $0x5a8] sm:$0xff]
    %v312 = vld [vmem:[#allocation2 + $0x5b0] sm:$0xff]
    %v313 = vld [vmem:[#allocation2 + $0x5b8] sm:$0xff]
    %v314 = vld [vmem:[#allocation2 + $0x5c0] sm:$0xff]
    %v315 = vld [vmem:[#allocation2 + $0x5c8] sm:$0xff]
    %v316 = vld [vmem:[#allocation2 + $0x5d0] sm:$0xff]
    %v317 = vld [vmem:[#allocation2 + $0x5d8] sm:$0xff]
    %v318 = vld [vmem:[#allocation2 + $0x5e0] sm:$0xff]
    %v319 = vld [vmem:[#allocation2 + $0x5e8] sm:$0xff]
    %v320 = vld [vmem:[#allocation2 + $0x5f0] sm:$0xff]
    %v321 = vld [vmem:[#allocation2 + $0x5f8] sm:$0xff]
    %v322 = vld [vmem:[#allocation5] sm:$0xff]
    %v323 = vld [vmem:[#allocation5 + $0x8] sm:$0xff]
    %v324 = vld [vmem:[#allocation5 + $0x10] sm:$0xff]
    %v325 = vld [vmem:[#allocation5 + $0x18] sm:$0xff]
    %v326 = vld [vmem:[#allocation5 + $0x20] sm:$0xff]
    %v327 = vld [vmem:[#allocation5 + $0x28] sm:$0xff]
    %v328 = vld [vmem:[#allocation5 + $0x30] sm:$0xff]
    %v329 = vld [vmem:[#allocation5 + $0x38] sm:$0xff]
    %v330 = vld [vmem:[#allocation5 + $0x40] sm:$0xff]
    %v331 = vld [vmem:[#allocation5 + $0x48] sm:$0xff]
    %v332 = vld [vmem:[#allocation5 + $0x50] sm:$0xff]
    %v333 = vld [vmem:[#allocation5 + $0x58] sm:$0xff]
    %v334 = vld [vmem:[#allocation5 + $0x60] sm:$0xff]
    %v335 = vld [vmem:[#allocation5 + $0x68] sm:$0xff]
    %v336 = vld [vmem:[#allocation5 + $0x70] sm:$0xff]
    %v337 = vld [vmem:[#allocation5 + $0x78] sm:$0xff]
    %v338 = vld [vmem:[#allocation5 + $0x80] sm:$0xff]
    %v339 = vld [vmem:[#allocation5 + $0x88] sm:$0xff]
    %v340 = vld [vmem:[#allocation5 + $0x90] sm:$0xff]
    %v341 = vld [vmem:[#allocation5 + $0x98] sm:$0xff]
    %v342 = vld [vmem:[#allocation5 + $0xa0] sm:$0xff]
    %v343 = vld [vmem:[#allocation5 + $0xa8] sm:$0xff]
    %v344 = vld [vmem:[#allocation5 + $0xb0] sm:$0xff]
    %v345 = vld [vmem:[#allocation5 + $0xb8] sm:$0xff]
    %v346 = vld [vmem:[#allocation5 + $0xc0] sm:$0xff]
    %v347 = vld [vmem:[#allocation5 + $0xc8] sm:$0xff]
    %v348 = vld [vmem:[#allocation5 + $0xd0] sm:$0xff]
    %v349 = vld [vmem:[#allocation5 + $0xd8] sm:$0xff]
    %v350 = vld [vmem:[#allocation5 + $0xe0] sm:$0xff]
    %v351 = vld [vmem:[#allocation5 + $0xe8] sm:$0xff]
    %v352 = vld [vmem:[#allocation5 + $0xf0] sm:$0xff]
    %v353 = vld [vmem:[#allocation5 + $0xf8] sm:$0xff]
    %v354 = vld [vmem:[#allocation5 + $0x100] sm:$0xff]
    %v355 = vld [vmem:[#allocation5 + $0x108] sm:$0xff]
    %v356 = vld [vmem:[#allocation5 + $0x110] sm:$0xff]
    %v357 = vld [vmem:[#allocation5 + $0x118] sm:$0xff]
    %v358 = vld [vmem:[#allocation5 + $0x120] sm:$0xff]
    %v359 = vld [vmem:[#allocation5 + $0x128] sm:$0xff]
    %v360 = vld [vmem:[#allocation5 + $0x130] sm:$0xff]
    %v361 = vld [vmem:[#allocation5 + $0x138] sm:$0xff]
    %v362 = vld [vmem:[#allocation5 + $0x140] sm:$0xff]
    %v363 = vld [vmem:[#allocation5 + $0x148] sm:$0xff]
    %v364 = vld [vmem:[#allocation5 + $0x150] sm:$0xff]
    %v365 = vld [vmem:[#allocation5 + $0x158] sm:$0xff]
    %v366 = vld [vmem:[#allocation5 + $0x160] sm:$0xff]
    %v367 = vld [vmem:[#allocation5 + $0x168] sm:$0xff]
    %v368 = vld [vmem:[#allocation5 + $0x170] sm:$0xff]
    %v369 = vld [vmem:[#allocation5 + $0x178] sm:$0xff]
    %v370 = vld [vmem:[#allocation5 + $0x180] sm:$0xff]
    %v371 = vld [vmem:[#allocation5 + $0x188] sm:$0xff]
    %v372 = vld [vmem:[#allocation5 + $0x190] sm:$0xff]
    %v373 = vld [vmem:[#allocation5 + $0x198] sm:$0xff]
    %v374 = vld [vmem:[#allocation5 + $0x1a0] sm:$0xff]
    %v375 = vld [vmem:[#allocation5 + $0x1a8] sm:$0xff]
    %v376 = vld [vmem:[#allocation5 + $0x1b0] sm:$0xff]
    %v377 = vld [vmem:[#allocation5 + $0x1b8] sm:$0xff]
    %v378 = vld [vmem:[#allocation5 + $0x1c0] sm:$0xff]
    %v379 = vld [vmem:[#allocation5 + $0x1c8] sm:$0xff]
    %v380 = vld [vmem:[#allocation5 + $0x1d0] sm:$0xff]
    %v381 = vld [vmem:[#allocation5 + $0x1d8] sm:$0xff]
    %v382 = vld [vmem:[#allocation5 + $0x1e0] sm:$0xff]
    %v383 = vld [vmem:[#allocation5 + $0x1e8] sm:$0xff]
    %v384 = vld [vmem:[#allocation5 + $0x1f0] sm:$0xff]
    %v385 = vld [vmem:[#allocation5 + $0x1f8] sm:$0xff]
    %v386 = vld [vmem:[#allocation5 + $0x200] sm:$0xff]
    %v387 = vld [vmem:[#allocation5 + $0x208] sm:$0xff]
    %v388 = vld [vmem:[#allocation5 + $0x210] sm:$0xff]
    %v389 = vld [vmem:[#allocation5 + $0x218] sm:$0xff]
    %v390 = vld [vmem:[#allocation5 + $0x220] sm:$0xff]
    %v391 = vld [vmem:[#allocation5 + $0x228] sm:$0xff]
    %v392 = vld [vmem:[#allocation5 + $0x230] sm:$0xff]
    %v393 = vld [vmem:[#allocation5 + $0x238] sm:$0xff]
    %v394 = vld [vmem:[#allocation5 + $0x240] sm:$0xff]
    %v395 = vld [vmem:[#allocation5 + $0x248] sm:$0xff]
    %v396 = vld [vmem:[#allocation5 + $0x250] sm:$0xff]
    %v397 = vld [vmem:[#allocation5 + $0x258] sm:$0xff]
    %v398 = vld [vmem:[#allocation5 + $0x260] sm:$0xff]
    %v399 = vld [vmem:[#allocation5 + $0x268] sm:$0xff]
    %v400 = vld [vmem:[#allocation5 + $0x270] sm:$0xff]
    %v401 = vld [vmem:[#allocation5 + $0x278] sm:$0xff]
    %v402 = vld [vmem:[#allocation5 + $0x280] sm:$0xff]
    %v403 = vld [vmem:[#allocation5 + $0x288] sm:$0xff]
    %v404 = vld [vmem:[#allocation5 + $0x290] sm:$0xff]
    %v405 = vld [vmem:[#allocation5 + $0x298] sm:$0xff]
    %v406 = vld [vmem:[#allocation5 + $0x2a0] sm:$0xff]
    %v407 = vld [vmem:[#allocation5 + $0x2a8] sm:$0xff]
    %v408 = vld [vmem:[#allocation5 + $0x2b0] sm:$0xff]
    %v409 = vld [vmem:[#allocation5 + $0x2b8] sm:$0xff]
    %v410 = vld [vmem:[#allocation5 + $0x2c0] sm:$0xff]
    %v411 = vld [vmem:[#allocation5 + $0x2c8] sm:$0xff]
    %v412 = vld [vmem:[#allocation5 + $0x2d0] sm:$0xff]
    %v413 = vld [vmem:[#allocation5 + $0x2d8] sm:$0xff]
    %v414 = vld [vmem:[#allocation5 + $0x2e0] sm:$0xff]
    %v415 = vld [vmem:[#allocation5 + $0x2e8] sm:$0xff]
    %v416 = vld [vmem:[#allocation5 + $0x2f0] sm:$0xff]
    %v417 = vld [vmem:[#allocation5 + $0x2f8] sm:$0xff]
    %v418 = vld [vmem:[#allocation5 + $0x300] sm:$0xff]
    %v419 = vld [vmem:[#allocation5 + $0x308] sm:$0xff]
    %v420 = vld [vmem:[#allocation5 + $0x310] sm:$0xff]
    %v421 = vld [vmem:[#allocation5 + $0x318] sm:$0xff]
    %v422 = vld [vmem:[#allocation5 + $0x320] sm:$0xff]
    %v423 = vld [vmem:[#allocation5 + $0x328] sm:$0xff]
    %v424 = vld [vmem:[#allocation5 + $0x330] sm:$0xff]
    %v425 = vld [vmem:[#allocation5 + $0x338] sm:$0xff]
    %v426 = vld [vmem:[#allocation5 + $0x340] sm:$0xff]
    %v427 = vld [vmem:[#allocation5 + $0x348] sm:$0xff]
    %v428 = vld [vmem:[#allocation5 + $0x350] sm:$0xff]
    %v429 = vld [vmem:[#allocation5 + $0x358] sm:$0xff]
    %v430 = vld [vmem:[#allocation5 + $0x360] sm:$0xff]
    %v431 = vld [vmem:[#allocation5 + $0x368] sm:$0xff]
    %v432 = vld [vmem:[#allocation5 + $0x370] sm:$0xff]
    %v433 = vld [vmem:[#allocation5 + $0x378] sm:$0xff]
    %v434 = vld [vmem:[#allocation5 + $0x380] sm:$0xff]
    %v435 = vld [vmem:[#allocation5 + $0x388] sm:$0xff]
    %v436 = vld [vmem:[#allocation5 + $0x390] sm:$0xff]
    %v437 = vld [vmem:[#allocation5 + $0x398] sm:$0xff]
    %v438 = vld [vmem:[#allocation5 + $0x3a0] sm:$0xff]
    %v439 = vld [vmem:[#allocation5 + $0x3a8] sm:$0xff]
    %v440 = vld [vmem:[#allocation5 + $0x3b0] sm:$0xff]
    %v441 = vld [vmem:[#allocation5 + $0x3b8] sm:$0xff]
    %v442 = vld [vmem:[#allocation5 + $0x3c0] sm:$0xff]
    %v443 = vld [vmem:[#allocation5 + $0x3c8] sm:$0xff]
    %v444 = vld [vmem:[#allocation5 + $0x3d0] sm:$0xff]
    %v445 = vld [vmem:[#allocation5 + $0x3d8] sm:$0xff]
    %v446 = vld [vmem:[#allocation5 + $0x3e0] sm:$0xff]
    %v447 = vld [vmem:[#allocation5 + $0x3e8] sm:$0xff]
    %v448 = vld [vmem:[#allocation5 + $0x3f0] sm:$0xff]
    %v449 = vld [vmem:[#allocation5 + $0x3f8] sm:$0xff]
    %v450 = vld [vmem:[#allocation5 + $0x400] sm:$0xff]
    %v451 = vld [vmem:[#allocation5 + $0x408] sm:$0xff]
    %v452 = vld [vmem:[#allocation5 + $0x410] sm:$0xff]
    %v453 = vld [vmem:[#allocation5 + $0x418] sm:$0xff]
    %v454 = vld [vmem:[#allocation5 + $0x420] sm:$0xff]
    %v455 = vld [vmem:[#allocation5 + $0x428] sm:$0xff]
    %v456 = vld [vmem:[#allocation5 + $0x430] sm:$0xff]
    %v457 = vld [vmem:[#allocation5 + $0x438] sm:$0xff]
    %v458 = vld [vmem:[#allocation5 + $0x440] sm:$0xff]
    %v459 = vld [vmem:[#allocation5 + $0x448] sm:$0xff]
    %v460 = vld [vmem:[#allocation5 + $0x450] sm:$0xff]
    %v461 = vld [vmem:[#allocation5 + $0x458] sm:$0xff]
    %v462 = vld [vmem:[#allocation5 + $0x460] sm:$0xff]
    %v463 = vld [vmem:[#allocation5 + $0x468] sm:$0xff]
    %v464 = vld [vmem:[#allocation5 + $0x470] sm:$0xff]
    %v465 = vld [vmem:[#allocation5 + $0x478] sm:$0xff]
    %v466 = vld [vmem:[#allocation5 + $0x480] sm:$0xff]
    %v467 = vld [vmem:[#allocation5 + $0x488] sm:$0xff]
    %v468 = vld [vmem:[#allocation5 + $0x490] sm:$0xff]
    %v469 = vld [vmem:[#allocation5 + $0x498] sm:$0xff]
    %v470 = vld [vmem:[#allocation5 + $0x4a0] sm:$0xff]
    %v471 = vld [vmem:[#allocation5 + $0x4a8] sm:$0xff]
    %v472 = vld [vmem:[#allocation5 + $0x4b0] sm:$0xff]
    %v473 = vld [vmem:[#allocation5 + $0x4b8] sm:$0xff]
    %v474 = vld [vmem:[#allocation5 + $0x4c0] sm:$0xff]
    %v475 = vld [vmem:[#allocation5 + $0x4c8] sm:$0xff]
    %v476 = vld [vmem:[#allocation5 + $0x4d0] sm:$0xff]
    %v477 = vld [vmem:[#allocation5 + $0x4d8] sm:$0xff]
    %v478 = vld [vmem:[#allocation5 + $0x4e0] sm:$0xff]
    %v479 = vld [vmem:[#allocation5 + $0x4e8] sm:$0xff]
    %v480 = vld [vmem:[#allocation5 + $0x4f0] sm:$0xff]
    %v481 = vld [vmem:[#allocation5 + $0x4f8] sm:$0xff]
    %v482 = vld [vmem:[#allocation5 + $0x500] sm:$0xff]
    %v483 = vld [vmem:[#allocation5 + $0x508] sm:$0xff]
    %v484 = vld [vmem:[#allocation5 + $0x510] sm:$0xff]
    %v485 = vld [vmem:[#allocation5 + $0x518] sm:$0xff]
    %v486 = vld [vmem:[#allocation5 + $0x520] sm:$0xff]
    %v487 = vld [vmem:[#allocation5 + $0x528] sm:$0xff]
    %v488 = vld [vmem:[#allocation5 + $0x530] sm:$0xff]
    %v489 = vld [vmem:[#allocation5 + $0x538] sm:$0xff]
    %v490 = vld [vmem:[#allocation5 + $0x540] sm:$0xff]
    %v491 = vld [vmem:[#allocation5 + $0x548] sm:$0xff]
    %v492 = vld [vmem:[#allocation5 + $0x550] sm:$0xff]
    %v493 = vld [vmem:[#allocation5 + $0x558] sm:$0xff]
    %v494 = vld [vmem:[#allocation5 + $0x560] sm:$0xff]
    %v495 = vld [vmem:[#allocation5 + $0x568] sm:$0xff]
    %v496 = vld [vmem:[#allocation5 + $0x570] sm:$0xff]
    %v497 = vld [vmem:[#allocation5 + $0x578] sm:$0xff]
    %v498 = vld [vmem:[#allocation5 + $0x580] sm:$0xff]
    %v499 = vld [vmem:[#allocation5 + $0x588] sm:$0xff]
    %v500 = vld [vmem:[#allocation5 + $0x590] sm:$0xff]
    %v501 = vld [vmem:[#allocation5 + $0x598] sm:$0xff]
    %v502 = vld [vmem:[#allocation5 + $0x5a0] sm:$0xff]
    %v503 = vld [vmem:[#allocation5 + $0x5a8] sm:$0xff]
    %v504 = vld [vmem:[#allocation5 + $0x5b0] sm:$0xff]
    %v505 = vld [vmem:[#allocation5 + $0x5b8] sm:$0xff]
    %v506 = vld [vmem:[#allocation5 + $0x5c0] sm:$0xff]
    %v507 = vld [vmem:[#allocation5 + $0x5c8] sm:$0xff]
    %v508 = vld [vmem:[#allocation5 + $0x5d0] sm:$0xff]
    %v509 = vld [vmem:[#allocation5 + $0x5d8] sm:$0xff]
    %v510 = vld [vmem:[#allocation5 + $0x5e0] sm:$0xff]
    %v511 = vld [vmem:[#allocation5 + $0x5e8] sm:$0xff]
    %v512 = vld [vmem:[#allocation5 + $0x5f0] sm:$0xff]
    %v513 = vld [vmem:[#allocation5 + $0x5f8] sm:$0xff]
    %v514 = vld [vmem:[#allocation5 + $0x600] sm:$0xff]
    %v515 = vld [vmem:[#allocation5 + $0x608] sm:$0xff]
    %v516 = vld [vmem:[#allocation5 + $0x610] sm:$0xff]
    %v517 = vld [vmem:[#allocation5 + $0x618] sm:$0xff]
    %v518 = vld [vmem:[#allocation5 + $0x620] sm:$0xff]
    %v519 = vld [vmem:[#allocation5 + $0x628] sm:$0xff]
    %v520 = vld [vmem:[#allocation5 + $0x630] sm:$0xff]
    %v521 = vld [vmem:[#allocation5 + $0x638] sm:$0xff]
    %v522 = vld [vmem:[#allocation5 + $0x640] sm:$0xff]
    %v523 = vld [vmem:[#allocation5 + $0x648] sm:$0xff]
    %v524 = vld [vmem:[#allocation5 + $0x650] sm:$0xff]
    %v525 = vld [vmem:[#allocation5 + $0x658] sm:$0xff]
    %v526 = vld [vmem:[#allocation5 + $0x660] sm:$0xff]
    %v527 = vld [vmem:[#allocation5 + $0x668] sm:$0xff]
    %v528 = vld [vmem:[#allocation5 + $0x670] sm:$0xff]
    %v529 = vld [vmem:[#allocation5 + $0x678] sm:$0xff]
    %v530 = vld [vmem:[#allocation5 + $0x680] sm:$0xff]
    %v531 = vld [vmem:[#allocation5 + $0x688] sm:$0xff]
    %v532 = vld [vmem:[#allocation5 + $0x690] sm:$0xff]
    %v533 = vld [vmem:[#allocation5 + $0x698] sm:$0xff]
    %v534 = vld [vmem:[#allocation5 + $0x6a0] sm:$0xff]
    %v535 = vld [vmem:[#allocation5 + $0x6a8] sm:$0xff]
    %v536 = vld [vmem:[#allocation5 + $0x6b0] sm:$0xff]
    %v537 = vld [vmem:[#allocation5 + $0x6b8] sm:$0xff]
    %v538 = vld [vmem:[#allocation5 + $0x6c0] sm:$0xff]
    %v539 = vld [vmem:[#allocation5 + $0x6c8] sm:$0xff]
    %v540 = vld [vmem:[#allocation5 + $0x6d0] sm:$0xff]
    %v541 = vld [vmem:[#allocation5 + $0x6d8] sm:$0xff]
    %v542 = vld [vmem:[#allocation5 + $0x6e0] sm:$0xff]
    %v543 = vld [vmem:[#allocation5 + $0x6e8] sm:$0xff]
    %v544 = vld [vmem:[#allocation5 + $0x6f0] sm:$0xff]
    %v545 = vld [vmem:[#allocation5 + $0x6f8] sm:$0xff]
    %v546 = vld [vmem:[#allocation5 + $0x700] sm:$0xff]
    %v547 = vld [vmem:[#allocation5 + $0x708] sm:$0xff]
    %v548 = vld [vmem:[#allocation5 + $0x710] sm:$0xff]
    %v549 = vld [vmem:[#allocation5 + $0x718] sm:$0xff]
    %v550 = vld [vmem:[#allocation5 + $0x720] sm:$0xff]
    %v551 = vld [vmem:[#allocation5 + $0x728] sm:$0xff]
    %v552 = vld [vmem:[#allocation5 + $0x730] sm:$0xff]
    %v553 = vld [vmem:[#allocation5 + $0x738] sm:$0xff]
    %v554 = vld [vmem:[#allocation5 + $0x740] sm:$0xff]
    %v555 = vld [vmem:[#allocation5 + $0x748] sm:$0xff]
    %v556 = vld [vmem:[#allocation5 + $0x750] sm:$0xff]
    %v557 = vld [vmem:[#allocation5 + $0x758] sm:$0xff]
    %v558 = vld [vmem:[#allocation5 + $0x760] sm:$0xff]
    %v559 = vld [vmem:[#allocation5 + $0x768] sm:$0xff]
    %v560 = vld [vmem:[#allocation5 + $0x770] sm:$0xff]
    %v561 = vld [vmem:[#allocation5 + $0x778] sm:$0xff]
    %v562 = vld [vmem:[#allocation5 + $0x780] sm:$0xff]
    %v563 = vld [vmem:[#allocation5 + $0x788] sm:$0xff]
    %v564 = vld [vmem:[#allocation5 + $0x790] sm:$0xff]
    %v565 = vld [vmem:[#allocation5 + $0x798] sm:$0xff]
    %v566 = vld [vmem:[#allocation5 + $0x7a0] sm:$0xff]
    %v567 = vld [vmem:[#allocation5 + $0x7a8] sm:$0xff]
    %v568 = vld [vmem:[#allocation5 + $0x7b0] sm:$0xff]
    %v569 = vld [vmem:[#allocation5 + $0x7b8] sm:$0xff]
    %v570 = vld [vmem:[#allocation5 + $0x7c0] sm:$0xff]
    %v571 = vld [vmem:[#allocation5 + $0x7c8] sm:$0xff]
    %v572 = vld [vmem:[#allocation5 + $0x7d0] sm:$0xff]
    %v573 = vld [vmem:[#allocation5 + $0x7d8] sm:$0xff]
    %v574 = vld [vmem:[#allocation5 + $0x7e0] sm:$0xff]
    %v575 = vld [vmem:[#allocation5 + $0x7e8] sm:$0xff]
    %v576 = vld [vmem:[#allocation5 + $0x7f0] sm:$0xff]
    %v577 = vld [vmem:[#allocation5 + $0x7f8] sm:$0xff]
    %v578 = vld [vmem:[#allocation5 + $0x800] sm:$0xff]
    %v579 = vld [vmem:[#allocation5 + $0x808] sm:$0xff]
    %v580 = vld [vmem:[#allocation5 + $0x810] sm:$0xff]
    %v581 = vld [vmem:[#allocation5 + $0x818] sm:$0xff]
    %v582 = vld [vmem:[#allocation5 + $0x820] sm:$0xff]
    %v583 = vld [vmem:[#allocation5 + $0x828] sm:$0xff]
    %v584 = vld [vmem:[#allocation5 + $0x830] sm:$0xff]
    %v585 = vld [vmem:[#allocation5 + $0x838] sm:$0xff]
    %v586 = vld [vmem:[#allocation5 + $0x840] sm:$0xff]
    %v587 = vld [vmem:[#allocation5 + $0x848] sm:$0xff]
    %v588 = vld [vmem:[#allocation5 + $0x850] sm:$0xff]
    %v589 = vld [vmem:[#allocation5 + $0x858] sm:$0xff]
    %v590 = vld [vmem:[#allocation5 + $0x860] sm:$0xff]
    %v591 = vld [vmem:[#allocation5 + $0x868] sm:$0xff]
    %v592 = vld [vmem:[#allocation5 + $0x870] sm:$0xff]
    %v593 = vld [vmem:[#allocation5 + $0x878] sm:$0xff]
    %v594 = vld [vmem:[#allocation5 + $0x880] sm:$0xff]
    %v595 = vld [vmem:[#allocation5 + $0x888] sm:$0xff]
    %v596 = vld [vmem:[#allocation5 + $0x890] sm:$0xff]
    %v597 = vld [vmem:[#allocation5 + $0x898] sm:$0xff]
    %v598 = vld [vmem:[#allocation5 + $0x8a0] sm:$0xff]
    %v599 = vld [vmem:[#allocation5 + $0x8a8] sm:$0xff]
    %v600 = vld [vmem:[#allocation5 + $0x8b0] sm:$0xff]
    %v601 = vld [vmem:[#allocation5 + $0x8b8] sm:$0xff]
    %v602 = vld [vmem:[#allocation5 + $0x8c0] sm:$0xff]
    %v603 = vld [vmem:[#allocation5 + $0x8c8] sm:$0xff]
    %v604 = vld [vmem:[#allocation5 + $0x8d0] sm:$0xff]
    %v605 = vld [vmem:[#allocation5 + $0x8d8] sm:$0xff]
    %v606 = vld [vmem:[#allocation5 + $0x8e0] sm:$0xff]
    %v607 = vld [vmem:[#allocation5 + $0x8e8] sm:$0xff]
    %v608 = vld [vmem:[#allocation5 + $0x8f0] sm:$0xff]
    %v609 = vld [vmem:[#allocation5 + $0x8f8] sm:$0xff]
    %v610 = vld [vmem:[#allocation5 + $0x900] sm:$0xff]
    %v611 = vld [vmem:[#allocation5 + $0x908] sm:$0xff]
    %v612 = vld [vmem:[#allocation5 + $0x910] sm:$0xff]
    %v613 = vld [vmem:[#allocation5 + $0x918] sm:$0xff]
    %v614 = vld [vmem:[#allocation5 + $0x920] sm:$0xff]
    %v615 = vld [vmem:[#allocation5 + $0x928] sm:$0xff]
    %v616 = vld [vmem:[#allocation5 + $0x930] sm:$0xff]
    %v617 = vld [vmem:[#allocation5 + $0x938] sm:$0xff]
    %v618 = vld [vmem:[#allocation5 + $0x940] sm:$0xff]
    %v619 = vld [vmem:[#allocation5 + $0x948] sm:$0xff]
    %v620 = vld [vmem:[#allocation5 + $0x950] sm:$0xff]
    %v621 = vld [vmem:[#allocation5 + $0x958] sm:$0xff]
    %v622 = vld [vmem:[#allocation5 + $0x960] sm:$0xff]
    %v623 = vld [vmem:[#allocation5 + $0x968] sm:$0xff]
    %v624 = vld [vmem:[#allocation5 + $0x970] sm:$0xff]
    %v625 = vld [vmem:[#allocation5 + $0x978] sm:$0xff]
    %v626 = vld [vmem:[#allocation5 + $0x980] sm:$0xff]
    %v627 = vld [vmem:[#allocation5 + $0x988] sm:$0xff]
    %v628 = vld [vmem:[#allocation5 + $0x990] sm:$0xff]
    %v629 = vld [vmem:[#allocation5 + $0x998] sm:$0xff]
    %v630 = vld [vmem:[#allocation5 + $0x9a0] sm:$0xff]
    %v631 = vld [vmem:[#allocation5 + $0x9a8] sm:$0xff]
    %v632 = vld [vmem:[#allocation5 + $0x9b0] sm:$0xff]
    %v633 = vld [vmem:[#allocation5 + $0x9b8] sm:$0xff]
    %v634 = vld [vmem:[#allocation5 + $0x9c0] sm:$0xff]
    %v635 = vld [vmem:[#allocation5 + $0x9c8] sm:$0xff]
    %v636 = vld [vmem:[#allocation5 + $0x9d0] sm:$0xff]
    %v637 = vld [vmem:[#allocation5 + $0x9d8] sm:$0xff]
    %v638 = vld [vmem:[#allocation5 + $0x9e0] sm:$0xff]
    %v639 = vld [vmem:[#allocation5 + $0x9e8] sm:$0xff]
    %v640 = vld [vmem:[#allocation5 + $0x9f0] sm:$0xff]
    %v641 = vld [vmem:[#allocation5 + $0x9f8] sm:$0xff]
    %v642 = vld [vmem:[#allocation5 + $0xa00] sm:$0xff]
    %v643 = vld [vmem:[#allocation5 + $0xa08] sm:$0xff]
    %v644 = vld [vmem:[#allocation5 + $0xa10] sm:$0xff]
    %v645 = vld [vmem:[#allocation5 + $0xa18] sm:$0xff]
    %v646 = vld [vmem:[#allocation5 + $0xa20] sm:$0xff]
    %v647 = vld [vmem:[#allocation5 + $0xa28] sm:$0xff]
    %v648 = vld [vmem:[#allocation5 + $0xa30] sm:$0xff]
    %v649 = vld [vmem:[#allocation5 + $0xa38] sm:$0xff]
    %v650 = vld [vmem:[#allocation5 + $0xa40] sm:$0xff]
    %v651 = vld [vmem:[#allocation5 + $0xa48] sm:$0xff]
    %v652 = vld [vmem:[#allocation5 + $0xa50] sm:$0xff]
    %v653 = vld [vmem:[#allocation5 + $0xa58] sm:$0xff]
    %v654 = vld [vmem:[#allocation5 + $0xa60] sm:$0xff]
    %v655 = vld [vmem:[#allocation5 + $0xa68] sm:$0xff]
    %v656 = vld [vmem:[#allocation5 + $0xa70] sm:$0xff]
    %v657 = vld [vmem:[#allocation5 + $0xa78] sm:$0xff]
    %v658 = vld [vmem:[#allocation5 + $0xa80] sm:$0xff]
    %v659 = vld [vmem:[#allocation5 + $0xa88] sm:$0xff]
    %v660 = vld [vmem:[#allocation5 + $0xa90] sm:$0xff]
    %v661 = vld [vmem:[#allocation5 + $0xa98] sm:$0xff]
    %v662 = vld [vmem:[#allocation5 + $0xaa0] sm:$0xff]
    %v663 = vld [vmem:[#allocation5 + $0xaa8] sm:$0xff]
    %v664 = vld [vmem:[#allocation5 + $0xab0] sm:$0xff]
    %v665 = vld [vmem:[#allocation5 + $0xab8] sm:$0xff]
    %v666 = vld [vmem:[#allocation5 + $0xac0] sm:$0xff]
    %v667 = vld [vmem:[#allocation5 + $0xac8] sm:$0xff]
    %v668 = vld [vmem:[#allocation5 + $0xad0] sm:$0xff]
    %v669 = vld [vmem:[#allocation5 + $0xad8] sm:$0xff]
    %v670 = vld [vmem:[#allocation5 + $0xae0] sm:$0xff]
    %v671 = vld [vmem:[#allocation5 + $0xae8] sm:$0xff]
    %v672 = vld [vmem:[#allocation5 + $0xaf0] sm:$0xff]
    %v673 = vld [vmem:[#allocation5 + $0xaf8] sm:$0xff]
    %v674 = vld [vmem:[#allocation5 + $0xb00] sm:$0xff]
    %v675 = vld [vmem:[#allocation5 + $0xb08] sm:$0xff]
    %v676 = vld [vmem:[#allocation5 + $0xb10] sm:$0xff]
    %v677 = vld [vmem:[#allocation5 + $0xb18] sm:$0xff]
    %v678 = vld [vmem:[#allocation5 + $0xb20] sm:$0xff]
    %v679 = vld [vmem:[#allocation5 + $0xb28] sm:$0xff]
    %v680 = vld [vmem:[#allocation5 + $0xb30] sm:$0xff]
    %v681 = vld [vmem:[#allocation5 + $0xb38] sm:$0xff]
    %v682 = vld [vmem:[#allocation5 + $0xb40] sm:$0xff]
    %v683 = vld [vmem:[#allocation5 + $0xb48] sm:$0xff]
    %v684 = vld [vmem:[#allocation5 + $0xb50] sm:$0xff]
    %v685 = vld [vmem:[#allocation5 + $0xb58] sm:$0xff]
    %v686 = vld [vmem:[#allocation5 + $0xb60] sm:$0xff]
    %v687 = vld [vmem:[#allocation5 + $0xb68] sm:$0xff]
    %v688 = vld [vmem:[#allocation5 + $0xb70] sm:$0xff]
    %v689 = vld [vmem:[#allocation5 + $0xb78] sm:$0xff]
    %v690 = vld [vmem:[#allocation5 + $0xb80] sm:$0xff]
    %v691 = vld [vmem:[#allocation5 + $0xb88] sm:$0xff]
    %v692 = vld [vmem:[#allocation5 + $0xb90] sm:$0xff]
    %v693 = vld [vmem:[#allocation5 + $0xb98] sm:$0xff]
    %v694 = vld [vmem:[#allocation5 + $0xba0] sm:$0xff]
    %v695 = vld [vmem:[#allocation5 + $0xba8] sm:$0xff]
    %v696 = vld [vmem:[#allocation5 + $0xbb0] sm:$0xff]
    %v697 = vld [vmem:[#allocation5 + $0xbb8] sm:$0xff]
    %v698 = vld [vmem:[#allocation5 + $0xbc0] sm:$0xff]
    %v699 = vld [vmem:[#allocation5 + $0xbc8] sm:$0xff]
    %v700 = vld [vmem:[#allocation5 + $0xbd0] sm:$0xff]
    %v701 = vld [vmem:[#allocation5 + $0xbd8] sm:$0xff]
    %v702 = vld [vmem:[#allocation5 + $0xbe0] sm:$0xff]
    %v703 = vld [vmem:[#allocation5 + $0xbe8] sm:$0xff]
    %v704 = vld [vmem:[#allocation5 + $0xbf0] sm:$0xff]
    %v705 = vld [vmem:[#allocation5 + $0xbf8] sm:$0xff]
    %v706 = vld [vmem:[#allocation5 + $0xc00] sm:$0xff]
    %v707 = vld [vmem:[#allocation5 + $0xc08] sm:$0xff]
    %v708 = vld [vmem:[#allocation5 + $0xc10] sm:$0xff]
    %v709 = vld [vmem:[#allocation5 + $0xc18] sm:$0xff]
    %v710 = vld [vmem:[#allocation5 + $0xc20] sm:$0xff]
    %v711 = vld [vmem:[#allocation5 + $0xc28] sm:$0xff]
    %v712 = vld [vmem:[#allocation5 + $0xc30] sm:$0xff]
    %v713 = vld [vmem:[#allocation5 + $0xc38] sm:$0xff]
    %v714 = vld [vmem:[#allocation5 + $0xc40] sm:$0xff]
    %v715 = vld [vmem:[#allocation5 + $0xc48] sm:$0xff]
    %v716 = vld [vmem:[#allocation5 + $0xc50] sm:$0xff]
    %v717 = vld [vmem:[#allocation5 + $0xc58] sm:$0xff]
    %v718 = vld [vmem:[#allocation5 + $0xc60] sm:$0xff]
    %v719 = vld [vmem:[#allocation5 + $0xc68] sm:$0xff]
    %v720 = vld [vmem:[#allocation5 + $0xc70] sm:$0xff]
    %v721 = vld [vmem:[#allocation5 + $0xc78] sm:$0xff]
    %v722 = vld [vmem:[#allocation5 + $0xc80] sm:$0xff]
    %v723 = vld [vmem:[#allocation5 + $0xc88] sm:$0xff]
    %v724 = vld [vmem:[#allocation5 + $0xc90] sm:$0xff]
    %v725 = vld [vmem:[#allocation5 + $0xc98] sm:$0xff]
    %v726 = vld [vmem:[#allocation5 + $0xca0] sm:$0xff]
    %v727 = vld [vmem:[#allocation5 + $0xca8] sm:$0xff]
    %v728 = vld [vmem:[#allocation5 + $0xcb0] sm:$0xff]
    %v729 = vld [vmem:[#allocation5 + $0xcb8] sm:$0xff]
    %v730 = vld [vmem:[#allocation5 + $0xcc0] sm:$0xff]
    %v731 = vld [vmem:[#allocation5 + $0xcc8] sm:$0xff]
    %v732 = vld [vmem:[#allocation5 + $0xcd0] sm:$0xff]
    %v733 = vld [vmem:[#allocation5 + $0xcd8] sm:$0xff]
    %v734 = vld [vmem:[#allocation5 + $0xce0] sm:$0xff]
    %v735 = vld [vmem:[#allocation5 + $0xce8] sm:$0xff]
    %v736 = vld [vmem:[#allocation5 + $0xcf0] sm:$0xff]
    %v737 = vld [vmem:[#allocation5 + $0xcf8] sm:$0xff]
    %v738 = vld [vmem:[#allocation5 + $0xd00] sm:$0xff]
    %v739 = vld [vmem:[#allocation5 + $0xd08] sm:$0xff]
    %v740 = vld [vmem:[#allocation5 + $0xd10] sm:$0xff]
    %v741 = vld [vmem:[#allocation5 + $0xd18] sm:$0xff]
    %v742 = vld [vmem:[#allocation5 + $0xd20] sm:$0xff]
    %v743 = vld [vmem:[#allocation5 + $0xd28] sm:$0xff]
    %v744 = vld [vmem:[#allocation5 + $0xd30] sm:$0xff]
    %v745 = vld [vmem:[#allocation5 + $0xd38] sm:$0xff]
    %v746 = vld [vmem:[#allocation5 + $0xd40] sm:$0xff]
    %v747 = vld [vmem:[#allocation5 + $0xd48] sm:$0xff]
    %v748 = vld [vmem:[#allocation5 + $0xd50] sm:$0xff]
    %v749 = vld [vmem:[#allocation5 + $0xd58] sm:$0xff]
    %v750 = vld [vmem:[#allocation5 + $0xd60] sm:$0xff]
    %v751 = vld [vmem:[#allocation5 + $0xd68] sm:$0xff]
    %v752 = vld [vmem:[#allocation5 + $0xd70] sm:$0xff]
    %v753 = vld [vmem:[#allocation5 + $0xd78] sm:$0xff]
    %v754 = vld [vmem:[#allocation5 + $0xd80] sm:$0xff]
    %v755 = vld [vmem:[#allocation5 + $0xd88] sm:$0xff]
    %v756 = vld [vmem:[#allocation5 + $0xd90] sm:$0xff]
    %v757 = vld [vmem:[#allocation5 + $0xd98] sm:$0xff]
    %v758 = vld [vmem:[#allocation5 + $0xda0] sm:$0xff]
    %v759 = vld [vmem:[#allocation5 + $0xda8] sm:$0xff]
    %v760 = vld [vmem:[#allocation5 + $0xdb0] sm:$0xff]
    %v761 = vld [vmem:[#allocation5 + $0xdb8] sm:$0xff]
    %v762 = vld [vmem:[#allocation5 + $0xdc0] sm:$0xff]
    %v763 = vld [vmem:[#allocation5 + $0xdc8] sm:$0xff]
    %v764 = vld [vmem:[#allocation5 + $0xdd0] sm:$0xff]
    %v765 = vld [vmem:[#allocation5 + $0xdd8] sm:$0xff]
    %v766 = vld [vmem:[#allocation5 + $0xde0] sm:$0xff]
    %v767 = vld [vmem:[#allocation5 + $0xde8] sm:$0xff]
    %v768 = vld [vmem:[#allocation5 + $0xdf0] sm:$0xff]
    %v769 = vld [vmem:[#allocation5 + $0xdf8] sm:$0xff]
    %v770 = vld [vmem:[#allocation5 + $0xe00] sm:$0xff]
    %v771 = vld [vmem:[#allocation5 + $0xe08] sm:$0xff]
    %v772 = vld [vmem:[#allocation5 + $0xe10] sm:$0xff]
    %v773 = vld [vmem:[#allocation5 + $0xe18] sm:$0xff]
    %v774 = vld [vmem:[#allocation5 + $0xe20] sm:$0xff]
    %v775 = vld [vmem:[#allocation5 + $0xe28] sm:$0xff]
    %v776 = vld [vmem:[#allocation5 + $0xe30] sm:$0xff]
    %v777 = vld [vmem:[#allocation5 + $0xe38] sm:$0xff]
    %v778 = vld [vmem:[#allocation5 + $0xe40] sm:$0xff]
    %v779 = vld [vmem:[#allocation5 + $0xe48] sm:$0xff]
    %v780 = vld [vmem:[#allocation5 + $0xe50] sm:$0xff]
    %v781 = vld [vmem:[#allocation5 + $0xe58] sm:$0xff]
    %v782 = vld [vmem:[#allocation5 + $0xe60] sm:$0xff]
    %v783 = vld [vmem:[#allocation5 + $0xe68] sm:$0xff]
    %v784 = vld [vmem:[#allocation5 + $0xe70] sm:$0xff]
    %v785 = vld [vmem:[#allocation5 + $0xe78] sm:$0xff]
    %v786 = vld [vmem:[#allocation5 + $0xe80] sm:$0xff]
    %v787 = vld [vmem:[#allocation5 + $0xe88] sm:$0xff]
    %v788 = vld [vmem:[#allocation5 + $0xe90] sm:$0xff]
    %v789 = vld [vmem:[#allocation5 + $0xe98] sm:$0xff]
    %v790 = vld [vmem:[#allocation5 + $0xea0] sm:$0xff]
    %v791 = vld [vmem:[#allocation5 + $0xea8] sm:$0xff]
    %v792 = vld [vmem:[#allocation5 + $0xeb0] sm:$0xff]
    %v793 = vld [vmem:[#allocation5 + $0xeb8] sm:$0xff]
    %v794 = vld [vmem:[#allocation5 + $0xec0] sm:$0xff]
    %v795 = vld [vmem:[#allocation5 + $0xec8] sm:$0xff]
    %v796 = vld [vmem:[#allocation5 + $0xed0] sm:$0xff]
    %v797 = vld [vmem:[#allocation5 + $0xed8] sm:$0xff]
    %v798 = vld [vmem:[#allocation5 + $0xee0] sm:$0xff]
    %v799 = vld [vmem:[#allocation5 + $0xee8] sm:$0xff]
    %v800 = vld [vmem:[#allocation5 + $0xef0] sm:$0xff]
    %v801 = vld [vmem:[#allocation5 + $0xef8] sm:$0xff]
    %v802 = vld [vmem:[#allocation5 + $0xf00] sm:$0xff]
    %v803 = vld [vmem:[#allocation5 + $0xf08] sm:$0xff]
    %v804 = vld [vmem:[#allocation5 + $0xf10] sm:$0xff]
    %v805 = vld [vmem:[#allocation5 + $0xf18] sm:$0xff]
    %v806 = vld [vmem:[#allocation5 + $0xf20] sm:$0xff]
    %v807 = vld [vmem:[#allocation5 + $0xf28] sm:$0xff]
    %v808 = vld [vmem:[#allocation5 + $0xf30] sm:$0xff]
    %v809 = vld [vmem:[#allocation5 + $0xf38] sm:$0xff]
    %v810 = vld [vmem:[#allocation5 + $0xf40] sm:$0xff]
    %v811 = vld [vmem:[#allocation5 + $0xf48] sm:$0xff]
    %v812 = vld [vmem:[#allocation5 + $0xf50] sm:$0xff]
    %v813 = vld [vmem:[#allocation5 + $0xf58] sm:$0xff]
    %v814 = vld [vmem:[#allocation5 + $0xf60] sm:$0xff]
    %v815 = vld [vmem:[#allocation5 + $0xf68] sm:$0xff]
    %v816 = vld [vmem:[#allocation5 + $0xf70] sm:$0xff]
    %v817 = vld [vmem:[#allocation5 + $0xf78] sm:$0xff]
    %v818 = vld [vmem:[#allocation5 + $0xf80] sm:$0xff]
    %v819 = vld [vmem:[#allocation5 + $0xf88] sm:$0xff]
    %v820 = vld [vmem:[#allocation5 + $0xf90] sm:$0xff]
    %v821 = vld [vmem:[#allocation5 + $0xf98] sm:$0xff]
    %v822 = vld [vmem:[#allocation5 + $0xfa0] sm:$0xff]
    %v823 = vld [vmem:[#allocation5 + $0xfa8] sm:$0xff]
    %v824 = vld [vmem:[#allocation5 + $0xfb0] sm:$0xff]
    %v825 = vld [vmem:[#allocation5 + $0xfb8] sm:$0xff]
    %v826 = vld [vmem:[#allocation5 + $0xfc0] sm:$0xff]
    %v827 = vld [vmem:[#allocation5 + $0xfc8] sm:$0xff]
    %v828 = vld [vmem:[#allocation5 + $0xfd0] sm:$0xff]
    %v829 = vld [vmem:[#allocation5 + $0xfd8] sm:$0xff]
    %v830 = vld [vmem:[#allocation5 + $0xfe0] sm:$0xff]
    %v831 = vld [vmem:[#allocation5 + $0xfe8] sm:$0xff]
    %v832 = vld [vmem:[#allocation5 + $0xff0] sm:$0xff]
    %v833 = vld [vmem:[#allocation5 + $0xff8] sm:$0xff]
    %v834 = vld [vmem:[#allocation5 + $0x1000] sm:$0xff]
    %v835 = vld [vmem:[#allocation5 + $0x1008] sm:$0xff]
    %v836 = vld [vmem:[#allocation5 + $0x1010] sm:$0xff]
    %v837 = vld [vmem:[#allocation5 + $0x1018] sm:$0xff]
    %v838 = vld [vmem:[#allocation5 + $0x1020] sm:$0xff]
    %v839 = vld [vmem:[#allocation5 + $0x1028] sm:$0xff]
    %v840 = vld [vmem:[#allocation5 + $0x1030] sm:$0xff]
    %v841 = vld [vmem:[#allocation5 + $0x1038] sm:$0xff]
    %v842 = vld [vmem:[#allocation5 + $0x1040] sm:$0xff]
    %v843 = vld [vmem:[#allocation5 + $0x1048] sm:$0xff]
    %v844 = vld [vmem:[#allocation5 + $0x1050] sm:$0xff]
    %v845 = vld [vmem:[#allocation5 + $0x1058] sm:$0xff]
    %v846 = vld [vmem:[#allocation5 + $0x1060] sm:$0xff]
    %v847 = vld [vmem:[#allocation5 + $0x1068] sm:$0xff]
    %v848 = vld [vmem:[#allocation5 + $0x1070] sm:$0xff]
    %v849 = vld [vmem:[#allocation5 + $0x1078] sm:$0xff]
    %v850 = vld [vmem:[#allocation5 + $0x1080] sm:$0xff]
    %v851 = vld [vmem:[#allocation5 + $0x1088] sm:$0xff]
    %v852 = vld [vmem:[#allocation5 + $0x1090] sm:$0xff]
    %v853 = vld [vmem:[#allocation5 + $0x1098] sm:$0xff]
    %v854 = vld [vmem:[#allocation5 + $0x10a0] sm:$0xff]
    %v855 = vld [vmem:[#allocation5 + $0x10a8] sm:$0xff]
    %v856 = vld [vmem:[#allocation5 + $0x10b0] sm:$0xff]
    %v857 = vld [vmem:[#allocation5 + $0x10b8] sm:$0xff]
    %v858 = vld [vmem:[#allocation5 + $0x10c0] sm:$0xff]
    %v859 = vld [vmem:[#allocation5 + $0x10c8] sm:$0xff]
    %v860 = vld [vmem:[#allocation5 + $0x10d0] sm:$0xff]
    %v861 = vld [vmem:[#allocation5 + $0x10d8] sm:$0xff]
    %v862 = vld [vmem:[#allocation5 + $0x10e0] sm:$0xff]
    %v863 = vld [vmem:[#allocation5 + $0x10e8] sm:$0xff]
    %v864 = vld [vmem:[#allocation5 + $0x10f0] sm:$0xff]
    %v865 = vld [vmem:[#allocation5 + $0x10f8] sm:$0xff]
    %v866 = vld [vmem:[#allocation5 + $0x1100] sm:$0xff]
    %v867 = vld [vmem:[#allocation5 + $0x1108] sm:$0xff]
    %v868 = vld [vmem:[#allocation5 + $0x1110] sm:$0xff]
    %v869 = vld [vmem:[#allocation5 + $0x1118] sm:$0xff]
    %v870 = vld [vmem:[#allocation5 + $0x1120] sm:$0xff]
    %v871 = vld [vmem:[#allocation5 + $0x1128] sm:$0xff]
    %v872 = vld [vmem:[#allocation5 + $0x1130] sm:$0xff]
    %v873 = vld [vmem:[#allocation5 + $0x1138] sm:$0xff]
    %v874 = vld [vmem:[#allocation5 + $0x1140] sm:$0xff]
    %v875 = vld [vmem:[#allocation5 + $0x1148] sm:$0xff]
    %v876 = vld [vmem:[#allocation5 + $0x1150] sm:$0xff]
    %v877 = vld [vmem:[#allocation5 + $0x1158] sm:$0xff]
    %v878 = vld [vmem:[#allocation5 + $0x1160] sm:$0xff]
    %v879 = vld [vmem:[#allocation5 + $0x1168] sm:$0xff]
    %v880 = vld [vmem:[#allocation5 + $0x1170] sm:$0xff]
    %v881 = vld [vmem:[#allocation5 + $0x1178] sm:$0xff]
    %v882 = vld [vmem:[#allocation5 + $0x1180] sm:$0xff]
    %v883 = vld [vmem:[#allocation5 + $0x1188] sm:$0xff]
    %v884 = vld [vmem:[#allocation5 + $0x1190] sm:$0xff]
    %v885 = vld [vmem:[#allocation5 + $0x1198] sm:$0xff]
    %v886 = vld [vmem:[#allocation5 + $0x11a0] sm:$0xff]
    %v887 = vld [vmem:[#allocation5 + $0x11a8] sm:$0xff]
    %v888 = vld [vmem:[#allocation5 + $0x11b0] sm:$0xff]
    %v889 = vld [vmem:[#allocation5 + $0x11b8] sm:$0xff]
    %v890 = vld [vmem:[#allocation5 + $0x11c0] sm:$0xff]
    %v891 = vld [vmem:[#allocation5 + $0x11c8] sm:$0xff]
    %v892 = vld [vmem:[#allocation5 + $0x11d0] sm:$0xff]
    %v893 = vld [vmem:[#allocation5 + $0x11d8] sm:$0xff]
    %v894 = vld [vmem:[#allocation5 + $0x11e0] sm:$0xff]
    %v895 = vld [vmem:[#allocation5 + $0x11e8] sm:$0xff]
    %v896 = vld [vmem:[#allocation5 + $0x11f0] sm:$0xff]
    %v897 = vld [vmem:[#allocation5 + $0x11f8] sm:$0xff]
    %v898 = vld [vmem:[#allocation5 + $0x1200] sm:$0xff]
    %v899 = vld [vmem:[#allocation5 + $0x1208] sm:$0xff]
    %v900 = vld [vmem:[#allocation5 + $0x1210] sm:$0xff]
    %v901 = vld [vmem:[#allocation5 + $0x1218] sm:$0xff]
    %v902 = vld [vmem:[#allocation5 + $0x1220] sm:$0xff]
    %v903 = vld [vmem:[#allocation5 + $0x1228] sm:$0xff]
    %v904 = vld [vmem:[#allocation5 + $0x1230] sm:$0xff]
    %v905 = vld [vmem:[#allocation5 + $0x1238] sm:$0xff]
    %v906 = vld [vmem:[#allocation5 + $0x1240] sm:$0xff]
    %v907 = vld [vmem:[#allocation5 + $0x1248] sm:$0xff]
    %v908 = vld [vmem:[#allocation5 + $0x1250] sm:$0xff]
    %v909 = vld [vmem:[#allocation5 + $0x1258] sm:$0xff]
    %v910 = vld [vmem:[#allocation5 + $0x1260] sm:$0xff]
    %v911 = vld [vmem:[#allocation5 + $0x1268] sm:$0xff]
    %v912 = vld [vmem:[#allocation5 + $0x1270] sm:$0xff]
    %v913 = vld [vmem:[#allocation5 + $0x1278] sm:$0xff]
    %v914 = vld [vmem:[#allocation5 + $0x1280] sm:$0xff]
    %v915 = vld [vmem:[#allocation5 + $0x1288] sm:$0xff]
    %v916 = vld [vmem:[#allocation5 + $0x1290] sm:$0xff]
    %v917 = vld [vmem:[#allocation5 + $0x1298] sm:$0xff]
    %v918 = vld [vmem:[#allocation5 + $0x12a0] sm:$0xff]
    %v919 = vld [vmem:[#allocation5 + $0x12a8] sm:$0xff]
    %v920 = vld [vmem:[#allocation5 + $0x12b0] sm:$0xff]
    %v921 = vld [vmem:[#allocation5 + $0x12b8] sm:$0xff]
    %v922 = vld [vmem:[#allocation5 + $0x12c0] sm:$0xff]
    %v923 = vld [vmem:[#allocation5 + $0x12c8] sm:$0xff]
    %v924 = vld [vmem:[#allocation5 + $0x12d0] sm:$0xff]
    %v925 = vld [vmem:[#allocation5 + $0x12d8] sm:$0xff]
    %v926 = vld [vmem:[#allocation5 + $0x12e0] sm:$0xff]
    %v927 = vld [vmem:[#allocation5 + $0x12e8] sm:$0xff]
    %v928 = vld [vmem:[#allocation5 + $0x12f0] sm:$0xff]
    %v929 = vld [vmem:[#allocation5 + $0x12f8] sm:$0xff]
    %v930 = vld [vmem:[#allocation5 + $0x1300] sm:$0xff]
    %v931 = vld [vmem:[#allocation5 + $0x1308] sm:$0xff]
    %v932 = vld [vmem:[#allocation5 + $0x1310] sm:$0xff]
    %v933 = vld [vmem:[#allocation5 + $0x1318] sm:$0xff]
    %v934 = vld [vmem:[#allocation5 + $0x1320] sm:$0xff]
    %v935 = vld [vmem:[#allocation5 + $0x1328] sm:$0xff]
    %v936 = vld [vmem:[#allocation5 + $0x1330] sm:$0xff]
    %v937 = vld [vmem:[#allocation5 + $0x1338] sm:$0xff]
    %v938 = vld [vmem:[#allocation5 + $0x1340] sm:$0xff]
    %v939 = vld [vmem:[#allocation5 + $0x1348] sm:$0xff]
    %v940 = vld [vmem:[#allocation5 + $0x1350] sm:$0xff]
    %v941 = vld [vmem:[#allocation5 + $0x1358] sm:$0xff]
    %v942 = vld [vmem:[#allocation5 + $0x1360] sm:$0xff]
    %v943 = vld [vmem:[#allocation5 + $0x1368] sm:$0xff]
    %v944 = vld [vmem:[#allocation5 + $0x1370] sm:$0xff]
    %v945 = vld [vmem:[#allocation5 + $0x1378] sm:$0xff]
    %v946 = vld [vmem:[#allocation5 + $0x1380] sm:$0xff]
    %v947 = vld [vmem:[#allocation5 + $0x1388] sm:$0xff]
    %v948 = vld [vmem:[#allocation5 + $0x1390] sm:$0xff]
    %v949 = vld [vmem:[#allocation5 + $0x1398] sm:$0xff]
    %v950 = vld [vmem:[#allocation5 + $0x13a0] sm:$0xff]
    %v951 = vld [vmem:[#allocation5 + $0x13a8] sm:$0xff]
    %v952 = vld [vmem:[#allocation5 + $0x13b0] sm:$0xff]
    %v953 = vld [vmem:[#allocation5 + $0x13b8] sm:$0xff]
    %v954 = vld [vmem:[#allocation5 + $0x13c0] sm:$0xff]
    %v955 = vld [vmem:[#allocation5 + $0x13c8] sm:$0xff]
    %v956 = vld [vmem:[#allocation5 + $0x13d0] sm:$0xff]
    %v957 = vld [vmem:[#allocation5 + $0x13d8] sm:$0xff]
    %v958 = vld [vmem:[#allocation5 + $0x13e0] sm:$0xff]
    %v959 = vld [vmem:[#allocation5 + $0x13e8] sm:$0xff]
    %v960 = vld [vmem:[#allocation5 + $0x13f0] sm:$0xff]
    %v961 = vld [vmem:[#allocation5 + $0x13f8] sm:$0xff]
    %v962 = vld [vmem:[#allocation5 + $0x1400] sm:$0xff]
    %v963 = vld [vmem:[#allocation5 + $0x1408] sm:$0xff]
    %v964 = vld [vmem:[#allocation5 + $0x1410] sm:$0xff]
    %v965 = vld [vmem:[#allocation5 + $0x1418] sm:$0xff]
    %v966 = vld [vmem:[#allocation5 + $0x1420] sm:$0xff]
    %v967 = vld [vmem:[#allocation5 + $0x1428] sm:$0xff]
    %v968 = vld [vmem:[#allocation5 + $0x1430] sm:$0xff]
    %v969 = vld [vmem:[#allocation5 + $0x1438] sm:$0xff]
    %v970 = vld [vmem:[#allocation5 + $0x1440] sm:$0xff]
    %v971 = vld [vmem:[#allocation5 + $0x1448] sm:$0xff]
    %v972 = vld [vmem:[#allocation5 + $0x1450] sm:$0xff]
    %v973 = vld [vmem:[#allocation5 + $0x1458] sm:$0xff]
    %v974 = vld [vmem:[#allocation5 + $0x1460] sm:$0xff]
    %v975 = vld [vmem:[#allocation5 + $0x1468] sm:$0xff]
    %v976 = vld [vmem:[#allocation5 + $0x1470] sm:$0xff]
    %v977 = vld [vmem:[#allocation5 + $0x1478] sm:$0xff]
    %v978 = vld [vmem:[#allocation5 + $0x1480] sm:$0xff]
    %v979 = vld [vmem:[#allocation5 + $0x1488] sm:$0xff]
    %v980 = vld [vmem:[#allocation5 + $0x1490] sm:$0xff]
    %v981 = vld [vmem:[#allocation5 + $0x1498] sm:$0xff]
    %v982 = vld [vmem:[#allocation5 + $0x14a0] sm:$0xff]
    %v983 = vld [vmem:[#allocation5 + $0x14a8] sm:$0xff]
    %v984 = vld [vmem:[#allocation5 + $0x14b0] sm:$0xff]
    %v985 = vld [vmem:[#allocation5 + $0x14b8] sm:$0xff]
    %v986 = vld [vmem:[#allocation5 + $0x14c0] sm:$0xff]
    %v987 = vld [vmem:[#allocation5 + $0x14c8] sm:$0xff]
    %v988 = vld [vmem:[#allocation5 + $0x14d0] sm:$0xff]
    %v989 = vld [vmem:[#allocation5 + $0x14d8] sm:$0xff]
    %v990 = vld [vmem:[#allocation5 + $0x14e0] sm:$0xff]
    %v991 = vld [vmem:[#allocation5 + $0x14e8] sm:$0xff]
    %v992 = vld [vmem:[#allocation5 + $0x14f0] sm:$0xff]
    %v993 = vld [vmem:[#allocation5 + $0x14f8] sm:$0xff]
    %v994 = vld [vmem:[#allocation5 + $0x1500] sm:$0xff]
    %v995 = vld [vmem:[#allocation5 + $0x1508] sm:$0xff]
    %v996 = vld [vmem:[#allocation5 + $0x1510] sm:$0xff]
    %v997 = vld [vmem:[#allocation5 + $0x1518] sm:$0xff]
    %v998 = vld [vmem:[#allocation5 + $0x1520] sm:$0xff]
    %v999 = vld [vmem:[#allocation5 + $0x1528] sm:$0xff]
    %v1000 = vld [vmem:[#allocation5 + $0x1530] sm:$0xff]
    %v1001 = vld [vmem:[#allocation5 + $0x1538] sm:$0xff]
    %v1002 = vld [vmem:[#allocation5 + $0x1540] sm:$0xff]
    %v1003 = vld [vmem:[#allocation5 + $0x1548] sm:$0xff]
    %v1004 = vld [vmem:[#allocation5 + $0x1550] sm:$0xff]
    %v1005 = vld [vmem:[#allocation5 + $0x1558] sm:$0xff]
    %v1006 = vld [vmem:[#allocation5 + $0x1560] sm:$0xff]
    %v1007 = vld [vmem:[#allocation5 + $0x1568] sm:$0xff]
    %v1008 = vld [vmem:[#allocation5 + $0x1570] sm:$0xff]
    %v1009 = vld [vmem:[#allocation5 + $0x1578] sm:$0xff]
    %v1010 = vld [vmem:[#allocation5 + $0x1580] sm:$0xff]
    %v1011 = vld [vmem:[#allocation5 + $0x1588] sm:$0xff]
    %v1012 = vld [vmem:[#allocation5 + $0x1590] sm:$0xff]
    %v1013 = vld [vmem:[#allocation5 + $0x1598] sm:$0xff]
    %v1014 = vld [vmem:[#allocation5 + $0x15a0] sm:$0xff]
    %v1015 = vld [vmem:[#allocation5 + $0x15a8] sm:$0xff]
    %v1016 = vld [vmem:[#allocation5 + $0x15b0] sm:$0xff]
    %v1017 = vld [vmem:[#allocation5 + $0x15b8] sm:$0xff]
    %v1018 = vld [vmem:[#allocation5 + $0x15c0] sm:$0xff]
    %v1019 = vld [vmem:[#allocation5 + $0x15c8] sm:$0xff]
    %v1020 = vld [vmem:[#allocation5 + $0x15d0] sm:$0xff]
    %v1021 = vld [vmem:[#allocation5 + $0x15d8] sm:$0xff]
    %v1022 = vld [vmem:[#allocation5 + $0x15e0] sm:$0xff]
    %v1023 = vld [vmem:[#allocation5 + $0x15e8] sm:$0xff]
    %v1024 = vld [vmem:[#allocation5 + $0x15f0] sm:$0xff]
    %v1025 = vld [vmem:[#allocation5 + $0x15f8] sm:$0xff]
    %v1026 = vld [vmem:[#allocation5 + $0x1600] sm:$0xff]
    %v1027 = vld [vmem:[#allocation5 + $0x1608] sm:$0xff]
    %v1028 = vld [vmem:[#allocation5 + $0x1610] sm:$0xff]
    %v1029 = vld [vmem:[#allocation5 + $0x1618] sm:$0xff]
    %v1030 = vld [vmem:[#allocation5 + $0x1620] sm:$0xff]
    %v1031 = vld [vmem:[#allocation5 + $0x1628] sm:$0xff]
    %v1032 = vld [vmem:[#allocation5 + $0x1630] sm:$0xff]
    %v1033 = vld [vmem:[#allocation5 + $0x1638] sm:$0xff]
    %v1034 = vld [vmem:[#allocation5 + $0x1640] sm:$0xff]
    %v1035 = vld [vmem:[#allocation5 + $0x1648] sm:$0xff]
    %v1036 = vld [vmem:[#allocation5 + $0x1650] sm:$0xff]
    %v1037 = vld [vmem:[#allocation5 + $0x1658] sm:$0xff]
    %v1038 = vld [vmem:[#allocation5 + $0x1660] sm:$0xff]
    %v1039 = vld [vmem:[#allocation5 + $0x1668] sm:$0xff]
    %v1040 = vld [vmem:[#allocation5 + $0x1670] sm:$0xff]
    %v1041 = vld [vmem:[#allocation5 + $0x1678] sm:$0xff]
    %v1042 = vld [vmem:[#allocation5 + $0x1680] sm:$0xff]
    %v1043 = vld [vmem:[#allocation5 + $0x1688] sm:$0xff]
    %v1044 = vld [vmem:[#allocation5 + $0x1690] sm:$0xff]
    %v1045 = vld [vmem:[#allocation5 + $0x1698] sm:$0xff]
    %v1046 = vld [vmem:[#allocation5 + $0x16a0] sm:$0xff]
    %v1047 = vld [vmem:[#allocation5 + $0x16a8] sm:$0xff]
    %v1048 = vld [vmem:[#allocation5 + $0x16b0] sm:$0xff]
    %v1049 = vld [vmem:[#allocation5 + $0x16b8] sm:$0xff]
    %v1050 = vld [vmem:[#allocation5 + $0x16c0] sm:$0xff]
    %v1051 = vld [vmem:[#allocation5 + $0x16c8] sm:$0xff]
    %v1052 = vld [vmem:[#allocation5 + $0x16d0] sm:$0xff]
    %v1053 = vld [vmem:[#allocation5 + $0x16d8] sm:$0xff]
    %v1054 = vld [vmem:[#allocation5 + $0x16e0] sm:$0xff]
    %v1055 = vld [vmem:[#allocation5 + $0x16e8] sm:$0xff]
    %v1056 = vld [vmem:[#allocation5 + $0x16f0] sm:$0xff]
    %v1057 = vld [vmem:[#allocation5 + $0x16f8] sm:$0xff]
    %v1058 = vld [vmem:[#allocation5 + $0x1700] sm:$0xff]
    %v1059 = vld [vmem:[#allocation5 + $0x1708] sm:$0xff]
    %v1060 = vld [vmem:[#allocation5 + $0x1710] sm:$0xff]
    %v1061 = vld [vmem:[#allocation5 + $0x1718] sm:$0xff]
    %v1062 = vld [vmem:[#allocation5 + $0x1720] sm:$0xff]
    %v1063 = vld [vmem:[#allocation5 + $0x1728] sm:$0xff]
    %v1064 = vld [vmem:[#allocation5 + $0x1730] sm:$0xff]
    %v1065 = vld [vmem:[#allocation5 + $0x1738] sm:$0xff]
    %v1066 = vld [vmem:[#allocation5 + $0x1740] sm:$0xff]
    %v1067 = vld [vmem:[#allocation5 + $0x1748] sm:$0xff]
    %v1068 = vld [vmem:[#allocation5 + $0x1750] sm:$0xff]
    %v1069 = vld [vmem:[#allocation5 + $0x1758] sm:$0xff]
    %v1070 = vld [vmem:[#allocation5 + $0x1760] sm:$0xff]
    %v1071 = vld [vmem:[#allocation5 + $0x1768] sm:$0xff]
    %v1072 = vld [vmem:[#allocation5 + $0x1770] sm:$0xff]
    %v1073 = vld [vmem:[#allocation5 + $0x1778] sm:$0xff]
    %v1074 = vld [vmem:[#allocation5 + $0x1780] sm:$0xff]
    %v1075 = vld [vmem:[#allocation5 + $0x1788] sm:$0xff]
    %v1076 = vld [vmem:[#allocation5 + $0x1790] sm:$0xff]
    %v1077 = vld [vmem:[#allocation5 + $0x1798] sm:$0xff]
    %v1078 = vld [vmem:[#allocation5 + $0x17a0] sm:$0xff]
    %v1079 = vld [vmem:[#allocation5 + $0x17a8] sm:$0xff]
    %v1080 = vld [vmem:[#allocation5 + $0x17b0] sm:$0xff]
    %v1081 = vld [vmem:[#allocation5 + $0x17b8] sm:$0xff]
    %v1082 = vld [vmem:[#allocation5 + $0x17c0] sm:$0xff]
    %v1083 = vld [vmem:[#allocation5 + $0x17c8] sm:$0xff]
    %v1084 = vld [vmem:[#allocation5 + $0x17d0] sm:$0xff]
    %v1085 = vld [vmem:[#allocation5 + $0x17d8] sm:$0xff]
    %v1086 = vld [vmem:[#allocation5 + $0x17e0] sm:$0xff]
    %v1087 = vld [vmem:[#allocation5 + $0x17e8] sm:$0xff]
    %v1088 = vld [vmem:[#allocation5 + $0x17f0] sm:$0xff]
    %v1089 = vld [vmem:[#allocation5 + $0x17f8] sm:$0xff]
    %v1090 = vld [vmem:[#allocation7] sm:$0xf]
    %v1092 = vperm.slane %v1090, 0
    %v1093 = vperm.slane %v1090, 1
    %v1094 = vperm.slane %v1090, 2
    %v1095 = vperm.slane %v1090, 3
    %v1292 = vunpack.c.l.b16 %v130
    %v1293 = vunpack.c.h.b16 %v130
    %v1294 = vunpack.c.l.b16 %v131
    %v1295 = vunpack.c.h.b16 %v131
    %v1296 = vunpack.c.l.b16 %v132
    %v1297 = vunpack.c.h.b16 %v132
    %v1298 = vunpack.c.l.b16 %v133
    %v1299 = vunpack.c.h.b16 %v133
    %v1300 = vunpack.c.l.b16 %v134
    %v1301 = vunpack.c.h.b16 %v134
    %v1302 = vunpack.c.l.b16 %v135
    %v1303 = vunpack.c.h.b16 %v135
    %v1304 = vunpack.c.l.b16 %v136
    %v1305 = vunpack.c.h.b16 %v136
    %v1306 = vunpack.c.l.b16 %v137
    %v1307 = vunpack.c.h.b16 %v137
    %v1308 = vunpack.c.l.b16 %v138
    %v1309 = vunpack.c.h.b16 %v138
    %v1310 = vunpack.c.l.b16 %v139
    %v1311 = vunpack.c.h.b16 %v139
    %v1312 = vunpack.c.l.b16 %v140
    %v1313 = vunpack.c.h.b16 %v140
    %v1314 = vunpack.c.l.b16 %v141
    %v1315 = vunpack.c.h.b16 %v141
    %v1316 = vunpack.c.l.b16 %v142
    %v1317 = vunpack.c.h.b16 %v142
    %v1318 = vunpack.c.l.b16 %v143
    %v1319 = vunpack.c.h.b16 %v143
    %v1320 = vunpack.c.l.b16 %v144
    %v1321 = vunpack.c.h.b16 %v144
    %v1322 = vunpack.c.l.b16 %v145
    %v1323 = vunpack.c.h.b16 %v145
    %v1324 = vunpack.c.l.b16 %v146
    %v1325 = vunpack.c.h.b16 %v146
    %v1326 = vunpack.c.l.b16 %v147
    %v1327 = vunpack.c.h.b16 %v147
    %v1328 = vunpack.c.l.b16 %v148
    %v1329 = vunpack.c.h.b16 %v148
    %v1330 = vunpack.c.l.b16 %v149
    %v1331 = vunpack.c.h.b16 %v149
    %v1332 = vunpack.c.l.b16 %v150
    %v1333 = vunpack.c.h.b16 %v150
    %v1334 = vunpack.c.l.b16 %v151
    %v1335 = vunpack.c.h.b16 %v151
    %v1336 = vunpack.c.l.b16 %v152
    %v1337 = vunpack.c.h.b16 %v152
    %v1338 = vunpack.c.l.b16 %v153
    %v1339 = vunpack.c.h.b16 %v153
    %v1340 = vunpack.c.l.b16 %v154
    %v1341 = vunpack.c.h.b16 %v154
    %v1342 = vunpack.c.l.b16 %v155
    %v1343 = vunpack.c.h.b16 %v155
    %v1344 = vunpack.c.l.b16 %v156
    %v1345 = vunpack.c.h.b16 %v156
    %v1346 = vunpack.c.l.b16 %v157
    %v1347 = vunpack.c.h.b16 %v157
    %v1348 = vunpack.c.l.b16 %v158
    %v1349 = vunpack.c.h.b16 %v158
    %v1350 = vunpack.c.l.b16 %v159
    %v1351 = vunpack.c.h.b16 %v159
    %v1352 = vunpack.c.l.b16 %v160
    %v1353 = vunpack.c.h.b16 %v160
    %v1354 = vunpack.c.l.b16 %v161
    %v1355 = vunpack.c.h.b16 %v161
    %v1356 = vunpack.c.l.b16 %v162
    %v1357 = vunpack.c.h.b16 %v162
    %v1358 = vunpack.c.l.b16 %v163
    %v1359 = vunpack.c.h.b16 %v163
    %v1360 = vunpack.c.l.b16 %v164
    %v1361 = vunpack.c.h.b16 %v164
    %v1362 = vunpack.c.l.b16 %v165
    %v1363 = vunpack.c.h.b16 %v165
    %v1364 = vunpack.c.l.b16 %v166
    %v1365 = vunpack.c.h.b16 %v166
    %v1366 = vunpack.c.l.b16 %v167
    %v1367 = vunpack.c.h.b16 %v167
    %v1368 = vunpack.c.l.b16 %v168
    %v1369 = vunpack.c.h.b16 %v168
    %v1370 = vunpack.c.l.b16 %v169
    %v1371 = vunpack.c.h.b16 %v169
    %v1372 = vunpack.c.l.b16 %v170
    %v1373 = vunpack.c.h.b16 %v170
    %v1374 = vunpack.c.l.b16 %v171
    %v1375 = vunpack.c.h.b16 %v171
    %v1376 = vunpack.c.l.b16 %v172
    %v1377 = vunpack.c.h.b16 %v172
    %v1378 = vunpack.c.l.b16 %v173
    %v1379 = vunpack.c.h.b16 %v173
    %v1380 = vunpack.c.l.b16 %v174
    %v1381 = vunpack.c.h.b16 %v174
    %v1382 = vunpack.c.l.b16 %v175
    %v1383 = vunpack.c.h.b16 %v175
    %v1384 = vunpack.c.l.b16 %v176
    %v1385 = vunpack.c.h.b16 %v176
    %v1386 = vunpack.c.l.b16 %v177
    %v1387 = vunpack.c.h.b16 %v177
    %v1388 = vunpack.c.l.b16 %v178
    %v1389 = vunpack.c.h.b16 %v178
    %v1390 = vunpack.c.l.b16 %v179
    %v1391 = vunpack.c.h.b16 %v179
    %v1392 = vunpack.c.l.b16 %v180
    %v1393 = vunpack.c.h.b16 %v180
    %v1394 = vunpack.c.l.b16 %v181
    %v1395 = vunpack.c.h.b16 %v181
    %v1396 = vunpack.c.l.b16 %v182
    %v1397 = vunpack.c.h.b16 %v182
    %v1398 = vunpack.c.l.b16 %v183
    %v1399 = vunpack.c.h.b16 %v183
    %v1400 = vunpack.c.l.b16 %v184
    %v1401 = vunpack.c.h.b16 %v184
    %v1402 = vunpack.c.l.b16 %v185
    %v1403 = vunpack.c.h.b16 %v185
    %v1404 = vunpack.c.l.b16 %v186
    %v1405 = vunpack.c.h.b16 %v186
    %v1406 = vunpack.c.l.b16 %v187
    %v1407 = vunpack.c.h.b16 %v187
    %v1408 = vunpack.c.l.b16 %v188
    %v1409 = vunpack.c.h.b16 %v188
    %v1410 = vunpack.c.l.b16 %v189
    %v1411 = vunpack.c.h.b16 %v189
    %v1412 = vunpack.c.l.b16 %v190
    %v1413 = vunpack.c.h.b16 %v190
    %v1414 = vunpack.c.l.b16 %v191
    %v1415 = vunpack.c.h.b16 %v191
    %v1416 = vunpack.c.l.b16 %v192
    %v1417 = vunpack.c.h.b16 %v192
    %v1418 = vunpack.c.l.b16 %v193
    %v1419 = vunpack.c.h.b16 %v193
    %v1420 = vunpack.c.l.b16 %v194
    %v1421 = vunpack.c.h.b16 %v194
    %v1422 = vunpack.c.l.b16 %v195
    %v1423 = vunpack.c.h.b16 %v195
    %v1424 = vunpack.c.l.b16 %v196
    %v1425 = vunpack.c.h.b16 %v196
    %v1426 = vunpack.c.l.b16 %v197
    %v1427 = vunpack.c.h.b16 %v197
    %v1428 = vunpack.c.l.b16 %v198
    %v1429 = vunpack.c.h.b16 %v198
    %v1430 = vunpack.c.l.b16 %v199
    %v1431 = vunpack.c.h.b16 %v199
    %v1432 = vunpack.c.l.b16 %v200
    %v1433 = vunpack.c.h.b16 %v200
    %v1434 = vunpack.c.l.b16 %v201
    %v1435 = vunpack.c.h.b16 %v201
    %v1436 = vunpack.c.l.b16 %v202
    %v1437 = vunpack.c.h.b16 %v202
    %v1438 = vunpack.c.l.b16 %v203
    %v1439 = vunpack.c.h.b16 %v203
    %v1440 = vunpack.c.l.b16 %v204
    %v1441 = vunpack.c.h.b16 %v204
    %v1442 = vunpack.c.l.b16 %v205
    %v1443 = vunpack.c.h.b16 %v205
    %v1444 = vunpack.c.l.b16 %v206
    %v1445 = vunpack.c.h.b16 %v206
    %v1446 = vunpack.c.l.b16 %v207
    %v1447 = vunpack.c.h.b16 %v207
    %v1448 = vunpack.c.l.b16 %v208
    %v1449 = vunpack.c.h.b16 %v208
    %v1450 = vunpack.c.l.b16 %v209
    %v1451 = vunpack.c.h.b16 %v209
    %v1452 = vunpack.c.l.b16 %v210
    %v1453 = vunpack.c.h.b16 %v210
    %v1454 = vunpack.c.l.b16 %v211
    %v1455 = vunpack.c.h.b16 %v211
    %v1456 = vunpack.c.l.b16 %v212
    %v1457 = vunpack.c.h.b16 %v212
    %v1458 = vunpack.c.l.b16 %v213
    %v1459 = vunpack.c.h.b16 %v213
    %v1460 = vunpack.c.l.b16 %v214
    %v1461 = vunpack.c.h.b16 %v214
    %v1462 = vunpack.c.l.b16 %v215
    %v1463 = vunpack.c.h.b16 %v215
    %v1464 = vunpack.c.l.b16 %v216
    %v1465 = vunpack.c.h.b16 %v216
    %v1466 = vunpack.c.l.b16 %v217
    %v1467 = vunpack.c.h.b16 %v217
    %v1468 = vunpack.c.l.b16 %v218
    %v1469 = vunpack.c.h.b16 %v218
    %v1470 = vunpack.c.l.b16 %v219
    %v1471 = vunpack.c.h.b16 %v219
    %v1472 = vunpack.c.l.b16 %v220
    %v1473 = vunpack.c.h.b16 %v220
    %v1474 = vunpack.c.l.b16 %v221
    %v1475 = vunpack.c.h.b16 %v221
    %v1476 = vunpack.c.l.b16 %v222
    %v1477 = vunpack.c.h.b16 %v222
    %v1478 = vunpack.c.l.b16 %v223
    %v1479 = vunpack.c.h.b16 %v223
    %v1480 = vunpack.c.l.b16 %v224
    %v1481 = vunpack.c.h.b16 %v224
    %v1482 = vunpack.c.l.b16 %v225
    %v1483 = vunpack.c.h.b16 %v225
    %v1484 = vunpack.c.l.b16 %v226
    %v1485 = vunpack.c.h.b16 %v226
    %v1486 = vunpack.c.l.b16 %v227
    %v1487 = vunpack.c.h.b16 %v227
    %v1488 = vunpack.c.l.b16 %v228
    %v1489 = vunpack.c.h.b16 %v228
    %v1490 = vunpack.c.l.b16 %v229
    %v1491 = vunpack.c.h.b16 %v229
    %v1492 = vunpack.c.l.b16 %v230
    %v1493 = vunpack.c.h.b16 %v230
    %v1494 = vunpack.c.l.b16 %v231
    %v1495 = vunpack.c.h.b16 %v231
    %v1496 = vunpack.c.l.b16 %v232
    %v1497 = vunpack.c.h.b16 %v232
    %v1498 = vunpack.c.l.b16 %v233
    %v1499 = vunpack.c.h.b16 %v233
    %v1500 = vunpack.c.l.b16 %v234
    %v1501 = vunpack.c.h.b16 %v234
    %v1502 = vunpack.c.l.b16 %v235
    %v1503 = vunpack.c.h.b16 %v235
    %v1504 = vunpack.c.l.b16 %v236
    %v1505 = vunpack.c.h.b16 %v236
    %v1506 = vunpack.c.l.b16 %v237
    %v1507 = vunpack.c.h.b16 %v237
    %v1508 = vunpack.c.l.b16 %v238
    %v1509 = vunpack.c.h.b16 %v238
    %v1510 = vunpack.c.l.b16 %v239
    %v1511 = vunpack.c.h.b16 %v239
    %v1512 = vunpack.c.l.b16 %v240
    %v1513 = vunpack.c.h.b16 %v240
    %v1514 = vunpack.c.l.b16 %v241
    %v1515 = vunpack.c.h.b16 %v241
    %v1516 = vunpack.c.l.b16 %v242
    %v1517 = vunpack.c.h.b16 %v242
    %v1518 = vunpack.c.l.b16 %v243
    %v1519 = vunpack.c.h.b16 %v243
    %v1520 = vunpack.c.l.b16 %v244
    %v1521 = vunpack.c.h.b16 %v244
    %v1522 = vunpack.c.l.b16 %v245
    %v1523 = vunpack.c.h.b16 %v245
    %v1524 = vunpack.c.l.b16 %v246
    %v1525 = vunpack.c.h.b16 %v246
    %v1526 = vunpack.c.l.b16 %v247
    %v1527 = vunpack.c.h.b16 %v247
    %v1528 = vunpack.c.l.b16 %v248
    %v1529 = vunpack.c.h.b16 %v248
    %v1530 = vunpack.c.l.b16 %v249
    %v1531 = vunpack.c.h.b16 %v249
    %v1532 = vunpack.c.l.b16 %v250
    %v1533 = vunpack.c.h.b16 %v250
    %v1534 = vunpack.c.l.b16 %v251
    %v1535 = vunpack.c.h.b16 %v251
    %v1536 = vunpack.c.l.b16 %v252
    %v1537 = vunpack.c.h.b16 %v252
    %v1538 = vunpack.c.l.b16 %v253
    %v1539 = vunpack.c.h.b16 %v253
    %v1540 = vunpack.c.l.b16 %v254
    %v1541 = vunpack.c.h.b16 %v254
    %v1542 = vunpack.c.l.b16 %v255
    %v1543 = vunpack.c.h.b16 %v255
    %v1544 = vunpack.c.l.b16 %v256
    %v1545 = vunpack.c.h.b16 %v256
    %v1546 = vunpack.c.l.b16 %v257
    %v1547 = vunpack.c.h.b16 %v257
    %v1548 = vunpack.c.l.b16 %v258
    %v1549 = vunpack.c.h.b16 %v258
    %v1550 = vunpack.c.l.b16 %v259
    %v1551 = vunpack.c.h.b16 %v259
    %v1552 = vunpack.c.l.b16 %v260
    %v1553 = vunpack.c.h.b16 %v260
    %v1554 = vunpack.c.l.b16 %v261
    %v1555 = vunpack.c.h.b16 %v261
    %v1556 = vunpack.c.l.b16 %v262
    %v1557 = vunpack.c.h.b16 %v262
    %v1558 = vunpack.c.l.b16 %v263
    %v1559 = vunpack.c.h.b16 %v263
    %v1560 = vunpack.c.l.b16 %v264
    %v1561 = vunpack.c.h.b16 %v264
    %v1562 = vunpack.c.l.b16 %v265
    %v1563 = vunpack.c.h.b16 %v265
    %v1564 = vunpack.c.l.b16 %v266
    %v1565 = vunpack.c.h.b16 %v266
    %v1566 = vunpack.c.l.b16 %v267
    %v1567 = vunpack.c.h.b16 %v267
    %v1568 = vunpack.c.l.b16 %v268
    %v1569 = vunpack.c.h.b16 %v268
    %v1570 = vunpack.c.l.b16 %v269
    %v1571 = vunpack.c.h.b16 %v269
    %v1572 = vunpack.c.l.b16 %v270
    %v1573 = vunpack.c.h.b16 %v270
    %v1574 = vunpack.c.l.b16 %v271
    %v1575 = vunpack.c.h.b16 %v271
    %v1576 = vunpack.c.l.b16 %v272
    %v1577 = vunpack.c.h.b16 %v272
    %v1578 = vunpack.c.l.b16 %v273
    %v1579 = vunpack.c.h.b16 %v273
    %v1580 = vunpack.c.l.b16 %v274
    %v1581 = vunpack.c.h.b16 %v274
    %v1582 = vunpack.c.l.b16 %v275
    %v1583 = vunpack.c.h.b16 %v275
    %v1584 = vunpack.c.l.b16 %v276
    %v1585 = vunpack.c.h.b16 %v276
    %v1586 = vunpack.c.l.b16 %v277
    %v1587 = vunpack.c.h.b16 %v277
    %v1588 = vunpack.c.l.b16 %v278
    %v1589 = vunpack.c.h.b16 %v278
    %v1590 = vunpack.c.l.b16 %v279
    %v1591 = vunpack.c.h.b16 %v279
    %v1592 = vunpack.c.l.b16 %v280
    %v1593 = vunpack.c.h.b16 %v280
    %v1594 = vunpack.c.l.b16 %v281
    %v1595 = vunpack.c.h.b16 %v281
    %v1596 = vunpack.c.l.b16 %v282
    %v1597 = vunpack.c.h.b16 %v282
    %v1598 = vunpack.c.l.b16 %v283
    %v1599 = vunpack.c.h.b16 %v283
    %v1600 = vunpack.c.l.b16 %v284
    %v1601 = vunpack.c.h.b16 %v284
    %v1602 = vunpack.c.l.b16 %v285
    %v1603 = vunpack.c.h.b16 %v285
    %v1604 = vunpack.c.l.b16 %v286
    %v1605 = vunpack.c.h.b16 %v286
    %v1606 = vunpack.c.l.b16 %v287
    %v1607 = vunpack.c.h.b16 %v287
    %v1608 = vunpack.c.l.b16 %v288
    %v1609 = vunpack.c.h.b16 %v288
    %v1610 = vunpack.c.l.b16 %v289
    %v1611 = vunpack.c.h.b16 %v289
    %v1612 = vunpack.c.l.b16 %v290
    %v1613 = vunpack.c.h.b16 %v290
    %v1614 = vunpack.c.l.b16 %v291
    %v1615 = vunpack.c.h.b16 %v291
    %v1616 = vunpack.c.l.b16 %v292
    %v1617 = vunpack.c.h.b16 %v292
    %v1618 = vunpack.c.l.b16 %v293
    %v1619 = vunpack.c.h.b16 %v293
    %v1620 = vunpack.c.l.b16 %v294
    %v1621 = vunpack.c.h.b16 %v294
    %v1622 = vunpack.c.l.b16 %v295
    %v1623 = vunpack.c.h.b16 %v295
    %v1624 = vunpack.c.l.b16 %v296
    %v1625 = vunpack.c.h.b16 %v296
    %v1626 = vunpack.c.l.b16 %v297
    %v1627 = vunpack.c.h.b16 %v297
    %v1628 = vunpack.c.l.b16 %v298
    %v1629 = vunpack.c.h.b16 %v298
    %v1630 = vunpack.c.l.b16 %v299
    %v1631 = vunpack.c.h.b16 %v299
    %v1632 = vunpack.c.l.b16 %v300
    %v1633 = vunpack.c.h.b16 %v300
    %v1634 = vunpack.c.l.b16 %v301
    %v1635 = vunpack.c.h.b16 %v301
    %v1636 = vunpack.c.l.b16 %v302
    %v1637 = vunpack.c.h.b16 %v302
    %v1638 = vunpack.c.l.b16 %v303
    %v1639 = vunpack.c.h.b16 %v303
    %v1640 = vunpack.c.l.b16 %v304
    %v1641 = vunpack.c.h.b16 %v304
    %v1642 = vunpack.c.l.b16 %v305
    %v1643 = vunpack.c.h.b16 %v305
    %v1644 = vunpack.c.l.b16 %v306
    %v1645 = vunpack.c.h.b16 %v306
    %v1646 = vunpack.c.l.b16 %v307
    %v1647 = vunpack.c.h.b16 %v307
    %v1648 = vunpack.c.l.b16 %v308
    %v1649 = vunpack.c.h.b16 %v308
    %v1650 = vunpack.c.l.b16 %v309
    %v1651 = vunpack.c.h.b16 %v309
    %v1652 = vunpack.c.l.b16 %v310
    %v1653 = vunpack.c.h.b16 %v310
    %v1654 = vunpack.c.l.b16 %v311
    %v1655 = vunpack.c.h.b16 %v311
    %v1656 = vunpack.c.l.b16 %v312
    %v1657 = vunpack.c.h.b16 %v312
    %v1658 = vunpack.c.l.b16 %v313
    %v1659 = vunpack.c.h.b16 %v313
    %v1660 = vunpack.c.l.b16 %v314
    %v1661 = vunpack.c.h.b16 %v314
    %v1662 = vunpack.c.l.b16 %v315
    %v1663 = vunpack.c.h.b16 %v315
    %v1664 = vunpack.c.l.b16 %v316
    %v1665 = vunpack.c.h.b16 %v316
    %v1666 = vunpack.c.l.b16 %v317
    %v1667 = vunpack.c.h.b16 %v317
    %v1668 = vunpack.c.l.b16 %v318
    %v1669 = vunpack.c.h.b16 %v318
    %v1670 = vunpack.c.l.b16 %v319
    %v1671 = vunpack.c.h.b16 %v319
    %v1672 = vunpack.c.l.b16 %v320
    %v1673 = vunpack.c.h.b16 %v320
    %v1674 = vunpack.c.l.b16 %v321
    %v1675 = vunpack.c.h.b16 %v321
    %v1676 = vpack.c.b16 %v1316, %v1292
    %v1677 = vpack.c.b16 %v1317, %v1293
    %v1678 = vpack.c.b16 %v1318, %v1294
    %v1679 = vpack.c.b16 %v1319, %v1295
    %v1680 = vpack.c.b16 %v1320, %v1296
    %v1681 = vpack.c.b16 %v1321, %v1297
    %v1682 = vpack.c.b16 %v1322, %v1298
    %v1683 = vpack.c.b16 %v1323, %v1299
    %v1684 = vpack.c.b16 %v1324, %v1300
    %v1685 = vpack.c.b16 %v1325, %v1301
    %v1686 = vpack.c.b16 %v1326, %v1302
    %v1687 = vpack.c.b16 %v1327, %v1303
    %v1688 = vpack.c.b16 %v1328, %v1304
    %v1689 = vpack.c.b16 %v1329, %v1305
    %v1690 = vpack.c.b16 %v1330, %v1306
    %v1691 = vpack.c.b16 %v1331, %v1307
    %v1692 = vpack.c.b16 %v1332, %v1308
    %v1693 = vpack.c.b16 %v1333, %v1309
    %v1694 = vpack.c.b16 %v1334, %v1310
    %v1695 = vpack.c.b16 %v1335, %v1311
    %v1696 = vpack.c.b16 %v1336, %v1312
    %v1697 = vpack.c.b16 %v1337, %v1313
    %v1698 = vpack.c.b16 %v1338, %v1314
    %v1699 = vpack.c.b16 %v1339, %v1315
    %v1700 = vpack.c.b16 %v1364, %v1340
    %v1701 = vpack.c.b16 %v1365, %v1341
    %v1702 = vpack.c.b16 %v1366, %v1342
    %v1703 = vpack.c.b16 %v1367, %v1343
    %v1704 = vpack.c.b16 %v1368, %v1344
    %v1705 = vpack.c.b16 %v1369, %v1345
    %v1706 = vpack.c.b16 %v1370, %v1346
    %v1707 = vpack.c.b16 %v1371, %v1347
    %v1708 = vpack.c.b16 %v1372, %v1348
    %v1709 = vpack.c.b16 %v1373, %v1349
    %v1710 = vpack.c.b16 %v1374, %v1350
    %v1711 = vpack.c.b16 %v1375, %v1351
    %v1712 = vpack.c.b16 %v1376, %v1352
    %v1713 = vpack.c.b16 %v1377, %v1353
    %v1714 = vpack.c.b16 %v1378, %v1354
    %v1715 = vpack.c.b16 %v1379, %v1355
    %v1716 = vpack.c.b16 %v1380, %v1356
    %v1717 = vpack.c.b16 %v1381, %v1357
    %v1718 = vpack.c.b16 %v1382, %v1358
    %v1719 = vpack.c.b16 %v1383, %v1359
    %v1720 = vpack.c.b16 %v1384, %v1360
    %v1721 = vpack.c.b16 %v1385, %v1361
    %v1722 = vpack.c.b16 %v1386, %v1362
    %v1723 = vpack.c.b16 %v1387, %v1363
    %v1724 = vpack.c.b16 %v1412, %v1388
    %v1725 = vpack.c.b16 %v1413, %v1389
    %v1726 = vpack.c.b16 %v1414, %v1390
    %v1727 = vpack.c.b16 %v1415, %v1391
    %v1728 = vpack.c.b16 %v1416, %v1392
    %v1729 = vpack.c.b16 %v1417, %v1393
    %v1730 = vpack.c.b16 %v1418, %v1394
    %v1731 = vpack.c.b16 %v1419, %v1395
    %v1732 = vpack.c.b16 %v1420, %v1396
    %v1733 = vpack.c.b16 %v1421, %v1397
    %v1734 = vpack.c.b16 %v1422, %v1398
    %v1735 = vpack.c.b16 %v1423, %v1399
    %v1736 = vpack.c.b16 %v1424, %v1400
    %v1737 = vpack.c.b16 %v1425, %v1401
    %v1738 = vpack.c.b16 %v1426, %v1402
    %v1739 = vpack.c.b16 %v1427, %v1403
    %v1740 = vpack.c.b16 %v1428, %v1404
    %v1741 = vpack.c.b16 %v1429, %v1405
    %v1742 = vpack.c.b16 %v1430, %v1406
    %v1743 = vpack.c.b16 %v1431, %v1407
    %v1744 = vpack.c.b16 %v1432, %v1408
    %v1745 = vpack.c.b16 %v1433, %v1409
    %v1746 = vpack.c.b16 %v1434, %v1410
    %v1747 = vpack.c.b16 %v1435, %v1411
    %v1748 = vpack.c.b16 %v1460, %v1436
    %v1749 = vpack.c.b16 %v1461, %v1437
    %v1750 = vpack.c.b16 %v1462, %v1438
    %v1751 = vpack.c.b16 %v1463, %v1439
    %v1752 = vpack.c.b16 %v1464, %v1440
    %v1753 = vpack.c.b16 %v1465, %v1441
    %v1754 = vpack.c.b16 %v1466, %v1442
    %v1755 = vpack.c.b16 %v1467, %v1443
    %v1756 = vpack.c.b16 %v1468, %v1444
    %v1757 = vpack.c.b16 %v1469, %v1445
    %v1758 = vpack.c.b16 %v1470, %v1446
    %v1759 = vpack.c.b16 %v1471, %v1447
    %v1760 = vpack.c.b16 %v1472, %v1448
    %v1761 = vpack.c.b16 %v1473, %v1449
    %v1762 = vpack.c.b16 %v1474, %v1450
    %v1763 = vpack.c.b16 %v1475, %v1451
    %v1764 = vpack.c.b16 %v1476, %v1452
    %v1765 = vpack.c.b16 %v1477, %v1453
    %v1766 = vpack.c.b16 %v1478, %v1454
    %v1767 = vpack.c.b16 %v1479, %v1455
    %v1768 = vpack.c.b16 %v1480, %v1456
    %v1769 = vpack.c.b16 %v1481, %v1457
    %v1770 = vpack.c.b16 %v1482, %v1458
    %v1771 = vpack.c.b16 %v1483, %v1459
    %v1772 = vpack.c.b16 %v1508, %v1484
    %v1773 = vpack.c.b16 %v1509, %v1485
    %v1774 = vpack.c.b16 %v1510, %v1486
    %v1775 = vpack.c.b16 %v1511, %v1487
    %v1776 = vpack.c.b16 %v1512, %v1488
    %v1777 = vpack.c.b16 %v1513, %v1489
    %v1778 = vpack.c.b16 %v1514, %v1490
    %v1779 = vpack.c.b16 %v1515, %v1491
    %v1780 = vpack.c.b16 %v1516, %v1492
    %v1781 = vpack.c.b16 %v1517, %v1493
    %v1782 = vpack.c.b16 %v1518, %v1494
    %v1783 = vpack.c.b16 %v1519, %v1495
    %v1784 = vpack.c.b16 %v1520, %v1496
    %v1785 = vpack.c.b16 %v1521, %v1497
    %v1786 = vpack.c.b16 %v1522, %v1498
    %v1787 = vpack.c.b16 %v1523, %v1499
    %v1788 = vpack.c.b16 %v1524, %v1500
    %v1789 = vpack.c.b16 %v1525, %v1501
    %v1790 = vpack.c.b16 %v1526, %v1502
    %v1791 = vpack.c.b16 %v1527, %v1503
    %v1792 = vpack.c.b16 %v1528, %v1504
    %v1793 = vpack.c.b16 %v1529, %v1505
    %v1794 = vpack.c.b16 %v1530, %v1506
    %v1795 = vpack.c.b16 %v1531, %v1507
    %v1796 = vpack.c.b16 %v1556, %v1532
    %v1797 = vpack.c.b16 %v1557, %v1533
    %v1798 = vpack.c.b16 %v1558, %v1534
    %v1799 = vpack.c.b16 %v1559, %v1535
    %v1800 = vpack.c.b16 %v1560, %v1536
    %v1801 = vpack.c.b16 %v1561, %v1537
    %v1802 = vpack.c.b16 %v1562, %v1538
    %v1803 = vpack.c.b16 %v1563, %v1539
    %v1804 = vpack.c.b16 %v1564, %v1540
    %v1805 = vpack.c.b16 %v1565, %v1541
    %v1806 = vpack.c.b16 %v1566, %v1542
    %v1807 = vpack.c.b16 %v1567, %v1543
    %v1808 = vpack.c.b16 %v1568, %v1544
    %v1809 = vpack.c.b16 %v1569, %v1545
    %v1810 = vpack.c.b16 %v1570, %v1546
    %v1811 = vpack.c.b16 %v1571, %v1547
    %v1812 = vpack.c.b16 %v1572, %v1548
    %v1813 = vpack.c.b16 %v1573, %v1549
    %v1814 = vpack.c.b16 %v1574, %v1550
    %v1815 = vpack.c.b16 %v1575, %v1551
    %v1816 = vpack.c.b16 %v1576, %v1552
    %v1817 = vpack.c.b16 %v1577, %v1553
    %v1818 = vpack.c.b16 %v1578, %v1554
    %v1819 = vpack.c.b16 %v1579, %v1555
    %v1820 = vpack.c.b16 %v1604, %v1580
    %v1821 = vpack.c.b16 %v1605, %v1581
    %v1822 = vpack.c.b16 %v1606, %v1582
    %v1823 = vpack.c.b16 %v1607, %v1583
    %v1824 = vpack.c.b16 %v1608, %v1584
    %v1825 = vpack.c.b16 %v1609, %v1585
    %v1826 = vpack.c.b16 %v1610, %v1586
    %v1827 = vpack.c.b16 %v1611, %v1587
    %v1828 = vpack.c.b16 %v1612, %v1588
    %v1829 = vpack.c.b16 %v1613, %v1589
    %v1830 = vpack.c.b16 %v1614, %v1590
    %v1831 = vpack.c.b16 %v1615, %v1591
    %v1832 = vpack.c.b16 %v1616, %v1592
    %v1833 = vpack.c.b16 %v1617, %v1593
    %v1834 = vpack.c.b16 %v1618, %v1594
    %v1835 = vpack.c.b16 %v1619, %v1595
    %v1836 = vpack.c.b16 %v1620, %v1596
    %v1837 = vpack.c.b16 %v1621, %v1597
    %v1838 = vpack.c.b16 %v1622, %v1598
    %v1839 = vpack.c.b16 %v1623, %v1599
    %v1840 = vpack.c.b16 %v1624, %v1600
    %v1841 = vpack.c.b16 %v1625, %v1601
    %v1842 = vpack.c.b16 %v1626, %v1602
    %v1843 = vpack.c.b16 %v1627, %v1603
    %v1844 = vpack.c.b16 %v1652, %v1628
    %v1845 = vpack.c.b16 %v1653, %v1629
    %v1846 = vpack.c.b16 %v1654, %v1630
    %v1847 = vpack.c.b16 %v1655, %v1631
    %v1848 = vpack.c.b16 %v1656, %v1632
    %v1849 = vpack.c.b16 %v1657, %v1633
    %v1850 = vpack.c.b16 %v1658, %v1634
    %v1851 = vpack.c.b16 %v1659, %v1635
    %v1852 = vpack.c.b16 %v1660, %v1636
    %v1853 = vpack.c.b16 %v1661, %v1637
    %v1854 = vpack.c.b16 %v1662, %v1638
    %v1855 = vpack.c.b16 %v1663, %v1639
    %v1856 = vpack.c.b16 %v1664, %v1640
    %v1857 = vpack.c.b16 %v1665, %v1641
    %v1858 = vpack.c.b16 %v1666, %v1642
    %v1859 = vpack.c.b16 %v1667, %v1643
    %v1860 = vpack.c.b16 %v1668, %v1644
    %v1861 = vpack.c.b16 %v1669, %v1645
    %v1862 = vpack.c.b16 %v1670, %v1646
    %v1863 = vpack.c.b16 %v1671, %v1647
    %v1864 = vpack.c.b16 %v1672, %v1648
    %v1865 = vpack.c.b16 %v1673, %v1649
    %v1866 = vpack.c.b16 %v1674, %v1650
    %v1867 = vpack.c.b16 %v1675, %v1651
    %v2828 = vunpack.c.l.b16 %v322
    %v2829 = vunpack.c.h.b16 %v322
    %v2830 = vunpack.c.l.b16 %v323
    %v2831 = vunpack.c.h.b16 %v323
    %v2832 = vunpack.c.l.b16 %v324
    %v2833 = vunpack.c.h.b16 %v324
    %v2834 = vunpack.c.l.b16 %v325
    %v2835 = vunpack.c.h.b16 %v325
    %v2836 = vunpack.c.l.b16 %v326
    %v2837 = vunpack.c.h.b16 %v326
    %v2838 = vunpack.c.l.b16 %v327
    %v2839 = vunpack.c.h.b16 %v327
    %v2840 = vunpack.c.l.b16 %v328
    %v2841 = vunpack.c.h.b16 %v328
    %v2842 = vunpack.c.l.b16 %v329
    %v2843 = vunpack.c.h.b16 %v329
    %v2844 = vunpack.c.l.b16 %v330
    %v2845 = vunpack.c.h.b16 %v330
    %v2846 = vunpack.c.l.b16 %v331
    %v2847 = vunpack.c.h.b16 %v331
    %v2848 = vunpack.c.l.b16 %v332
    %v2849 = vunpack.c.h.b16 %v332
    %v2850 = vunpack.c.l.b16 %v333
    %v2851 = vunpack.c.h.b16 %v333
    %v2852 = vunpack.c.l.b16 %v334
    %v2853 = vunpack.c.h.b16 %v334
    %v2854 = vunpack.c.l.b16 %v335
    %v2855 = vunpack.c.h.b16 %v335
    %v2856 = vunpack.c.l.b16 %v336
    %v2857 = vunpack.c.h.b16 %v336
    %v2858 = vunpack.c.l.b16 %v337
    %v2859 = vunpack.c.h.b16 %v337
    %v2860 = vunpack.c.l.b16 %v338
    %v2861 = vunpack.c.h.b16 %v338
    %v2862 = vunpack.c.l.b16 %v339
    %v2863 = vunpack.c.h.b16 %v339
    %v2864 = vunpack.c.l.b16 %v340
    %v2865 = vunpack.c.h.b16 %v340
    %v2866 = vunpack.c.l.b16 %v341
    %v2867 = vunpack.c.h.b16 %v341
    %v2868 = vunpack.c.l.b16 %v342
    %v2869 = vunpack.c.h.b16 %v342
    %v2870 = vunpack.c.l.b16 %v343
    %v2871 = vunpack.c.h.b16 %v343
    %v2872 = vunpack.c.l.b16 %v344
    %v2873 = vunpack.c.h.b16 %v344
    %v2874 = vunpack.c.l.b16 %v345
    %v2875 = vunpack.c.h.b16 %v345
    %v2876 = vunpack.c.l.b16 %v346
    %v2877 = vunpack.c.h.b16 %v346
    %v2878 = vunpack.c.l.b16 %v347
    %v2879 = vunpack.c.h.b16 %v347
    %v2880 = vunpack.c.l.b16 %v348
    %v2881 = vunpack.c.h.b16 %v348
    %v2882 = vunpack.c.l.b16 %v349
    %v2883 = vunpack.c.h.b16 %v349
    %v2884 = vunpack.c.l.b16 %v350
    %v2885 = vunpack.c.h.b16 %v350
    %v2886 = vunpack.c.l.b16 %v351
    %v2887 = vunpack.c.h.b16 %v351
    %v2888 = vunpack.c.l.b16 %v352
    %v2889 = vunpack.c.h.b16 %v352
    %v2890 = vunpack.c.l.b16 %v353
    %v2891 = vunpack.c.h.b16 %v353
    %v2892 = vunpack.c.l.b16 %v354
    %v2893 = vunpack.c.h.b16 %v354
    %v2894 = vunpack.c.l.b16 %v355
    %v2895 = vunpack.c.h.b16 %v355
    %v2896 = vunpack.c.l.b16 %v356
    %v2897 = vunpack.c.h.b16 %v356
    %v2898 = vunpack.c.l.b16 %v357
    %v2899 = vunpack.c.h.b16 %v357
    %v2900 = vunpack.c.l.b16 %v358
    %v2901 = vunpack.c.h.b16 %v358
    %v2902 = vunpack.c.l.b16 %v359
    %v2903 = vunpack.c.h.b16 %v359
    %v2904 = vunpack.c.l.b16 %v360
    %v2905 = vunpack.c.h.b16 %v360
    %v2906 = vunpack.c.l.b16 %v361
    %v2907 = vunpack.c.h.b16 %v361
    %v2908 = vunpack.c.l.b16 %v362
    %v2909 = vunpack.c.h.b16 %v362
    %v2910 = vunpack.c.l.b16 %v363
    %v2911 = vunpack.c.h.b16 %v363
    %v2912 = vunpack.c.l.b16 %v364
    %v2913 = vunpack.c.h.b16 %v364
    %v2914 = vunpack.c.l.b16 %v365
    %v2915 = vunpack.c.h.b16 %v365
    %v2916 = vunpack.c.l.b16 %v366
    %v2917 = vunpack.c.h.b16 %v366
    %v2918 = vunpack.c.l.b16 %v367
    %v2919 = vunpack.c.h.b16 %v367
    %v2920 = vunpack.c.l.b16 %v368
    %v2921 = vunpack.c.h.b16 %v368
    %v2922 = vunpack.c.l.b16 %v369
    %v2923 = vunpack.c.h.b16 %v369
    %v2924 = vunpack.c.l.b16 %v370
    %v2925 = vunpack.c.h.b16 %v370
    %v2926 = vunpack.c.l.b16 %v371
    %v2927 = vunpack.c.h.b16 %v371
    %v2928 = vunpack.c.l.b16 %v372
    %v2929 = vunpack.c.h.b16 %v372
    %v2930 = vunpack.c.l.b16 %v373
    %v2931 = vunpack.c.h.b16 %v373
    %v2932 = vunpack.c.l.b16 %v374
    %v2933 = vunpack.c.h.b16 %v374
    %v2934 = vunpack.c.l.b16 %v375
    %v2935 = vunpack.c.h.b16 %v375
    %v2936 = vunpack.c.l.b16 %v376
    %v2937 = vunpack.c.h.b16 %v376
    %v2938 = vunpack.c.l.b16 %v377
    %v2939 = vunpack.c.h.b16 %v377
    %v2940 = vunpack.c.l.b16 %v378
    %v2941 = vunpack.c.h.b16 %v378
    %v2942 = vunpack.c.l.b16 %v379
    %v2943 = vunpack.c.h.b16 %v379
    %v2944 = vunpack.c.l.b16 %v380
    %v2945 = vunpack.c.h.b16 %v380
    %v2946 = vunpack.c.l.b16 %v381
    %v2947 = vunpack.c.h.b16 %v381
    %v2948 = vunpack.c.l.b16 %v382
    %v2949 = vunpack.c.h.b16 %v382
    %v2950 = vunpack.c.l.b16 %v383
    %v2951 = vunpack.c.h.b16 %v383
    %v2952 = vunpack.c.l.b16 %v384
    %v2953 = vunpack.c.h.b16 %v384
    %v2954 = vunpack.c.l.b16 %v385
    %v2955 = vunpack.c.h.b16 %v385
    %v2956 = vunpack.c.l.b16 %v386
    %v2957 = vunpack.c.h.b16 %v386
    %v2958 = vunpack.c.l.b16 %v387
    %v2959 = vunpack.c.h.b16 %v387
    %v2960 = vunpack.c.l.b16 %v388
    %v2961 = vunpack.c.h.b16 %v388
    %v2962 = vunpack.c.l.b16 %v389
    %v2963 = vunpack.c.h.b16 %v389
    %v2964 = vunpack.c.l.b16 %v390
    %v2965 = vunpack.c.h.b16 %v390
    %v2966 = vunpack.c.l.b16 %v391
    %v2967 = vunpack.c.h.b16 %v391
    %v2968 = vunpack.c.l.b16 %v392
    %v2969 = vunpack.c.h.b16 %v392
    %v2970 = vunpack.c.l.b16 %v393
    %v2971 = vunpack.c.h.b16 %v393
    %v2972 = vunpack.c.l.b16 %v394
    %v2973 = vunpack.c.h.b16 %v394
    %v2974 = vunpack.c.l.b16 %v395
    %v2975 = vunpack.c.h.b16 %v395
    %v2976 = vunpack.c.l.b16 %v396
    %v2977 = vunpack.c.h.b16 %v396
    %v2978 = vunpack.c.l.b16 %v397
    %v2979 = vunpack.c.h.b16 %v397
    %v2980 = vunpack.c.l.b16 %v398
    %v2981 = vunpack.c.h.b16 %v398
    %v2982 = vunpack.c.l.b16 %v399
    %v2983 = vunpack.c.h.b16 %v399
    %v2984 = vunpack.c.l.b16 %v400
    %v2985 = vunpack.c.h.b16 %v400
    %v2986 = vunpack.c.l.b16 %v401
    %v2987 = vunpack.c.h.b16 %v401
    %v2988 = vunpack.c.l.b16 %v402
    %v2989 = vunpack.c.h.b16 %v402
    %v2990 = vunpack.c.l.b16 %v403
    %v2991 = vunpack.c.h.b16 %v403
    %v2992 = vunpack.c.l.b16 %v404
    %v2993 = vunpack.c.h.b16 %v404
    %v2994 = vunpack.c.l.b16 %v405
    %v2995 = vunpack.c.h.b16 %v405
    %v2996 = vunpack.c.l.b16 %v406
    %v2997 = vunpack.c.h.b16 %v406
    %v2998 = vunpack.c.l.b16 %v407
    %v2999 = vunpack.c.h.b16 %v407
    %v3000 = vunpack.c.l.b16 %v408
    %v3001 = vunpack.c.h.b16 %v408
    %v3002 = vunpack.c.l.b16 %v409
    %v3003 = vunpack.c.h.b16 %v409
    %v3004 = vunpack.c.l.b16 %v410
    %v3005 = vunpack.c.h.b16 %v410
    %v3006 = vunpack.c.l.b16 %v411
    %v3007 = vunpack.c.h.b16 %v411
    %v3008 = vunpack.c.l.b16 %v412
    %v3009 = vunpack.c.h.b16 %v412
    %v3010 = vunpack.c.l.b16 %v413
    %v3011 = vunpack.c.h.b16 %v413
    %v3012 = vunpack.c.l.b16 %v414
    %v3013 = vunpack.c.h.b16 %v414
    %v3014 = vunpack.c.l.b16 %v415
    %v3015 = vunpack.c.h.b16 %v415
    %v3016 = vunpack.c.l.b16 %v416
    %v3017 = vunpack.c.h.b16 %v416
    %v3018 = vunpack.c.l.b16 %v417
    %v3019 = vunpack.c.h.b16 %v417
    %v3020 = vunpack.c.l.b16 %v418
    %v3021 = vunpack.c.h.b16 %v418
    %v3022 = vunpack.c.l.b16 %v419
    %v3023 = vunpack.c.h.b16 %v419
    %v3024 = vunpack.c.l.b16 %v420
    %v3025 = vunpack.c.h.b16 %v420
    %v3026 = vunpack.c.l.b16 %v421
    %v3027 = vunpack.c.h.b16 %v421
    %v3028 = vunpack.c.l.b16 %v422
    %v3029 = vunpack.c.h.b16 %v422
    %v3030 = vunpack.c.l.b16 %v423
    %v3031 = vunpack.c.h.b16 %v423
    %v3032 = vunpack.c.l.b16 %v424
    %v3033 = vunpack.c.h.b16 %v424
    %v3034 = vunpack.c.l.b16 %v425
    %v3035 = vunpack.c.h.b16 %v425
    %v3036 = vunpack.c.l.b16 %v426
    %v3037 = vunpack.c.h.b16 %v426
    %v3038 = vunpack.c.l.b16 %v427
    %v3039 = vunpack.c.h.b16 %v427
    %v3040 = vunpack.c.l.b16 %v428
    %v3041 = vunpack.c.h.b16 %v428
    %v3042 = vunpack.c.l.b16 %v429
    %v3043 = vunpack.c.h.b16 %v429
    %v3044 = vunpack.c.l.b16 %v430
    %v3045 = vunpack.c.h.b16 %v430
    %v3046 = vunpack.c.l.b16 %v431
    %v3047 = vunpack.c.h.b16 %v431
    %v3048 = vunpack.c.l.b16 %v432
    %v3049 = vunpack.c.h.b16 %v432
    %v3050 = vunpack.c.l.b16 %v433
    %v3051 = vunpack.c.h.b16 %v433
    %v3052 = vunpack.c.l.b16 %v434
    %v3053 = vunpack.c.h.b16 %v434
    %v3054 = vunpack.c.l.b16 %v435
    %v3055 = vunpack.c.h.b16 %v435
    %v3056 = vunpack.c.l.b16 %v436
    %v3057 = vunpack.c.h.b16 %v436
    %v3058 = vunpack.c.l.b16 %v437
    %v3059 = vunpack.c.h.b16 %v437
    %v3060 = vunpack.c.l.b16 %v438
    %v3061 = vunpack.c.h.b16 %v438
    %v3062 = vunpack.c.l.b16 %v439
    %v3063 = vunpack.c.h.b16 %v439
    %v3064 = vunpack.c.l.b16 %v440
    %v3065 = vunpack.c.h.b16 %v440
    %v3066 = vunpack.c.l.b16 %v441
    %v3067 = vunpack.c.h.b16 %v441
    %v3068 = vunpack.c.l.b16 %v442
    %v3069 = vunpack.c.h.b16 %v442
    %v3070 = vunpack.c.l.b16 %v443
    %v3071 = vunpack.c.h.b16 %v443
    %v3072 = vunpack.c.l.b16 %v444
    %v3073 = vunpack.c.h.b16 %v444
    %v3074 = vunpack.c.l.b16 %v445
    %v3075 = vunpack.c.h.b16 %v445
    %v3076 = vunpack.c.l.b16 %v446
    %v3077 = vunpack.c.h.b16 %v446
    %v3078 = vunpack.c.l.b16 %v447
    %v3079 = vunpack.c.h.b16 %v447
    %v3080 = vunpack.c.l.b16 %v448
    %v3081 = vunpack.c.h.b16 %v448
    %v3082 = vunpack.c.l.b16 %v449
    %v3083 = vunpack.c.h.b16 %v449
    %v3084 = vunpack.c.l.b16 %v450
    %v3085 = vunpack.c.h.b16 %v450
    %v3086 = vunpack.c.l.b16 %v451
    %v3087 = vunpack.c.h.b16 %v451
    %v3088 = vunpack.c.l.b16 %v452
    %v3089 = vunpack.c.h.b16 %v452
    %v3090 = vunpack.c.l.b16 %v453
    %v3091 = vunpack.c.h.b16 %v453
    %v3092 = vunpack.c.l.b16 %v454
    %v3093 = vunpack.c.h.b16 %v454
    %v3094 = vunpack.c.l.b16 %v455
    %v3095 = vunpack.c.h.b16 %v455
    %v3096 = vunpack.c.l.b16 %v456
    %v3097 = vunpack.c.h.b16 %v456
    %v3098 = vunpack.c.l.b16 %v457
    %v3099 = vunpack.c.h.b16 %v457
    %v3100 = vunpack.c.l.b16 %v458
    %v3101 = vunpack.c.h.b16 %v458
    %v3102 = vunpack.c.l.b16 %v459
    %v3103 = vunpack.c.h.b16 %v459
    %v3104 = vunpack.c.l.b16 %v460
    %v3105 = vunpack.c.h.b16 %v460
    %v3106 = vunpack.c.l.b16 %v461
    %v3107 = vunpack.c.h.b16 %v461
    %v3108 = vunpack.c.l.b16 %v462
    %v3109 = vunpack.c.h.b16 %v462
    %v3110 = vunpack.c.l.b16 %v463
    %v3111 = vunpack.c.h.b16 %v463
    %v3112 = vunpack.c.l.b16 %v464
    %v3113 = vunpack.c.h.b16 %v464
    %v3114 = vunpack.c.l.b16 %v465
    %v3115 = vunpack.c.h.b16 %v465
    %v3116 = vunpack.c.l.b16 %v466
    %v3117 = vunpack.c.h.b16 %v466
    %v3118 = vunpack.c.l.b16 %v467
    %v3119 = vunpack.c.h.b16 %v467
    %v3120 = vunpack.c.l.b16 %v468
    %v3121 = vunpack.c.h.b16 %v468
    %v3122 = vunpack.c.l.b16 %v469
    %v3123 = vunpack.c.h.b16 %v469
    %v3124 = vunpack.c.l.b16 %v470
    %v3125 = vunpack.c.h.b16 %v470
    %v3126 = vunpack.c.l.b16 %v471
    %v3127 = vunpack.c.h.b16 %v471
    %v3128 = vunpack.c.l.b16 %v472
    %v3129 = vunpack.c.h.b16 %v472
    %v3130 = vunpack.c.l.b16 %v473
    %v3131 = vunpack.c.h.b16 %v473
    %v3132 = vunpack.c.l.b16 %v474
    %v3133 = vunpack.c.h.b16 %v474
    %v3134 = vunpack.c.l.b16 %v475
    %v3135 = vunpack.c.h.b16 %v475
    %v3136 = vunpack.c.l.b16 %v476
    %v3137 = vunpack.c.h.b16 %v476
    %v3138 = vunpack.c.l.b16 %v477
    %v3139 = vunpack.c.h.b16 %v477
    %v3140 = vunpack.c.l.b16 %v478
    %v3141 = vunpack.c.h.b16 %v478
    %v3142 = vunpack.c.l.b16 %v479
    %v3143 = vunpack.c.h.b16 %v479
    %v3144 = vunpack.c.l.b16 %v480
    %v3145 = vunpack.c.h.b16 %v480
    %v3146 = vunpack.c.l.b16 %v481
    %v3147 = vunpack.c.h.b16 %v481
    %v3148 = vunpack.c.l.b16 %v482
    %v3149 = vunpack.c.h.b16 %v482
    %v3150 = vunpack.c.l.b16 %v483
    %v3151 = vunpack.c.h.b16 %v483
    %v3152 = vunpack.c.l.b16 %v484
    %v3153 = vunpack.c.h.b16 %v484
    %v3154 = vunpack.c.l.b16 %v485
    %v3155 = vunpack.c.h.b16 %v485
    %v3156 = vunpack.c.l.b16 %v486
    %v3157 = vunpack.c.h.b16 %v486
    %v3158 = vunpack.c.l.b16 %v487
    %v3159 = vunpack.c.h.b16 %v487
    %v3160 = vunpack.c.l.b16 %v488
    %v3161 = vunpack.c.h.b16 %v488
    %v3162 = vunpack.c.l.b16 %v489
    %v3163 = vunpack.c.h.b16 %v489
    %v3164 = vunpack.c.l.b16 %v490
    %v3165 = vunpack.c.h.b16 %v490
    %v3166 = vunpack.c.l.b16 %v491
    %v3167 = vunpack.c.h.b16 %v491
    %v3168 = vunpack.c.l.b16 %v492
    %v3169 = vunpack.c.h.b16 %v492
    %v3170 = vunpack.c.l.b16 %v493
    %v3171 = vunpack.c.h.b16 %v493
    %v3172 = vunpack.c.l.b16 %v494
    %v3173 = vunpack.c.h.b16 %v494
    %v3174 = vunpack.c.l.b16 %v495
    %v3175 = vunpack.c.h.b16 %v495
    %v3176 = vunpack.c.l.b16 %v496
    %v3177 = vunpack.c.h.b16 %v496
    %v3178 = vunpack.c.l.b16 %v497
    %v3179 = vunpack.c.h.b16 %v497
    %v3180 = vunpack.c.l.b16 %v498
    %v3181 = vunpack.c.h.b16 %v498
    %v3182 = vunpack.c.l.b16 %v499
    %v3183 = vunpack.c.h.b16 %v499
    %v3184 = vunpack.c.l.b16 %v500
    %v3185 = vunpack.c.h.b16 %v500
    %v3186 = vunpack.c.l.b16 %v501
    %v3187 = vunpack.c.h.b16 %v501
    %v3188 = vunpack.c.l.b16 %v502
    %v3189 = vunpack.c.h.b16 %v502
    %v3190 = vunpack.c.l.b16 %v503
    %v3191 = vunpack.c.h.b16 %v503
    %v3192 = vunpack.c.l.b16 %v504
    %v3193 = vunpack.c.h.b16 %v504
    %v3194 = vunpack.c.l.b16 %v505
    %v3195 = vunpack.c.h.b16 %v505
    %v3196 = vunpack.c.l.b16 %v506
    %v3197 = vunpack.c.h.b16 %v506
    %v3198 = vunpack.c.l.b16 %v507
    %v3199 = vunpack.c.h.b16 %v507
    %v3200 = vunpack.c.l.b16 %v508
    %v3201 = vunpack.c.h.b16 %v508
    %v3202 = vunpack.c.l.b16 %v509
    %v3203 = vunpack.c.h.b16 %v509
    %v3204 = vunpack.c.l.b16 %v510
    %v3205 = vunpack.c.h.b16 %v510
    %v3206 = vunpack.c.l.b16 %v511
    %v3207 = vunpack.c.h.b16 %v511
    %v3208 = vunpack.c.l.b16 %v512
    %v3209 = vunpack.c.h.b16 %v512
    %v3210 = vunpack.c.l.b16 %v513
    %v3211 = vunpack.c.h.b16 %v513
    %v3212 = vunpack.c.l.b16 %v514
    %v3213 = vunpack.c.h.b16 %v514
    %v3214 = vunpack.c.l.b16 %v515
    %v3215 = vunpack.c.h.b16 %v515
    %v3216 = vunpack.c.l.b16 %v516
    %v3217 = vunpack.c.h.b16 %v516
    %v3218 = vunpack.c.l.b16 %v517
    %v3219 = vunpack.c.h.b16 %v517
    %v3220 = vunpack.c.l.b16 %v518
    %v3221 = vunpack.c.h.b16 %v518
    %v3222 = vunpack.c.l.b16 %v519
    %v3223 = vunpack.c.h.b16 %v519
    %v3224 = vunpack.c.l.b16 %v520
    %v3225 = vunpack.c.h.b16 %v520
    %v3226 = vunpack.c.l.b16 %v521
    %v3227 = vunpack.c.h.b16 %v521
    %v3228 = vunpack.c.l.b16 %v522
    %v3229 = vunpack.c.h.b16 %v522
    %v3230 = vunpack.c.l.b16 %v523
    %v3231 = vunpack.c.h.b16 %v523
    %v3232 = vunpack.c.l.b16 %v524
    %v3233 = vunpack.c.h.b16 %v524
    %v3234 = vunpack.c.l.b16 %v525
    %v3235 = vunpack.c.h.b16 %v525
    %v3236 = vunpack.c.l.b16 %v526
    %v3237 = vunpack.c.h.b16 %v526
    %v3238 = vunpack.c.l.b16 %v527
    %v3239 = vunpack.c.h.b16 %v527
    %v3240 = vunpack.c.l.b16 %v528
    %v3241 = vunpack.c.h.b16 %v528
    %v3242 = vunpack.c.l.b16 %v529
    %v3243 = vunpack.c.h.b16 %v529
    %v3244 = vunpack.c.l.b16 %v530
    %v3245 = vunpack.c.h.b16 %v530
    %v3246 = vunpack.c.l.b16 %v531
    %v3247 = vunpack.c.h.b16 %v531
    %v3248 = vunpack.c.l.b16 %v532
    %v3249 = vunpack.c.h.b16 %v532
    %v3250 = vunpack.c.l.b16 %v533
    %v3251 = vunpack.c.h.b16 %v533
    %v3252 = vunpack.c.l.b16 %v534
    %v3253 = vunpack.c.h.b16 %v534
    %v3254 = vunpack.c.l.b16 %v535
    %v3255 = vunpack.c.h.b16 %v535
    %v3256 = vunpack.c.l.b16 %v536
    %v3257 = vunpack.c.h.b16 %v536
    %v3258 = vunpack.c.l.b16 %v537
    %v3259 = vunpack.c.h.b16 %v537
    %v3260 = vunpack.c.l.b16 %v538
    %v3261 = vunpack.c.h.b16 %v538
    %v3262 = vunpack.c.l.b16 %v539
    %v3263 = vunpack.c.h.b16 %v539
    %v3264 = vunpack.c.l.b16 %v540
    %v3265 = vunpack.c.h.b16 %v540
    %v3266 = vunpack.c.l.b16 %v541
    %v3267 = vunpack.c.h.b16 %v541
    %v3268 = vunpack.c.l.b16 %v542
    %v3269 = vunpack.c.h.b16 %v542
    %v3270 = vunpack.c.l.b16 %v543
    %v3271 = vunpack.c.h.b16 %v543
    %v3272 = vunpack.c.l.b16 %v544
    %v3273 = vunpack.c.h.b16 %v544
    %v3274 = vunpack.c.l.b16 %v545
    %v3275 = vunpack.c.h.b16 %v545
    %v3276 = vunpack.c.l.b16 %v546
    %v3277 = vunpack.c.h.b16 %v546
    %v3278 = vunpack.c.l.b16 %v547
    %v3279 = vunpack.c.h.b16 %v547
    %v3280 = vunpack.c.l.b16 %v548
    %v3281 = vunpack.c.h.b16 %v548
    %v3282 = vunpack.c.l.b16 %v549
    %v3283 = vunpack.c.h.b16 %v549
    %v3284 = vunpack.c.l.b16 %v550
    %v3285 = vunpack.c.h.b16 %v550
    %v3286 = vunpack.c.l.b16 %v551
    %v3287 = vunpack.c.h.b16 %v551
    %v3288 = vunpack.c.l.b16 %v552
    %v3289 = vunpack.c.h.b16 %v552
    %v3290 = vunpack.c.l.b16 %v553
    %v3291 = vunpack.c.h.b16 %v553
    %v3292 = vunpack.c.l.b16 %v554
    %v3293 = vunpack.c.h.b16 %v554
    %v3294 = vunpack.c.l.b16 %v555
    %v3295 = vunpack.c.h.b16 %v555
    %v3296 = vunpack.c.l.b16 %v556
    %v3297 = vunpack.c.h.b16 %v556
    %v3298 = vunpack.c.l.b16 %v557
    %v3299 = vunpack.c.h.b16 %v557
    %v3300 = vunpack.c.l.b16 %v558
    %v3301 = vunpack.c.h.b16 %v558
    %v3302 = vunpack.c.l.b16 %v559
    %v3303 = vunpack.c.h.b16 %v559
    %v3304 = vunpack.c.l.b16 %v560
    %v3305 = vunpack.c.h.b16 %v560
    %v3306 = vunpack.c.l.b16 %v561
    %v3307 = vunpack.c.h.b16 %v561
    %v3308 = vunpack.c.l.b16 %v562
    %v3309 = vunpack.c.h.b16 %v562
    %v3310 = vunpack.c.l.b16 %v563
    %v3311 = vunpack.c.h.b16 %v563
    %v3312 = vunpack.c.l.b16 %v564
    %v3313 = vunpack.c.h.b16 %v564
    %v3314 = vunpack.c.l.b16 %v565
    %v3315 = vunpack.c.h.b16 %v565
    %v3316 = vunpack.c.l.b16 %v566
    %v3317 = vunpack.c.h.b16 %v566
    %v3318 = vunpack.c.l.b16 %v567
    %v3319 = vunpack.c.h.b16 %v567
    %v3320 = vunpack.c.l.b16 %v568
    %v3321 = vunpack.c.h.b16 %v568
    %v3322 = vunpack.c.l.b16 %v569
    %v3323 = vunpack.c.h.b16 %v569
    %v3324 = vunpack.c.l.b16 %v570
    %v3325 = vunpack.c.h.b16 %v570
    %v3326 = vunpack.c.l.b16 %v571
    %v3327 = vunpack.c.h.b16 %v571
    %v3328 = vunpack.c.l.b16 %v572
    %v3329 = vunpack.c.h.b16 %v572
    %v3330 = vunpack.c.l.b16 %v573
    %v3331 = vunpack.c.h.b16 %v573
    %v3332 = vunpack.c.l.b16 %v574
    %v3333 = vunpack.c.h.b16 %v574
    %v3334 = vunpack.c.l.b16 %v575
    %v3335 = vunpack.c.h.b16 %v575
    %v3336 = vunpack.c.l.b16 %v576
    %v3337 = vunpack.c.h.b16 %v576
    %v3338 = vunpack.c.l.b16 %v577
    %v3339 = vunpack.c.h.b16 %v577
    %v3340 = vunpack.c.l.b16 %v578
    %v3341 = vunpack.c.h.b16 %v578
    %v3342 = vunpack.c.l.b16 %v579
    %v3343 = vunpack.c.h.b16 %v579
    %v3344 = vunpack.c.l.b16 %v580
    %v3345 = vunpack.c.h.b16 %v580
    %v3346 = vunpack.c.l.b16 %v581
    %v3347 = vunpack.c.h.b16 %v581
    %v3348 = vunpack.c.l.b16 %v582
    %v3349 = vunpack.c.h.b16 %v582
    %v3350 = vunpack.c.l.b16 %v583
    %v3351 = vunpack.c.h.b16 %v583
    %v3352 = vunpack.c.l.b16 %v584
    %v3353 = vunpack.c.h.b16 %v584
    %v3354 = vunpack.c.l.b16 %v585
    %v3355 = vunpack.c.h.b16 %v585
    %v3356 = vunpack.c.l.b16 %v586
    %v3357 = vunpack.c.h.b16 %v586
    %v3358 = vunpack.c.l.b16 %v587
    %v3359 = vunpack.c.h.b16 %v587
    %v3360 = vunpack.c.l.b16 %v588
    %v3361 = vunpack.c.h.b16 %v588
    %v3362 = vunpack.c.l.b16 %v589
    %v3363 = vunpack.c.h.b16 %v589
    %v3364 = vunpack.c.l.b16 %v590
    %v3365 = vunpack.c.h.b16 %v590
    %v3366 = vunpack.c.l.b16 %v591
    %v3367 = vunpack.c.h.b16 %v591
    %v3368 = vunpack.c.l.b16 %v592
    %v3369 = vunpack.c.h.b16 %v592
    %v3370 = vunpack.c.l.b16 %v593
    %v3371 = vunpack.c.h.b16 %v593
    %v3372 = vunpack.c.l.b16 %v594
    %v3373 = vunpack.c.h.b16 %v594
    %v3374 = vunpack.c.l.b16 %v595
    %v3375 = vunpack.c.h.b16 %v595
    %v3376 = vunpack.c.l.b16 %v596
    %v3377 = vunpack.c.h.b16 %v596
    %v3378 = vunpack.c.l.b16 %v597
    %v3379 = vunpack.c.h.b16 %v597
    %v3380 = vunpack.c.l.b16 %v598
    %v3381 = vunpack.c.h.b16 %v598
    %v3382 = vunpack.c.l.b16 %v599
    %v3383 = vunpack.c.h.b16 %v599
    %v3384 = vunpack.c.l.b16 %v600
    %v3385 = vunpack.c.h.b16 %v600
    %v3386 = vunpack.c.l.b16 %v601
    %v3387 = vunpack.c.h.b16 %v601
    %v3388 = vunpack.c.l.b16 %v602
    %v3389 = vunpack.c.h.b16 %v602
    %v3390 = vunpack.c.l.b16 %v603
    %v3391 = vunpack.c.h.b16 %v603
    %v3392 = vunpack.c.l.b16 %v604
    %v3393 = vunpack.c.h.b16 %v604
    %v3394 = vunpack.c.l.b16 %v605
    %v3395 = vunpack.c.h.b16 %v605
    %v3396 = vunpack.c.l.b16 %v606
    %v3397 = vunpack.c.h.b16 %v606
    %v3398 = vunpack.c.l.b16 %v607
    %v3399 = vunpack.c.h.b16 %v607
    %v3400 = vunpack.c.l.b16 %v608
    %v3401 = vunpack.c.h.b16 %v608
    %v3402 = vunpack.c.l.b16 %v609
    %v3403 = vunpack.c.h.b16 %v609
    %v3404 = vunpack.c.l.b16 %v610
    %v3405 = vunpack.c.h.b16 %v610
    %v3406 = vunpack.c.l.b16 %v611
    %v3407 = vunpack.c.h.b16 %v611
    %v3408 = vunpack.c.l.b16 %v612
    %v3409 = vunpack.c.h.b16 %v612
    %v3410 = vunpack.c.l.b16 %v613
    %v3411 = vunpack.c.h.b16 %v613
    %v3412 = vunpack.c.l.b16 %v614
    %v3413 = vunpack.c.h.b16 %v614
    %v3414 = vunpack.c.l.b16 %v615
    %v3415 = vunpack.c.h.b16 %v615
    %v3416 = vunpack.c.l.b16 %v616
    %v3417 = vunpack.c.h.b16 %v616
    %v3418 = vunpack.c.l.b16 %v617
    %v3419 = vunpack.c.h.b16 %v617
    %v3420 = vunpack.c.l.b16 %v618
    %v3421 = vunpack.c.h.b16 %v618
    %v3422 = vunpack.c.l.b16 %v619
    %v3423 = vunpack.c.h.b16 %v619
    %v3424 = vunpack.c.l.b16 %v620
    %v3425 = vunpack.c.h.b16 %v620
    %v3426 = vunpack.c.l.b16 %v621
    %v3427 = vunpack.c.h.b16 %v621
    %v3428 = vunpack.c.l.b16 %v622
    %v3429 = vunpack.c.h.b16 %v622
    %v3430 = vunpack.c.l.b16 %v623
    %v3431 = vunpack.c.h.b16 %v623
    %v3432 = vunpack.c.l.b16 %v624
    %v3433 = vunpack.c.h.b16 %v624
    %v3434 = vunpack.c.l.b16 %v625
    %v3435 = vunpack.c.h.b16 %v625
    %v3436 = vunpack.c.l.b16 %v626
    %v3437 = vunpack.c.h.b16 %v626
    %v3438 = vunpack.c.l.b16 %v627
    %v3439 = vunpack.c.h.b16 %v627
    %v3440 = vunpack.c.l.b16 %v628
    %v3441 = vunpack.c.h.b16 %v628
    %v3442 = vunpack.c.l.b16 %v629
    %v3443 = vunpack.c.h.b16 %v629
    %v3444 = vunpack.c.l.b16 %v630
    %v3445 = vunpack.c.h.b16 %v630
    %v3446 = vunpack.c.l.b16 %v631
    %v3447 = vunpack.c.h.b16 %v631
    %v3448 = vunpack.c.l.b16 %v632
    %v3449 = vunpack.c.h.b16 %v632
    %v3450 = vunpack.c.l.b16 %v633
    %v3451 = vunpack.c.h.b16 %v633
    %v3452 = vunpack.c.l.b16 %v634
    %v3453 = vunpack.c.h.b16 %v634
    %v3454 = vunpack.c.l.b16 %v635
    %v3455 = vunpack.c.h.b16 %v635
    %v3456 = vunpack.c.l.b16 %v636
    %v3457 = vunpack.c.h.b16 %v636
    %v3458 = vunpack.c.l.b16 %v637
    %v3459 = vunpack.c.h.b16 %v637
    %v3460 = vunpack.c.l.b16 %v638
    %v3461 = vunpack.c.h.b16 %v638
    %v3462 = vunpack.c.l.b16 %v639
    %v3463 = vunpack.c.h.b16 %v639
    %v3464 = vunpack.c.l.b16 %v640
    %v3465 = vunpack.c.h.b16 %v640
    %v3466 = vunpack.c.l.b16 %v641
    %v3467 = vunpack.c.h.b16 %v641
    %v3468 = vunpack.c.l.b16 %v642
    %v3469 = vunpack.c.h.b16 %v642
    %v3470 = vunpack.c.l.b16 %v643
    %v3471 = vunpack.c.h.b16 %v643
    %v3472 = vunpack.c.l.b16 %v644
    %v3473 = vunpack.c.h.b16 %v644
    %v3474 = vunpack.c.l.b16 %v645
    %v3475 = vunpack.c.h.b16 %v645
    %v3476 = vunpack.c.l.b16 %v646
    %v3477 = vunpack.c.h.b16 %v646
    %v3478 = vunpack.c.l.b16 %v647
    %v3479 = vunpack.c.h.b16 %v647
    %v3480 = vunpack.c.l.b16 %v648
    %v3481 = vunpack.c.h.b16 %v648
    %v3482 = vunpack.c.l.b16 %v649
    %v3483 = vunpack.c.h.b16 %v649
    %v3484 = vunpack.c.l.b16 %v650
    %v3485 = vunpack.c.h.b16 %v650
    %v3486 = vunpack.c.l.b16 %v651
    %v3487 = vunpack.c.h.b16 %v651
    %v3488 = vunpack.c.l.b16 %v652
    %v3489 = vunpack.c.h.b16 %v652
    %v3490 = vunpack.c.l.b16 %v653
    %v3491 = vunpack.c.h.b16 %v653
    %v3492 = vunpack.c.l.b16 %v654
    %v3493 = vunpack.c.h.b16 %v654
    %v3494 = vunpack.c.l.b16 %v655
    %v3495 = vunpack.c.h.b16 %v655
    %v3496 = vunpack.c.l.b16 %v656
    %v3497 = vunpack.c.h.b16 %v656
    %v3498 = vunpack.c.l.b16 %v657
    %v3499 = vunpack.c.h.b16 %v657
    %v3500 = vunpack.c.l.b16 %v658
    %v3501 = vunpack.c.h.b16 %v658
    %v3502 = vunpack.c.l.b16 %v659
    %v3503 = vunpack.c.h.b16 %v659
    %v3504 = vunpack.c.l.b16 %v660
    %v3505 = vunpack.c.h.b16 %v660
    %v3506 = vunpack.c.l.b16 %v661
    %v3507 = vunpack.c.h.b16 %v661
    %v3508 = vunpack.c.l.b16 %v662
    %v3509 = vunpack.c.h.b16 %v662
    %v3510 = vunpack.c.l.b16 %v663
    %v3511 = vunpack.c.h.b16 %v663
    %v3512 = vunpack.c.l.b16 %v664
    %v3513 = vunpack.c.h.b16 %v664
    %v3514 = vunpack.c.l.b16 %v665
    %v3515 = vunpack.c.h.b16 %v665
    %v3516 = vunpack.c.l.b16 %v666
    %v3517 = vunpack.c.h.b16 %v666
    %v3518 = vunpack.c.l.b16 %v667
    %v3519 = vunpack.c.h.b16 %v667
    %v3520 = vunpack.c.l.b16 %v668
    %v3521 = vunpack.c.h.b16 %v668
    %v3522 = vunpack.c.l.b16 %v669
    %v3523 = vunpack.c.h.b16 %v669
    %v3524 = vunpack.c.l.b16 %v670
    %v3525 = vunpack.c.h.b16 %v670
    %v3526 = vunpack.c.l.b16 %v671
    %v3527 = vunpack.c.h.b16 %v671
    %v3528 = vunpack.c.l.b16 %v672
    %v3529 = vunpack.c.h.b16 %v672
    %v3530 = vunpack.c.l.b16 %v673
    %v3531 = vunpack.c.h.b16 %v673
    %v3532 = vunpack.c.l.b16 %v674
    %v3533 = vunpack.c.h.b16 %v674
    %v3534 = vunpack.c.l.b16 %v675
    %v3535 = vunpack.c.h.b16 %v675
    %v3536 = vunpack.c.l.b16 %v676
    %v3537 = vunpack.c.h.b16 %v676
    %v3538 = vunpack.c.l.b16 %v677
    %v3539 = vunpack.c.h.b16 %v677
    %v3540 = vunpack.c.l.b16 %v678
    %v3541 = vunpack.c.h.b16 %v678
    %v3542 = vunpack.c.l.b16 %v679
    %v3543 = vunpack.c.h.b16 %v679
    %v3544 = vunpack.c.l.b16 %v680
    %v3545 = vunpack.c.h.b16 %v680
    %v3546 = vunpack.c.l.b16 %v681
    %v3547 = vunpack.c.h.b16 %v681
    %v3548 = vunpack.c.l.b16 %v682
    %v3549 = vunpack.c.h.b16 %v682
    %v3550 = vunpack.c.l.b16 %v683
    %v3551 = vunpack.c.h.b16 %v683
    %v3552 = vunpack.c.l.b16 %v684
    %v3553 = vunpack.c.h.b16 %v684
    %v3554 = vunpack.c.l.b16 %v685
    %v3555 = vunpack.c.h.b16 %v685
    %v3556 = vunpack.c.l.b16 %v686
    %v3557 = vunpack.c.h.b16 %v686
    %v3558 = vunpack.c.l.b16 %v687
    %v3559 = vunpack.c.h.b16 %v687
    %v3560 = vunpack.c.l.b16 %v688
    %v3561 = vunpack.c.h.b16 %v688
    %v3562 = vunpack.c.l.b16 %v689
    %v3563 = vunpack.c.h.b16 %v689
    %v3564 = vunpack.c.l.b16 %v690
    %v3565 = vunpack.c.h.b16 %v690
    %v3566 = vunpack.c.l.b16 %v691
    %v3567 = vunpack.c.h.b16 %v691
    %v3568 = vunpack.c.l.b16 %v692
    %v3569 = vunpack.c.h.b16 %v692
    %v3570 = vunpack.c.l.b16 %v693
    %v3571 = vunpack.c.h.b16 %v693
    %v3572 = vunpack.c.l.b16 %v694
    %v3573 = vunpack.c.h.b16 %v694
    %v3574 = vunpack.c.l.b16 %v695
    %v3575 = vunpack.c.h.b16 %v695
    %v3576 = vunpack.c.l.b16 %v696
    %v3577 = vunpack.c.h.b16 %v696
    %v3578 = vunpack.c.l.b16 %v697
    %v3579 = vunpack.c.h.b16 %v697
    %v3580 = vunpack.c.l.b16 %v698
    %v3581 = vunpack.c.h.b16 %v698
    %v3582 = vunpack.c.l.b16 %v699
    %v3583 = vunpack.c.h.b16 %v699
    %v3584 = vunpack.c.l.b16 %v700
    %v3585 = vunpack.c.h.b16 %v700
    %v3586 = vunpack.c.l.b16 %v701
    %v3587 = vunpack.c.h.b16 %v701
    %v3588 = vunpack.c.l.b16 %v702
    %v3589 = vunpack.c.h.b16 %v702
    %v3590 = vunpack.c.l.b16 %v703
    %v3591 = vunpack.c.h.b16 %v703
    %v3592 = vunpack.c.l.b16 %v704
    %v3593 = vunpack.c.h.b16 %v704
    %v3594 = vunpack.c.l.b16 %v705
    %v3595 = vunpack.c.h.b16 %v705
    %v3596 = vunpack.c.l.b16 %v706
    %v3597 = vunpack.c.h.b16 %v706
    %v3598 = vunpack.c.l.b16 %v707
    %v3599 = vunpack.c.h.b16 %v707
    %v3600 = vunpack.c.l.b16 %v708
    %v3601 = vunpack.c.h.b16 %v708
    %v3602 = vunpack.c.l.b16 %v709
    %v3603 = vunpack.c.h.b16 %v709
    %v3604 = vunpack.c.l.b16 %v710
    %v3605 = vunpack.c.h.b16 %v710
    %v3606 = vunpack.c.l.b16 %v711
    %v3607 = vunpack.c.h.b16 %v711
    %v3608 = vunpack.c.l.b16 %v712
    %v3609 = vunpack.c.h.b16 %v712
    %v3610 = vunpack.c.l.b16 %v713
    %v3611 = vunpack.c.h.b16 %v713
    %v3612 = vunpack.c.l.b16 %v714
    %v3613 = vunpack.c.h.b16 %v714
    %v3614 = vunpack.c.l.b16 %v715
    %v3615 = vunpack.c.h.b16 %v715
    %v3616 = vunpack.c.l.b16 %v716
    %v3617 = vunpack.c.h.b16 %v716
    %v3618 = vunpack.c.l.b16 %v717
    %v3619 = vunpack.c.h.b16 %v717
    %v3620 = vunpack.c.l.b16 %v718
    %v3621 = vunpack.c.h.b16 %v718
    %v3622 = vunpack.c.l.b16 %v719
    %v3623 = vunpack.c.h.b16 %v719
    %v3624 = vunpack.c.l.b16 %v720
    %v3625 = vunpack.c.h.b16 %v720
    %v3626 = vunpack.c.l.b16 %v721
    %v3627 = vunpack.c.h.b16 %v721
    %v3628 = vunpack.c.l.b16 %v722
    %v3629 = vunpack.c.h.b16 %v722
    %v3630 = vunpack.c.l.b16 %v723
    %v3631 = vunpack.c.h.b16 %v723
    %v3632 = vunpack.c.l.b16 %v724
    %v3633 = vunpack.c.h.b16 %v724
    %v3634 = vunpack.c.l.b16 %v725
    %v3635 = vunpack.c.h.b16 %v725
    %v3636 = vunpack.c.l.b16 %v726
    %v3637 = vunpack.c.h.b16 %v726
    %v3638 = vunpack.c.l.b16 %v727
    %v3639 = vunpack.c.h.b16 %v727
    %v3640 = vunpack.c.l.b16 %v728
    %v3641 = vunpack.c.h.b16 %v728
    %v3642 = vunpack.c.l.b16 %v729
    %v3643 = vunpack.c.h.b16 %v729
    %v3644 = vunpack.c.l.b16 %v730
    %v3645 = vunpack.c.h.b16 %v730
    %v3646 = vunpack.c.l.b16 %v731
    %v3647 = vunpack.c.h.b16 %v731
    %v3648 = vunpack.c.l.b16 %v732
    %v3649 = vunpack.c.h.b16 %v732
    %v3650 = vunpack.c.l.b16 %v733
    %v3651 = vunpack.c.h.b16 %v733
    %v3652 = vunpack.c.l.b16 %v734
    %v3653 = vunpack.c.h.b16 %v734
    %v3654 = vunpack.c.l.b16 %v735
    %v3655 = vunpack.c.h.b16 %v735
    %v3656 = vunpack.c.l.b16 %v736
    %v3657 = vunpack.c.h.b16 %v736
    %v3658 = vunpack.c.l.b16 %v737
    %v3659 = vunpack.c.h.b16 %v737
    %v3660 = vunpack.c.l.b16 %v738
    %v3661 = vunpack.c.h.b16 %v738
    %v3662 = vunpack.c.l.b16 %v739
    %v3663 = vunpack.c.h.b16 %v739
    %v3664 = vunpack.c.l.b16 %v740
    %v3665 = vunpack.c.h.b16 %v740
    %v3666 = vunpack.c.l.b16 %v741
    %v3667 = vunpack.c.h.b16 %v741
    %v3668 = vunpack.c.l.b16 %v742
    %v3669 = vunpack.c.h.b16 %v742
    %v3670 = vunpack.c.l.b16 %v743
    %v3671 = vunpack.c.h.b16 %v743
    %v3672 = vunpack.c.l.b16 %v744
    %v3673 = vunpack.c.h.b16 %v744
    %v3674 = vunpack.c.l.b16 %v745
    %v3675 = vunpack.c.h.b16 %v745
    %v3676 = vunpack.c.l.b16 %v746
    %v3677 = vunpack.c.h.b16 %v746
    %v3678 = vunpack.c.l.b16 %v747
    %v3679 = vunpack.c.h.b16 %v747
    %v3680 = vunpack.c.l.b16 %v748
    %v3681 = vunpack.c.h.b16 %v748
    %v3682 = vunpack.c.l.b16 %v749
    %v3683 = vunpack.c.h.b16 %v749
    %v3684 = vunpack.c.l.b16 %v750
    %v3685 = vunpack.c.h.b16 %v750
    %v3686 = vunpack.c.l.b16 %v751
    %v3687 = vunpack.c.h.b16 %v751
    %v3688 = vunpack.c.l.b16 %v752
    %v3689 = vunpack.c.h.b16 %v752
    %v3690 = vunpack.c.l.b16 %v753
    %v3691 = vunpack.c.h.b16 %v753
    %v3692 = vunpack.c.l.b16 %v754
    %v3693 = vunpack.c.h.b16 %v754
    %v3694 = vunpack.c.l.b16 %v755
    %v3695 = vunpack.c.h.b16 %v755
    %v3696 = vunpack.c.l.b16 %v756
    %v3697 = vunpack.c.h.b16 %v756
    %v3698 = vunpack.c.l.b16 %v757
    %v3699 = vunpack.c.h.b16 %v757
    %v3700 = vunpack.c.l.b16 %v758
    %v3701 = vunpack.c.h.b16 %v758
    %v3702 = vunpack.c.l.b16 %v759
    %v3703 = vunpack.c.h.b16 %v759
    %v3704 = vunpack.c.l.b16 %v760
    %v3705 = vunpack.c.h.b16 %v760
    %v3706 = vunpack.c.l.b16 %v761
    %v3707 = vunpack.c.h.b16 %v761
    %v3708 = vunpack.c.l.b16 %v762
    %v3709 = vunpack.c.h.b16 %v762
    %v3710 = vunpack.c.l.b16 %v763
    %v3711 = vunpack.c.h.b16 %v763
    %v3712 = vunpack.c.l.b16 %v764
    %v3713 = vunpack.c.h.b16 %v764
    %v3714 = vunpack.c.l.b16 %v765
    %v3715 = vunpack.c.h.b16 %v765
    %v3716 = vunpack.c.l.b16 %v766
    %v3717 = vunpack.c.h.b16 %v766
    %v3718 = vunpack.c.l.b16 %v767
    %v3719 = vunpack.c.h.b16 %v767
    %v3720 = vunpack.c.l.b16 %v768
    %v3721 = vunpack.c.h.b16 %v768
    %v3722 = vunpack.c.l.b16 %v769
    %v3723 = vunpack.c.h.b16 %v769
    %v3724 = vunpack.c.l.b16 %v770
    %v3725 = vunpack.c.h.b16 %v770
    %v3726 = vunpack.c.l.b16 %v771
    %v3727 = vunpack.c.h.b16 %v771
    %v3728 = vunpack.c.l.b16 %v772
    %v3729 = vunpack.c.h.b16 %v772
    %v3730 = vunpack.c.l.b16 %v773
    %v3731 = vunpack.c.h.b16 %v773
    %v3732 = vunpack.c.l.b16 %v774
    %v3733 = vunpack.c.h.b16 %v774
    %v3734 = vunpack.c.l.b16 %v775
    %v3735 = vunpack.c.h.b16 %v775
    %v3736 = vunpack.c.l.b16 %v776
    %v3737 = vunpack.c.h.b16 %v776
    %v3738 = vunpack.c.l.b16 %v777
    %v3739 = vunpack.c.h.b16 %v777
    %v3740 = vunpack.c.l.b16 %v778
    %v3741 = vunpack.c.h.b16 %v778
    %v3742 = vunpack.c.l.b16 %v779
    %v3743 = vunpack.c.h.b16 %v779
    %v3744 = vunpack.c.l.b16 %v780
    %v3745 = vunpack.c.h.b16 %v780
    %v3746 = vunpack.c.l.b16 %v781
    %v3747 = vunpack.c.h.b16 %v781
    %v3748 = vunpack.c.l.b16 %v782
    %v3749 = vunpack.c.h.b16 %v782
    %v3750 = vunpack.c.l.b16 %v783
    %v3751 = vunpack.c.h.b16 %v783
    %v3752 = vunpack.c.l.b16 %v784
    %v3753 = vunpack.c.h.b16 %v784
    %v3754 = vunpack.c.l.b16 %v785
    %v3755 = vunpack.c.h.b16 %v785
    %v3756 = vunpack.c.l.b16 %v786
    %v3757 = vunpack.c.h.b16 %v786
    %v3758 = vunpack.c.l.b16 %v787
    %v3759 = vunpack.c.h.b16 %v787
    %v3760 = vunpack.c.l.b16 %v788
    %v3761 = vunpack.c.h.b16 %v788
    %v3762 = vunpack.c.l.b16 %v789
    %v3763 = vunpack.c.h.b16 %v789
    %v3764 = vunpack.c.l.b16 %v790
    %v3765 = vunpack.c.h.b16 %v790
    %v3766 = vunpack.c.l.b16 %v791
    %v3767 = vunpack.c.h.b16 %v791
    %v3768 = vunpack.c.l.b16 %v792
    %v3769 = vunpack.c.h.b16 %v792
    %v3770 = vunpack.c.l.b16 %v793
    %v3771 = vunpack.c.h.b16 %v793
    %v3772 = vunpack.c.l.b16 %v794
    %v3773 = vunpack.c.h.b16 %v794
    %v3774 = vunpack.c.l.b16 %v795
    %v3775 = vunpack.c.h.b16 %v795
    %v3776 = vunpack.c.l.b16 %v796
    %v3777 = vunpack.c.h.b16 %v796
    %v3778 = vunpack.c.l.b16 %v797
    %v3779 = vunpack.c.h.b16 %v797
    %v3780 = vunpack.c.l.b16 %v798
    %v3781 = vunpack.c.h.b16 %v798
    %v3782 = vunpack.c.l.b16 %v799
    %v3783 = vunpack.c.h.b16 %v799
    %v3784 = vunpack.c.l.b16 %v800
    %v3785 = vunpack.c.h.b16 %v800
    %v3786 = vunpack.c.l.b16 %v801
    %v3787 = vunpack.c.h.b16 %v801
    %v3788 = vunpack.c.l.b16 %v802
    %v3789 = vunpack.c.h.b16 %v802
    %v3790 = vunpack.c.l.b16 %v803
    %v3791 = vunpack.c.h.b16 %v803
    %v3792 = vunpack.c.l.b16 %v804
    %v3793 = vunpack.c.h.b16 %v804
    %v3794 = vunpack.c.l.b16 %v805
    %v3795 = vunpack.c.h.b16 %v805
    %v3796 = vunpack.c.l.b16 %v806
    %v3797 = vunpack.c.h.b16 %v806
    %v3798 = vunpack.c.l.b16 %v807
    %v3799 = vunpack.c.h.b16 %v807
    %v3800 = vunpack.c.l.b16 %v808
    %v3801 = vunpack.c.h.b16 %v808
    %v3802 = vunpack.c.l.b16 %v809
    %v3803 = vunpack.c.h.b16 %v809
    %v3804 = vunpack.c.l.b16 %v810
    %v3805 = vunpack.c.h.b16 %v810
    %v3806 = vunpack.c.l.b16 %v811
    %v3807 = vunpack.c.h.b16 %v811
    %v3808 = vunpack.c.l.b16 %v812
    %v3809 = vunpack.c.h.b16 %v812
    %v3810 = vunpack.c.l.b16 %v813
    %v3811 = vunpack.c.h.b16 %v813
    %v3812 = vunpack.c.l.b16 %v814
    %v3813 = vunpack.c.h.b16 %v814
    %v3814 = vunpack.c.l.b16 %v815
    %v3815 = vunpack.c.h.b16 %v815
    %v3816 = vunpack.c.l.b16 %v816
    %v3817 = vunpack.c.h.b16 %v816
    %v3818 = vunpack.c.l.b16 %v817
    %v3819 = vunpack.c.h.b16 %v817
    %v3820 = vunpack.c.l.b16 %v818
    %v3821 = vunpack.c.h.b16 %v818
    %v3822 = vunpack.c.l.b16 %v819
    %v3823 = vunpack.c.h.b16 %v819
    %v3824 = vunpack.c.l.b16 %v820
    %v3825 = vunpack.c.h.b16 %v820
    %v3826 = vunpack.c.l.b16 %v821
    %v3827 = vunpack.c.h.b16 %v821
    %v3828 = vunpack.c.l.b16 %v822
    %v3829 = vunpack.c.h.b16 %v822
    %v3830 = vunpack.c.l.b16 %v823
    %v3831 = vunpack.c.h.b16 %v823
    %v3832 = vunpack.c.l.b16 %v824
    %v3833 = vunpack.c.h.b16 %v824
    %v3834 = vunpack.c.l.b16 %v825
    %v3835 = vunpack.c.h.b16 %v825
    %v3836 = vunpack.c.l.b16 %v826
    %v3837 = vunpack.c.h.b16 %v826
    %v3838 = vunpack.c.l.b16 %v827
    %v3839 = vunpack.c.h.b16 %v827
    %v3840 = vunpack.c.l.b16 %v828
    %v3841 = vunpack.c.h.b16 %v828
    %v3842 = vunpack.c.l.b16 %v829
    %v3843 = vunpack.c.h.b16 %v829
    %v3844 = vunpack.c.l.b16 %v830
    %v3845 = vunpack.c.h.b16 %v830
    %v3846 = vunpack.c.l.b16 %v831
    %v3847 = vunpack.c.h.b16 %v831
    %v3848 = vunpack.c.l.b16 %v832
    %v3849 = vunpack.c.h.b16 %v832
    %v3850 = vunpack.c.l.b16 %v833
    %v3851 = vunpack.c.h.b16 %v833
    %v3852 = vunpack.c.l.b16 %v834
    %v3853 = vunpack.c.h.b16 %v834
    %v3854 = vunpack.c.l.b16 %v835
    %v3855 = vunpack.c.h.b16 %v835
    %v3856 = vunpack.c.l.b16 %v836
    %v3857 = vunpack.c.h.b16 %v836
    %v3858 = vunpack.c.l.b16 %v837
    %v3859 = vunpack.c.h.b16 %v837
    %v3860 = vunpack.c.l.b16 %v838
    %v3861 = vunpack.c.h.b16 %v838
    %v3862 = vunpack.c.l.b16 %v839
    %v3863 = vunpack.c.h.b16 %v839
    %v3864 = vunpack.c.l.b16 %v840
    %v3865 = vunpack.c.h.b16 %v840
    %v3866 = vunpack.c.l.b16 %v841
    %v3867 = vunpack.c.h.b16 %v841
    %v3868 = vunpack.c.l.b16 %v842
    %v3869 = vunpack.c.h.b16 %v842
    %v3870 = vunpack.c.l.b16 %v843
    %v3871 = vunpack.c.h.b16 %v843
    %v3872 = vunpack.c.l.b16 %v844
    %v3873 = vunpack.c.h.b16 %v844
    %v3874 = vunpack.c.l.b16 %v845
    %v3875 = vunpack.c.h.b16 %v845
    %v3876 = vunpack.c.l.b16 %v846
    %v3877 = vunpack.c.h.b16 %v846
    %v3878 = vunpack.c.l.b16 %v847
    %v3879 = vunpack.c.h.b16 %v847
    %v3880 = vunpack.c.l.b16 %v848
    %v3881 = vunpack.c.h.b16 %v848
    %v3882 = vunpack.c.l.b16 %v849
    %v3883 = vunpack.c.h.b16 %v849
    %v3884 = vunpack.c.l.b16 %v850
    %v3885 = vunpack.c.h.b16 %v850
    %v3886 = vunpack.c.l.b16 %v851
    %v3887 = vunpack.c.h.b16 %v851
    %v3888 = vunpack.c.l.b16 %v852
    %v3889 = vunpack.c.h.b16 %v852
    %v3890 = vunpack.c.l.b16 %v853
    %v3891 = vunpack.c.h.b16 %v853
    %v3892 = vunpack.c.l.b16 %v854
    %v3893 = vunpack.c.h.b16 %v854
    %v3894 = vunpack.c.l.b16 %v855
    %v3895 = vunpack.c.h.b16 %v855
    %v3896 = vunpack.c.l.b16 %v856
    %v3897 = vunpack.c.h.b16 %v856
    %v3898 = vunpack.c.l.b16 %v857
    %v3899 = vunpack.c.h.b16 %v857
    %v3900 = vunpack.c.l.b16 %v858
    %v3901 = vunpack.c.h.b16 %v858
    %v3902 = vunpack.c.l.b16 %v859
    %v3903 = vunpack.c.h.b16 %v859
    %v3904 = vunpack.c.l.b16 %v860
    %v3905 = vunpack.c.h.b16 %v860
    %v3906 = vunpack.c.l.b16 %v861
    %v3907 = vunpack.c.h.b16 %v861
    %v3908 = vunpack.c.l.b16 %v862
    %v3909 = vunpack.c.h.b16 %v862
    %v3910 = vunpack.c.l.b16 %v863
    %v3911 = vunpack.c.h.b16 %v863
    %v3912 = vunpack.c.l.b16 %v864
    %v3913 = vunpack.c.h.b16 %v864
    %v3914 = vunpack.c.l.b16 %v865
    %v3915 = vunpack.c.h.b16 %v865
    %v3916 = vunpack.c.l.b16 %v866
    %v3917 = vunpack.c.h.b16 %v866
    %v3918 = vunpack.c.l.b16 %v867
    %v3919 = vunpack.c.h.b16 %v867
    %v3920 = vunpack.c.l.b16 %v868
    %v3921 = vunpack.c.h.b16 %v868
    %v3922 = vunpack.c.l.b16 %v869
    %v3923 = vunpack.c.h.b16 %v869
    %v3924 = vunpack.c.l.b16 %v870
    %v3925 = vunpack.c.h.b16 %v870
    %v3926 = vunpack.c.l.b16 %v871
    %v3927 = vunpack.c.h.b16 %v871
    %v3928 = vunpack.c.l.b16 %v872
    %v3929 = vunpack.c.h.b16 %v872
    %v3930 = vunpack.c.l.b16 %v873
    %v3931 = vunpack.c.h.b16 %v873
    %v3932 = vunpack.c.l.b16 %v874
    %v3933 = vunpack.c.h.b16 %v874
    %v3934 = vunpack.c.l.b16 %v875
    %v3935 = vunpack.c.h.b16 %v875
    %v3936 = vunpack.c.l.b16 %v876
    %v3937 = vunpack.c.h.b16 %v876
    %v3938 = vunpack.c.l.b16 %v877
    %v3939 = vunpack.c.h.b16 %v877
    %v3940 = vunpack.c.l.b16 %v878
    %v3941 = vunpack.c.h.b16 %v878
    %v3942 = vunpack.c.l.b16 %v879
    %v3943 = vunpack.c.h.b16 %v879
    %v3944 = vunpack.c.l.b16 %v880
    %v3945 = vunpack.c.h.b16 %v880
    %v3946 = vunpack.c.l.b16 %v881
    %v3947 = vunpack.c.h.b16 %v881
    %v3948 = vunpack.c.l.b16 %v882
    %v3949 = vunpack.c.h.b16 %v882
    %v3950 = vunpack.c.l.b16 %v883
    %v3951 = vunpack.c.h.b16 %v883
    %v3952 = vunpack.c.l.b16 %v884
    %v3953 = vunpack.c.h.b16 %v884
    %v3954 = vunpack.c.l.b16 %v885
    %v3955 = vunpack.c.h.b16 %v885
    %v3956 = vunpack.c.l.b16 %v886
    %v3957 = vunpack.c.h.b16 %v886
    %v3958 = vunpack.c.l.b16 %v887
    %v3959 = vunpack.c.h.b16 %v887
    %v3960 = vunpack.c.l.b16 %v888
    %v3961 = vunpack.c.h.b16 %v888
    %v3962 = vunpack.c.l.b16 %v889
    %v3963 = vunpack.c.h.b16 %v889
    %v3964 = vunpack.c.l.b16 %v890
    %v3965 = vunpack.c.h.b16 %v890
    %v3966 = vunpack.c.l.b16 %v891
    %v3967 = vunpack.c.h.b16 %v891
    %v3968 = vunpack.c.l.b16 %v892
    %v3969 = vunpack.c.h.b16 %v892
    %v3970 = vunpack.c.l.b16 %v893
    %v3971 = vunpack.c.h.b16 %v893
    %v3972 = vunpack.c.l.b16 %v894
    %v3973 = vunpack.c.h.b16 %v894
    %v3974 = vunpack.c.l.b16 %v895
    %v3975 = vunpack.c.h.b16 %v895
    %v3976 = vunpack.c.l.b16 %v896
    %v3977 = vunpack.c.h.b16 %v896
    %v3978 = vunpack.c.l.b16 %v897
    %v3979 = vunpack.c.h.b16 %v897
    %v3980 = vunpack.c.l.b16 %v898
    %v3981 = vunpack.c.h.b16 %v898
    %v3982 = vunpack.c.l.b16 %v899
    %v3983 = vunpack.c.h.b16 %v899
    %v3984 = vunpack.c.l.b16 %v900
    %v3985 = vunpack.c.h.b16 %v900
    %v3986 = vunpack.c.l.b16 %v901
    %v3987 = vunpack.c.h.b16 %v901
    %v3988 = vunpack.c.l.b16 %v902
    %v3989 = vunpack.c.h.b16 %v902
    %v3990 = vunpack.c.l.b16 %v903
    %v3991 = vunpack.c.h.b16 %v903
    %v3992 = vunpack.c.l.b16 %v904
    %v3993 = vunpack.c.h.b16 %v904
    %v3994 = vunpack.c.l.b16 %v905
    %v3995 = vunpack.c.h.b16 %v905
    %v3996 = vunpack.c.l.b16 %v906
    %v3997 = vunpack.c.h.b16 %v906
    %v3998 = vunpack.c.l.b16 %v907
    %v3999 = vunpack.c.h.b16 %v907
    %v4000 = vunpack.c.l.b16 %v908
    %v4001 = vunpack.c.h.b16 %v908
    %v4002 = vunpack.c.l.b16 %v909
    %v4003 = vunpack.c.h.b16 %v909
    %v4004 = vunpack.c.l.b16 %v910
    %v4005 = vunpack.c.h.b16 %v910
    %v4006 = vunpack.c.l.b16 %v911
    %v4007 = vunpack.c.h.b16 %v911
    %v4008 = vunpack.c.l.b16 %v912
    %v4009 = vunpack.c.h.b16 %v912
    %v4010 = vunpack.c.l.b16 %v913
    %v4011 = vunpack.c.h.b16 %v913
    %v4012 = vunpack.c.l.b16 %v914
    %v4013 = vunpack.c.h.b16 %v914
    %v4014 = vunpack.c.l.b16 %v915
    %v4015 = vunpack.c.h.b16 %v915
    %v4016 = vunpack.c.l.b16 %v916
    %v4017 = vunpack.c.h.b16 %v916
    %v4018 = vunpack.c.l.b16 %v917
    %v4019 = vunpack.c.h.b16 %v917
    %v4020 = vunpack.c.l.b16 %v918
    %v4021 = vunpack.c.h.b16 %v918
    %v4022 = vunpack.c.l.b16 %v919
    %v4023 = vunpack.c.h.b16 %v919
    %v4024 = vunpack.c.l.b16 %v920
    %v4025 = vunpack.c.h.b16 %v920
    %v4026 = vunpack.c.l.b16 %v921
    %v4027 = vunpack.c.h.b16 %v921
    %v4028 = vunpack.c.l.b16 %v922
    %v4029 = vunpack.c.h.b16 %v922
    %v4030 = vunpack.c.l.b16 %v923
    %v4031 = vunpack.c.h.b16 %v923
    %v4032 = vunpack.c.l.b16 %v924
    %v4033 = vunpack.c.h.b16 %v924
    %v4034 = vunpack.c.l.b16 %v925
    %v4035 = vunpack.c.h.b16 %v925
    %v4036 = vunpack.c.l.b16 %v926
    %v4037 = vunpack.c.h.b16 %v926
    %v4038 = vunpack.c.l.b16 %v927
    %v4039 = vunpack.c.h.b16 %v927
    %v4040 = vunpack.c.l.b16 %v928
    %v4041 = vunpack.c.h.b16 %v928
    %v4042 = vunpack.c.l.b16 %v929
    %v4043 = vunpack.c.h.b16 %v929
    %v4044 = vunpack.c.l.b16 %v930
    %v4045 = vunpack.c.h.b16 %v930
    %v4046 = vunpack.c.l.b16 %v931
    %v4047 = vunpack.c.h.b16 %v931
    %v4048 = vunpack.c.l.b16 %v932
    %v4049 = vunpack.c.h.b16 %v932
    %v4050 = vunpack.c.l.b16 %v933
    %v4051 = vunpack.c.h.b16 %v933
    %v4052 = vunpack.c.l.b16 %v934
    %v4053 = vunpack.c.h.b16 %v934
    %v4054 = vunpack.c.l.b16 %v935
    %v4055 = vunpack.c.h.b16 %v935
    %v4056 = vunpack.c.l.b16 %v936
    %v4057 = vunpack.c.h.b16 %v936
    %v4058 = vunpack.c.l.b16 %v937
    %v4059 = vunpack.c.h.b16 %v937
    %v4060 = vunpack.c.l.b16 %v938
    %v4061 = vunpack.c.h.b16 %v938
    %v4062 = vunpack.c.l.b16 %v939
    %v4063 = vunpack.c.h.b16 %v939
    %v4064 = vunpack.c.l.b16 %v940
    %v4065 = vunpack.c.h.b16 %v940
    %v4066 = vunpack.c.l.b16 %v941
    %v4067 = vunpack.c.h.b16 %v941
    %v4068 = vunpack.c.l.b16 %v942
    %v4069 = vunpack.c.h.b16 %v942
    %v4070 = vunpack.c.l.b16 %v943
    %v4071 = vunpack.c.h.b16 %v943
    %v4072 = vunpack.c.l.b16 %v944
    %v4073 = vunpack.c.h.b16 %v944
    %v4074 = vunpack.c.l.b16 %v945
    %v4075 = vunpack.c.h.b16 %v945
    %v4076 = vunpack.c.l.b16 %v946
    %v4077 = vunpack.c.h.b16 %v946
    %v4078 = vunpack.c.l.b16 %v947
    %v4079 = vunpack.c.h.b16 %v947
    %v4080 = vunpack.c.l.b16 %v948
    %v4081 = vunpack.c.h.b16 %v948
    %v4082 = vunpack.c.l.b16 %v949
    %v4083 = vunpack.c.h.b16 %v949
    %v4084 = vunpack.c.l.b16 %v950
    %v4085 = vunpack.c.h.b16 %v950
    %v4086 = vunpack.c.l.b16 %v951
    %v4087 = vunpack.c.h.b16 %v951
    %v4088 = vunpack.c.l.b16 %v952
    %v4089 = vunpack.c.h.b16 %v952
    %v4090 = vunpack.c.l.b16 %v953
    %v4091 = vunpack.c.h.b16 %v953
    %v4092 = vunpack.c.l.b16 %v954
    %v4093 = vunpack.c.h.b16 %v954
    %v4094 = vunpack.c.l.b16 %v955
    %v4095 = vunpack.c.h.b16 %v955
    %v4096 = vunpack.c.l.b16 %v956
    %v4097 = vunpack.c.h.b16 %v956
    %v4098 = vunpack.c.l.b16 %v957
    %v4099 = vunpack.c.h.b16 %v957
    %v4100 = vunpack.c.l.b16 %v958
    %v4101 = vunpack.c.h.b16 %v958
    %v4102 = vunpack.c.l.b16 %v959
    %v4103 = vunpack.c.h.b16 %v959
    %v4104 = vunpack.c.l.b16 %v960
    %v4105 = vunpack.c.h.b16 %v960
    %v4106 = vunpack.c.l.b16 %v961
    %v4107 = vunpack.c.h.b16 %v961
    %v4108 = vunpack.c.l.b16 %v962
    %v4109 = vunpack.c.h.b16 %v962
    %v4110 = vunpack.c.l.b16 %v963
    %v4111 = vunpack.c.h.b16 %v963
    %v4112 = vunpack.c.l.b16 %v964
    %v4113 = vunpack.c.h.b16 %v964
    %v4114 = vunpack.c.l.b16 %v965
    %v4115 = vunpack.c.h.b16 %v965
    %v4116 = vunpack.c.l.b16 %v966
    %v4117 = vunpack.c.h.b16 %v966
    %v4118 = vunpack.c.l.b16 %v967
    %v4119 = vunpack.c.h.b16 %v967
    %v4120 = vunpack.c.l.b16 %v968
    %v4121 = vunpack.c.h.b16 %v968
    %v4122 = vunpack.c.l.b16 %v969
    %v4123 = vunpack.c.h.b16 %v969
    %v4124 = vunpack.c.l.b16 %v970
    %v4125 = vunpack.c.h.b16 %v970
    %v4126 = vunpack.c.l.b16 %v971
    %v4127 = vunpack.c.h.b16 %v971
    %v4128 = vunpack.c.l.b16 %v972
    %v4129 = vunpack.c.h.b16 %v972
    %v4130 = vunpack.c.l.b16 %v973
    %v4131 = vunpack.c.h.b16 %v973
    %v4132 = vunpack.c.l.b16 %v974
    %v4133 = vunpack.c.h.b16 %v974
    %v4134 = vunpack.c.l.b16 %v975
    %v4135 = vunpack.c.h.b16 %v975
    %v4136 = vunpack.c.l.b16 %v976
    %v4137 = vunpack.c.h.b16 %v976
    %v4138 = vunpack.c.l.b16 %v977
    %v4139 = vunpack.c.h.b16 %v977
    %v4140 = vunpack.c.l.b16 %v978
    %v4141 = vunpack.c.h.b16 %v978
    %v4142 = vunpack.c.l.b16 %v979
    %v4143 = vunpack.c.h.b16 %v979
    %v4144 = vunpack.c.l.b16 %v980
    %v4145 = vunpack.c.h.b16 %v980
    %v4146 = vunpack.c.l.b16 %v981
    %v4147 = vunpack.c.h.b16 %v981
    %v4148 = vunpack.c.l.b16 %v982
    %v4149 = vunpack.c.h.b16 %v982
    %v4150 = vunpack.c.l.b16 %v983
    %v4151 = vunpack.c.h.b16 %v983
    %v4152 = vunpack.c.l.b16 %v984
    %v4153 = vunpack.c.h.b16 %v984
    %v4154 = vunpack.c.l.b16 %v985
    %v4155 = vunpack.c.h.b16 %v985
    %v4156 = vunpack.c.l.b16 %v986
    %v4157 = vunpack.c.h.b16 %v986
    %v4158 = vunpack.c.l.b16 %v987
    %v4159 = vunpack.c.h.b16 %v987
    %v4160 = vunpack.c.l.b16 %v988
    %v4161 = vunpack.c.h.b16 %v988
    %v4162 = vunpack.c.l.b16 %v989
    %v4163 = vunpack.c.h.b16 %v989
    %v4164 = vunpack.c.l.b16 %v990
    %v4165 = vunpack.c.h.b16 %v990
    %v4166 = vunpack.c.l.b16 %v991
    %v4167 = vunpack.c.h.b16 %v991
    %v4168 = vunpack.c.l.b16 %v992
    %v4169 = vunpack.c.h.b16 %v992
    %v4170 = vunpack.c.l.b16 %v993
    %v4171 = vunpack.c.h.b16 %v993
    %v4172 = vunpack.c.l.b16 %v994
    %v4173 = vunpack.c.h.b16 %v994
    %v4174 = vunpack.c.l.b16 %v995
    %v4175 = vunpack.c.h.b16 %v995
    %v4176 = vunpack.c.l.b16 %v996
    %v4177 = vunpack.c.h.b16 %v996
    %v4178 = vunpack.c.l.b16 %v997
    %v4179 = vunpack.c.h.b16 %v997
    %v4180 = vunpack.c.l.b16 %v998
    %v4181 = vunpack.c.h.b16 %v998
    %v4182 = vunpack.c.l.b16 %v999
    %v4183 = vunpack.c.h.b16 %v999
    %v4184 = vunpack.c.l.b16 %v1000
    %v4185 = vunpack.c.h.b16 %v1000
    %v4186 = vunpack.c.l.b16 %v1001
    %v4187 = vunpack.c.h.b16 %v1001
    %v4188 = vunpack.c.l.b16 %v1002
    %v4189 = vunpack.c.h.b16 %v1002
    %v4190 = vunpack.c.l.b16 %v1003
    %v4191 = vunpack.c.h.b16 %v1003
    %v4192 = vunpack.c.l.b16 %v1004
    %v4193 = vunpack.c.h.b16 %v1004
    %v4194 = vunpack.c.l.b16 %v1005
    %v4195 = vunpack.c.h.b16 %v1005
    %v4196 = vunpack.c.l.b16 %v1006
    %v4197 = vunpack.c.h.b16 %v1006
    %v4198 = vunpack.c.l.b16 %v1007
    %v4199 = vunpack.c.h.b16 %v1007
    %v4200 = vunpack.c.l.b16 %v1008
    %v4201 = vunpack.c.h.b16 %v1008
    %v4202 = vunpack.c.l.b16 %v1009
    %v4203 = vunpack.c.h.b16 %v1009
    %v4204 = vunpack.c.l.b16 %v1010
    %v4205 = vunpack.c.h.b16 %v1010
    %v4206 = vunpack.c.l.b16 %v1011
    %v4207 = vunpack.c.h.b16 %v1011
    %v4208 = vunpack.c.l.b16 %v1012
    %v4209 = vunpack.c.h.b16 %v1012
    %v4210 = vunpack.c.l.b16 %v1013
    %v4211 = vunpack.c.h.b16 %v1013
    %v4212 = vunpack.c.l.b16 %v1014
    %v4213 = vunpack.c.h.b16 %v1014
    %v4214 = vunpack.c.l.b16 %v1015
    %v4215 = vunpack.c.h.b16 %v1015
    %v4216 = vunpack.c.l.b16 %v1016
    %v4217 = vunpack.c.h.b16 %v1016
    %v4218 = vunpack.c.l.b16 %v1017
    %v4219 = vunpack.c.h.b16 %v1017
    %v4220 = vunpack.c.l.b16 %v1018
    %v4221 = vunpack.c.h.b16 %v1018
    %v4222 = vunpack.c.l.b16 %v1019
    %v4223 = vunpack.c.h.b16 %v1019
    %v4224 = vunpack.c.l.b16 %v1020
    %v4225 = vunpack.c.h.b16 %v1020
    %v4226 = vunpack.c.l.b16 %v1021
    %v4227 = vunpack.c.h.b16 %v1021
    %v4228 = vunpack.c.l.b16 %v1022
    %v4229 = vunpack.c.h.b16 %v1022
    %v4230 = vunpack.c.l.b16 %v1023
    %v4231 = vunpack.c.h.b16 %v1023
    %v4232 = vunpack.c.l.b16 %v1024
    %v4233 = vunpack.c.h.b16 %v1024
    %v4234 = vunpack.c.l.b16 %v1025
    %v4235 = vunpack.c.h.b16 %v1025
    %v4236 = vunpack.c.l.b16 %v1026
    %v4237 = vunpack.c.h.b16 %v1026
    %v4238 = vunpack.c.l.b16 %v1027
    %v4239 = vunpack.c.h.b16 %v1027
    %v4240 = vunpack.c.l.b16 %v1028
    %v4241 = vunpack.c.h.b16 %v1028
    %v4242 = vunpack.c.l.b16 %v1029
    %v4243 = vunpack.c.h.b16 %v1029
    %v4244 = vunpack.c.l.b16 %v1030
    %v4245 = vunpack.c.h.b16 %v1030
    %v4246 = vunpack.c.l.b16 %v1031
    %v4247 = vunpack.c.h.b16 %v1031
    %v4248 = vunpack.c.l.b16 %v1032
    %v4249 = vunpack.c.h.b16 %v1032
    %v4250 = vunpack.c.l.b16 %v1033
    %v4251 = vunpack.c.h.b16 %v1033
    %v4252 = vunpack.c.l.b16 %v1034
    %v4253 = vunpack.c.h.b16 %v1034
    %v4254 = vunpack.c.l.b16 %v1035
    %v4255 = vunpack.c.h.b16 %v1035
    %v4256 = vunpack.c.l.b16 %v1036
    %v4257 = vunpack.c.h.b16 %v1036
    %v4258 = vunpack.c.l.b16 %v1037
    %v4259 = vunpack.c.h.b16 %v1037
    %v4260 = vunpack.c.l.b16 %v1038
    %v4261 = vunpack.c.h.b16 %v1038
    %v4262 = vunpack.c.l.b16 %v1039
    %v4263 = vunpack.c.h.b16 %v1039
    %v4264 = vunpack.c.l.b16 %v1040
    %v4265 = vunpack.c.h.b16 %v1040
    %v4266 = vunpack.c.l.b16 %v1041
    %v4267 = vunpack.c.h.b16 %v1041
    %v4268 = vunpack.c.l.b16 %v1042
    %v4269 = vunpack.c.h.b16 %v1042
    %v4270 = vunpack.c.l.b16 %v1043
    %v4271 = vunpack.c.h.b16 %v1043
    %v4272 = vunpack.c.l.b16 %v1044
    %v4273 = vunpack.c.h.b16 %v1044
    %v4274 = vunpack.c.l.b16 %v1045
    %v4275 = vunpack.c.h.b16 %v1045
    %v4276 = vunpack.c.l.b16 %v1046
    %v4277 = vunpack.c.h.b16 %v1046
    %v4278 = vunpack.c.l.b16 %v1047
    %v4279 = vunpack.c.h.b16 %v1047
    %v4280 = vunpack.c.l.b16 %v1048
    %v4281 = vunpack.c.h.b16 %v1048
    %v4282 = vunpack.c.l.b16 %v1049
    %v4283 = vunpack.c.h.b16 %v1049
    %v4284 = vunpack.c.l.b16 %v1050
    %v4285 = vunpack.c.h.b16 %v1050
    %v4286 = vunpack.c.l.b16 %v1051
    %v4287 = vunpack.c.h.b16 %v1051
    %v4288 = vunpack.c.l.b16 %v1052
    %v4289 = vunpack.c.h.b16 %v1052
    %v4290 = vunpack.c.l.b16 %v1053
    %v4291 = vunpack.c.h.b16 %v1053
    %v4292 = vunpack.c.l.b16 %v1054
    %v4293 = vunpack.c.h.b16 %v1054
    %v4294 = vunpack.c.l.b16 %v1055
    %v4295 = vunpack.c.h.b16 %v1055
    %v4296 = vunpack.c.l.b16 %v1056
    %v4297 = vunpack.c.h.b16 %v1056
    %v4298 = vunpack.c.l.b16 %v1057
    %v4299 = vunpack.c.h.b16 %v1057
    %v4300 = vunpack.c.l.b16 %v1058
    %v4301 = vunpack.c.h.b16 %v1058
    %v4302 = vunpack.c.l.b16 %v1059
    %v4303 = vunpack.c.h.b16 %v1059
    %v4304 = vunpack.c.l.b16 %v1060
    %v4305 = vunpack.c.h.b16 %v1060
    %v4306 = vunpack.c.l.b16 %v1061
    %v4307 = vunpack.c.h.b16 %v1061
    %v4308 = vunpack.c.l.b16 %v1062
    %v4309 = vunpack.c.h.b16 %v1062
    %v4310 = vunpack.c.l.b16 %v1063
    %v4311 = vunpack.c.h.b16 %v1063
    %v4312 = vunpack.c.l.b16 %v1064
    %v4313 = vunpack.c.h.b16 %v1064
    %v4314 = vunpack.c.l.b16 %v1065
    %v4315 = vunpack.c.h.b16 %v1065
    %v4316 = vunpack.c.l.b16 %v1066
    %v4317 = vunpack.c.h.b16 %v1066
    %v4318 = vunpack.c.l.b16 %v1067
    %v4319 = vunpack.c.h.b16 %v1067
    %v4320 = vunpack.c.l.b16 %v1068
    %v4321 = vunpack.c.h.b16 %v1068
    %v4322 = vunpack.c.l.b16 %v1069
    %v4323 = vunpack.c.h.b16 %v1069
    %v4324 = vunpack.c.l.b16 %v1070
    %v4325 = vunpack.c.h.b16 %v1070
    %v4326 = vunpack.c.l.b16 %v1071
    %v4327 = vunpack.c.h.b16 %v1071
    %v4328 = vunpack.c.l.b16 %v1072
    %v4329 = vunpack.c.h.b16 %v1072
    %v4330 = vunpack.c.l.b16 %v1073
    %v4331 = vunpack.c.h.b16 %v1073
    %v4332 = vunpack.c.l.b16 %v1074
    %v4333 = vunpack.c.h.b16 %v1074
    %v4334 = vunpack.c.l.b16 %v1075
    %v4335 = vunpack.c.h.b16 %v1075
    %v4336 = vunpack.c.l.b16 %v1076
    %v4337 = vunpack.c.h.b16 %v1076
    %v4338 = vunpack.c.l.b16 %v1077
    %v4339 = vunpack.c.h.b16 %v1077
    %v4340 = vunpack.c.l.b16 %v1078
    %v4341 = vunpack.c.h.b16 %v1078
    %v4342 = vunpack.c.l.b16 %v1079
    %v4343 = vunpack.c.h.b16 %v1079
    %v4344 = vunpack.c.l.b16 %v1080
    %v4345 = vunpack.c.h.b16 %v1080
    %v4346 = vunpack.c.l.b16 %v1081
    %v4347 = vunpack.c.h.b16 %v1081
    %v4348 = vunpack.c.l.b16 %v1082
    %v4349 = vunpack.c.h.b16 %v1082
    %v4350 = vunpack.c.l.b16 %v1083
    %v4351 = vunpack.c.h.b16 %v1083
    %v4352 = vunpack.c.l.b16 %v1084
    %v4353 = vunpack.c.h.b16 %v1084
    %v4354 = vunpack.c.l.b16 %v1085
    %v4355 = vunpack.c.h.b16 %v1085
    %v4356 = vunpack.c.l.b16 %v1086
    %v4357 = vunpack.c.h.b16 %v1086
    %v4358 = vunpack.c.l.b16 %v1087
    %v4359 = vunpack.c.h.b16 %v1087
    %v4360 = vunpack.c.l.b16 %v1088
    %v4361 = vunpack.c.h.b16 %v1088
    %v4362 = vunpack.c.l.b16 %v1089
    %v4363 = vunpack.c.h.b16 %v1089
    %v4364 = vpack.c.b16 %v2832, %v2828
    %v4365 = vpack.c.b16 %v2833, %v2829
    %v4366 = vpack.c.b16 %v2834, %v2830
    %v4367 = vpack.c.b16 %v2835, %v2831
    %v4368 = vpack.c.b16 %v2840, %v2836
    %v4369 = vpack.c.b16 %v2841, %v2837
    %v4370 = vpack.c.b16 %v2842, %v2838
    %v4371 = vpack.c.b16 %v2843, %v2839
    %v4372 = vpack.c.b16 %v2848, %v2844
    %v4373 = vpack.c.b16 %v2849, %v2845
    %v4374 = vpack.c.b16 %v2850, %v2846
    %v4375 = vpack.c.b16 %v2851, %v2847
    %v4376 = vpack.c.b16 %v2856, %v2852
    %v4377 = vpack.c.b16 %v2857, %v2853
    %v4378 = vpack.c.b16 %v2858, %v2854
    %v4379 = vpack.c.b16 %v2859, %v2855
    %v4380 = vpack.c.b16 %v2864, %v2860
    %v4381 = vpack.c.b16 %v2865, %v2861
    %v4382 = vpack.c.b16 %v2866, %v2862
    %v4383 = vpack.c.b16 %v2867, %v2863
    %v4384 = vpack.c.b16 %v2872, %v2868
    %v4385 = vpack.c.b16 %v2873, %v2869
    %v4386 = vpack.c.b16 %v2874, %v2870
    %v4387 = vpack.c.b16 %v2875, %v2871
    %v4388 = vpack.c.b16 %v2880, %v2876
    %v4389 = vpack.c.b16 %v2881, %v2877
    %v4390 = vpack.c.b16 %v2882, %v2878
    %v4391 = vpack.c.b16 %v2883, %v2879
    %v4392 = vpack.c.b16 %v2888, %v2884
    %v4393 = vpack.c.b16 %v2889, %v2885
    %v4394 = vpack.c.b16 %v2890, %v2886
    %v4395 = vpack.c.b16 %v2891, %v2887
    %v4396 = vpack.c.b16 %v2896, %v2892
    %v4397 = vpack.c.b16 %v2897, %v2893
    %v4398 = vpack.c.b16 %v2898, %v2894
    %v4399 = vpack.c.b16 %v2899, %v2895
    %v4400 = vpack.c.b16 %v2904, %v2900
    %v4401 = vpack.c.b16 %v2905, %v2901
    %v4402 = vpack.c.b16 %v2906, %v2902
    %v4403 = vpack.c.b16 %v2907, %v2903
    %v4404 = vpack.c.b16 %v2912, %v2908
    %v4405 = vpack.c.b16 %v2913, %v2909
    %v4406 = vpack.c.b16 %v2914, %v2910
    %v4407 = vpack.c.b16 %v2915, %v2911
    %v4408 = vpack.c.b16 %v2920, %v2916
    %v4409 = vpack.c.b16 %v2921, %v2917
    %v4410 = vpack.c.b16 %v2922, %v2918
    %v4411 = vpack.c.b16 %v2923, %v2919
    %v4412 = vpack.c.b16 %v2928, %v2924
    %v4413 = vpack.c.b16 %v2929, %v2925
    %v4414 = vpack.c.b16 %v2930, %v2926
    %v4415 = vpack.c.b16 %v2931, %v2927
    %v4416 = vpack.c.b16 %v2936, %v2932
    %v4417 = vpack.c.b16 %v2937, %v2933
    %v4418 = vpack.c.b16 %v2938, %v2934
    %v4419 = vpack.c.b16 %v2939, %v2935
    %v4420 = vpack.c.b16 %v2944, %v2940
    %v4421 = vpack.c.b16 %v2945, %v2941
    %v4422 = vpack.c.b16 %v2946, %v2942
    %v4423 = vpack.c.b16 %v2947, %v2943
    %v4424 = vpack.c.b16 %v2952, %v2948
    %v4425 = vpack.c.b16 %v2953, %v2949
    %v4426 = vpack.c.b16 %v2954, %v2950
    %v4427 = vpack.c.b16 %v2955, %v2951
    %v4428 = vpack.c.b16 %v2960, %v2956
    %v4429 = vpack.c.b16 %v2961, %v2957
    %v4430 = vpack.c.b16 %v2962, %v2958
    %v4431 = vpack.c.b16 %v2963, %v2959
    %v4432 = vpack.c.b16 %v2968, %v2964
    %v4433 = vpack.c.b16 %v2969, %v2965
    %v4434 = vpack.c.b16 %v2970, %v2966
    %v4435 = vpack.c.b16 %v2971, %v2967
    %v4436 = vpack.c.b16 %v2976, %v2972
    %v4437 = vpack.c.b16 %v2977, %v2973
    %v4438 = vpack.c.b16 %v2978, %v2974
    %v4439 = vpack.c.b16 %v2979, %v2975
    %v4440 = vpack.c.b16 %v2984, %v2980
    %v4441 = vpack.c.b16 %v2985, %v2981
    %v4442 = vpack.c.b16 %v2986, %v2982
    %v4443 = vpack.c.b16 %v2987, %v2983
    %v4444 = vpack.c.b16 %v2992, %v2988
    %v4445 = vpack.c.b16 %v2993, %v2989
    %v4446 = vpack.c.b16 %v2994, %v2990
    %v4447 = vpack.c.b16 %v2995, %v2991
    %v4448 = vpack.c.b16 %v3000, %v2996
    %v4449 = vpack.c.b16 %v3001, %v2997
    %v4450 = vpack.c.b16 %v3002, %v2998
    %v4451 = vpack.c.b16 %v3003, %v2999
    %v4452 = vpack.c.b16 %v3008, %v3004
    %v4453 = vpack.c.b16 %v3009, %v3005
    %v4454 = vpack.c.b16 %v3010, %v3006
    %v4455 = vpack.c.b16 %v3011, %v3007
    %v4456 = vpack.c.b16 %v3016, %v3012
    %v4457 = vpack.c.b16 %v3017, %v3013
    %v4458 = vpack.c.b16 %v3018, %v3014
    %v4459 = vpack.c.b16 %v3019, %v3015
    %v4460 = vpack.c.b16 %v3024, %v3020
    %v4461 = vpack.c.b16 %v3025, %v3021
    %v4462 = vpack.c.b16 %v3026, %v3022
    %v4463 = vpack.c.b16 %v3027, %v3023
    %v4464 = vpack.c.b16 %v3032, %v3028
    %v4465 = vpack.c.b16 %v3033, %v3029
    %v4466 = vpack.c.b16 %v3034, %v3030
    %v4467 = vpack.c.b16 %v3035, %v3031
    %v4468 = vpack.c.b16 %v3040, %v3036
    %v4469 = vpack.c.b16 %v3041, %v3037
    %v4470 = vpack.c.b16 %v3042, %v3038
    %v4471 = vpack.c.b16 %v3043, %v3039
    %v4472 = vpack.c.b16 %v3048, %v3044
    %v4473 = vpack.c.b16 %v3049, %v3045
    %v4474 = vpack.c.b16 %v3050, %v3046
    %v4475 = vpack.c.b16 %v3051, %v3047
    %v4476 = vpack.c.b16 %v3056, %v3052
    %v4477 = vpack.c.b16 %v3057, %v3053
    %v4478 = vpack.c.b16 %v3058, %v3054
    %v4479 = vpack.c.b16 %v3059, %v3055
    %v4480 = vpack.c.b16 %v3064, %v3060
    %v4481 = vpack.c.b16 %v3065, %v3061
    %v4482 = vpack.c.b16 %v3066, %v3062
    %v4483 = vpack.c.b16 %v3067, %v3063
    %v4484 = vpack.c.b16 %v3072, %v3068
    %v4485 = vpack.c.b16 %v3073, %v3069
    %v4486 = vpack.c.b16 %v3074, %v3070
    %v4487 = vpack.c.b16 %v3075, %v3071
    %v4488 = vpack.c.b16 %v3080, %v3076
    %v4489 = vpack.c.b16 %v3081, %v3077
    %v4490 = vpack.c.b16 %v3082, %v3078
    %v4491 = vpack.c.b16 %v3083, %v3079
    %v4492 = vpack.c.b16 %v3088, %v3084
    %v4493 = vpack.c.b16 %v3089, %v3085
    %v4494 = vpack.c.b16 %v3090, %v3086
    %v4495 = vpack.c.b16 %v3091, %v3087
    %v4496 = vpack.c.b16 %v3096, %v3092
    %v4497 = vpack.c.b16 %v3097, %v3093
    %v4498 = vpack.c.b16 %v3098, %v3094
    %v4499 = vpack.c.b16 %v3099, %v3095
    %v4500 = vpack.c.b16 %v3104, %v3100
    %v4501 = vpack.c.b16 %v3105, %v3101
    %v4502 = vpack.c.b16 %v3106, %v3102
    %v4503 = vpack.c.b16 %v3107, %v3103
    %v4504 = vpack.c.b16 %v3112, %v3108
    %v4505 = vpack.c.b16 %v3113, %v3109
    %v4506 = vpack.c.b16 %v3114, %v3110
    %v4507 = vpack.c.b16 %v3115, %v3111
    %v4508 = vpack.c.b16 %v3120, %v3116
    %v4509 = vpack.c.b16 %v3121, %v3117
    %v4510 = vpack.c.b16 %v3122, %v3118
    %v4511 = vpack.c.b16 %v3123, %v3119
    %v4512 = vpack.c.b16 %v3128, %v3124
    %v4513 = vpack.c.b16 %v3129, %v3125
    %v4514 = vpack.c.b16 %v3130, %v3126
    %v4515 = vpack.c.b16 %v3131, %v3127
    %v4516 = vpack.c.b16 %v3136, %v3132
    %v4517 = vpack.c.b16 %v3137, %v3133
    %v4518 = vpack.c.b16 %v3138, %v3134
    %v4519 = vpack.c.b16 %v3139, %v3135
    %v4520 = vpack.c.b16 %v3144, %v3140
    %v4521 = vpack.c.b16 %v3145, %v3141
    %v4522 = vpack.c.b16 %v3146, %v3142
    %v4523 = vpack.c.b16 %v3147, %v3143
    %v4524 = vpack.c.b16 %v3152, %v3148
    %v4525 = vpack.c.b16 %v3153, %v3149
    %v4526 = vpack.c.b16 %v3154, %v3150
    %v4527 = vpack.c.b16 %v3155, %v3151
    %v4528 = vpack.c.b16 %v3160, %v3156
    %v4529 = vpack.c.b16 %v3161, %v3157
    %v4530 = vpack.c.b16 %v3162, %v3158
    %v4531 = vpack.c.b16 %v3163, %v3159
    %v4532 = vpack.c.b16 %v3168, %v3164
    %v4533 = vpack.c.b16 %v3169, %v3165
    %v4534 = vpack.c.b16 %v3170, %v3166
    %v4535 = vpack.c.b16 %v3171, %v3167
    %v4536 = vpack.c.b16 %v3176, %v3172
    %v4537 = vpack.c.b16 %v3177, %v3173
    %v4538 = vpack.c.b16 %v3178, %v3174
    %v4539 = vpack.c.b16 %v3179, %v3175
    %v4540 = vpack.c.b16 %v3184, %v3180
    %v4541 = vpack.c.b16 %v3185, %v3181
    %v4542 = vpack.c.b16 %v3186, %v3182
    %v4543 = vpack.c.b16 %v3187, %v3183
    %v4544 = vpack.c.b16 %v3192, %v3188
    %v4545 = vpack.c.b16 %v3193, %v3189
    %v4546 = vpack.c.b16 %v3194, %v3190
    %v4547 = vpack.c.b16 %v3195, %v3191
    %v4548 = vpack.c.b16 %v3200, %v3196
    %v4549 = vpack.c.b16 %v3201, %v3197
    %v4550 = vpack.c.b16 %v3202, %v3198
    %v4551 = vpack.c.b16 %v3203, %v3199
    %v4552 = vpack.c.b16 %v3208, %v3204
    %v4553 = vpack.c.b16 %v3209, %v3205
    %v4554 = vpack.c.b16 %v3210, %v3206
    %v4555 = vpack.c.b16 %v3211, %v3207
    %v4556 = vpack.c.b16 %v3216, %v3212
    %v4557 = vpack.c.b16 %v3217, %v3213
    %v4558 = vpack.c.b16 %v3218, %v3214
    %v4559 = vpack.c.b16 %v3219, %v3215
    %v4560 = vpack.c.b16 %v3224, %v3220
    %v4561 = vpack.c.b16 %v3225, %v3221
    %v4562 = vpack.c.b16 %v3226, %v3222
    %v4563 = vpack.c.b16 %v3227, %v3223
    %v4564 = vpack.c.b16 %v3232, %v3228
    %v4565 = vpack.c.b16 %v3233, %v3229
    %v4566 = vpack.c.b16 %v3234, %v3230
    %v4567 = vpack.c.b16 %v3235, %v3231
    %v4568 = vpack.c.b16 %v3240, %v3236
    %v4569 = vpack.c.b16 %v3241, %v3237
    %v4570 = vpack.c.b16 %v3242, %v3238
    %v4571 = vpack.c.b16 %v3243, %v3239
    %v4572 = vpack.c.b16 %v3248, %v3244
    %v4573 = vpack.c.b16 %v3249, %v3245
    %v4574 = vpack.c.b16 %v3250, %v3246
    %v4575 = vpack.c.b16 %v3251, %v3247
    %v4576 = vpack.c.b16 %v3256, %v3252
    %v4577 = vpack.c.b16 %v3257, %v3253
    %v4578 = vpack.c.b16 %v3258, %v3254
    %v4579 = vpack.c.b16 %v3259, %v3255
    %v4580 = vpack.c.b16 %v3264, %v3260
    %v4581 = vpack.c.b16 %v3265, %v3261
    %v4582 = vpack.c.b16 %v3266, %v3262
    %v4583 = vpack.c.b16 %v3267, %v3263
    %v4584 = vpack.c.b16 %v3272, %v3268
    %v4585 = vpack.c.b16 %v3273, %v3269
    %v4586 = vpack.c.b16 %v3274, %v3270
    %v4587 = vpack.c.b16 %v3275, %v3271
    %v4588 = vpack.c.b16 %v3280, %v3276
    %v4589 = vpack.c.b16 %v3281, %v3277
    %v4590 = vpack.c.b16 %v3282, %v3278
    %v4591 = vpack.c.b16 %v3283, %v3279
    %v4592 = vpack.c.b16 %v3288, %v3284
    %v4593 = vpack.c.b16 %v3289, %v3285
    %v4594 = vpack.c.b16 %v3290, %v3286
    %v4595 = vpack.c.b16 %v3291, %v3287
    %v4596 = vpack.c.b16 %v3296, %v3292
    %v4597 = vpack.c.b16 %v3297, %v3293
    %v4598 = vpack.c.b16 %v3298, %v3294
    %v4599 = vpack.c.b16 %v3299, %v3295
    %v4600 = vpack.c.b16 %v3304, %v3300
    %v4601 = vpack.c.b16 %v3305, %v3301
    %v4602 = vpack.c.b16 %v3306, %v3302
    %v4603 = vpack.c.b16 %v3307, %v3303
    %v4604 = vpack.c.b16 %v3312, %v3308
    %v4605 = vpack.c.b16 %v3313, %v3309
    %v4606 = vpack.c.b16 %v3314, %v3310
    %v4607 = vpack.c.b16 %v3315, %v3311
    %v4608 = vpack.c.b16 %v3320, %v3316
    %v4609 = vpack.c.b16 %v3321, %v3317
    %v4610 = vpack.c.b16 %v3322, %v3318
    %v4611 = vpack.c.b16 %v3323, %v3319
    %v4612 = vpack.c.b16 %v3328, %v3324
    %v4613 = vpack.c.b16 %v3329, %v3325
    %v4614 = vpack.c.b16 %v3330, %v3326
    %v4615 = vpack.c.b16 %v3331, %v3327
    %v4616 = vpack.c.b16 %v3336, %v3332
    %v4617 = vpack.c.b16 %v3337, %v3333
    %v4618 = vpack.c.b16 %v3338, %v3334
    %v4619 = vpack.c.b16 %v3339, %v3335
    %v4620 = vpack.c.b16 %v3344, %v3340
    %v4621 = vpack.c.b16 %v3345, %v3341
    %v4622 = vpack.c.b16 %v3346, %v3342
    %v4623 = vpack.c.b16 %v3347, %v3343
    %v4624 = vpack.c.b16 %v3352, %v3348
    %v4625 = vpack.c.b16 %v3353, %v3349
    %v4626 = vpack.c.b16 %v3354, %v3350
    %v4627 = vpack.c.b16 %v3355, %v3351
    %v4628 = vpack.c.b16 %v3360, %v3356
    %v4629 = vpack.c.b16 %v3361, %v3357
    %v4630 = vpack.c.b16 %v3362, %v3358
    %v4631 = vpack.c.b16 %v3363, %v3359
    %v4632 = vpack.c.b16 %v3368, %v3364
    %v4633 = vpack.c.b16 %v3369, %v3365
    %v4634 = vpack.c.b16 %v3370, %v3366
    %v4635 = vpack.c.b16 %v3371, %v3367
    %v4636 = vpack.c.b16 %v3376, %v3372
    %v4637 = vpack.c.b16 %v3377, %v3373
    %v4638 = vpack.c.b16 %v3378, %v3374
    %v4639 = vpack.c.b16 %v3379, %v3375
    %v4640 = vpack.c.b16 %v3384, %v3380
    %v4641 = vpack.c.b16 %v3385, %v3381
    %v4642 = vpack.c.b16 %v3386, %v3382
    %v4643 = vpack.c.b16 %v3387, %v3383
    %v4644 = vpack.c.b16 %v3392, %v3388
    %v4645 = vpack.c.b16 %v3393, %v3389
    %v4646 = vpack.c.b16 %v3394, %v3390
    %v4647 = vpack.c.b16 %v3395, %v3391
    %v4648 = vpack.c.b16 %v3400, %v3396
    %v4649 = vpack.c.b16 %v3401, %v3397
    %v4650 = vpack.c.b16 %v3402, %v3398
    %v4651 = vpack.c.b16 %v3403, %v3399
    %v4652 = vpack.c.b16 %v3408, %v3404
    %v4653 = vpack.c.b16 %v3409, %v3405
    %v4654 = vpack.c.b16 %v3410, %v3406
    %v4655 = vpack.c.b16 %v3411, %v3407
    %v4656 = vpack.c.b16 %v3416, %v3412
    %v4657 = vpack.c.b16 %v3417, %v3413
    %v4658 = vpack.c.b16 %v3418, %v3414
    %v4659 = vpack.c.b16 %v3419, %v3415
    %v4660 = vpack.c.b16 %v3424, %v3420
    %v4661 = vpack.c.b16 %v3425, %v3421
    %v4662 = vpack.c.b16 %v3426, %v3422
    %v4663 = vpack.c.b16 %v3427, %v3423
    %v4664 = vpack.c.b16 %v3432, %v3428
    %v4665 = vpack.c.b16 %v3433, %v3429
    %v4666 = vpack.c.b16 %v3434, %v3430
    %v4667 = vpack.c.b16 %v3435, %v3431
    %v4668 = vpack.c.b16 %v3440, %v3436
    %v4669 = vpack.c.b16 %v3441, %v3437
    %v4670 = vpack.c.b16 %v3442, %v3438
    %v4671 = vpack.c.b16 %v3443, %v3439
    %v4672 = vpack.c.b16 %v3448, %v3444
    %v4673 = vpack.c.b16 %v3449, %v3445
    %v4674 = vpack.c.b16 %v3450, %v3446
    %v4675 = vpack.c.b16 %v3451, %v3447
    %v4676 = vpack.c.b16 %v3456, %v3452
    %v4677 = vpack.c.b16 %v3457, %v3453
    %v4678 = vpack.c.b16 %v3458, %v3454
    %v4679 = vpack.c.b16 %v3459, %v3455
    %v4680 = vpack.c.b16 %v3464, %v3460
    %v4681 = vpack.c.b16 %v3465, %v3461
    %v4682 = vpack.c.b16 %v3466, %v3462
    %v4683 = vpack.c.b16 %v3467, %v3463
    %v4684 = vpack.c.b16 %v3472, %v3468
    %v4685 = vpack.c.b16 %v3473, %v3469
    %v4686 = vpack.c.b16 %v3474, %v3470
    %v4687 = vpack.c.b16 %v3475, %v3471
    %v4688 = vpack.c.b16 %v3480, %v3476
    %v4689 = vpack.c.b16 %v3481, %v3477
    %v4690 = vpack.c.b16 %v3482, %v3478
    %v4691 = vpack.c.b16 %v3483, %v3479
    %v4692 = vpack.c.b16 %v3488, %v3484
    %v4693 = vpack.c.b16 %v3489, %v3485
    %v4694 = vpack.c.b16 %v3490, %v3486
    %v4695 = vpack.c.b16 %v3491, %v3487
    %v4696 = vpack.c.b16 %v3496, %v3492
    %v4697 = vpack.c.b16 %v3497, %v3493
    %v4698 = vpack.c.b16 %v3498, %v3494
    %v4699 = vpack.c.b16 %v3499, %v3495
    %v4700 = vpack.c.b16 %v3504, %v3500
    %v4701 = vpack.c.b16 %v3505, %v3501
    %v4702 = vpack.c.b16 %v3506, %v3502
    %v4703 = vpack.c.b16 %v3507, %v3503
    %v4704 = vpack.c.b16 %v3512, %v3508
    %v4705 = vpack.c.b16 %v3513, %v3509
    %v4706 = vpack.c.b16 %v3514, %v3510
    %v4707 = vpack.c.b16 %v3515, %v3511
    %v4708 = vpack.c.b16 %v3520, %v3516
    %v4709 = vpack.c.b16 %v3521, %v3517
    %v4710 = vpack.c.b16 %v3522, %v3518
    %v4711 = vpack.c.b16 %v3523, %v3519
    %v4712 = vpack.c.b16 %v3528, %v3524
    %v4713 = vpack.c.b16 %v3529, %v3525
    %v4714 = vpack.c.b16 %v3530, %v3526
    %v4715 = vpack.c.b16 %v3531, %v3527
    %v4716 = vpack.c.b16 %v3536, %v3532
    %v4717 = vpack.c.b16 %v3537, %v3533
    %v4718 = vpack.c.b16 %v3538, %v3534
    %v4719 = vpack.c.b16 %v3539, %v3535
    %v4720 = vpack.c.b16 %v3544, %v3540
    %v4721 = vpack.c.b16 %v3545, %v3541
    %v4722 = vpack.c.b16 %v3546, %v3542
    %v4723 = vpack.c.b16 %v3547, %v3543
    %v4724 = vpack.c.b16 %v3552, %v3548
    %v4725 = vpack.c.b16 %v3553, %v3549
    %v4726 = vpack.c.b16 %v3554, %v3550
    %v4727 = vpack.c.b16 %v3555, %v3551
    %v4728 = vpack.c.b16 %v3560, %v3556
    %v4729 = vpack.c.b16 %v3561, %v3557
    %v4730 = vpack.c.b16 %v3562, %v3558
    %v4731 = vpack.c.b16 %v3563, %v3559
    %v4732 = vpack.c.b16 %v3568, %v3564
    %v4733 = vpack.c.b16 %v3569, %v3565
    %v4734 = vpack.c.b16 %v3570, %v3566
    %v4735 = vpack.c.b16 %v3571, %v3567
    %v4736 = vpack.c.b16 %v3576, %v3572
    %v4737 = vpack.c.b16 %v3577, %v3573
    %v4738 = vpack.c.b16 %v3578, %v3574
    %v4739 = vpack.c.b16 %v3579, %v3575
    %v4740 = vpack.c.b16 %v3584, %v3580
    %v4741 = vpack.c.b16 %v3585, %v3581
    %v4742 = vpack.c.b16 %v3586, %v3582
    %v4743 = vpack.c.b16 %v3587, %v3583
    %v4744 = vpack.c.b16 %v3592, %v3588
    %v4745 = vpack.c.b16 %v3593, %v3589
    %v4746 = vpack.c.b16 %v3594, %v3590
    %v4747 = vpack.c.b16 %v3595, %v3591
    %v4748 = vpack.c.b16 %v3600, %v3596
    %v4749 = vpack.c.b16 %v3601, %v3597
    %v4750 = vpack.c.b16 %v3602, %v3598
    %v4751 = vpack.c.b16 %v3603, %v3599
    %v4752 = vpack.c.b16 %v3608, %v3604
    %v4753 = vpack.c.b16 %v3609, %v3605
    %v4754 = vpack.c.b16 %v3610, %v3606
    %v4755 = vpack.c.b16 %v3611, %v3607
    %v4756 = vpack.c.b16 %v3616, %v3612
    %v4757 = vpack.c.b16 %v3617, %v3613
    %v4758 = vpack.c.b16 %v3618, %v3614
    %v4759 = vpack.c.b16 %v3619, %v3615
    %v4760 = vpack.c.b16 %v3624, %v3620
    %v4761 = vpack.c.b16 %v3625, %v3621
    %v4762 = vpack.c.b16 %v3626, %v3622
    %v4763 = vpack.c.b16 %v3627, %v3623
    %v4764 = vpack.c.b16 %v3632, %v3628
    %v4765 = vpack.c.b16 %v3633, %v3629
    %v4766 = vpack.c.b16 %v3634, %v3630
    %v4767 = vpack.c.b16 %v3635, %v3631
    %v4768 = vpack.c.b16 %v3640, %v3636
    %v4769 = vpack.c.b16 %v3641, %v3637
    %v4770 = vpack.c.b16 %v3642, %v3638
    %v4771 = vpack.c.b16 %v3643, %v3639
    %v4772 = vpack.c.b16 %v3648, %v3644
    %v4773 = vpack.c.b16 %v3649, %v3645
    %v4774 = vpack.c.b16 %v3650, %v3646
    %v4775 = vpack.c.b16 %v3651, %v3647
    %v4776 = vpack.c.b16 %v3656, %v3652
    %v4777 = vpack.c.b16 %v3657, %v3653
    %v4778 = vpack.c.b16 %v3658, %v3654
    %v4779 = vpack.c.b16 %v3659, %v3655
    %v4780 = vpack.c.b16 %v3664, %v3660
    %v4781 = vpack.c.b16 %v3665, %v3661
    %v4782 = vpack.c.b16 %v3666, %v3662
    %v4783 = vpack.c.b16 %v3667, %v3663
    %v4784 = vpack.c.b16 %v3672, %v3668
    %v4785 = vpack.c.b16 %v3673, %v3669
    %v4786 = vpack.c.b16 %v3674, %v3670
    %v4787 = vpack.c.b16 %v3675, %v3671
    %v4788 = vpack.c.b16 %v3680, %v3676
    %v4789 = vpack.c.b16 %v3681, %v3677
    %v4790 = vpack.c.b16 %v3682, %v3678
    %v4791 = vpack.c.b16 %v3683, %v3679
    %v4792 = vpack.c.b16 %v3688, %v3684
    %v4793 = vpack.c.b16 %v3689, %v3685
    %v4794 = vpack.c.b16 %v3690, %v3686
    %v4795 = vpack.c.b16 %v3691, %v3687
    %v4796 = vpack.c.b16 %v3696, %v3692
    %v4797 = vpack.c.b16 %v3697, %v3693
    %v4798 = vpack.c.b16 %v3698, %v3694
    %v4799 = vpack.c.b16 %v3699, %v3695
    %v4800 = vpack.c.b16 %v3704, %v3700
    %v4801 = vpack.c.b16 %v3705, %v3701
    %v4802 = vpack.c.b16 %v3706, %v3702
    %v4803 = vpack.c.b16 %v3707, %v3703
    %v4804 = vpack.c.b16 %v3712, %v3708
    %v4805 = vpack.c.b16 %v3713, %v3709
    %v4806 = vpack.c.b16 %v3714, %v3710
    %v4807 = vpack.c.b16 %v3715, %v3711
    %v4808 = vpack.c.b16 %v3720, %v3716
    %v4809 = vpack.c.b16 %v3721, %v3717
    %v4810 = vpack.c.b16 %v3722, %v3718
    %v4811 = vpack.c.b16 %v3723, %v3719
    %v4812 = vpack.c.b16 %v3728, %v3724
    %v4813 = vpack.c.b16 %v3729, %v3725
    %v4814 = vpack.c.b16 %v3730, %v3726
    %v4815 = vpack.c.b16 %v3731, %v3727
    %v4816 = vpack.c.b16 %v3736, %v3732
    %v4817 = vpack.c.b16 %v3737, %v3733
    %v4818 = vpack.c.b16 %v3738, %v3734
    %v4819 = vpack.c.b16 %v3739, %v3735
    %v4820 = vpack.c.b16 %v3744, %v3740
    %v4821 = vpack.c.b16 %v3745, %v3741
    %v4822 = vpack.c.b16 %v3746, %v3742
    %v4823 = vpack.c.b16 %v3747, %v3743
    %v4824 = vpack.c.b16 %v3752, %v3748
    %v4825 = vpack.c.b16 %v3753, %v3749
    %v4826 = vpack.c.b16 %v3754, %v3750
    %v4827 = vpack.c.b16 %v3755, %v3751
    %v4828 = vpack.c.b16 %v3760, %v3756
    %v4829 = vpack.c.b16 %v3761, %v3757
    %v4830 = vpack.c.b16 %v3762, %v3758
    %v4831 = vpack.c.b16 %v3763, %v3759
    %v4832 = vpack.c.b16 %v3768, %v3764
    %v4833 = vpack.c.b16 %v3769, %v3765
    %v4834 = vpack.c.b16 %v3770, %v3766
    %v4835 = vpack.c.b16 %v3771, %v3767
    %v4836 = vpack.c.b16 %v3776, %v3772
    %v4837 = vpack.c.b16 %v3777, %v3773
    %v4838 = vpack.c.b16 %v3778, %v3774
    %v4839 = vpack.c.b16 %v3779, %v3775
    %v4840 = vpack.c.b16 %v3784, %v3780
    %v4841 = vpack.c.b16 %v3785, %v3781
    %v4842 = vpack.c.b16 %v3786, %v3782
    %v4843 = vpack.c.b16 %v3787, %v3783
    %v4844 = vpack.c.b16 %v3792, %v3788
    %v4845 = vpack.c.b16 %v3793, %v3789
    %v4846 = vpack.c.b16 %v3794, %v3790
    %v4847 = vpack.c.b16 %v3795, %v3791
    %v4848 = vpack.c.b16 %v3800, %v3796
    %v4849 = vpack.c.b16 %v3801, %v3797
    %v4850 = vpack.c.b16 %v3802, %v3798
    %v4851 = vpack.c.b16 %v3803, %v3799
    %v4852 = vpack.c.b16 %v3808, %v3804
    %v4853 = vpack.c.b16 %v3809, %v3805
    %v4854 = vpack.c.b16 %v3810, %v3806
    %v4855 = vpack.c.b16 %v3811, %v3807
    %v4856 = vpack.c.b16 %v3816, %v3812
    %v4857 = vpack.c.b16 %v3817, %v3813
    %v4858 = vpack.c.b16 %v3818, %v3814
    %v4859 = vpack.c.b16 %v3819, %v3815
    %v4860 = vpack.c.b16 %v3824, %v3820
    %v4861 = vpack.c.b16 %v3825, %v3821
    %v4862 = vpack.c.b16 %v3826, %v3822
    %v4863 = vpack.c.b16 %v3827, %v3823
    %v4864 = vpack.c.b16 %v3832, %v3828
    %v4865 = vpack.c.b16 %v3833, %v3829
    %v4866 = vpack.c.b16 %v3834, %v3830
    %v4867 = vpack.c.b16 %v3835, %v3831
    %v4868 = vpack.c.b16 %v3840, %v3836
    %v4869 = vpack.c.b16 %v3841, %v3837
    %v4870 = vpack.c.b16 %v3842, %v3838
    %v4871 = vpack.c.b16 %v3843, %v3839
    %v4872 = vpack.c.b16 %v3848, %v3844
    %v4873 = vpack.c.b16 %v3849, %v3845
    %v4874 = vpack.c.b16 %v3850, %v3846
    %v4875 = vpack.c.b16 %v3851, %v3847
    %v4876 = vpack.c.b16 %v3856, %v3852
    %v4877 = vpack.c.b16 %v3857, %v3853
    %v4878 = vpack.c.b16 %v3858, %v3854
    %v4879 = vpack.c.b16 %v3859, %v3855
    %v4880 = vpack.c.b16 %v3864, %v3860
    %v4881 = vpack.c.b16 %v3865, %v3861
    %v4882 = vpack.c.b16 %v3866, %v3862
    %v4883 = vpack.c.b16 %v3867, %v3863
    %v4884 = vpack.c.b16 %v3872, %v3868
    %v4885 = vpack.c.b16 %v3873, %v3869
    %v4886 = vpack.c.b16 %v3874, %v3870
    %v4887 = vpack.c.b16 %v3875, %v3871
    %v4888 = vpack.c.b16 %v3880, %v3876
    %v4889 = vpack.c.b16 %v3881, %v3877
    %v4890 = vpack.c.b16 %v3882, %v3878
    %v4891 = vpack.c.b16 %v3883, %v3879
    %v4892 = vpack.c.b16 %v3888, %v3884
    %v4893 = vpack.c.b16 %v3889, %v3885
    %v4894 = vpack.c.b16 %v3890, %v3886
    %v4895 = vpack.c.b16 %v3891, %v3887
    %v4896 = vpack.c.b16 %v3896, %v3892
    %v4897 = vpack.c.b16 %v3897, %v3893
    %v4898 = vpack.c.b16 %v3898, %v3894
    %v4899 = vpack.c.b16 %v3899, %v3895
    %v4900 = vpack.c.b16 %v3904, %v3900
    %v4901 = vpack.c.b16 %v3905, %v3901
    %v4902 = vpack.c.b16 %v3906, %v3902
    %v4903 = vpack.c.b16 %v3907, %v3903
    %v4904 = vpack.c.b16 %v3912, %v3908
    %v4905 = vpack.c.b16 %v3913, %v3909
    %v4906 = vpack.c.b16 %v3914, %v3910
    %v4907 = vpack.c.b16 %v3915, %v3911
    %v4908 = vpack.c.b16 %v3920, %v3916
    %v4909 = vpack.c.b16 %v3921, %v3917
    %v4910 = vpack.c.b16 %v3922, %v3918
    %v4911 = vpack.c.b16 %v3923, %v3919
    %v4912 = vpack.c.b16 %v3928, %v3924
    %v4913 = vpack.c.b16 %v3929, %v3925
    %v4914 = vpack.c.b16 %v3930, %v3926
    %v4915 = vpack.c.b16 %v3931, %v3927
    %v4916 = vpack.c.b16 %v3936, %v3932
    %v4917 = vpack.c.b16 %v3937, %v3933
    %v4918 = vpack.c.b16 %v3938, %v3934
    %v4919 = vpack.c.b16 %v3939, %v3935
    %v4920 = vpack.c.b16 %v3944, %v3940
    %v4921 = vpack.c.b16 %v3945, %v3941
    %v4922 = vpack.c.b16 %v3946, %v3942
    %v4923 = vpack.c.b16 %v3947, %v3943
    %v4924 = vpack.c.b16 %v3952, %v3948
    %v4925 = vpack.c.b16 %v3953, %v3949
    %v4926 = vpack.c.b16 %v3954, %v3950
    %v4927 = vpack.c.b16 %v3955, %v3951
    %v4928 = vpack.c.b16 %v3960, %v3956
    %v4929 = vpack.c.b16 %v3961, %v3957
    %v4930 = vpack.c.b16 %v3962, %v3958
    %v4931 = vpack.c.b16 %v3963, %v3959
    %v4932 = vpack.c.b16 %v3968, %v3964
    %v4933 = vpack.c.b16 %v3969, %v3965
    %v4934 = vpack.c.b16 %v3970, %v3966
    %v4935 = vpack.c.b16 %v3971, %v3967
    %v4936 = vpack.c.b16 %v3976, %v3972
    %v4937 = vpack.c.b16 %v3977, %v3973
    %v4938 = vpack.c.b16 %v3978, %v3974
    %v4939 = vpack.c.b16 %v3979, %v3975
    %v4940 = vpack.c.b16 %v3984, %v3980
    %v4941 = vpack.c.b16 %v3985, %v3981
    %v4942 = vpack.c.b16 %v3986, %v3982
    %v4943 = vpack.c.b16 %v3987, %v3983
    %v4944 = vpack.c.b16 %v3992, %v3988
    %v4945 = vpack.c.b16 %v3993, %v3989
    %v4946 = vpack.c.b16 %v3994, %v3990
    %v4947 = vpack.c.b16 %v3995, %v3991
    %v4948 = vpack.c.b16 %v4000, %v3996
    %v4949 = vpack.c.b16 %v4001, %v3997
    %v4950 = vpack.c.b16 %v4002, %v3998
    %v4951 = vpack.c.b16 %v4003, %v3999
    %v4952 = vpack.c.b16 %v4008, %v4004
    %v4953 = vpack.c.b16 %v4009, %v4005
    %v4954 = vpack.c.b16 %v4010, %v4006
    %v4955 = vpack.c.b16 %v4011, %v4007
    %v4956 = vpack.c.b16 %v4016, %v4012
    %v4957 = vpack.c.b16 %v4017, %v4013
    %v4958 = vpack.c.b16 %v4018, %v4014
    %v4959 = vpack.c.b16 %v4019, %v4015
    %v4960 = vpack.c.b16 %v4024, %v4020
    %v4961 = vpack.c.b16 %v4025, %v4021
    %v4962 = vpack.c.b16 %v4026, %v4022
    %v4963 = vpack.c.b16 %v4027, %v4023
    %v4964 = vpack.c.b16 %v4032, %v4028
    %v4965 = vpack.c.b16 %v4033, %v4029
    %v4966 = vpack.c.b16 %v4034, %v4030
    %v4967 = vpack.c.b16 %v4035, %v4031
    %v4968 = vpack.c.b16 %v4040, %v4036
    %v4969 = vpack.c.b16 %v4041, %v4037
    %v4970 = vpack.c.b16 %v4042, %v4038
    %v4971 = vpack.c.b16 %v4043, %v4039
    %v4972 = vpack.c.b16 %v4048, %v4044
    %v4973 = vpack.c.b16 %v4049, %v4045
    %v4974 = vpack.c.b16 %v4050, %v4046
    %v4975 = vpack.c.b16 %v4051, %v4047
    %v4976 = vpack.c.b16 %v4056, %v4052
    %v4977 = vpack.c.b16 %v4057, %v4053
    %v4978 = vpack.c.b16 %v4058, %v4054
    %v4979 = vpack.c.b16 %v4059, %v4055
    %v4980 = vpack.c.b16 %v4064, %v4060
    %v4981 = vpack.c.b16 %v4065, %v4061
    %v4982 = vpack.c.b16 %v4066, %v4062
    %v4983 = vpack.c.b16 %v4067, %v4063
    %v4984 = vpack.c.b16 %v4072, %v4068
    %v4985 = vpack.c.b16 %v4073, %v4069
    %v4986 = vpack.c.b16 %v4074, %v4070
    %v4987 = vpack.c.b16 %v4075, %v4071
    %v4988 = vpack.c.b16 %v4080, %v4076
    %v4989 = vpack.c.b16 %v4081, %v4077
    %v4990 = vpack.c.b16 %v4082, %v4078
    %v4991 = vpack.c.b16 %v4083, %v4079
    %v4992 = vpack.c.b16 %v4088, %v4084
    %v4993 = vpack.c.b16 %v4089, %v4085
    %v4994 = vpack.c.b16 %v4090, %v4086
    %v4995 = vpack.c.b16 %v4091, %v4087
    %v4996 = vpack.c.b16 %v4096, %v4092
    %v4997 = vpack.c.b16 %v4097, %v4093
    %v4998 = vpack.c.b16 %v4098, %v4094
    %v4999 = vpack.c.b16 %v4099, %v4095
    %v5000 = vpack.c.b16 %v4104, %v4100
    %v5001 = vpack.c.b16 %v4105, %v4101
    %v5002 = vpack.c.b16 %v4106, %v4102
    %v5003 = vpack.c.b16 %v4107, %v4103
    %v5004 = vpack.c.b16 %v4112, %v4108
    %v5005 = vpack.c.b16 %v4113, %v4109
    %v5006 = vpack.c.b16 %v4114, %v4110
    %v5007 = vpack.c.b16 %v4115, %v4111
    %v5008 = vpack.c.b16 %v4120, %v4116
    %v5009 = vpack.c.b16 %v4121, %v4117
    %v5010 = vpack.c.b16 %v4122, %v4118
    %v5011 = vpack.c.b16 %v4123, %v4119
    %v5012 = vpack.c.b16 %v4128, %v4124
    %v5013 = vpack.c.b16 %v4129, %v4125
    %v5014 = vpack.c.b16 %v4130, %v4126
    %v5015 = vpack.c.b16 %v4131, %v4127
    %v5016 = vpack.c.b16 %v4136, %v4132
    %v5017 = vpack.c.b16 %v4137, %v4133
    %v5018 = vpack.c.b16 %v4138, %v4134
    %v5019 = vpack.c.b16 %v4139, %v4135
    %v5020 = vpack.c.b16 %v4144, %v4140
    %v5021 = vpack.c.b16 %v4145, %v4141
    %v5022 = vpack.c.b16 %v4146, %v4142
    %v5023 = vpack.c.b16 %v4147, %v4143
    %v5024 = vpack.c.b16 %v4152, %v4148
    %v5025 = vpack.c.b16 %v4153, %v4149
    %v5026 = vpack.c.b16 %v4154, %v4150
    %v5027 = vpack.c.b16 %v4155, %v4151
    %v5028 = vpack.c.b16 %v4160, %v4156
    %v5029 = vpack.c.b16 %v4161, %v4157
    %v5030 = vpack.c.b16 %v4162, %v4158
    %v5031 = vpack.c.b16 %v4163, %v4159
    %v5032 = vpack.c.b16 %v4168, %v4164
    %v5033 = vpack.c.b16 %v4169, %v4165
    %v5034 = vpack.c.b16 %v4170, %v4166
    %v5035 = vpack.c.b16 %v4171, %v4167
    %v5036 = vpack.c.b16 %v4176, %v4172
    %v5037 = vpack.c.b16 %v4177, %v4173
    %v5038 = vpack.c.b16 %v4178, %v4174
    %v5039 = vpack.c.b16 %v4179, %v4175
    %v5040 = vpack.c.b16 %v4184, %v4180
    %v5041 = vpack.c.b16 %v4185, %v4181
    %v5042 = vpack.c.b16 %v4186, %v4182
    %v5043 = vpack.c.b16 %v4187, %v4183
    %v5044 = vpack.c.b16 %v4192, %v4188
    %v5045 = vpack.c.b16 %v4193, %v4189
    %v5046 = vpack.c.b16 %v4194, %v4190
    %v5047 = vpack.c.b16 %v4195, %v4191
    %v5048 = vpack.c.b16 %v4200, %v4196
    %v5049 = vpack.c.b16 %v4201, %v4197
    %v5050 = vpack.c.b16 %v4202, %v4198
    %v5051 = vpack.c.b16 %v4203, %v4199
    %v5052 = vpack.c.b16 %v4208, %v4204
    %v5053 = vpack.c.b16 %v4209, %v4205
    %v5054 = vpack.c.b16 %v4210, %v4206
    %v5055 = vpack.c.b16 %v4211, %v4207
    %v5056 = vpack.c.b16 %v4216, %v4212
    %v5057 = vpack.c.b16 %v4217, %v4213
    %v5058 = vpack.c.b16 %v4218, %v4214
    %v5059 = vpack.c.b16 %v4219, %v4215
    %v5060 = vpack.c.b16 %v4224, %v4220
    %v5061 = vpack.c.b16 %v4225, %v4221
    %v5062 = vpack.c.b16 %v4226, %v4222
    %v5063 = vpack.c.b16 %v4227, %v4223
    %v5064 = vpack.c.b16 %v4232, %v4228
    %v5065 = vpack.c.b16 %v4233, %v4229
    %v5066 = vpack.c.b16 %v4234, %v4230
    %v5067 = vpack.c.b16 %v4235, %v4231
    %v5068 = vpack.c.b16 %v4240, %v4236
    %v5069 = vpack.c.b16 %v4241, %v4237
    %v5070 = vpack.c.b16 %v4242, %v4238
    %v5071 = vpack.c.b16 %v4243, %v4239
    %v5072 = vpack.c.b16 %v4248, %v4244
    %v5073 = vpack.c.b16 %v4249, %v4245
    %v5074 = vpack.c.b16 %v4250, %v4246
    %v5075 = vpack.c.b16 %v4251, %v4247
    %v5076 = vpack.c.b16 %v4256, %v4252
    %v5077 = vpack.c.b16 %v4257, %v4253
    %v5078 = vpack.c.b16 %v4258, %v4254
    %v5079 = vpack.c.b16 %v4259, %v4255
    %v5080 = vpack.c.b16 %v4264, %v4260
    %v5081 = vpack.c.b16 %v4265, %v4261
    %v5082 = vpack.c.b16 %v4266, %v4262
    %v5083 = vpack.c.b16 %v4267, %v4263
    %v5084 = vpack.c.b16 %v4272, %v4268
    %v5085 = vpack.c.b16 %v4273, %v4269
    %v5086 = vpack.c.b16 %v4274, %v4270
    %v5087 = vpack.c.b16 %v4275, %v4271
    %v5088 = vpack.c.b16 %v4280, %v4276
    %v5089 = vpack.c.b16 %v4281, %v4277
    %v5090 = vpack.c.b16 %v4282, %v4278
    %v5091 = vpack.c.b16 %v4283, %v4279
    %v5092 = vpack.c.b16 %v4288, %v4284
    %v5093 = vpack.c.b16 %v4289, %v4285
    %v5094 = vpack.c.b16 %v4290, %v4286
    %v5095 = vpack.c.b16 %v4291, %v4287
    %v5096 = vpack.c.b16 %v4296, %v4292
    %v5097 = vpack.c.b16 %v4297, %v4293
    %v5098 = vpack.c.b16 %v4298, %v4294
    %v5099 = vpack.c.b16 %v4299, %v4295
    %v5100 = vpack.c.b16 %v4304, %v4300
    %v5101 = vpack.c.b16 %v4305, %v4301
    %v5102 = vpack.c.b16 %v4306, %v4302
    %v5103 = vpack.c.b16 %v4307, %v4303
    %v5104 = vpack.c.b16 %v4312, %v4308
    %v5105 = vpack.c.b16 %v4313, %v4309
    %v5106 = vpack.c.b16 %v4314, %v4310
    %v5107 = vpack.c.b16 %v4315, %v4311
    %v5108 = vpack.c.b16 %v4320, %v4316
    %v5109 = vpack.c.b16 %v4321, %v4317
    %v5110 = vpack.c.b16 %v4322, %v4318
    %v5111 = vpack.c.b16 %v4323, %v4319
    %v5112 = vpack.c.b16 %v4328, %v4324
    %v5113 = vpack.c.b16 %v4329, %v4325
    %v5114 = vpack.c.b16 %v4330, %v4326
    %v5115 = vpack.c.b16 %v4331, %v4327
    %v5116 = vpack.c.b16 %v4336, %v4332
    %v5117 = vpack.c.b16 %v4337, %v4333
    %v5118 = vpack.c.b16 %v4338, %v4334
    %v5119 = vpack.c.b16 %v4339, %v4335
    %v5120 = vpack.c.b16 %v4344, %v4340
    %v5121 = vpack.c.b16 %v4345, %v4341
    %v5122 = vpack.c.b16 %v4346, %v4342
    %v5123 = vpack.c.b16 %v4347, %v4343
    %v5124 = vpack.c.b16 %v4352, %v4348
    %v5125 = vpack.c.b16 %v4353, %v4349
    %v5126 = vpack.c.b16 %v4354, %v4350
    %v5127 = vpack.c.b16 %v4355, %v4351
    %v5128 = vpack.c.b16 %v4360, %v4356
    %v5129 = vpack.c.b16 %v4361, %v4357
    %v5130 = vpack.c.b16 %v4362, %v4358
    %v5131 = vpack.c.b16 %v4363, %v4359
    %5900 = vmatpush.bf16.msra.mxu0 %v4392
    %5901 = vmatpush.bf16.msra.mxu0 %v4388
    %5902 = vmatpush.bf16.msra.mxu0 %v4384
    %5903 = vmatpush.bf16.msra.mxu0 %v4380
    %5904 = vmatpush.bf16.msra.mxu0 %v4376
    %5905 = vmatpush.bf16.msra.mxu0 %v4372
    %5906 = vmatpush.bf16.msra.mxu0 %v4368
    %5907 = vmatpush.bf16.msra.mxu0 %v4364
    %5908 = vmatmul.bf16.gmra.mxu0 %v1676
    %v5909 = vpop.f32.mrf.mxu0
    %v5910 = vadd.f32 %v1092, %v5909
    %v5911 = vpop.f32.mrf.mxu0
    %v5912 = vadd.f32 %v1092, %v5911
    %5913 = vmatmul.bf16.gmra.mxu0 %v1700
    %v5914 = vpop.f32.mrf.mxu0
    %v5915 = vadd.f32 %v1092, %v5914
    %v5916 = vpop.f32.mrf.mxu0
    %v5917 = vadd.f32 %v1092, %v5916
    %5918 = vmatmul.bf16.gmra.mxu0 %v1724
    %v5919 = vpop.f32.mrf.mxu0
    %v5920 = vadd.f32 %v1092, %v5919
    %v5921 = vpop.f32.mrf.mxu0
    %v5922 = vadd.f32 %v1092, %v5921
    %5923 = vmatmul.bf16.gmra.mxu0 %v1748
    %v5924 = vpop.f32.mrf.mxu0
    %v5925 = vadd.f32 %v1092, %v5924
    %v5926 = vpop.f32.mrf.mxu0
    %v5927 = vadd.f32 %v1092, %v5926
    %5928 = vmatmul.bf16.gmra.mxu0 %v1772
    %v5929 = vpop.f32.mrf.mxu0
    %v5930 = vadd.f32 %v1092, %v5929
    %v5931 = vpop.f32.mrf.mxu0
    %v5932 = vadd.f32 %v1092, %v5931
    %5933 = vmatmul.bf16.gmra.mxu0 %v1796
    %v5934 = vpop.f32.mrf.mxu0
    %v5935 = vadd.f32 %v1092, %v5934
    %v5936 = vpop.f32.mrf.mxu0
    %v5937 = vadd.f32 %v1092, %v5936
    %5938 = vmatmul.bf16.gmra.mxu0 %v1820
    %v5939 = vpop.f32.mrf.mxu0
    %v5940 = vadd.f32 %v1092, %v5939
    %v5941 = vpop.f32.mrf.mxu0
    %v5942 = vadd.f32 %v1092, %v5941
    %5943 = vmatmul.bf16.gmra.mxu0 %v1844
    %v5944 = vpop.f32.mrf.mxu0
    %v5945 = vadd.f32 %v1092, %v5944
    %v5946 = vpop.f32.mrf.mxu0
    %v5947 = vadd.f32 %v1092, %v5946
    %5948 = vdwg.mxu0
    %5949 = vmatpush.bf16.msra.mxu0 %v4424
    %5950 = vmatpush.bf16.msra.mxu0 %v4420
    %5951 = vmatpush.bf16.msra.mxu0 %v4416
    %5952 = vmatpush.bf16.msra.mxu0 %v4412
    %5953 = vmatpush.bf16.msra.mxu0 %v4408
    %5954 = vmatpush.bf16.msra.mxu0 %v4404
    %5955 = vmatpush.bf16.msra.mxu0 %v4400
    %5956 = vmatpush.bf16.msra.mxu0 %v4396
    %5957 = vmatmul.bf16.gmra.mxu0 %v1677
    %v5958 = vpop.f32.mrf.mxu0
    %v5959 = vadd.f32 %v5910, %v5958
    %v5960 = vpop.f32.mrf.mxu0
    %v5961 = vadd.f32 %v5912, %v5960
    %5962 = vmatmul.bf16.gmra.mxu0 %v1701
    %v5963 = vpop.f32.mrf.mxu0
    %v5964 = vadd.f32 %v5915, %v5963
    %v5965 = vpop.f32.mrf.mxu0
    %v5966 = vadd.f32 %v5917, %v5965
    %5967 = vmatmul.bf16.gmra.mxu0 %v1725
    %v5968 = vpop.f32.mrf.mxu0
    %v5969 = vadd.f32 %v5920, %v5968
    %v5970 = vpop.f32.mrf.mxu0
    %v5971 = vadd.f32 %v5922, %v5970
    %5972 = vmatmul.bf16.gmra.mxu0 %v1749
    %v5973 = vpop.f32.mrf.mxu0
    %v5974 = vadd.f32 %v5925, %v5973
    %v5975 = vpop.f32.mrf.mxu0
    %v5976 = vadd.f32 %v5927, %v5975
    %5977 = vmatmul.bf16.gmra.mxu0 %v1773
    %v5978 = vpop.f32.mrf.mxu0
    %v5979 = vadd.f32 %v5930, %v5978
    %v5980 = vpop.f32.mrf.mxu0
    %v5981 = vadd.f32 %v5932, %v5980
    %5982 = vmatmul.bf16.gmra.mxu0 %v1797
    %v5983 = vpop.f32.mrf.mxu0
    %v5984 = vadd.f32 %v5935, %v5983
    %v5985 = vpop.f32.mrf.mxu0
    %v5986 = vadd.f32 %v5937, %v5985
    %5987 = vmatmul.bf16.gmra.mxu0 %v1821
    %v5988 = vpop.f32.mrf.mxu0
    %v5989 = vadd.f32 %v5940, %v5988
    %v5990 = vpop.f32.mrf.mxu0
    %v5991 = vadd.f32 %v5942, %v5990
    %5992 = vmatmul.bf16.gmra.mxu0 %v1845
    %v5993 = vpop.f32.mrf.mxu0
    %v5994 = vadd.f32 %v5945, %v5993
    %v5995 = vpop.f32.mrf.mxu0
    %v5996 = vadd.f32 %v5947, %v5995
    %5997 = vdwg.mxu0
    %5998 = vmatpush.bf16.msra.mxu0 %v4456
    %5999 = vmatpush.bf16.msra.mxu0 %v4452
    %6000 = vmatpush.bf16.msra.mxu0 %v4448
    %6001 = vmatpush.bf16.msra.mxu0 %v4444
    %6002 = vmatpush.bf16.msra.mxu0 %v4440
    %6003 = vmatpush.bf16.msra.mxu0 %v4436
    %6004 = vmatpush.bf16.msra.mxu0 %v4432
    %6005 = vmatpush.bf16.msra.mxu0 %v4428
    %6006 = vmatmul.bf16.gmra.mxu0 %v1678
    %v6007 = vpop.f32.mrf.mxu0
    %v6008 = vadd.f32 %v5959, %v6007
    %v6009 = vpop.f32.mrf.mxu0
    %v6010 = vadd.f32 %v5961, %v6009
    %6011 = vmatmul.bf16.gmra.mxu0 %v1702
    %v6012 = vpop.f32.mrf.mxu0
    %v6013 = vadd.f32 %v5964, %v6012
    %v6014 = vpop.f32.mrf.mxu0
    %v6015 = vadd.f32 %v5966, %v6014
    %6016 = vmatmul.bf16.gmra.mxu0 %v1726
    %v6017 = vpop.f32.mrf.mxu0
    %v6018 = vadd.f32 %v5969, %v6017
    %v6019 = vpop.f32.mrf.mxu0
    %v6020 = vadd.f32 %v5971, %v6019
    %6021 = vmatmul.bf16.gmra.mxu0 %v1750
    %v6022 = vpop.f32.mrf.mxu0
    %v6023 = vadd.f32 %v5974, %v6022
    %v6024 = vpop.f32.mrf.mxu0
    %v6025 = vadd.f32 %v5976, %v6024
    %6026 = vmatmul.bf16.gmra.mxu0 %v1774
    %v6027 = vpop.f32.mrf.mxu0
    %v6028 = vadd.f32 %v5979, %v6027
    %v6029 = vpop.f32.mrf.mxu0
    %v6030 = vadd.f32 %v5981, %v6029
    %6031 = vmatmul.bf16.gmra.mxu0 %v1798
    %v6032 = vpop.f32.mrf.mxu0
    %v6033 = vadd.f32 %v5984, %v6032
    %v6034 = vpop.f32.mrf.mxu0
    %v6035 = vadd.f32 %v5986, %v6034
    %6036 = vmatmul.bf16.gmra.mxu0 %v1822
    %v6037 = vpop.f32.mrf.mxu0
    %v6038 = vadd.f32 %v5989, %v6037
    %v6039 = vpop.f32.mrf.mxu0
    %v6040 = vadd.f32 %v5991, %v6039
    %6041 = vmatmul.bf16.gmra.mxu0 %v1846
    %v6042 = vpop.f32.mrf.mxu0
    %v6043 = vadd.f32 %v5994, %v6042
    %v6044 = vpop.f32.mrf.mxu0
    %v6045 = vadd.f32 %v5996, %v6044
    %6046 = vdwg.mxu0
    %6047 = vmatpush.bf16.msra.mxu0 %v4488
    %6048 = vmatpush.bf16.msra.mxu0 %v4484
    %6049 = vmatpush.bf16.msra.mxu0 %v4480
    %6050 = vmatpush.bf16.msra.mxu0 %v4476
    %6051 = vmatpush.bf16.msra.mxu0 %v4472
    %6052 = vmatpush.bf16.msra.mxu0 %v4468
    %6053 = vmatpush.bf16.msra.mxu0 %v4464
    %6054 = vmatpush.bf16.msra.mxu0 %v4460
    %6055 = vmatmul.bf16.gmra.mxu0 %v1679
    %v6056 = vpop.f32.mrf.mxu0
    %v6057 = vadd.f32 %v6008, %v6056
    %v6058 = vpop.f32.mrf.mxu0
    %v6059 = vadd.f32 %v6010, %v6058
    %6060 = vmatmul.bf16.gmra.mxu0 %v1703
    %v6061 = vpop.f32.mrf.mxu0
    %v6062 = vadd.f32 %v6013, %v6061
    %v6063 = vpop.f32.mrf.mxu0
    %v6064 = vadd.f32 %v6015, %v6063
    %6065 = vmatmul.bf16.gmra.mxu0 %v1727
    %v6066 = vpop.f32.mrf.mxu0
    %v6067 = vadd.f32 %v6018, %v6066
    %v6068 = vpop.f32.mrf.mxu0
    %v6069 = vadd.f32 %v6020, %v6068
    %6070 = vmatmul.bf16.gmra.mxu0 %v1751
    %v6071 = vpop.f32.mrf.mxu0
    %v6072 = vadd.f32 %v6023, %v6071
    %v6073 = vpop.f32.mrf.mxu0
    %v6074 = vadd.f32 %v6025, %v6073
    %6075 = vmatmul.bf16.gmra.mxu0 %v1775
    %v6076 = vpop.f32.mrf.mxu0
    %v6077 = vadd.f32 %v6028, %v6076
    %v6078 = vpop.f32.mrf.mxu0
    %v6079 = vadd.f32 %v6030, %v6078
    %6080 = vmatmul.bf16.gmra.mxu0 %v1799
    %v6081 = vpop.f32.mrf.mxu0
    %v6082 = vadd.f32 %v6033, %v6081
    %v6083 = vpop.f32.mrf.mxu0
    %v6084 = vadd.f32 %v6035, %v6083
    %6085 = vmatmul.bf16.gmra.mxu0 %v1823
    %v6086 = vpop.f32.mrf.mxu0
    %v6087 = vadd.f32 %v6038, %v6086
    %v6088 = vpop.f32.mrf.mxu0
    %v6089 = vadd.f32 %v6040, %v6088
    %6090 = vmatmul.bf16.gmra.mxu0 %v1847
    %v6091 = vpop.f32.mrf.mxu0
    %v6092 = vadd.f32 %v6043, %v6091
    %v6093 = vpop.f32.mrf.mxu0
    %v6094 = vadd.f32 %v6045, %v6093
    %6095 = vdwg.mxu0
    %6096 = vmatpush.bf16.msra.mxu0 %v4520
    %6097 = vmatpush.bf16.msra.mxu0 %v4516
    %6098 = vmatpush.bf16.msra.mxu0 %v4512
    %6099 = vmatpush.bf16.msra.mxu0 %v4508
    %6100 = vmatpush.bf16.msra.mxu0 %v4504
    %6101 = vmatpush.bf16.msra.mxu0 %v4500
    %6102 = vmatpush.bf16.msra.mxu0 %v4496
    %6103 = vmatpush.bf16.msra.mxu0 %v4492
    %6104 = vmatmul.bf16.gmra.mxu0 %v1680
    %v6105 = vpop.f32.mrf.mxu0
    %v6106 = vadd.f32 %v6057, %v6105
    %v6107 = vpop.f32.mrf.mxu0
    %v6108 = vadd.f32 %v6059, %v6107
    %6109 = vmatmul.bf16.gmra.mxu0 %v1704
    %v6110 = vpop.f32.mrf.mxu0
    %v6111 = vadd.f32 %v6062, %v6110
    %v6112 = vpop.f32.mrf.mxu0
    %v6113 = vadd.f32 %v6064, %v6112
    %6114 = vmatmul.bf16.gmra.mxu0 %v1728
    %v6115 = vpop.f32.mrf.mxu0
    %v6116 = vadd.f32 %v6067, %v6115
    %v6117 = vpop.f32.mrf.mxu0
    %v6118 = vadd.f32 %v6069, %v6117
    %6119 = vmatmul.bf16.gmra.mxu0 %v1752
    %v6120 = vpop.f32.mrf.mxu0
    %v6121 = vadd.f32 %v6072, %v6120
    %v6122 = vpop.f32.mrf.mxu0
    %v6123 = vadd.f32 %v6074, %v6122
    %6124 = vmatmul.bf16.gmra.mxu0 %v1776
    %v6125 = vpop.f32.mrf.mxu0
    %v6126 = vadd.f32 %v6077, %v6125
    %v6127 = vpop.f32.mrf.mxu0
    %v6128 = vadd.f32 %v6079, %v6127
    %6129 = vmatmul.bf16.gmra.mxu0 %v1800
    %v6130 = vpop.f32.mrf.mxu0
    %v6131 = vadd.f32 %v6082, %v6130
    %v6132 = vpop.f32.mrf.mxu0
    %v6133 = vadd.f32 %v6084, %v6132
    %6134 = vmatmul.bf16.gmra.mxu0 %v1824
    %v6135 = vpop.f32.mrf.mxu0
    %v6136 = vadd.f32 %v6087, %v6135
    %v6137 = vpop.f32.mrf.mxu0
    %v6138 = vadd.f32 %v6089, %v6137
    %6139 = vmatmul.bf16.gmra.mxu0 %v1848
    %v6140 = vpop.f32.mrf.mxu0
    %v6141 = vadd.f32 %v6092, %v6140
    %v6142 = vpop.f32.mrf.mxu0
    %v6143 = vadd.f32 %v6094, %v6142
    %6144 = vdwg.mxu0
    %6145 = vmatpush.bf16.msra.mxu0 %v4552
    %6146 = vmatpush.bf16.msra.mxu0 %v4548
    %6147 = vmatpush.bf16.msra.mxu0 %v4544
    %6148 = vmatpush.bf16.msra.mxu0 %v4540
    %6149 = vmatpush.bf16.msra.mxu0 %v4536
    %6150 = vmatpush.bf16.msra.mxu0 %v4532
    %6151 = vmatpush.bf16.msra.mxu0 %v4528
    %6152 = vmatpush.bf16.msra.mxu0 %v4524
    %6153 = vmatmul.bf16.gmra.mxu0 %v1681
    %v6154 = vpop.f32.mrf.mxu0
    %v6155 = vadd.f32 %v6106, %v6154
    %v6156 = vpop.f32.mrf.mxu0
    %v6157 = vadd.f32 %v6108, %v6156
    %6158 = vmatmul.bf16.gmra.mxu0 %v1705
    %v6159 = vpop.f32.mrf.mxu0
    %v6160 = vadd.f32 %v6111, %v6159
    %v6161 = vpop.f32.mrf.mxu0
    %v6162 = vadd.f32 %v6113, %v6161
    %6163 = vmatmul.bf16.gmra.mxu0 %v1729
    %v6164 = vpop.f32.mrf.mxu0
    %v6165 = vadd.f32 %v6116, %v6164
    %v6166 = vpop.f32.mrf.mxu0
    %v6167 = vadd.f32 %v6118, %v6166
    %6168 = vmatmul.bf16.gmra.mxu0 %v1753
    %v6169 = vpop.f32.mrf.mxu0
    %v6170 = vadd.f32 %v6121, %v6169
    %v6171 = vpop.f32.mrf.mxu0
    %v6172 = vadd.f32 %v6123, %v6171
    %6173 = vmatmul.bf16.gmra.mxu0 %v1777
    %v6174 = vpop.f32.mrf.mxu0
    %v6175 = vadd.f32 %v6126, %v6174
    %v6176 = vpop.f32.mrf.mxu0
    %v6177 = vadd.f32 %v6128, %v6176
    %6178 = vmatmul.bf16.gmra.mxu0 %v1801
    %v6179 = vpop.f32.mrf.mxu0
    %v6180 = vadd.f32 %v6131, %v6179
    %v6181 = vpop.f32.mrf.mxu0
    %v6182 = vadd.f32 %v6133, %v6181
    %6183 = vmatmul.bf16.gmra.mxu0 %v1825
    %v6184 = vpop.f32.mrf.mxu0
    %v6185 = vadd.f32 %v6136, %v6184
    %v6186 = vpop.f32.mrf.mxu0
    %v6187 = vadd.f32 %v6138, %v6186
    %6188 = vmatmul.bf16.gmra.mxu0 %v1849
    %v6189 = vpop.f32.mrf.mxu0
    %v6190 = vadd.f32 %v6141, %v6189
    %v6191 = vpop.f32.mrf.mxu0
    %v6192 = vadd.f32 %v6143, %v6191
    %6193 = vdwg.mxu0
    %6194 = vmatpush.bf16.msra.mxu0 %v4584
    %6195 = vmatpush.bf16.msra.mxu0 %v4580
    %6196 = vmatpush.bf16.msra.mxu0 %v4576
    %6197 = vmatpush.bf16.msra.mxu0 %v4572
    %6198 = vmatpush.bf16.msra.mxu0 %v4568
    %6199 = vmatpush.bf16.msra.mxu0 %v4564
    %6200 = vmatpush.bf16.msra.mxu0 %v4560
    %6201 = vmatpush.bf16.msra.mxu0 %v4556
    %6202 = vmatmul.bf16.gmra.mxu0 %v1682
    %v6203 = vpop.f32.mrf.mxu0
    %v6204 = vadd.f32 %v6155, %v6203
    %v6205 = vpop.f32.mrf.mxu0
    %v6206 = vadd.f32 %v6157, %v6205
    %6207 = vmatmul.bf16.gmra.mxu0 %v1706
    %v6208 = vpop.f32.mrf.mxu0
    %v6209 = vadd.f32 %v6160, %v6208
    %v6210 = vpop.f32.mrf.mxu0
    %v6211 = vadd.f32 %v6162, %v6210
    %6212 = vmatmul.bf16.gmra.mxu0 %v1730
    %v6213 = vpop.f32.mrf.mxu0
    %v6214 = vadd.f32 %v6165, %v6213
    %v6215 = vpop.f32.mrf.mxu0
    %v6216 = vadd.f32 %v6167, %v6215
    %6217 = vmatmul.bf16.gmra.mxu0 %v1754
    %v6218 = vpop.f32.mrf.mxu0
    %v6219 = vadd.f32 %v6170, %v6218
    %v6220 = vpop.f32.mrf.mxu0
    %v6221 = vadd.f32 %v6172, %v6220
    %6222 = vmatmul.bf16.gmra.mxu0 %v1778
    %v6223 = vpop.f32.mrf.mxu0
    %v6224 = vadd.f32 %v6175, %v6223
    %v6225 = vpop.f32.mrf.mxu0
    %v6226 = vadd.f32 %v6177, %v6225
    %6227 = vmatmul.bf16.gmra.mxu0 %v1802
    %v6228 = vpop.f32.mrf.mxu0
    %v6229 = vadd.f32 %v6180, %v6228
    %v6230 = vpop.f32.mrf.mxu0
    %v6231 = vadd.f32 %v6182, %v6230
    %6232 = vmatmul.bf16.gmra.mxu0 %v1826
    %v6233 = vpop.f32.mrf.mxu0
    %v6234 = vadd.f32 %v6185, %v6233
    %v6235 = vpop.f32.mrf.mxu0
    %v6236 = vadd.f32 %v6187, %v6235
    %6237 = vmatmul.bf16.gmra.mxu0 %v1850
    %v6238 = vpop.f32.mrf.mxu0
    %v6239 = vadd.f32 %v6190, %v6238
    %v6240 = vpop.f32.mrf.mxu0
    %v6241 = vadd.f32 %v6192, %v6240
    %6242 = vdwg.mxu0
    %6243 = vmatpush.bf16.msra.mxu0 %v4616
    %6244 = vmatpush.bf16.msra.mxu0 %v4612
    %6245 = vmatpush.bf16.msra.mxu0 %v4608
    %6246 = vmatpush.bf16.msra.mxu0 %v4604
    %6247 = vmatpush.bf16.msra.mxu0 %v4600
    %6248 = vmatpush.bf16.msra.mxu0 %v4596
    %6249 = vmatpush.bf16.msra.mxu0 %v4592
    %6250 = vmatpush.bf16.msra.mxu0 %v4588
    %6251 = vmatmul.bf16.gmra.mxu0 %v1683
    %v6252 = vpop.f32.mrf.mxu0
    %v6253 = vadd.f32 %v6204, %v6252
    %v6254 = vpop.f32.mrf.mxu0
    %v6255 = vadd.f32 %v6206, %v6254
    %6256 = vmatmul.bf16.gmra.mxu0 %v1707
    %v6257 = vpop.f32.mrf.mxu0
    %v6258 = vadd.f32 %v6209, %v6257
    %v6259 = vpop.f32.mrf.mxu0
    %v6260 = vadd.f32 %v6211, %v6259
    %6261 = vmatmul.bf16.gmra.mxu0 %v1731
    %v6262 = vpop.f32.mrf.mxu0
    %v6263 = vadd.f32 %v6214, %v6262
    %v6264 = vpop.f32.mrf.mxu0
    %v6265 = vadd.f32 %v6216, %v6264
    %6266 = vmatmul.bf16.gmra.mxu0 %v1755
    %v6267 = vpop.f32.mrf.mxu0
    %v6268 = vadd.f32 %v6219, %v6267
    %v6269 = vpop.f32.mrf.mxu0
    %v6270 = vadd.f32 %v6221, %v6269
    %6271 = vmatmul.bf16.gmra.mxu0 %v1779
    %v6272 = vpop.f32.mrf.mxu0
    %v6273 = vadd.f32 %v6224, %v6272
    %v6274 = vpop.f32.mrf.mxu0
    %v6275 = vadd.f32 %v6226, %v6274
    %6276 = vmatmul.bf16.gmra.mxu0 %v1803
    %v6277 = vpop.f32.mrf.mxu0
    %v6278 = vadd.f32 %v6229, %v6277
    %v6279 = vpop.f32.mrf.mxu0
    %v6280 = vadd.f32 %v6231, %v6279
    %6281 = vmatmul.bf16.gmra.mxu0 %v1827
    %v6282 = vpop.f32.mrf.mxu0
    %v6283 = vadd.f32 %v6234, %v6282
    %v6284 = vpop.f32.mrf.mxu0
    %v6285 = vadd.f32 %v6236, %v6284
    %6286 = vmatmul.bf16.gmra.mxu0 %v1851
    %v6287 = vpop.f32.mrf.mxu0
    %v6288 = vadd.f32 %v6239, %v6287
    %v6289 = vpop.f32.mrf.mxu0
    %v6290 = vadd.f32 %v6241, %v6289
    %6291 = vdwg.mxu0
    %6292 = vmatpush.bf16.msra.mxu0 %v4648
    %6293 = vmatpush.bf16.msra.mxu0 %v4644
    %6294 = vmatpush.bf16.msra.mxu0 %v4640
    %6295 = vmatpush.bf16.msra.mxu0 %v4636
    %6296 = vmatpush.bf16.msra.mxu0 %v4632
    %6297 = vmatpush.bf16.msra.mxu0 %v4628
    %6298 = vmatpush.bf16.msra.mxu0 %v4624
    %6299 = vmatpush.bf16.msra.mxu0 %v4620
    %6300 = vmatmul.bf16.gmra.mxu0 %v1684
    %v6301 = vpop.f32.mrf.mxu0
    %v6302 = vadd.f32 %v6253, %v6301
    %v6303 = vpop.f32.mrf.mxu0
    %v6304 = vadd.f32 %v6255, %v6303
    %6305 = vmatmul.bf16.gmra.mxu0 %v1708
    %v6306 = vpop.f32.mrf.mxu0
    %v6307 = vadd.f32 %v6258, %v6306
    %v6308 = vpop.f32.mrf.mxu0
    %v6309 = vadd.f32 %v6260, %v6308
    %6310 = vmatmul.bf16.gmra.mxu0 %v1732
    %v6311 = vpop.f32.mrf.mxu0
    %v6312 = vadd.f32 %v6263, %v6311
    %v6313 = vpop.f32.mrf.mxu0
    %v6314 = vadd.f32 %v6265, %v6313
    %6315 = vmatmul.bf16.gmra.mxu0 %v1756
    %v6316 = vpop.f32.mrf.mxu0
    %v6317 = vadd.f32 %v6268, %v6316
    %v6318 = vpop.f32.mrf.mxu0
    %v6319 = vadd.f32 %v6270, %v6318
    %6320 = vmatmul.bf16.gmra.mxu0 %v1780
    %v6321 = vpop.f32.mrf.mxu0
    %v6322 = vadd.f32 %v6273, %v6321
    %v6323 = vpop.f32.mrf.mxu0
    %v6324 = vadd.f32 %v6275, %v6323
    %6325 = vmatmul.bf16.gmra.mxu0 %v1804
    %v6326 = vpop.f32.mrf.mxu0
    %v6327 = vadd.f32 %v6278, %v6326
    %v6328 = vpop.f32.mrf.mxu0
    %v6329 = vadd.f32 %v6280, %v6328
    %6330 = vmatmul.bf16.gmra.mxu0 %v1828
    %v6331 = vpop.f32.mrf.mxu0
    %v6332 = vadd.f32 %v6283, %v6331
    %v6333 = vpop.f32.mrf.mxu0
    %v6334 = vadd.f32 %v6285, %v6333
    %6335 = vmatmul.bf16.gmra.mxu0 %v1852
    %v6336 = vpop.f32.mrf.mxu0
    %v6337 = vadd.f32 %v6288, %v6336
    %v6338 = vpop.f32.mrf.mxu0
    %v6339 = vadd.f32 %v6290, %v6338
    %6340 = vdwg.mxu0
    %6341 = vmatpush.bf16.msra.mxu0 %v4680
    %6342 = vmatpush.bf16.msra.mxu0 %v4676
    %6343 = vmatpush.bf16.msra.mxu0 %v4672
    %6344 = vmatpush.bf16.msra.mxu0 %v4668
    %6345 = vmatpush.bf16.msra.mxu0 %v4664
    %6346 = vmatpush.bf16.msra.mxu0 %v4660
    %6347 = vmatpush.bf16.msra.mxu0 %v4656
    %6348 = vmatpush.bf16.msra.mxu0 %v4652
    %6349 = vmatmul.bf16.gmra.mxu0 %v1685
    %v6350 = vpop.f32.mrf.mxu0
    %v6351 = vadd.f32 %v6302, %v6350
    %v6352 = vpop.f32.mrf.mxu0
    %v6353 = vadd.f32 %v6304, %v6352
    %6354 = vmatmul.bf16.gmra.mxu0 %v1709
    %v6355 = vpop.f32.mrf.mxu0
    %v6356 = vadd.f32 %v6307, %v6355
    %v6357 = vpop.f32.mrf.mxu0
    %v6358 = vadd.f32 %v6309, %v6357
    %6359 = vmatmul.bf16.gmra.mxu0 %v1733
    %v6360 = vpop.f32.mrf.mxu0
    %v6361 = vadd.f32 %v6312, %v6360
    %v6362 = vpop.f32.mrf.mxu0
    %v6363 = vadd.f32 %v6314, %v6362
    %6364 = vmatmul.bf16.gmra.mxu0 %v1757
    %v6365 = vpop.f32.mrf.mxu0
    %v6366 = vadd.f32 %v6317, %v6365
    %v6367 = vpop.f32.mrf.mxu0
    %v6368 = vadd.f32 %v6319, %v6367
    %6369 = vmatmul.bf16.gmra.mxu0 %v1781
    %v6370 = vpop.f32.mrf.mxu0
    %v6371 = vadd.f32 %v6322, %v6370
    %v6372 = vpop.f32.mrf.mxu0
    %v6373 = vadd.f32 %v6324, %v6372
    %6374 = vmatmul.bf16.gmra.mxu0 %v1805
    %v6375 = vpop.f32.mrf.mxu0
    %v6376 = vadd.f32 %v6327, %v6375
    %v6377 = vpop.f32.mrf.mxu0
    %v6378 = vadd.f32 %v6329, %v6377
    %6379 = vmatmul.bf16.gmra.mxu0 %v1829
    %v6380 = vpop.f32.mrf.mxu0
    %v6381 = vadd.f32 %v6332, %v6380
    %v6382 = vpop.f32.mrf.mxu0
    %v6383 = vadd.f32 %v6334, %v6382
    %6384 = vmatmul.bf16.gmra.mxu0 %v1853
    %v6385 = vpop.f32.mrf.mxu0
    %v6386 = vadd.f32 %v6337, %v6385
    %v6387 = vpop.f32.mrf.mxu0
    %v6388 = vadd.f32 %v6339, %v6387
    %6389 = vdwg.mxu0
    %6390 = vmatpush.bf16.msra.mxu0 %v4712
    %6391 = vmatpush.bf16.msra.mxu0 %v4708
    %6392 = vmatpush.bf16.msra.mxu0 %v4704
    %6393 = vmatpush.bf16.msra.mxu0 %v4700
    %6394 = vmatpush.bf16.msra.mxu0 %v4696
    %6395 = vmatpush.bf16.msra.mxu0 %v4692
    %6396 = vmatpush.bf16.msra.mxu0 %v4688
    %6397 = vmatpush.bf16.msra.mxu0 %v4684
    %6398 = vmatmul.bf16.gmra.mxu0 %v1686
    %v6399 = vpop.f32.mrf.mxu0
    %v6400 = vadd.f32 %v6351, %v6399
    %v6401 = vpop.f32.mrf.mxu0
    %v6402 = vadd.f32 %v6353, %v6401
    %6403 = vmatmul.bf16.gmra.mxu0 %v1710
    %v6404 = vpop.f32.mrf.mxu0
    %v6405 = vadd.f32 %v6356, %v6404
    %v6406 = vpop.f32.mrf.mxu0
    %v6407 = vadd.f32 %v6358, %v6406
    %6408 = vmatmul.bf16.gmra.mxu0 %v1734
    %v6409 = vpop.f32.mrf.mxu0
    %v6410 = vadd.f32 %v6361, %v6409
    %v6411 = vpop.f32.mrf.mxu0
    %v6412 = vadd.f32 %v6363, %v6411
    %6413 = vmatmul.bf16.gmra.mxu0 %v1758
    %v6414 = vpop.f32.mrf.mxu0
    %v6415 = vadd.f32 %v6366, %v6414
    %v6416 = vpop.f32.mrf.mxu0
    %v6417 = vadd.f32 %v6368, %v6416
    %6418 = vmatmul.bf16.gmra.mxu0 %v1782
    %v6419 = vpop.f32.mrf.mxu0
    %v6420 = vadd.f32 %v6371, %v6419
    %v6421 = vpop.f32.mrf.mxu0
    %v6422 = vadd.f32 %v6373, %v6421
    %6423 = vmatmul.bf16.gmra.mxu0 %v1806
    %v6424 = vpop.f32.mrf.mxu0
    %v6425 = vadd.f32 %v6376, %v6424
    %v6426 = vpop.f32.mrf.mxu0
    %v6427 = vadd.f32 %v6378, %v6426
    %6428 = vmatmul.bf16.gmra.mxu0 %v1830
    %v6429 = vpop.f32.mrf.mxu0
    %v6430 = vadd.f32 %v6381, %v6429
    %v6431 = vpop.f32.mrf.mxu0
    %v6432 = vadd.f32 %v6383, %v6431
    %6433 = vmatmul.bf16.gmra.mxu0 %v1854
    %v6434 = vpop.f32.mrf.mxu0
    %v6435 = vadd.f32 %v6386, %v6434
    %v6436 = vpop.f32.mrf.mxu0
    %v6437 = vadd.f32 %v6388, %v6436
    %6438 = vdwg.mxu0
    %6439 = vmatpush.bf16.msra.mxu0 %v4744
    %6440 = vmatpush.bf16.msra.mxu0 %v4740
    %6441 = vmatpush.bf16.msra.mxu0 %v4736
    %6442 = vmatpush.bf16.msra.mxu0 %v4732
    %6443 = vmatpush.bf16.msra.mxu0 %v4728
    %6444 = vmatpush.bf16.msra.mxu0 %v4724
    %6445 = vmatpush.bf16.msra.mxu0 %v4720
    %6446 = vmatpush.bf16.msra.mxu0 %v4716
    %6447 = vmatmul.bf16.gmra.mxu0 %v1687
    %v6448 = vpop.f32.mrf.mxu0
    %v6449 = vadd.f32 %v6400, %v6448
    %v6450 = vpop.f32.mrf.mxu0
    %v6451 = vadd.f32 %v6402, %v6450
    %6452 = vmatmul.bf16.gmra.mxu0 %v1711
    %v6453 = vpop.f32.mrf.mxu0
    %v6454 = vadd.f32 %v6405, %v6453
    %v6455 = vpop.f32.mrf.mxu0
    %v6456 = vadd.f32 %v6407, %v6455
    %6457 = vmatmul.bf16.gmra.mxu0 %v1735
    %v6458 = vpop.f32.mrf.mxu0
    %v6459 = vadd.f32 %v6410, %v6458
    %v6460 = vpop.f32.mrf.mxu0
    %v6461 = vadd.f32 %v6412, %v6460
    %6462 = vmatmul.bf16.gmra.mxu0 %v1759
    %v6463 = vpop.f32.mrf.mxu0
    %v6464 = vadd.f32 %v6415, %v6463
    %v6465 = vpop.f32.mrf.mxu0
    %v6466 = vadd.f32 %v6417, %v6465
    %6467 = vmatmul.bf16.gmra.mxu0 %v1783
    %v6468 = vpop.f32.mrf.mxu0
    %v6469 = vadd.f32 %v6420, %v6468
    %v6470 = vpop.f32.mrf.mxu0
    %v6471 = vadd.f32 %v6422, %v6470
    %6472 = vmatmul.bf16.gmra.mxu0 %v1807
    %v6473 = vpop.f32.mrf.mxu0
    %v6474 = vadd.f32 %v6425, %v6473
    %v6475 = vpop.f32.mrf.mxu0
    %v6476 = vadd.f32 %v6427, %v6475
    %6477 = vmatmul.bf16.gmra.mxu0 %v1831
    %v6478 = vpop.f32.mrf.mxu0
    %v6479 = vadd.f32 %v6430, %v6478
    %v6480 = vpop.f32.mrf.mxu0
    %v6481 = vadd.f32 %v6432, %v6480
    %6482 = vmatmul.bf16.gmra.mxu0 %v1855
    %v6483 = vpop.f32.mrf.mxu0
    %v6484 = vadd.f32 %v6435, %v6483
    %v6485 = vpop.f32.mrf.mxu0
    %v6486 = vadd.f32 %v6437, %v6485
    %6487 = vdwg.mxu0
    %6488 = vmatpush.bf16.msra.mxu0 %v4776
    %6489 = vmatpush.bf16.msra.mxu0 %v4772
    %6490 = vmatpush.bf16.msra.mxu0 %v4768
    %6491 = vmatpush.bf16.msra.mxu0 %v4764
    %6492 = vmatpush.bf16.msra.mxu0 %v4760
    %6493 = vmatpush.bf16.msra.mxu0 %v4756
    %6494 = vmatpush.bf16.msra.mxu0 %v4752
    %6495 = vmatpush.bf16.msra.mxu0 %v4748
    %6496 = vmatmul.bf16.gmra.mxu0 %v1688
    %v6497 = vpop.f32.mrf.mxu0
    %v6498 = vadd.f32 %v6449, %v6497
    %v6499 = vpop.f32.mrf.mxu0
    %v6500 = vadd.f32 %v6451, %v6499
    %6501 = vmatmul.bf16.gmra.mxu0 %v1712
    %v6502 = vpop.f32.mrf.mxu0
    %v6503 = vadd.f32 %v6454, %v6502
    %v6504 = vpop.f32.mrf.mxu0
    %v6505 = vadd.f32 %v6456, %v6504
    %6506 = vmatmul.bf16.gmra.mxu0 %v1736
    %v6507 = vpop.f32.mrf.mxu0
    %v6508 = vadd.f32 %v6459, %v6507
    %v6509 = vpop.f32.mrf.mxu0
    %v6510 = vadd.f32 %v6461, %v6509
    %6511 = vmatmul.bf16.gmra.mxu0 %v1760
    %v6512 = vpop.f32.mrf.mxu0
    %v6513 = vadd.f32 %v6464, %v6512
    %v6514 = vpop.f32.mrf.mxu0
    %v6515 = vadd.f32 %v6466, %v6514
    %6516 = vmatmul.bf16.gmra.mxu0 %v1784
    %v6517 = vpop.f32.mrf.mxu0
    %v6518 = vadd.f32 %v6469, %v6517
    %v6519 = vpop.f32.mrf.mxu0
    %v6520 = vadd.f32 %v6471, %v6519
    %6521 = vmatmul.bf16.gmra.mxu0 %v1808
    %v6522 = vpop.f32.mrf.mxu0
    %v6523 = vadd.f32 %v6474, %v6522
    %v6524 = vpop.f32.mrf.mxu0
    %v6525 = vadd.f32 %v6476, %v6524
    %6526 = vmatmul.bf16.gmra.mxu0 %v1832
    %v6527 = vpop.f32.mrf.mxu0
    %v6528 = vadd.f32 %v6479, %v6527
    %v6529 = vpop.f32.mrf.mxu0
    %v6530 = vadd.f32 %v6481, %v6529
    %6531 = vmatmul.bf16.gmra.mxu0 %v1856
    %v6532 = vpop.f32.mrf.mxu0
    %v6533 = vadd.f32 %v6484, %v6532
    %v6534 = vpop.f32.mrf.mxu0
    %v6535 = vadd.f32 %v6486, %v6534
    %6536 = vdwg.mxu0
    %6537 = vmatpush.bf16.msra.mxu0 %v4808
    %6538 = vmatpush.bf16.msra.mxu0 %v4804
    %6539 = vmatpush.bf16.msra.mxu0 %v4800
    %6540 = vmatpush.bf16.msra.mxu0 %v4796
    %6541 = vmatpush.bf16.msra.mxu0 %v4792
    %6542 = vmatpush.bf16.msra.mxu0 %v4788
    %6543 = vmatpush.bf16.msra.mxu0 %v4784
    %6544 = vmatpush.bf16.msra.mxu0 %v4780
    %6545 = vmatmul.bf16.gmra.mxu0 %v1689
    %v6546 = vpop.f32.mrf.mxu0
    %v6547 = vadd.f32 %v6498, %v6546
    %v6548 = vpop.f32.mrf.mxu0
    %v6549 = vadd.f32 %v6500, %v6548
    %6550 = vmatmul.bf16.gmra.mxu0 %v1713
    %v6551 = vpop.f32.mrf.mxu0
    %v6552 = vadd.f32 %v6503, %v6551
    %v6553 = vpop.f32.mrf.mxu0
    %v6554 = vadd.f32 %v6505, %v6553
    %6555 = vmatmul.bf16.gmra.mxu0 %v1737
    %v6556 = vpop.f32.mrf.mxu0
    %v6557 = vadd.f32 %v6508, %v6556
    %v6558 = vpop.f32.mrf.mxu0
    %v6559 = vadd.f32 %v6510, %v6558
    %6560 = vmatmul.bf16.gmra.mxu0 %v1761
    %v6561 = vpop.f32.mrf.mxu0
    %v6562 = vadd.f32 %v6513, %v6561
    %v6563 = vpop.f32.mrf.mxu0
    %v6564 = vadd.f32 %v6515, %v6563
    %6565 = vmatmul.bf16.gmra.mxu0 %v1785
    %v6566 = vpop.f32.mrf.mxu0
    %v6567 = vadd.f32 %v6518, %v6566
    %v6568 = vpop.f32.mrf.mxu0
    %v6569 = vadd.f32 %v6520, %v6568
    %6570 = vmatmul.bf16.gmra.mxu0 %v1809
    %v6571 = vpop.f32.mrf.mxu0
    %v6572 = vadd.f32 %v6523, %v6571
    %v6573 = vpop.f32.mrf.mxu0
    %v6574 = vadd.f32 %v6525, %v6573
    %6575 = vmatmul.bf16.gmra.mxu0 %v1833
    %v6576 = vpop.f32.mrf.mxu0
    %v6577 = vadd.f32 %v6528, %v6576
    %v6578 = vpop.f32.mrf.mxu0
    %v6579 = vadd.f32 %v6530, %v6578
    %6580 = vmatmul.bf16.gmra.mxu0 %v1857
    %v6581 = vpop.f32.mrf.mxu0
    %v6582 = vadd.f32 %v6533, %v6581
    %v6583 = vpop.f32.mrf.mxu0
    %v6584 = vadd.f32 %v6535, %v6583
    %6585 = vdwg.mxu0
    %6586 = vmatpush.bf16.msra.mxu0 %v4840
    %6587 = vmatpush.bf16.msra.mxu0 %v4836
    %6588 = vmatpush.bf16.msra.mxu0 %v4832
    %6589 = vmatpush.bf16.msra.mxu0 %v4828
    %6590 = vmatpush.bf16.msra.mxu0 %v4824
    %6591 = vmatpush.bf16.msra.mxu0 %v4820
    %6592 = vmatpush.bf16.msra.mxu0 %v4816
    %6593 = vmatpush.bf16.msra.mxu0 %v4812
    %6594 = vmatmul.bf16.gmra.mxu0 %v1690
    %v6595 = vpop.f32.mrf.mxu0
    %v6596 = vadd.f32 %v6547, %v6595
    %v6597 = vpop.f32.mrf.mxu0
    %v6598 = vadd.f32 %v6549, %v6597
    %6599 = vmatmul.bf16.gmra.mxu0 %v1714
    %v6600 = vpop.f32.mrf.mxu0
    %v6601 = vadd.f32 %v6552, %v6600
    %v6602 = vpop.f32.mrf.mxu0
    %v6603 = vadd.f32 %v6554, %v6602
    %6604 = vmatmul.bf16.gmra.mxu0 %v1738
    %v6605 = vpop.f32.mrf.mxu0
    %v6606 = vadd.f32 %v6557, %v6605
    %v6607 = vpop.f32.mrf.mxu0
    %v6608 = vadd.f32 %v6559, %v6607
    %6609 = vmatmul.bf16.gmra.mxu0 %v1762
    %v6610 = vpop.f32.mrf.mxu0
    %v6611 = vadd.f32 %v6562, %v6610
    %v6612 = vpop.f32.mrf.mxu0
    %v6613 = vadd.f32 %v6564, %v6612
    %6614 = vmatmul.bf16.gmra.mxu0 %v1786
    %v6615 = vpop.f32.mrf.mxu0
    %v6616 = vadd.f32 %v6567, %v6615
    %v6617 = vpop.f32.mrf.mxu0
    %v6618 = vadd.f32 %v6569, %v6617
    %6619 = vmatmul.bf16.gmra.mxu0 %v1810
    %v6620 = vpop.f32.mrf.mxu0
    %v6621 = vadd.f32 %v6572, %v6620
    %v6622 = vpop.f32.mrf.mxu0
    %v6623 = vadd.f32 %v6574, %v6622
    %6624 = vmatmul.bf16.gmra.mxu0 %v1834
    %v6625 = vpop.f32.mrf.mxu0
    %v6626 = vadd.f32 %v6577, %v6625
    %v6627 = vpop.f32.mrf.mxu0
    %v6628 = vadd.f32 %v6579, %v6627
    %6629 = vmatmul.bf16.gmra.mxu0 %v1858
    %v6630 = vpop.f32.mrf.mxu0
    %v6631 = vadd.f32 %v6582, %v6630
    %v6632 = vpop.f32.mrf.mxu0
    %v6633 = vadd.f32 %v6584, %v6632
    %6634 = vdwg.mxu0
    %6635 = vmatpush.bf16.msra.mxu0 %v4872
    %6636 = vmatpush.bf16.msra.mxu0 %v4868
    %6637 = vmatpush.bf16.msra.mxu0 %v4864
    %6638 = vmatpush.bf16.msra.mxu0 %v4860
    %6639 = vmatpush.bf16.msra.mxu0 %v4856
    %6640 = vmatpush.bf16.msra.mxu0 %v4852
    %6641 = vmatpush.bf16.msra.mxu0 %v4848
    %6642 = vmatpush.bf16.msra.mxu0 %v4844
    %6643 = vmatmul.bf16.gmra.mxu0 %v1691
    %v6644 = vpop.f32.mrf.mxu0
    %v6645 = vadd.f32 %v6596, %v6644
    %v6646 = vpop.f32.mrf.mxu0
    %v6647 = vadd.f32 %v6598, %v6646
    %6648 = vmatmul.bf16.gmra.mxu0 %v1715
    %v6649 = vpop.f32.mrf.mxu0
    %v6650 = vadd.f32 %v6601, %v6649
    %v6651 = vpop.f32.mrf.mxu0
    %v6652 = vadd.f32 %v6603, %v6651
    %6653 = vmatmul.bf16.gmra.mxu0 %v1739
    %v6654 = vpop.f32.mrf.mxu0
    %v6655 = vadd.f32 %v6606, %v6654
    %v6656 = vpop.f32.mrf.mxu0
    %v6657 = vadd.f32 %v6608, %v6656
    %6658 = vmatmul.bf16.gmra.mxu0 %v1763
    %v6659 = vpop.f32.mrf.mxu0
    %v6660 = vadd.f32 %v6611, %v6659
    %v6661 = vpop.f32.mrf.mxu0
    %v6662 = vadd.f32 %v6613, %v6661
    %6663 = vmatmul.bf16.gmra.mxu0 %v1787
    %v6664 = vpop.f32.mrf.mxu0
    %v6665 = vadd.f32 %v6616, %v6664
    %v6666 = vpop.f32.mrf.mxu0
    %v6667 = vadd.f32 %v6618, %v6666
    %6668 = vmatmul.bf16.gmra.mxu0 %v1811
    %v6669 = vpop.f32.mrf.mxu0
    %v6670 = vadd.f32 %v6621, %v6669
    %v6671 = vpop.f32.mrf.mxu0
    %v6672 = vadd.f32 %v6623, %v6671
    %6673 = vmatmul.bf16.gmra.mxu0 %v1835
    %v6674 = vpop.f32.mrf.mxu0
    %v6675 = vadd.f32 %v6626, %v6674
    %v6676 = vpop.f32.mrf.mxu0
    %v6677 = vadd.f32 %v6628, %v6676
    %6678 = vmatmul.bf16.gmra.mxu0 %v1859
    %v6679 = vpop.f32.mrf.mxu0
    %v6680 = vadd.f32 %v6631, %v6679
    %v6681 = vpop.f32.mrf.mxu0
    %v6682 = vadd.f32 %v6633, %v6681
    %6683 = vdwg.mxu0
    %6684 = vmatpush.bf16.msra.mxu0 %v4904
    %6685 = vmatpush.bf16.msra.mxu0 %v4900
    %6686 = vmatpush.bf16.msra.mxu0 %v4896
    %6687 = vmatpush.bf16.msra.mxu0 %v4892
    %6688 = vmatpush.bf16.msra.mxu0 %v4888
    %6689 = vmatpush.bf16.msra.mxu0 %v4884
    %6690 = vmatpush.bf16.msra.mxu0 %v4880
    %6691 = vmatpush.bf16.msra.mxu0 %v4876
    %6692 = vmatmul.bf16.gmra.mxu0 %v1692
    %v6693 = vpop.f32.mrf.mxu0
    %v6694 = vadd.f32 %v6645, %v6693
    %v6695 = vpop.f32.mrf.mxu0
    %v6696 = vadd.f32 %v6647, %v6695
    %6697 = vmatmul.bf16.gmra.mxu0 %v1716
    %v6698 = vpop.f32.mrf.mxu0
    %v6699 = vadd.f32 %v6650, %v6698
    %v6700 = vpop.f32.mrf.mxu0
    %v6701 = vadd.f32 %v6652, %v6700
    %6702 = vmatmul.bf16.gmra.mxu0 %v1740
    %v6703 = vpop.f32.mrf.mxu0
    %v6704 = vadd.f32 %v6655, %v6703
    %v6705 = vpop.f32.mrf.mxu0
    %v6706 = vadd.f32 %v6657, %v6705
    %6707 = vmatmul.bf16.gmra.mxu0 %v1764
    %v6708 = vpop.f32.mrf.mxu0
    %v6709 = vadd.f32 %v6660, %v6708
    %v6710 = vpop.f32.mrf.mxu0
    %v6711 = vadd.f32 %v6662, %v6710
    %6712 = vmatmul.bf16.gmra.mxu0 %v1788
    %v6713 = vpop.f32.mrf.mxu0
    %v6714 = vadd.f32 %v6665, %v6713
    %v6715 = vpop.f32.mrf.mxu0
    %v6716 = vadd.f32 %v6667, %v6715
    %6717 = vmatmul.bf16.gmra.mxu0 %v1812
    %v6718 = vpop.f32.mrf.mxu0
    %v6719 = vadd.f32 %v6670, %v6718
    %v6720 = vpop.f32.mrf.mxu0
    %v6721 = vadd.f32 %v6672, %v6720
    %6722 = vmatmul.bf16.gmra.mxu0 %v1836
    %v6723 = vpop.f32.mrf.mxu0
    %v6724 = vadd.f32 %v6675, %v6723
    %v6725 = vpop.f32.mrf.mxu0
    %v6726 = vadd.f32 %v6677, %v6725
    %6727 = vmatmul.bf16.gmra.mxu0 %v1860
    %v6728 = vpop.f32.mrf.mxu0
    %v6729 = vadd.f32 %v6680, %v6728
    %v6730 = vpop.f32.mrf.mxu0
    %v6731 = vadd.f32 %v6682, %v6730
    %6732 = vdwg.mxu0
    %6733 = vmatpush.bf16.msra.mxu0 %v4936
    %6734 = vmatpush.bf16.msra.mxu0 %v4932
    %6735 = vmatpush.bf16.msra.mxu0 %v4928
    %6736 = vmatpush.bf16.msra.mxu0 %v4924
    %6737 = vmatpush.bf16.msra.mxu0 %v4920
    %6738 = vmatpush.bf16.msra.mxu0 %v4916
    %6739 = vmatpush.bf16.msra.mxu0 %v4912
    %6740 = vmatpush.bf16.msra.mxu0 %v4908
    %6741 = vmatmul.bf16.gmra.mxu0 %v1693
    %v6742 = vpop.f32.mrf.mxu0
    %v6743 = vadd.f32 %v6694, %v6742
    %v6744 = vpop.f32.mrf.mxu0
    %v6745 = vadd.f32 %v6696, %v6744
    %6746 = vmatmul.bf16.gmra.mxu0 %v1717
    %v6747 = vpop.f32.mrf.mxu0
    %v6748 = vadd.f32 %v6699, %v6747
    %v6749 = vpop.f32.mrf.mxu0
    %v6750 = vadd.f32 %v6701, %v6749
    %6751 = vmatmul.bf16.gmra.mxu0 %v1741
    %v6752 = vpop.f32.mrf.mxu0
    %v6753 = vadd.f32 %v6704, %v6752
    %v6754 = vpop.f32.mrf.mxu0
    %v6755 = vadd.f32 %v6706, %v6754
    %6756 = vmatmul.bf16.gmra.mxu0 %v1765
    %v6757 = vpop.f32.mrf.mxu0
    %v6758 = vadd.f32 %v6709, %v6757
    %v6759 = vpop.f32.mrf.mxu0
    %v6760 = vadd.f32 %v6711, %v6759
    %6761 = vmatmul.bf16.gmra.mxu0 %v1789
    %v6762 = vpop.f32.mrf.mxu0
    %v6763 = vadd.f32 %v6714, %v6762
    %v6764 = vpop.f32.mrf.mxu0
    %v6765 = vadd.f32 %v6716, %v6764
    %6766 = vmatmul.bf16.gmra.mxu0 %v1813
    %v6767 = vpop.f32.mrf.mxu0
    %v6768 = vadd.f32 %v6719, %v6767
    %v6769 = vpop.f32.mrf.mxu0
    %v6770 = vadd.f32 %v6721, %v6769
    %6771 = vmatmul.bf16.gmra.mxu0 %v1837
    %v6772 = vpop.f32.mrf.mxu0
    %v6773 = vadd.f32 %v6724, %v6772
    %v6774 = vpop.f32.mrf.mxu0
    %v6775 = vadd.f32 %v6726, %v6774
    %6776 = vmatmul.bf16.gmra.mxu0 %v1861
    %v6777 = vpop.f32.mrf.mxu0
    %v6778 = vadd.f32 %v6729, %v6777
    %v6779 = vpop.f32.mrf.mxu0
    %v6780 = vadd.f32 %v6731, %v6779
    %6781 = vdwg.mxu0
    %6782 = vmatpush.bf16.msra.mxu0 %v4968
    %6783 = vmatpush.bf16.msra.mxu0 %v4964
    %6784 = vmatpush.bf16.msra.mxu0 %v4960
    %6785 = vmatpush.bf16.msra.mxu0 %v4956
    %6786 = vmatpush.bf16.msra.mxu0 %v4952
    %6787 = vmatpush.bf16.msra.mxu0 %v4948
    %6788 = vmatpush.bf16.msra.mxu0 %v4944
    %6789 = vmatpush.bf16.msra.mxu0 %v4940
    %6790 = vmatmul.bf16.gmra.mxu0 %v1694
    %v6791 = vpop.f32.mrf.mxu0
    %v6792 = vadd.f32 %v6743, %v6791
    %v6793 = vpop.f32.mrf.mxu0
    %v6794 = vadd.f32 %v6745, %v6793
    %6795 = vmatmul.bf16.gmra.mxu0 %v1718
    %v6796 = vpop.f32.mrf.mxu0
    %v6797 = vadd.f32 %v6748, %v6796
    %v6798 = vpop.f32.mrf.mxu0
    %v6799 = vadd.f32 %v6750, %v6798
    %6800 = vmatmul.bf16.gmra.mxu0 %v1742
    %v6801 = vpop.f32.mrf.mxu0
    %v6802 = vadd.f32 %v6753, %v6801
    %v6803 = vpop.f32.mrf.mxu0
    %v6804 = vadd.f32 %v6755, %v6803
    %6805 = vmatmul.bf16.gmra.mxu0 %v1766
    %v6806 = vpop.f32.mrf.mxu0
    %v6807 = vadd.f32 %v6758, %v6806
    %v6808 = vpop.f32.mrf.mxu0
    %v6809 = vadd.f32 %v6760, %v6808
    %6810 = vmatmul.bf16.gmra.mxu0 %v1790
    %v6811 = vpop.f32.mrf.mxu0
    %v6812 = vadd.f32 %v6763, %v6811
    %v6813 = vpop.f32.mrf.mxu0
    %v6814 = vadd.f32 %v6765, %v6813
    %6815 = vmatmul.bf16.gmra.mxu0 %v1814
    %v6816 = vpop.f32.mrf.mxu0
    %v6817 = vadd.f32 %v6768, %v6816
    %v6818 = vpop.f32.mrf.mxu0
    %v6819 = vadd.f32 %v6770, %v6818
    %6820 = vmatmul.bf16.gmra.mxu0 %v1838
    %v6821 = vpop.f32.mrf.mxu0
    %v6822 = vadd.f32 %v6773, %v6821
    %v6823 = vpop.f32.mrf.mxu0
    %v6824 = vadd.f32 %v6775, %v6823
    %6825 = vmatmul.bf16.gmra.mxu0 %v1862
    %v6826 = vpop.f32.mrf.mxu0
    %v6827 = vadd.f32 %v6778, %v6826
    %v6828 = vpop.f32.mrf.mxu0
    %v6829 = vadd.f32 %v6780, %v6828
    %6830 = vdwg.mxu0
    %6831 = vmatpush.bf16.msra.mxu0 %v5000
    %6832 = vmatpush.bf16.msra.mxu0 %v4996
    %6833 = vmatpush.bf16.msra.mxu0 %v4992
    %6834 = vmatpush.bf16.msra.mxu0 %v4988
    %6835 = vmatpush.bf16.msra.mxu0 %v4984
    %6836 = vmatpush.bf16.msra.mxu0 %v4980
    %6837 = vmatpush.bf16.msra.mxu0 %v4976
    %6838 = vmatpush.bf16.msra.mxu0 %v4972
    %6839 = vmatmul.bf16.gmra.mxu0 %v1695
    %v6840 = vpop.f32.mrf.mxu0
    %v6841 = vadd.f32 %v6792, %v6840
    %v6842 = vpop.f32.mrf.mxu0
    %v6843 = vadd.f32 %v6794, %v6842
    %6844 = vmatmul.bf16.gmra.mxu0 %v1719
    %v6845 = vpop.f32.mrf.mxu0
    %v6846 = vadd.f32 %v6797, %v6845
    %v6847 = vpop.f32.mrf.mxu0
    %v6848 = vadd.f32 %v6799, %v6847
    %6849 = vmatmul.bf16.gmra.mxu0 %v1743
    %v6850 = vpop.f32.mrf.mxu0
    %v6851 = vadd.f32 %v6802, %v6850
    %v6852 = vpop.f32.mrf.mxu0
    %v6853 = vadd.f32 %v6804, %v6852
    %6854 = vmatmul.bf16.gmra.mxu0 %v1767
    %v6855 = vpop.f32.mrf.mxu0
    %v6856 = vadd.f32 %v6807, %v6855
    %v6857 = vpop.f32.mrf.mxu0
    %v6858 = vadd.f32 %v6809, %v6857
    %6859 = vmatmul.bf16.gmra.mxu0 %v1791
    %v6860 = vpop.f32.mrf.mxu0
    %v6861 = vadd.f32 %v6812, %v6860
    %v6862 = vpop.f32.mrf.mxu0
    %v6863 = vadd.f32 %v6814, %v6862
    %6864 = vmatmul.bf16.gmra.mxu0 %v1815
    %v6865 = vpop.f32.mrf.mxu0
    %v6866 = vadd.f32 %v6817, %v6865
    %v6867 = vpop.f32.mrf.mxu0
    %v6868 = vadd.f32 %v6819, %v6867
    %6869 = vmatmul.bf16.gmra.mxu0 %v1839
    %v6870 = vpop.f32.mrf.mxu0
    %v6871 = vadd.f32 %v6822, %v6870
    %v6872 = vpop.f32.mrf.mxu0
    %v6873 = vadd.f32 %v6824, %v6872
    %6874 = vmatmul.bf16.gmra.mxu0 %v1863
    %v6875 = vpop.f32.mrf.mxu0
    %v6876 = vadd.f32 %v6827, %v6875
    %v6877 = vpop.f32.mrf.mxu0
    %v6878 = vadd.f32 %v6829, %v6877
    %6879 = vdwg.mxu0
    %6880 = vmatpush.bf16.msra.mxu0 %v5032
    %6881 = vmatpush.bf16.msra.mxu0 %v5028
    %6882 = vmatpush.bf16.msra.mxu0 %v5024
    %6883 = vmatpush.bf16.msra.mxu0 %v5020
    %6884 = vmatpush.bf16.msra.mxu0 %v5016
    %6885 = vmatpush.bf16.msra.mxu0 %v5012
    %6886 = vmatpush.bf16.msra.mxu0 %v5008
    %6887 = vmatpush.bf16.msra.mxu0 %v5004
    %6888 = vmatmul.bf16.gmra.mxu0 %v1696
    %v6889 = vpop.f32.mrf.mxu0
    %v6890 = vadd.f32 %v6841, %v6889
    %v6891 = vpop.f32.mrf.mxu0
    %v6892 = vadd.f32 %v6843, %v6891
    %6893 = vmatmul.bf16.gmra.mxu0 %v1720
    %v6894 = vpop.f32.mrf.mxu0
    %v6895 = vadd.f32 %v6846, %v6894
    %v6896 = vpop.f32.mrf.mxu0
    %v6897 = vadd.f32 %v6848, %v6896
    %6898 = vmatmul.bf16.gmra.mxu0 %v1744
    %v6899 = vpop.f32.mrf.mxu0
    %v6900 = vadd.f32 %v6851, %v6899
    %v6901 = vpop.f32.mrf.mxu0
    %v6902 = vadd.f32 %v6853, %v6901
    %6903 = vmatmul.bf16.gmra.mxu0 %v1768
    %v6904 = vpop.f32.mrf.mxu0
    %v6905 = vadd.f32 %v6856, %v6904
    %v6906 = vpop.f32.mrf.mxu0
    %v6907 = vadd.f32 %v6858, %v6906
    %6908 = vmatmul.bf16.gmra.mxu0 %v1792
    %v6909 = vpop.f32.mrf.mxu0
    %v6910 = vadd.f32 %v6861, %v6909
    %v6911 = vpop.f32.mrf.mxu0
    %v6912 = vadd.f32 %v6863, %v6911
    %6913 = vmatmul.bf16.gmra.mxu0 %v1816
    %v6914 = vpop.f32.mrf.mxu0
    %v6915 = vadd.f32 %v6866, %v6914
    %v6916 = vpop.f32.mrf.mxu0
    %v6917 = vadd.f32 %v6868, %v6916
    %6918 = vmatmul.bf16.gmra.mxu0 %v1840
    %v6919 = vpop.f32.mrf.mxu0
    %v6920 = vadd.f32 %v6871, %v6919
    %v6921 = vpop.f32.mrf.mxu0
    %v6922 = vadd.f32 %v6873, %v6921
    %6923 = vmatmul.bf16.gmra.mxu0 %v1864
    %v6924 = vpop.f32.mrf.mxu0
    %v6925 = vadd.f32 %v6876, %v6924
    %v6926 = vpop.f32.mrf.mxu0
    %v6927 = vadd.f32 %v6878, %v6926
    %6928 = vdwg.mxu0
    %6929 = vmatpush.bf16.msra.mxu0 %v5064
    %6930 = vmatpush.bf16.msra.mxu0 %v5060
    %6931 = vmatpush.bf16.msra.mxu0 %v5056
    %6932 = vmatpush.bf16.msra.mxu0 %v5052
    %6933 = vmatpush.bf16.msra.mxu0 %v5048
    %6934 = vmatpush.bf16.msra.mxu0 %v5044
    %6935 = vmatpush.bf16.msra.mxu0 %v5040
    %6936 = vmatpush.bf16.msra.mxu0 %v5036
    %6937 = vmatmul.bf16.gmra.mxu0 %v1697
    %v6938 = vpop.f32.mrf.mxu0
    %v6939 = vadd.f32 %v6890, %v6938
    %v6940 = vpop.f32.mrf.mxu0
    %v6941 = vadd.f32 %v6892, %v6940
    %6942 = vmatmul.bf16.gmra.mxu0 %v1721
    %v6943 = vpop.f32.mrf.mxu0
    %v6944 = vadd.f32 %v6895, %v6943
    %v6945 = vpop.f32.mrf.mxu0
    %v6946 = vadd.f32 %v6897, %v6945
    %6947 = vmatmul.bf16.gmra.mxu0 %v1745
    %v6948 = vpop.f32.mrf.mxu0
    %v6949 = vadd.f32 %v6900, %v6948
    %v6950 = vpop.f32.mrf.mxu0
    %v6951 = vadd.f32 %v6902, %v6950
    %6952 = vmatmul.bf16.gmra.mxu0 %v1769
    %v6953 = vpop.f32.mrf.mxu0
    %v6954 = vadd.f32 %v6905, %v6953
    %v6955 = vpop.f32.mrf.mxu0
    %v6956 = vadd.f32 %v6907, %v6955
    %6957 = vmatmul.bf16.gmra.mxu0 %v1793
    %v6958 = vpop.f32.mrf.mxu0
    %v6959 = vadd.f32 %v6910, %v6958
    %v6960 = vpop.f32.mrf.mxu0
    %v6961 = vadd.f32 %v6912, %v6960
    %6962 = vmatmul.bf16.gmra.mxu0 %v1817
    %v6963 = vpop.f32.mrf.mxu0
    %v6964 = vadd.f32 %v6915, %v6963
    %v6965 = vpop.f32.mrf.mxu0
    %v6966 = vadd.f32 %v6917, %v6965
    %6967 = vmatmul.bf16.gmra.mxu0 %v1841
    %v6968 = vpop.f32.mrf.mxu0
    %v6969 = vadd.f32 %v6920, %v6968
    %v6970 = vpop.f32.mrf.mxu0
    %v6971 = vadd.f32 %v6922, %v6970
    %6972 = vmatmul.bf16.gmra.mxu0 %v1865
    %v6973 = vpop.f32.mrf.mxu0
    %v6974 = vadd.f32 %v6925, %v6973
    %v6975 = vpop.f32.mrf.mxu0
    %v6976 = vadd.f32 %v6927, %v6975
    %6977 = vdwg.mxu0
    %6978 = vmatpush.bf16.msra.mxu0 %v5096
    %6979 = vmatpush.bf16.msra.mxu0 %v5092
    %6980 = vmatpush.bf16.msra.mxu0 %v5088
    %6981 = vmatpush.bf16.msra.mxu0 %v5084
    %6982 = vmatpush.bf16.msra.mxu0 %v5080
    %6983 = vmatpush.bf16.msra.mxu0 %v5076
    %6984 = vmatpush.bf16.msra.mxu0 %v5072
    %6985 = vmatpush.bf16.msra.mxu0 %v5068
    %6986 = vmatmul.bf16.gmra.mxu0 %v1698
    %v6987 = vpop.f32.mrf.mxu0
    %v6988 = vadd.f32 %v6939, %v6987
    %v6989 = vpop.f32.mrf.mxu0
    %v6990 = vadd.f32 %v6941, %v6989
    %6991 = vmatmul.bf16.gmra.mxu0 %v1722
    %v6992 = vpop.f32.mrf.mxu0
    %v6993 = vadd.f32 %v6944, %v6992
    %v6994 = vpop.f32.mrf.mxu0
    %v6995 = vadd.f32 %v6946, %v6994
    %6996 = vmatmul.bf16.gmra.mxu0 %v1746
    %v6997 = vpop.f32.mrf.mxu0
    %v6998 = vadd.f32 %v6949, %v6997
    %v6999 = vpop.f32.mrf.mxu0
    %v7000 = vadd.f32 %v6951, %v6999
    %7001 = vmatmul.bf16.gmra.mxu0 %v1770
    %v7002 = vpop.f32.mrf.mxu0
    %v7003 = vadd.f32 %v6954, %v7002
    %v7004 = vpop.f32.mrf.mxu0
    %v7005 = vadd.f32 %v6956, %v7004
    %7006 = vmatmul.bf16.gmra.mxu0 %v1794
    %v7007 = vpop.f32.mrf.mxu0
    %v7008 = vadd.f32 %v6959, %v7007
    %v7009 = vpop.f32.mrf.mxu0
    %v7010 = vadd.f32 %v6961, %v7009
    %7011 = vmatmul.bf16.gmra.mxu0 %v1818
    %v7012 = vpop.f32.mrf.mxu0
    %v7013 = vadd.f32 %v6964, %v7012
    %v7014 = vpop.f32.mrf.mxu0
    %v7015 = vadd.f32 %v6966, %v7014
    %7016 = vmatmul.bf16.gmra.mxu0 %v1842
    %v7017 = vpop.f32.mrf.mxu0
    %v7018 = vadd.f32 %v6969, %v7017
    %v7019 = vpop.f32.mrf.mxu0
    %v7020 = vadd.f32 %v6971, %v7019
    %7021 = vmatmul.bf16.gmra.mxu0 %v1866
    %v7022 = vpop.f32.mrf.mxu0
    %v7023 = vadd.f32 %v6974, %v7022
    %v7024 = vpop.f32.mrf.mxu0
    %v7025 = vadd.f32 %v6976, %v7024
    %7026 = vdwg.mxu0
    %7027 = vmatpush.bf16.msra.mxu0 %v5128
    %7028 = vmatpush.bf16.msra.mxu0 %v5124
    %7029 = vmatpush.bf16.msra.mxu0 %v5120
    %7030 = vmatpush.bf16.msra.mxu0 %v5116
    %7031 = vmatpush.bf16.msra.mxu0 %v5112
    %7032 = vmatpush.bf16.msra.mxu0 %v5108
    %7033 = vmatpush.bf16.msra.mxu0 %v5104
    %7034 = vmatpush.bf16.msra.mxu0 %v5100
    %7035 = vmatmul.bf16.gmra.mxu0 %v1699
    %v7036 = vpop.f32.mrf.mxu0
    %v7037 = vadd.f32 %v6988, %v7036
    %v7038 = vpop.f32.mrf.mxu0
    %v7039 = vadd.f32 %v6990, %v7038
    %7040 = vmatmul.bf16.gmra.mxu0 %v1723
    %v7041 = vpop.f32.mrf.mxu0
    %v7042 = vadd.f32 %v6993, %v7041
    %v7043 = vpop.f32.mrf.mxu0
    %v7044 = vadd.f32 %v6995, %v7043
    %7045 = vmatmul.bf16.gmra.mxu0 %v1747
    %v7046 = vpop.f32.mrf.mxu0
    %v7047 = vadd.f32 %v6998, %v7046
    %v7048 = vpop.f32.mrf.mxu0
    %v7049 = vadd.f32 %v7000, %v7048
    %7050 = vmatmul.bf16.gmra.mxu0 %v1771
    %v7051 = vpop.f32.mrf.mxu0
    %v7052 = vadd.f32 %v7003, %v7051
    %v7053 = vpop.f32.mrf.mxu0
    %v7054 = vadd.f32 %v7005, %v7053
    %7055 = vmatmul.bf16.gmra.mxu0 %v1795
    %v7056 = vpop.f32.mrf.mxu0
    %v7057 = vadd.f32 %v7008, %v7056
    %v7058 = vpop.f32.mrf.mxu0
    %v7059 = vadd.f32 %v7010, %v7058
    %7060 = vmatmul.bf16.gmra.mxu0 %v1819
    %v7061 = vpop.f32.mrf.mxu0
    %v7062 = vadd.f32 %v7013, %v7061
    %v7063 = vpop.f32.mrf.mxu0
    %v7064 = vadd.f32 %v7015, %v7063
    %7065 = vmatmul.bf16.gmra.mxu0 %v1843
    %v7066 = vpop.f32.mrf.mxu0
    %v7067 = vadd.f32 %v7018, %v7066
    %v7068 = vpop.f32.mrf.mxu0
    %v7069 = vadd.f32 %v7020, %v7068
    %7070 = vmatmul.bf16.gmra.mxu0 %v1867
    %v7071 = vpop.f32.mrf.mxu0
    %v7072 = vadd.f32 %v7023, %v7071
    %v7073 = vpop.f32.mrf.mxu0
    %v7074 = vadd.f32 %v7025, %v7073
    %7075 = vdwg.mxu0
    %7076 = vmatpush.bf16.msra.mxu0 %v4393
    %7077 = vmatpush.bf16.msra.mxu0 %v4389
    %7078 = vmatpush.bf16.msra.mxu0 %v4385
    %7079 = vmatpush.bf16.msra.mxu0 %v4381
    %7080 = vmatpush.bf16.msra.mxu0 %v4377
    %7081 = vmatpush.bf16.msra.mxu0 %v4373
    %7082 = vmatpush.bf16.msra.mxu0 %v4369
    %7083 = vmatpush.bf16.msra.mxu0 %v4365
    %7084 = vmatmul.bf16.gmra.mxu0 %v1676
    %v7085 = vpop.f32.mrf.mxu0
    %v7086 = vadd.f32 %v1093, %v7085
    %v7087 = vpop.f32.mrf.mxu0
    %v7088 = vadd.f32 %v1093, %v7087
    %7089 = vmatmul.bf16.gmra.mxu0 %v1700
    %v7090 = vpop.f32.mrf.mxu0
    %v7091 = vadd.f32 %v1093, %v7090
    %v7092 = vpop.f32.mrf.mxu0
    %v7093 = vadd.f32 %v1093, %v7092
    %7094 = vmatmul.bf16.gmra.mxu0 %v1724
    %v7095 = vpop.f32.mrf.mxu0
    %v7096 = vadd.f32 %v1093, %v7095
    %v7097 = vpop.f32.mrf.mxu0
    %v7098 = vadd.f32 %v1093, %v7097
    %7099 = vmatmul.bf16.gmra.mxu0 %v1748
    %v7100 = vpop.f32.mrf.mxu0
    %v7101 = vadd.f32 %v1093, %v7100
    %v7102 = vpop.f32.mrf.mxu0
    %v7103 = vadd.f32 %v1093, %v7102
    %7104 = vmatmul.bf16.gmra.mxu0 %v1772
    %v7105 = vpop.f32.mrf.mxu0
    %v7106 = vadd.f32 %v1093, %v7105
    %v7107 = vpop.f32.mrf.mxu0
    %v7108 = vadd.f32 %v1093, %v7107
    %7109 = vmatmul.bf16.gmra.mxu0 %v1796
    %v7110 = vpop.f32.mrf.mxu0
    %v7111 = vadd.f32 %v1093, %v7110
    %v7112 = vpop.f32.mrf.mxu0
    %v7113 = vadd.f32 %v1093, %v7112
    %7114 = vmatmul.bf16.gmra.mxu0 %v1820
    %v7115 = vpop.f32.mrf.mxu0
    %v7116 = vadd.f32 %v1093, %v7115
    %v7117 = vpop.f32.mrf.mxu0
    %v7118 = vadd.f32 %v1093, %v7117
    %7119 = vmatmul.bf16.gmra.mxu0 %v1844
    %v7120 = vpop.f32.mrf.mxu0
    %v7121 = vadd.f32 %v1093, %v7120
    %v7122 = vpop.f32.mrf.mxu0
    %v7123 = vadd.f32 %v1093, %v7122
    %7124 = vdwg.mxu0
    %7125 = vmatpush.bf16.msra.mxu0 %v4425
    %7126 = vmatpush.bf16.msra.mxu0 %v4421
    %7127 = vmatpush.bf16.msra.mxu0 %v4417
    %7128 = vmatpush.bf16.msra.mxu0 %v4413
    %7129 = vmatpush.bf16.msra.mxu0 %v4409
    %7130 = vmatpush.bf16.msra.mxu0 %v4405
    %7131 = vmatpush.bf16.msra.mxu0 %v4401
    %7132 = vmatpush.bf16.msra.mxu0 %v4397
    %7133 = vmatmul.bf16.gmra.mxu0 %v1677
    %v7134 = vpop.f32.mrf.mxu0
    %v7135 = vadd.f32 %v7086, %v7134
    %v7136 = vpop.f32.mrf.mxu0
    %v7137 = vadd.f32 %v7088, %v7136
    %7138 = vmatmul.bf16.gmra.mxu0 %v1701
    %v7139 = vpop.f32.mrf.mxu0
    %v7140 = vadd.f32 %v7091, %v7139
    %v7141 = vpop.f32.mrf.mxu0
    %v7142 = vadd.f32 %v7093, %v7141
    %7143 = vmatmul.bf16.gmra.mxu0 %v1725
    %v7144 = vpop.f32.mrf.mxu0
    %v7145 = vadd.f32 %v7096, %v7144
    %v7146 = vpop.f32.mrf.mxu0
    %v7147 = vadd.f32 %v7098, %v7146
    %7148 = vmatmul.bf16.gmra.mxu0 %v1749
    %v7149 = vpop.f32.mrf.mxu0
    %v7150 = vadd.f32 %v7101, %v7149
    %v7151 = vpop.f32.mrf.mxu0
    %v7152 = vadd.f32 %v7103, %v7151
    %7153 = vmatmul.bf16.gmra.mxu0 %v1773
    %v7154 = vpop.f32.mrf.mxu0
    %v7155 = vadd.f32 %v7106, %v7154
    %v7156 = vpop.f32.mrf.mxu0
    %v7157 = vadd.f32 %v7108, %v7156
    %7158 = vmatmul.bf16.gmra.mxu0 %v1797
    %v7159 = vpop.f32.mrf.mxu0
    %v7160 = vadd.f32 %v7111, %v7159
    %v7161 = vpop.f32.mrf.mxu0
    %v7162 = vadd.f32 %v7113, %v7161
    %7163 = vmatmul.bf16.gmra.mxu0 %v1821
    %v7164 = vpop.f32.mrf.mxu0
    %v7165 = vadd.f32 %v7116, %v7164
    %v7166 = vpop.f32.mrf.mxu0
    %v7167 = vadd.f32 %v7118, %v7166
    %7168 = vmatmul.bf16.gmra.mxu0 %v1845
    %v7169 = vpop.f32.mrf.mxu0
    %v7170 = vadd.f32 %v7121, %v7169
    %v7171 = vpop.f32.mrf.mxu0
    %v7172 = vadd.f32 %v7123, %v7171
    %7173 = vdwg.mxu0
    %7174 = vmatpush.bf16.msra.mxu0 %v4457
    %7175 = vmatpush.bf16.msra.mxu0 %v4453
    %7176 = vmatpush.bf16.msra.mxu0 %v4449
    %7177 = vmatpush.bf16.msra.mxu0 %v4445
    %7178 = vmatpush.bf16.msra.mxu0 %v4441
    %7179 = vmatpush.bf16.msra.mxu0 %v4437
    %7180 = vmatpush.bf16.msra.mxu0 %v4433
    %7181 = vmatpush.bf16.msra.mxu0 %v4429
    %7182 = vmatmul.bf16.gmra.mxu0 %v1678
    %v7183 = vpop.f32.mrf.mxu0
    %v7184 = vadd.f32 %v7135, %v7183
    %v7185 = vpop.f32.mrf.mxu0
    %v7186 = vadd.f32 %v7137, %v7185
    %7187 = vmatmul.bf16.gmra.mxu0 %v1702
    %v7188 = vpop.f32.mrf.mxu0
    %v7189 = vadd.f32 %v7140, %v7188
    %v7190 = vpop.f32.mrf.mxu0
    %v7191 = vadd.f32 %v7142, %v7190
    %7192 = vmatmul.bf16.gmra.mxu0 %v1726
    %v7193 = vpop.f32.mrf.mxu0
    %v7194 = vadd.f32 %v7145, %v7193
    %v7195 = vpop.f32.mrf.mxu0
    %v7196 = vadd.f32 %v7147, %v7195
    %7197 = vmatmul.bf16.gmra.mxu0 %v1750
    %v7198 = vpop.f32.mrf.mxu0
    %v7199 = vadd.f32 %v7150, %v7198
    %v7200 = vpop.f32.mrf.mxu0
    %v7201 = vadd.f32 %v7152, %v7200
    %7202 = vmatmul.bf16.gmra.mxu0 %v1774
    %v7203 = vpop.f32.mrf.mxu0
    %v7204 = vadd.f32 %v7155, %v7203
    %v7205 = vpop.f32.mrf.mxu0
    %v7206 = vadd.f32 %v7157, %v7205
    %7207 = vmatmul.bf16.gmra.mxu0 %v1798
    %v7208 = vpop.f32.mrf.mxu0
    %v7209 = vadd.f32 %v7160, %v7208
    %v7210 = vpop.f32.mrf.mxu0
    %v7211 = vadd.f32 %v7162, %v7210
    %7212 = vmatmul.bf16.gmra.mxu0 %v1822
    %v7213 = vpop.f32.mrf.mxu0
    %v7214 = vadd.f32 %v7165, %v7213
    %v7215 = vpop.f32.mrf.mxu0
    %v7216 = vadd.f32 %v7167, %v7215
    %7217 = vmatmul.bf16.gmra.mxu0 %v1846
    %v7218 = vpop.f32.mrf.mxu0
    %v7219 = vadd.f32 %v7170, %v7218
    %v7220 = vpop.f32.mrf.mxu0
    %v7221 = vadd.f32 %v7172, %v7220
    %7222 = vdwg.mxu0
    %7223 = vmatpush.bf16.msra.mxu0 %v4489
    %7224 = vmatpush.bf16.msra.mxu0 %v4485
    %7225 = vmatpush.bf16.msra.mxu0 %v4481
    %7226 = vmatpush.bf16.msra.mxu0 %v4477
    %7227 = vmatpush.bf16.msra.mxu0 %v4473
    %7228 = vmatpush.bf16.msra.mxu0 %v4469
    %7229 = vmatpush.bf16.msra.mxu0 %v4465
    %7230 = vmatpush.bf16.msra.mxu0 %v4461
    %7231 = vmatmul.bf16.gmra.mxu0 %v1679
    %v7232 = vpop.f32.mrf.mxu0
    %v7233 = vadd.f32 %v7184, %v7232
    %v7234 = vpop.f32.mrf.mxu0
    %v7235 = vadd.f32 %v7186, %v7234
    %7236 = vmatmul.bf16.gmra.mxu0 %v1703
    %v7237 = vpop.f32.mrf.mxu0
    %v7238 = vadd.f32 %v7189, %v7237
    %v7239 = vpop.f32.mrf.mxu0
    %v7240 = vadd.f32 %v7191, %v7239
    %7241 = vmatmul.bf16.gmra.mxu0 %v1727
    %v7242 = vpop.f32.mrf.mxu0
    %v7243 = vadd.f32 %v7194, %v7242
    %v7244 = vpop.f32.mrf.mxu0
    %v7245 = vadd.f32 %v7196, %v7244
    %7246 = vmatmul.bf16.gmra.mxu0 %v1751
    %v7247 = vpop.f32.mrf.mxu0
    %v7248 = vadd.f32 %v7199, %v7247
    %v7249 = vpop.f32.mrf.mxu0
    %v7250 = vadd.f32 %v7201, %v7249
    %7251 = vmatmul.bf16.gmra.mxu0 %v1775
    %v7252 = vpop.f32.mrf.mxu0
    %v7253 = vadd.f32 %v7204, %v7252
    %v7254 = vpop.f32.mrf.mxu0
    %v7255 = vadd.f32 %v7206, %v7254
    %7256 = vmatmul.bf16.gmra.mxu0 %v1799
    %v7257 = vpop.f32.mrf.mxu0
    %v7258 = vadd.f32 %v7209, %v7257
    %v7259 = vpop.f32.mrf.mxu0
    %v7260 = vadd.f32 %v7211, %v7259
    %7261 = vmatmul.bf16.gmra.mxu0 %v1823
    %v7262 = vpop.f32.mrf.mxu0
    %v7263 = vadd.f32 %v7214, %v7262
    %v7264 = vpop.f32.mrf.mxu0
    %v7265 = vadd.f32 %v7216, %v7264
    %7266 = vmatmul.bf16.gmra.mxu0 %v1847
    %v7267 = vpop.f32.mrf.mxu0
    %v7268 = vadd.f32 %v7219, %v7267
    %v7269 = vpop.f32.mrf.mxu0
    %v7270 = vadd.f32 %v7221, %v7269
    %7271 = vdwg.mxu0
    %7272 = vmatpush.bf16.msra.mxu0 %v4521
    %7273 = vmatpush.bf16.msra.mxu0 %v4517
    %7274 = vmatpush.bf16.msra.mxu0 %v4513
    %7275 = vmatpush.bf16.msra.mxu0 %v4509
    %7276 = vmatpush.bf16.msra.mxu0 %v4505
    %7277 = vmatpush.bf16.msra.mxu0 %v4501
    %7278 = vmatpush.bf16.msra.mxu0 %v4497
    %7279 = vmatpush.bf16.msra.mxu0 %v4493
    %7280 = vmatmul.bf16.gmra.mxu0 %v1680
    %v7281 = vpop.f32.mrf.mxu0
    %v7282 = vadd.f32 %v7233, %v7281
    %v7283 = vpop.f32.mrf.mxu0
    %v7284 = vadd.f32 %v7235, %v7283
    %7285 = vmatmul.bf16.gmra.mxu0 %v1704
    %v7286 = vpop.f32.mrf.mxu0
    %v7287 = vadd.f32 %v7238, %v7286
    %v7288 = vpop.f32.mrf.mxu0
    %v7289 = vadd.f32 %v7240, %v7288
    %7290 = vmatmul.bf16.gmra.mxu0 %v1728
    %v7291 = vpop.f32.mrf.mxu0
    %v7292 = vadd.f32 %v7243, %v7291
    %v7293 = vpop.f32.mrf.mxu0
    %v7294 = vadd.f32 %v7245, %v7293
    %7295 = vmatmul.bf16.gmra.mxu0 %v1752
    %v7296 = vpop.f32.mrf.mxu0
    %v7297 = vadd.f32 %v7248, %v7296
    %v7298 = vpop.f32.mrf.mxu0
    %v7299 = vadd.f32 %v7250, %v7298
    %7300 = vmatmul.bf16.gmra.mxu0 %v1776
    %v7301 = vpop.f32.mrf.mxu0
    %v7302 = vadd.f32 %v7253, %v7301
    %v7303 = vpop.f32.mrf.mxu0
    %v7304 = vadd.f32 %v7255, %v7303
    %7305 = vmatmul.bf16.gmra.mxu0 %v1800
    %v7306 = vpop.f32.mrf.mxu0
    %v7307 = vadd.f32 %v7258, %v7306
    %v7308 = vpop.f32.mrf.mxu0
    %v7309 = vadd.f32 %v7260, %v7308
    %7310 = vmatmul.bf16.gmra.mxu0 %v1824
    %v7311 = vpop.f32.mrf.mxu0
    %v7312 = vadd.f32 %v7263, %v7311
    %v7313 = vpop.f32.mrf.mxu0
    %v7314 = vadd.f32 %v7265, %v7313
    %7315 = vmatmul.bf16.gmra.mxu0 %v1848
    %v7316 = vpop.f32.mrf.mxu0
    %v7317 = vadd.f32 %v7268, %v7316
    %v7318 = vpop.f32.mrf.mxu0
    %v7319 = vadd.f32 %v7270, %v7318
    %7320 = vdwg.mxu0
    %7321 = vmatpush.bf16.msra.mxu0 %v4553
    %7322 = vmatpush.bf16.msra.mxu0 %v4549
    %7323 = vmatpush.bf16.msra.mxu0 %v4545
    %7324 = vmatpush.bf16.msra.mxu0 %v4541
    %7325 = vmatpush.bf16.msra.mxu0 %v4537
    %7326 = vmatpush.bf16.msra.mxu0 %v4533
    %7327 = vmatpush.bf16.msra.mxu0 %v4529
    %7328 = vmatpush.bf16.msra.mxu0 %v4525
    %7329 = vmatmul.bf16.gmra.mxu0 %v1681
    %v7330 = vpop.f32.mrf.mxu0
    %v7331 = vadd.f32 %v7282, %v7330
    %v7332 = vpop.f32.mrf.mxu0
    %v7333 = vadd.f32 %v7284, %v7332
    %7334 = vmatmul.bf16.gmra.mxu0 %v1705
    %v7335 = vpop.f32.mrf.mxu0
    %v7336 = vadd.f32 %v7287, %v7335
    %v7337 = vpop.f32.mrf.mxu0
    %v7338 = vadd.f32 %v7289, %v7337
    %7339 = vmatmul.bf16.gmra.mxu0 %v1729
    %v7340 = vpop.f32.mrf.mxu0
    %v7341 = vadd.f32 %v7292, %v7340
    %v7342 = vpop.f32.mrf.mxu0
    %v7343 = vadd.f32 %v7294, %v7342
    %7344 = vmatmul.bf16.gmra.mxu0 %v1753
    %v7345 = vpop.f32.mrf.mxu0
    %v7346 = vadd.f32 %v7297, %v7345
    %v7347 = vpop.f32.mrf.mxu0
    %v7348 = vadd.f32 %v7299, %v7347
    %7349 = vmatmul.bf16.gmra.mxu0 %v1777
    %v7350 = vpop.f32.mrf.mxu0
    %v7351 = vadd.f32 %v7302, %v7350
    %v7352 = vpop.f32.mrf.mxu0
    %v7353 = vadd.f32 %v7304, %v7352
    %7354 = vmatmul.bf16.gmra.mxu0 %v1801
    %v7355 = vpop.f32.mrf.mxu0
    %v7356 = vadd.f32 %v7307, %v7355
    %v7357 = vpop.f32.mrf.mxu0
    %v7358 = vadd.f32 %v7309, %v7357
    %7359 = vmatmul.bf16.gmra.mxu0 %v1825
    %v7360 = vpop.f32.mrf.mxu0
    %v7361 = vadd.f32 %v7312, %v7360
    %v7362 = vpop.f32.mrf.mxu0
    %v7363 = vadd.f32 %v7314, %v7362
    %7364 = vmatmul.bf16.gmra.mxu0 %v1849
    %v7365 = vpop.f32.mrf.mxu0
    %v7366 = vadd.f32 %v7317, %v7365
    %v7367 = vpop.f32.mrf.mxu0
    %v7368 = vadd.f32 %v7319, %v7367
    %7369 = vdwg.mxu0
    %7370 = vmatpush.bf16.msra.mxu0 %v4585
    %7371 = vmatpush.bf16.msra.mxu0 %v4581
    %7372 = vmatpush.bf16.msra.mxu0 %v4577
    %7373 = vmatpush.bf16.msra.mxu0 %v4573
    %7374 = vmatpush.bf16.msra.mxu0 %v4569
    %7375 = vmatpush.bf16.msra.mxu0 %v4565
    %7376 = vmatpush.bf16.msra.mxu0 %v4561
    %7377 = vmatpush.bf16.msra.mxu0 %v4557
    %7378 = vmatmul.bf16.gmra.mxu0 %v1682
    %v7379 = vpop.f32.mrf.mxu0
    %v7380 = vadd.f32 %v7331, %v7379
    %v7381 = vpop.f32.mrf.mxu0
    %v7382 = vadd.f32 %v7333, %v7381
    %7383 = vmatmul.bf16.gmra.mxu0 %v1706
    %v7384 = vpop.f32.mrf.mxu0
    %v7385 = vadd.f32 %v7336, %v7384
    %v7386 = vpop.f32.mrf.mxu0
    %v7387 = vadd.f32 %v7338, %v7386
    %7388 = vmatmul.bf16.gmra.mxu0 %v1730
    %v7389 = vpop.f32.mrf.mxu0
    %v7390 = vadd.f32 %v7341, %v7389
    %v7391 = vpop.f32.mrf.mxu0
    %v7392 = vadd.f32 %v7343, %v7391
    %7393 = vmatmul.bf16.gmra.mxu0 %v1754
    %v7394 = vpop.f32.mrf.mxu0
    %v7395 = vadd.f32 %v7346, %v7394
    %v7396 = vpop.f32.mrf.mxu0
    %v7397 = vadd.f32 %v7348, %v7396
    %7398 = vmatmul.bf16.gmra.mxu0 %v1778
    %v7399 = vpop.f32.mrf.mxu0
    %v7400 = vadd.f32 %v7351, %v7399
    %v7401 = vpop.f32.mrf.mxu0
    %v7402 = vadd.f32 %v7353, %v7401
    %7403 = vmatmul.bf16.gmra.mxu0 %v1802
    %v7404 = vpop.f32.mrf.mxu0
    %v7405 = vadd.f32 %v7356, %v7404
    %v7406 = vpop.f32.mrf.mxu0
    %v7407 = vadd.f32 %v7358, %v7406
    %7408 = vmatmul.bf16.gmra.mxu0 %v1826
    %v7409 = vpop.f32.mrf.mxu0
    %v7410 = vadd.f32 %v7361, %v7409
    %v7411 = vpop.f32.mrf.mxu0
    %v7412 = vadd.f32 %v7363, %v7411
    %7413 = vmatmul.bf16.gmra.mxu0 %v1850
    %v7414 = vpop.f32.mrf.mxu0
    %v7415 = vadd.f32 %v7366, %v7414
    %v7416 = vpop.f32.mrf.mxu0
    %v7417 = vadd.f32 %v7368, %v7416
    %7418 = vdwg.mxu0
    %7419 = vmatpush.bf16.msra.mxu0 %v4617
    %7420 = vmatpush.bf16.msra.mxu0 %v4613
    %7421 = vmatpush.bf16.msra.mxu0 %v4609
    %7422 = vmatpush.bf16.msra.mxu0 %v4605
    %7423 = vmatpush.bf16.msra.mxu0 %v4601
    %7424 = vmatpush.bf16.msra.mxu0 %v4597
    %7425 = vmatpush.bf16.msra.mxu0 %v4593
    %7426 = vmatpush.bf16.msra.mxu0 %v4589
    %7427 = vmatmul.bf16.gmra.mxu0 %v1683
    %v7428 = vpop.f32.mrf.mxu0
    %v7429 = vadd.f32 %v7380, %v7428
    %v7430 = vpop.f32.mrf.mxu0
    %v7431 = vadd.f32 %v7382, %v7430
    %7432 = vmatmul.bf16.gmra.mxu0 %v1707
    %v7433 = vpop.f32.mrf.mxu0
    %v7434 = vadd.f32 %v7385, %v7433
    %v7435 = vpop.f32.mrf.mxu0
    %v7436 = vadd.f32 %v7387, %v7435
    %7437 = vmatmul.bf16.gmra.mxu0 %v1731
    %v7438 = vpop.f32.mrf.mxu0
    %v7439 = vadd.f32 %v7390, %v7438
    %v7440 = vpop.f32.mrf.mxu0
    %v7441 = vadd.f32 %v7392, %v7440
    %7442 = vmatmul.bf16.gmra.mxu0 %v1755
    %v7443 = vpop.f32.mrf.mxu0
    %v7444 = vadd.f32 %v7395, %v7443
    %v7445 = vpop.f32.mrf.mxu0
    %v7446 = vadd.f32 %v7397, %v7445
    %7447 = vmatmul.bf16.gmra.mxu0 %v1779
    %v7448 = vpop.f32.mrf.mxu0
    %v7449 = vadd.f32 %v7400, %v7448
    %v7450 = vpop.f32.mrf.mxu0
    %v7451 = vadd.f32 %v7402, %v7450
    %7452 = vmatmul.bf16.gmra.mxu0 %v1803
    %v7453 = vpop.f32.mrf.mxu0
    %v7454 = vadd.f32 %v7405, %v7453
    %v7455 = vpop.f32.mrf.mxu0
    %v7456 = vadd.f32 %v7407, %v7455
    %7457 = vmatmul.bf16.gmra.mxu0 %v1827
    %v7458 = vpop.f32.mrf.mxu0
    %v7459 = vadd.f32 %v7410, %v7458
    %v7460 = vpop.f32.mrf.mxu0
    %v7461 = vadd.f32 %v7412, %v7460
    %7462 = vmatmul.bf16.gmra.mxu0 %v1851
    %v7463 = vpop.f32.mrf.mxu0
    %v7464 = vadd.f32 %v7415, %v7463
    %v7465 = vpop.f32.mrf.mxu0
    %v7466 = vadd.f32 %v7417, %v7465
    %7467 = vdwg.mxu0
    %7468 = vmatpush.bf16.msra.mxu0 %v4649
    %7469 = vmatpush.bf16.msra.mxu0 %v4645
    %7470 = vmatpush.bf16.msra.mxu0 %v4641
    %7471 = vmatpush.bf16.msra.mxu0 %v4637
    %7472 = vmatpush.bf16.msra.mxu0 %v4633
    %7473 = vmatpush.bf16.msra.mxu0 %v4629
    %7474 = vmatpush.bf16.msra.mxu0 %v4625
    %7475 = vmatpush.bf16.msra.mxu0 %v4621
    %7476 = vmatmul.bf16.gmra.mxu0 %v1684
    %v7477 = vpop.f32.mrf.mxu0
    %v7478 = vadd.f32 %v7429, %v7477
    %v7479 = vpop.f32.mrf.mxu0
    %v7480 = vadd.f32 %v7431, %v7479
    %7481 = vmatmul.bf16.gmra.mxu0 %v1708
    %v7482 = vpop.f32.mrf.mxu0
    %v7483 = vadd.f32 %v7434, %v7482
    %v7484 = vpop.f32.mrf.mxu0
    %v7485 = vadd.f32 %v7436, %v7484
    %7486 = vmatmul.bf16.gmra.mxu0 %v1732
    %v7487 = vpop.f32.mrf.mxu0
    %v7488 = vadd.f32 %v7439, %v7487
    %v7489 = vpop.f32.mrf.mxu0
    %v7490 = vadd.f32 %v7441, %v7489
    %7491 = vmatmul.bf16.gmra.mxu0 %v1756
    %v7492 = vpop.f32.mrf.mxu0
    %v7493 = vadd.f32 %v7444, %v7492
    %v7494 = vpop.f32.mrf.mxu0
    %v7495 = vadd.f32 %v7446, %v7494
    %7496 = vmatmul.bf16.gmra.mxu0 %v1780
    %v7497 = vpop.f32.mrf.mxu0
    %v7498 = vadd.f32 %v7449, %v7497
    %v7499 = vpop.f32.mrf.mxu0
    %v7500 = vadd.f32 %v7451, %v7499
    %7501 = vmatmul.bf16.gmra.mxu0 %v1804
    %v7502 = vpop.f32.mrf.mxu0
    %v7503 = vadd.f32 %v7454, %v7502
    %v7504 = vpop.f32.mrf.mxu0
    %v7505 = vadd.f32 %v7456, %v7504
    %7506 = vmatmul.bf16.gmra.mxu0 %v1828
    %v7507 = vpop.f32.mrf.mxu0
    %v7508 = vadd.f32 %v7459, %v7507
    %v7509 = vpop.f32.mrf.mxu0
    %v7510 = vadd.f32 %v7461, %v7509
    %7511 = vmatmul.bf16.gmra.mxu0 %v1852
    %v7512 = vpop.f32.mrf.mxu0
    %v7513 = vadd.f32 %v7464, %v7512
    %v7514 = vpop.f32.mrf.mxu0
    %v7515 = vadd.f32 %v7466, %v7514
    %7516 = vdwg.mxu0
    %7517 = vmatpush.bf16.msra.mxu0 %v4681
    %7518 = vmatpush.bf16.msra.mxu0 %v4677
    %7519 = vmatpush.bf16.msra.mxu0 %v4673
    %7520 = vmatpush.bf16.msra.mxu0 %v4669
    %7521 = vmatpush.bf16.msra.mxu0 %v4665
    %7522 = vmatpush.bf16.msra.mxu0 %v4661
    %7523 = vmatpush.bf16.msra.mxu0 %v4657
    %7524 = vmatpush.bf16.msra.mxu0 %v4653
    %7525 = vmatmul.bf16.gmra.mxu0 %v1685
    %v7526 = vpop.f32.mrf.mxu0
    %v7527 = vadd.f32 %v7478, %v7526
    %v7528 = vpop.f32.mrf.mxu0
    %v7529 = vadd.f32 %v7480, %v7528
    %7530 = vmatmul.bf16.gmra.mxu0 %v1709
    %v7531 = vpop.f32.mrf.mxu0
    %v7532 = vadd.f32 %v7483, %v7531
    %v7533 = vpop.f32.mrf.mxu0
    %v7534 = vadd.f32 %v7485, %v7533
    %7535 = vmatmul.bf16.gmra.mxu0 %v1733
    %v7536 = vpop.f32.mrf.mxu0
    %v7537 = vadd.f32 %v7488, %v7536
    %v7538 = vpop.f32.mrf.mxu0
    %v7539 = vadd.f32 %v7490, %v7538
    %7540 = vmatmul.bf16.gmra.mxu0 %v1757
    %v7541 = vpop.f32.mrf.mxu0
    %v7542 = vadd.f32 %v7493, %v7541
    %v7543 = vpop.f32.mrf.mxu0
    %v7544 = vadd.f32 %v7495, %v7543
    %7545 = vmatmul.bf16.gmra.mxu0 %v1781
    %v7546 = vpop.f32.mrf.mxu0
    %v7547 = vadd.f32 %v7498, %v7546
    %v7548 = vpop.f32.mrf.mxu0
    %v7549 = vadd.f32 %v7500, %v7548
    %7550 = vmatmul.bf16.gmra.mxu0 %v1805
    %v7551 = vpop.f32.mrf.mxu0
    %v7552 = vadd.f32 %v7503, %v7551
    %v7553 = vpop.f32.mrf.mxu0
    %v7554 = vadd.f32 %v7505, %v7553
    %7555 = vmatmul.bf16.gmra.mxu0 %v1829
    %v7556 = vpop.f32.mrf.mxu0
    %v7557 = vadd.f32 %v7508, %v7556
    %v7558 = vpop.f32.mrf.mxu0
    %v7559 = vadd.f32 %v7510, %v7558
    %7560 = vmatmul.bf16.gmra.mxu0 %v1853
    %v7561 = vpop.f32.mrf.mxu0
    %v7562 = vadd.f32 %v7513, %v7561
    %v7563 = vpop.f32.mrf.mxu0
    %v7564 = vadd.f32 %v7515, %v7563
    %7565 = vdwg.mxu0
    %7566 = vmatpush.bf16.msra.mxu0 %v4713
    %7567 = vmatpush.bf16.msra.mxu0 %v4709
    %7568 = vmatpush.bf16.msra.mxu0 %v4705
    %7569 = vmatpush.bf16.msra.mxu0 %v4701
    %7570 = vmatpush.bf16.msra.mxu0 %v4697
    %7571 = vmatpush.bf16.msra.mxu0 %v4693
    %7572 = vmatpush.bf16.msra.mxu0 %v4689
    %7573 = vmatpush.bf16.msra.mxu0 %v4685
    %7574 = vmatmul.bf16.gmra.mxu0 %v1686
    %v7575 = vpop.f32.mrf.mxu0
    %v7576 = vadd.f32 %v7527, %v7575
    %v7577 = vpop.f32.mrf.mxu0
    %v7578 = vadd.f32 %v7529, %v7577
    %7579 = vmatmul.bf16.gmra.mxu0 %v1710
    %v7580 = vpop.f32.mrf.mxu0
    %v7581 = vadd.f32 %v7532, %v7580
    %v7582 = vpop.f32.mrf.mxu0
    %v7583 = vadd.f32 %v7534, %v7582
    %7584 = vmatmul.bf16.gmra.mxu0 %v1734
    %v7585 = vpop.f32.mrf.mxu0
    %v7586 = vadd.f32 %v7537, %v7585
    %v7587 = vpop.f32.mrf.mxu0
    %v7588 = vadd.f32 %v7539, %v7587
    %7589 = vmatmul.bf16.gmra.mxu0 %v1758
    %v7590 = vpop.f32.mrf.mxu0
    %v7591 = vadd.f32 %v7542, %v7590
    %v7592 = vpop.f32.mrf.mxu0
    %v7593 = vadd.f32 %v7544, %v7592
    %7594 = vmatmul.bf16.gmra.mxu0 %v1782
    %v7595 = vpop.f32.mrf.mxu0
    %v7596 = vadd.f32 %v7547, %v7595
    %v7597 = vpop.f32.mrf.mxu0
    %v7598 = vadd.f32 %v7549, %v7597
    %7599 = vmatmul.bf16.gmra.mxu0 %v1806
    %v7600 = vpop.f32.mrf.mxu0
    %v7601 = vadd.f32 %v7552, %v7600
    %v7602 = vpop.f32.mrf.mxu0
    %v7603 = vadd.f32 %v7554, %v7602
    %7604 = vmatmul.bf16.gmra.mxu0 %v1830
    %v7605 = vpop.f32.mrf.mxu0
    %v7606 = vadd.f32 %v7557, %v7605
    %v7607 = vpop.f32.mrf.mxu0
    %v7608 = vadd.f32 %v7559, %v7607
    %7609 = vmatmul.bf16.gmra.mxu0 %v1854
    %v7610 = vpop.f32.mrf.mxu0
    %v7611 = vadd.f32 %v7562, %v7610
    %v7612 = vpop.f32.mrf.mxu0
    %v7613 = vadd.f32 %v7564, %v7612
    %7614 = vdwg.mxu0
    %7615 = vmatpush.bf16.msra.mxu0 %v4745
    %7616 = vmatpush.bf16.msra.mxu0 %v4741
    %7617 = vmatpush.bf16.msra.mxu0 %v4737
    %7618 = vmatpush.bf16.msra.mxu0 %v4733
    %7619 = vmatpush.bf16.msra.mxu0 %v4729
    %7620 = vmatpush.bf16.msra.mxu0 %v4725
    %7621 = vmatpush.bf16.msra.mxu0 %v4721
    %7622 = vmatpush.bf16.msra.mxu0 %v4717
    %7623 = vmatmul.bf16.gmra.mxu0 %v1687
    %v7624 = vpop.f32.mrf.mxu0
    %v7625 = vadd.f32 %v7576, %v7624
    %v7626 = vpop.f32.mrf.mxu0
    %v7627 = vadd.f32 %v7578, %v7626
    %7628 = vmatmul.bf16.gmra.mxu0 %v1711
    %v7629 = vpop.f32.mrf.mxu0
    %v7630 = vadd.f32 %v7581, %v7629
    %v7631 = vpop.f32.mrf.mxu0
    %v7632 = vadd.f32 %v7583, %v7631
    %7633 = vmatmul.bf16.gmra.mxu0 %v1735
    %v7634 = vpop.f32.mrf.mxu0
    %v7635 = vadd.f32 %v7586, %v7634
    %v7636 = vpop.f32.mrf.mxu0
    %v7637 = vadd.f32 %v7588, %v7636
    %7638 = vmatmul.bf16.gmra.mxu0 %v1759
    %v7639 = vpop.f32.mrf.mxu0
    %v7640 = vadd.f32 %v7591, %v7639
    %v7641 = vpop.f32.mrf.mxu0
    %v7642 = vadd.f32 %v7593, %v7641
    %7643 = vmatmul.bf16.gmra.mxu0 %v1783
    %v7644 = vpop.f32.mrf.mxu0
    %v7645 = vadd.f32 %v7596, %v7644
    %v7646 = vpop.f32.mrf.mxu0
    %v7647 = vadd.f32 %v7598, %v7646
    %7648 = vmatmul.bf16.gmra.mxu0 %v1807
    %v7649 = vpop.f32.mrf.mxu0
    %v7650 = vadd.f32 %v7601, %v7649
    %v7651 = vpop.f32.mrf.mxu0
    %v7652 = vadd.f32 %v7603, %v7651
    %7653 = vmatmul.bf16.gmra.mxu0 %v1831
    %v7654 = vpop.f32.mrf.mxu0
    %v7655 = vadd.f32 %v7606, %v7654
    %v7656 = vpop.f32.mrf.mxu0
    %v7657 = vadd.f32 %v7608, %v7656
    %7658 = vmatmul.bf16.gmra.mxu0 %v1855
    %v7659 = vpop.f32.mrf.mxu0
    %v7660 = vadd.f32 %v7611, %v7659
    %v7661 = vpop.f32.mrf.mxu0
    %v7662 = vadd.f32 %v7613, %v7661
    %7663 = vdwg.mxu0
    %7664 = vmatpush.bf16.msra.mxu0 %v4777
    %7665 = vmatpush.bf16.msra.mxu0 %v4773
    %7666 = vmatpush.bf16.msra.mxu0 %v4769
    %7667 = vmatpush.bf16.msra.mxu0 %v4765
    %7668 = vmatpush.bf16.msra.mxu0 %v4761
    %7669 = vmatpush.bf16.msra.mxu0 %v4757
    %7670 = vmatpush.bf16.msra.mxu0 %v4753
    %7671 = vmatpush.bf16.msra.mxu0 %v4749
    %7672 = vmatmul.bf16.gmra.mxu0 %v1688
    %v7673 = vpop.f32.mrf.mxu0
    %v7674 = vadd.f32 %v7625, %v7673
    %v7675 = vpop.f32.mrf.mxu0
    %v7676 = vadd.f32 %v7627, %v7675
    %7677 = vmatmul.bf16.gmra.mxu0 %v1712
    %v7678 = vpop.f32.mrf.mxu0
    %v7679 = vadd.f32 %v7630, %v7678
    %v7680 = vpop.f32.mrf.mxu0
    %v7681 = vadd.f32 %v7632, %v7680
    %7682 = vmatmul.bf16.gmra.mxu0 %v1736
    %v7683 = vpop.f32.mrf.mxu0
    %v7684 = vadd.f32 %v7635, %v7683
    %v7685 = vpop.f32.mrf.mxu0
    %v7686 = vadd.f32 %v7637, %v7685
    %7687 = vmatmul.bf16.gmra.mxu0 %v1760
    %v7688 = vpop.f32.mrf.mxu0
    %v7689 = vadd.f32 %v7640, %v7688
    %v7690 = vpop.f32.mrf.mxu0
    %v7691 = vadd.f32 %v7642, %v7690
    %7692 = vmatmul.bf16.gmra.mxu0 %v1784
    %v7693 = vpop.f32.mrf.mxu0
    %v7694 = vadd.f32 %v7645, %v7693
    %v7695 = vpop.f32.mrf.mxu0
    %v7696 = vadd.f32 %v7647, %v7695
    %7697 = vmatmul.bf16.gmra.mxu0 %v1808
    %v7698 = vpop.f32.mrf.mxu0
    %v7699 = vadd.f32 %v7650, %v7698
    %v7700 = vpop.f32.mrf.mxu0
    %v7701 = vadd.f32 %v7652, %v7700
    %7702 = vmatmul.bf16.gmra.mxu0 %v1832
    %v7703 = vpop.f32.mrf.mxu0
    %v7704 = vadd.f32 %v7655, %v7703
    %v7705 = vpop.f32.mrf.mxu0
    %v7706 = vadd.f32 %v7657, %v7705
    %7707 = vmatmul.bf16.gmra.mxu0 %v1856
    %v7708 = vpop.f32.mrf.mxu0
    %v7709 = vadd.f32 %v7660, %v7708
    %v7710 = vpop.f32.mrf.mxu0
    %v7711 = vadd.f32 %v7662, %v7710
    %7712 = vdwg.mxu0
    %7713 = vmatpush.bf16.msra.mxu0 %v4809
    %7714 = vmatpush.bf16.msra.mxu0 %v4805
    %7715 = vmatpush.bf16.msra.mxu0 %v4801
    %7716 = vmatpush.bf16.msra.mxu0 %v4797
    %7717 = vmatpush.bf16.msra.mxu0 %v4793
    %7718 = vmatpush.bf16.msra.mxu0 %v4789
    %7719 = vmatpush.bf16.msra.mxu0 %v4785
    %7720 = vmatpush.bf16.msra.mxu0 %v4781
    %7721 = vmatmul.bf16.gmra.mxu0 %v1689
    %v7722 = vpop.f32.mrf.mxu0
    %v7723 = vadd.f32 %v7674, %v7722
    %v7724 = vpop.f32.mrf.mxu0
    %v7725 = vadd.f32 %v7676, %v7724
    %7726 = vmatmul.bf16.gmra.mxu0 %v1713
    %v7727 = vpop.f32.mrf.mxu0
    %v7728 = vadd.f32 %v7679, %v7727
    %v7729 = vpop.f32.mrf.mxu0
    %v7730 = vadd.f32 %v7681, %v7729
    %7731 = vmatmul.bf16.gmra.mxu0 %v1737
    %v7732 = vpop.f32.mrf.mxu0
    %v7733 = vadd.f32 %v7684, %v7732
    %v7734 = vpop.f32.mrf.mxu0
    %v7735 = vadd.f32 %v7686, %v7734
    %7736 = vmatmul.bf16.gmra.mxu0 %v1761
    %v7737 = vpop.f32.mrf.mxu0
    %v7738 = vadd.f32 %v7689, %v7737
    %v7739 = vpop.f32.mrf.mxu0
    %v7740 = vadd.f32 %v7691, %v7739
    %7741 = vmatmul.bf16.gmra.mxu0 %v1785
    %v7742 = vpop.f32.mrf.mxu0
    %v7743 = vadd.f32 %v7694, %v7742
    %v7744 = vpop.f32.mrf.mxu0
    %v7745 = vadd.f32 %v7696, %v7744
    %7746 = vmatmul.bf16.gmra.mxu0 %v1809
    %v7747 = vpop.f32.mrf.mxu0
    %v7748 = vadd.f32 %v7699, %v7747
    %v7749 = vpop.f32.mrf.mxu0
    %v7750 = vadd.f32 %v7701, %v7749
    %7751 = vmatmul.bf16.gmra.mxu0 %v1833
    %v7752 = vpop.f32.mrf.mxu0
    %v7753 = vadd.f32 %v7704, %v7752
    %v7754 = vpop.f32.mrf.mxu0
    %v7755 = vadd.f32 %v7706, %v7754
    %7756 = vmatmul.bf16.gmra.mxu0 %v1857
    %v7757 = vpop.f32.mrf.mxu0
    %v7758 = vadd.f32 %v7709, %v7757
    %v7759 = vpop.f32.mrf.mxu0
    %v7760 = vadd.f32 %v7711, %v7759
    %7761 = vdwg.mxu0
    %7762 = vmatpush.bf16.msra.mxu0 %v4841
    %7763 = vmatpush.bf16.msra.mxu0 %v4837
    %7764 = vmatpush.bf16.msra.mxu0 %v4833
    %7765 = vmatpush.bf16.msra.mxu0 %v4829
    %7766 = vmatpush.bf16.msra.mxu0 %v4825
    %7767 = vmatpush.bf16.msra.mxu0 %v4821
    %7768 = vmatpush.bf16.msra.mxu0 %v4817
    %7769 = vmatpush.bf16.msra.mxu0 %v4813
    %7770 = vmatmul.bf16.gmra.mxu0 %v1690
    %v7771 = vpop.f32.mrf.mxu0
    %v7772 = vadd.f32 %v7723, %v7771
    %v7773 = vpop.f32.mrf.mxu0
    %v7774 = vadd.f32 %v7725, %v7773
    %7775 = vmatmul.bf16.gmra.mxu0 %v1714
    %v7776 = vpop.f32.mrf.mxu0
    %v7777 = vadd.f32 %v7728, %v7776
    %v7778 = vpop.f32.mrf.mxu0
    %v7779 = vadd.f32 %v7730, %v7778
    %7780 = vmatmul.bf16.gmra.mxu0 %v1738
    %v7781 = vpop.f32.mrf.mxu0
    %v7782 = vadd.f32 %v7733, %v7781
    %v7783 = vpop.f32.mrf.mxu0
    %v7784 = vadd.f32 %v7735, %v7783
    %7785 = vmatmul.bf16.gmra.mxu0 %v1762
    %v7786 = vpop.f32.mrf.mxu0
    %v7787 = vadd.f32 %v7738, %v7786
    %v7788 = vpop.f32.mrf.mxu0
    %v7789 = vadd.f32 %v7740, %v7788
    %7790 = vmatmul.bf16.gmra.mxu0 %v1786
    %v7791 = vpop.f32.mrf.mxu0
    %v7792 = vadd.f32 %v7743, %v7791
    %v7793 = vpop.f32.mrf.mxu0
    %v7794 = vadd.f32 %v7745, %v7793
    %7795 = vmatmul.bf16.gmra.mxu0 %v1810
    %v7796 = vpop.f32.mrf.mxu0
    %v7797 = vadd.f32 %v7748, %v7796
    %v7798 = vpop.f32.mrf.mxu0
    %v7799 = vadd.f32 %v7750, %v7798
    %7800 = vmatmul.bf16.gmra.mxu0 %v1834
    %v7801 = vpop.f32.mrf.mxu0
    %v7802 = vadd.f32 %v7753, %v7801
    %v7803 = vpop.f32.mrf.mxu0
    %v7804 = vadd.f32 %v7755, %v7803
    %7805 = vmatmul.bf16.gmra.mxu0 %v1858
    %v7806 = vpop.f32.mrf.mxu0
    %v7807 = vadd.f32 %v7758, %v7806
    %v7808 = vpop.f32.mrf.mxu0
    %v7809 = vadd.f32 %v7760, %v7808
    %7810 = vdwg.mxu0
    %7811 = vmatpush.bf16.msra.mxu0 %v4873
    %7812 = vmatpush.bf16.msra.mxu0 %v4869
    %7813 = vmatpush.bf16.msra.mxu0 %v4865
    %7814 = vmatpush.bf16.msra.mxu0 %v4861
    %7815 = vmatpush.bf16.msra.mxu0 %v4857
    %7816 = vmatpush.bf16.msra.mxu0 %v4853
    %7817 = vmatpush.bf16.msra.mxu0 %v4849
    %7818 = vmatpush.bf16.msra.mxu0 %v4845
    %7819 = vmatmul.bf16.gmra.mxu0 %v1691
    %v7820 = vpop.f32.mrf.mxu0
    %v7821 = vadd.f32 %v7772, %v7820
    %v7822 = vpop.f32.mrf.mxu0
    %v7823 = vadd.f32 %v7774, %v7822
    %7824 = vmatmul.bf16.gmra.mxu0 %v1715
    %v7825 = vpop.f32.mrf.mxu0
    %v7826 = vadd.f32 %v7777, %v7825
    %v7827 = vpop.f32.mrf.mxu0
    %v7828 = vadd.f32 %v7779, %v7827
    %7829 = vmatmul.bf16.gmra.mxu0 %v1739
    %v7830 = vpop.f32.mrf.mxu0
    %v7831 = vadd.f32 %v7782, %v7830
    %v7832 = vpop.f32.mrf.mxu0
    %v7833 = vadd.f32 %v7784, %v7832
    %7834 = vmatmul.bf16.gmra.mxu0 %v1763
    %v7835 = vpop.f32.mrf.mxu0
    %v7836 = vadd.f32 %v7787, %v7835
    %v7837 = vpop.f32.mrf.mxu0
    %v7838 = vadd.f32 %v7789, %v7837
    %7839 = vmatmul.bf16.gmra.mxu0 %v1787
    %v7840 = vpop.f32.mrf.mxu0
    %v7841 = vadd.f32 %v7792, %v7840
    %v7842 = vpop.f32.mrf.mxu0
    %v7843 = vadd.f32 %v7794, %v7842
    %7844 = vmatmul.bf16.gmra.mxu0 %v1811
    %v7845 = vpop.f32.mrf.mxu0
    %v7846 = vadd.f32 %v7797, %v7845
    %v7847 = vpop.f32.mrf.mxu0
    %v7848 = vadd.f32 %v7799, %v7847
    %7849 = vmatmul.bf16.gmra.mxu0 %v1835
    %v7850 = vpop.f32.mrf.mxu0
    %v7851 = vadd.f32 %v7802, %v7850
    %v7852 = vpop.f32.mrf.mxu0
    %v7853 = vadd.f32 %v7804, %v7852
    %7854 = vmatmul.bf16.gmra.mxu0 %v1859
    %v7855 = vpop.f32.mrf.mxu0
    %v7856 = vadd.f32 %v7807, %v7855
    %v7857 = vpop.f32.mrf.mxu0
    %v7858 = vadd.f32 %v7809, %v7857
    %7859 = vdwg.mxu0
    %7860 = vmatpush.bf16.msra.mxu0 %v4905
    %7861 = vmatpush.bf16.msra.mxu0 %v4901
    %7862 = vmatpush.bf16.msra.mxu0 %v4897
    %7863 = vmatpush.bf16.msra.mxu0 %v4893
    %7864 = vmatpush.bf16.msra.mxu0 %v4889
    %7865 = vmatpush.bf16.msra.mxu0 %v4885
    %7866 = vmatpush.bf16.msra.mxu0 %v4881
    %7867 = vmatpush.bf16.msra.mxu0 %v4877
    %7868 = vmatmul.bf16.gmra.mxu0 %v1692
    %v7869 = vpop.f32.mrf.mxu0
    %v7870 = vadd.f32 %v7821, %v7869
    %v7871 = vpop.f32.mrf.mxu0
    %v7872 = vadd.f32 %v7823, %v7871
    %7873 = vmatmul.bf16.gmra.mxu0 %v1716
    %v7874 = vpop.f32.mrf.mxu0
    %v7875 = vadd.f32 %v7826, %v7874
    %v7876 = vpop.f32.mrf.mxu0
    %v7877 = vadd.f32 %v7828, %v7876
    %7878 = vmatmul.bf16.gmra.mxu0 %v1740
    %v7879 = vpop.f32.mrf.mxu0
    %v7880 = vadd.f32 %v7831, %v7879
    %v7881 = vpop.f32.mrf.mxu0
    %v7882 = vadd.f32 %v7833, %v7881
    %7883 = vmatmul.bf16.gmra.mxu0 %v1764
    %v7884 = vpop.f32.mrf.mxu0
    %v7885 = vadd.f32 %v7836, %v7884
    %v7886 = vpop.f32.mrf.mxu0
    %v7887 = vadd.f32 %v7838, %v7886
    %7888 = vmatmul.bf16.gmra.mxu0 %v1788
    %v7889 = vpop.f32.mrf.mxu0
    %v7890 = vadd.f32 %v7841, %v7889
    %v7891 = vpop.f32.mrf.mxu0
    %v7892 = vadd.f32 %v7843, %v7891
    %7893 = vmatmul.bf16.gmra.mxu0 %v1812
    %v7894 = vpop.f32.mrf.mxu0
    %v7895 = vadd.f32 %v7846, %v7894
    %v7896 = vpop.f32.mrf.mxu0
    %v7897 = vadd.f32 %v7848, %v7896
    %7898 = vmatmul.bf16.gmra.mxu0 %v1836
    %v7899 = vpop.f32.mrf.mxu0
    %v7900 = vadd.f32 %v7851, %v7899
    %v7901 = vpop.f32.mrf.mxu0
    %v7902 = vadd.f32 %v7853, %v7901
    %7903 = vmatmul.bf16.gmra.mxu0 %v1860
    %v7904 = vpop.f32.mrf.mxu0
    %v7905 = vadd.f32 %v7856, %v7904
    %v7906 = vpop.f32.mrf.mxu0
    %v7907 = vadd.f32 %v7858, %v7906
    %7908 = vdwg.mxu0
    %7909 = vmatpush.bf16.msra.mxu0 %v4937
    %7910 = vmatpush.bf16.msra.mxu0 %v4933
    %7911 = vmatpush.bf16.msra.mxu0 %v4929
    %7912 = vmatpush.bf16.msra.mxu0 %v4925
    %7913 = vmatpush.bf16.msra.mxu0 %v4921
    %7914 = vmatpush.bf16.msra.mxu0 %v4917
    %7915 = vmatpush.bf16.msra.mxu0 %v4913
    %7916 = vmatpush.bf16.msra.mxu0 %v4909
    %7917 = vmatmul.bf16.gmra.mxu0 %v1693
    %v7918 = vpop.f32.mrf.mxu0
    %v7919 = vadd.f32 %v7870, %v7918
    %v7920 = vpop.f32.mrf.mxu0
    %v7921 = vadd.f32 %v7872, %v7920
    %7922 = vmatmul.bf16.gmra.mxu0 %v1717
    %v7923 = vpop.f32.mrf.mxu0
    %v7924 = vadd.f32 %v7875, %v7923
    %v7925 = vpop.f32.mrf.mxu0
    %v7926 = vadd.f32 %v7877, %v7925
    %7927 = vmatmul.bf16.gmra.mxu0 %v1741
    %v7928 = vpop.f32.mrf.mxu0
    %v7929 = vadd.f32 %v7880, %v7928
    %v7930 = vpop.f32.mrf.mxu0
    %v7931 = vadd.f32 %v7882, %v7930
    %7932 = vmatmul.bf16.gmra.mxu0 %v1765
    %v7933 = vpop.f32.mrf.mxu0
    %v7934 = vadd.f32 %v7885, %v7933
    %v7935 = vpop.f32.mrf.mxu0
    %v7936 = vadd.f32 %v7887, %v7935
    %7937 = vmatmul.bf16.gmra.mxu0 %v1789
    %v7938 = vpop.f32.mrf.mxu0
    %v7939 = vadd.f32 %v7890, %v7938
    %v7940 = vpop.f32.mrf.mxu0
    %v7941 = vadd.f32 %v7892, %v7940
    %7942 = vmatmul.bf16.gmra.mxu0 %v1813
    %v7943 = vpop.f32.mrf.mxu0
    %v7944 = vadd.f32 %v7895, %v7943
    %v7945 = vpop.f32.mrf.mxu0
    %v7946 = vadd.f32 %v7897, %v7945
    %7947 = vmatmul.bf16.gmra.mxu0 %v1837
    %v7948 = vpop.f32.mrf.mxu0
    %v7949 = vadd.f32 %v7900, %v7948
    %v7950 = vpop.f32.mrf.mxu0
    %v7951 = vadd.f32 %v7902, %v7950
    %7952 = vmatmul.bf16.gmra.mxu0 %v1861
    %v7953 = vpop.f32.mrf.mxu0
    %v7954 = vadd.f32 %v7905, %v7953
    %v7955 = vpop.f32.mrf.mxu0
    %v7956 = vadd.f32 %v7907, %v7955
    %7957 = vdwg.mxu0
    %7958 = vmatpush.bf16.msra.mxu0 %v4969
    %7959 = vmatpush.bf16.msra.mxu0 %v4965
    %7960 = vmatpush.bf16.msra.mxu0 %v4961
    %7961 = vmatpush.bf16.msra.mxu0 %v4957
    %7962 = vmatpush.bf16.msra.mxu0 %v4953
    %7963 = vmatpush.bf16.msra.mxu0 %v4949
    %7964 = vmatpush.bf16.msra.mxu0 %v4945
    %7965 = vmatpush.bf16.msra.mxu0 %v4941
    %7966 = vmatmul.bf16.gmra.mxu0 %v1694
    %v7967 = vpop.f32.mrf.mxu0
    %v7968 = vadd.f32 %v7919, %v7967
    %v7969 = vpop.f32.mrf.mxu0
    %v7970 = vadd.f32 %v7921, %v7969
    %7971 = vmatmul.bf16.gmra.mxu0 %v1718
    %v7972 = vpop.f32.mrf.mxu0
    %v7973 = vadd.f32 %v7924, %v7972
    %v7974 = vpop.f32.mrf.mxu0
    %v7975 = vadd.f32 %v7926, %v7974
    %7976 = vmatmul.bf16.gmra.mxu0 %v1742
    %v7977 = vpop.f32.mrf.mxu0
    %v7978 = vadd.f32 %v7929, %v7977
    %v7979 = vpop.f32.mrf.mxu0
    %v7980 = vadd.f32 %v7931, %v7979
    %7981 = vmatmul.bf16.gmra.mxu0 %v1766
    %v7982 = vpop.f32.mrf.mxu0
    %v7983 = vadd.f32 %v7934, %v7982
    %v7984 = vpop.f32.mrf.mxu0
    %v7985 = vadd.f32 %v7936, %v7984
    %7986 = vmatmul.bf16.gmra.mxu0 %v1790
    %v7987 = vpop.f32.mrf.mxu0
    %v7988 = vadd.f32 %v7939, %v7987
    %v7989 = vpop.f32.mrf.mxu0
    %v7990 = vadd.f32 %v7941, %v7989
    %7991 = vmatmul.bf16.gmra.mxu0 %v1814
    %v7992 = vpop.f32.mrf.mxu0
    %v7993 = vadd.f32 %v7944, %v7992
    %v7994 = vpop.f32.mrf.mxu0
    %v7995 = vadd.f32 %v7946, %v7994
    %7996 = vmatmul.bf16.gmra.mxu0 %v1838
    %v7997 = vpop.f32.mrf.mxu0
    %v7998 = vadd.f32 %v7949, %v7997
    %v7999 = vpop.f32.mrf.mxu0
    %v8000 = vadd.f32 %v7951, %v7999
    %8001 = vmatmul.bf16.gmra.mxu0 %v1862
    %v8002 = vpop.f32.mrf.mxu0
    %v8003 = vadd.f32 %v7954, %v8002
    %v8004 = vpop.f32.mrf.mxu0
    %v8005 = vadd.f32 %v7956, %v8004
    %8006 = vdwg.mxu0
    %8007 = vmatpush.bf16.msra.mxu0 %v5001
    %8008 = vmatpush.bf16.msra.mxu0 %v4997
    %8009 = vmatpush.bf16.msra.mxu0 %v4993
    %8010 = vmatpush.bf16.msra.mxu0 %v4989
    %8011 = vmatpush.bf16.msra.mxu0 %v4985
    %8012 = vmatpush.bf16.msra.mxu0 %v4981
    %8013 = vmatpush.bf16.msra.mxu0 %v4977
    %8014 = vmatpush.bf16.msra.mxu0 %v4973
    %8015 = vmatmul.bf16.gmra.mxu0 %v1695
    %v8016 = vpop.f32.mrf.mxu0
    %v8017 = vadd.f32 %v7968, %v8016
    %v8018 = vpop.f32.mrf.mxu0
    %v8019 = vadd.f32 %v7970, %v8018
    %8020 = vmatmul.bf16.gmra.mxu0 %v1719
    %v8021 = vpop.f32.mrf.mxu0
    %v8022 = vadd.f32 %v7973, %v8021
    %v8023 = vpop.f32.mrf.mxu0
    %v8024 = vadd.f32 %v7975, %v8023
    %8025 = vmatmul.bf16.gmra.mxu0 %v1743
    %v8026 = vpop.f32.mrf.mxu0
    %v8027 = vadd.f32 %v7978, %v8026
    %v8028 = vpop.f32.mrf.mxu0
    %v8029 = vadd.f32 %v7980, %v8028
    %8030 = vmatmul.bf16.gmra.mxu0 %v1767
    %v8031 = vpop.f32.mrf.mxu0
    %v8032 = vadd.f32 %v7983, %v8031
    %v8033 = vpop.f32.mrf.mxu0
    %v8034 = vadd.f32 %v7985, %v8033
    %8035 = vmatmul.bf16.gmra.mxu0 %v1791
    %v8036 = vpop.f32.mrf.mxu0
    %v8037 = vadd.f32 %v7988, %v8036
    %v8038 = vpop.f32.mrf.mxu0
    %v8039 = vadd.f32 %v7990, %v8038
    %8040 = vmatmul.bf16.gmra.mxu0 %v1815
    %v8041 = vpop.f32.mrf.mxu0
    %v8042 = vadd.f32 %v7993, %v8041
    %v8043 = vpop.f32.mrf.mxu0
    %v8044 = vadd.f32 %v7995, %v8043
    %8045 = vmatmul.bf16.gmra.mxu0 %v1839
    %v8046 = vpop.f32.mrf.mxu0
    %v8047 = vadd.f32 %v7998, %v8046
    %v8048 = vpop.f32.mrf.mxu0
    %v8049 = vadd.f32 %v8000, %v8048
    %8050 = vmatmul.bf16.gmra.mxu0 %v1863
    %v8051 = vpop.f32.mrf.mxu0
    %v8052 = vadd.f32 %v8003, %v8051
    %v8053 = vpop.f32.mrf.mxu0
    %v8054 = vadd.f32 %v8005, %v8053
    %8055 = vdwg.mxu0
    %8056 = vmatpush.bf16.msra.mxu0 %v5033
    %8057 = vmatpush.bf16.msra.mxu0 %v5029
    %8058 = vmatpush.bf16.msra.mxu0 %v5025
    %8059 = vmatpush.bf16.msra.mxu0 %v5021
    %8060 = vmatpush.bf16.msra.mxu0 %v5017
    %8061 = vmatpush.bf16.msra.mxu0 %v5013
    %8062 = vmatpush.bf16.msra.mxu0 %v5009
    %8063 = vmatpush.bf16.msra.mxu0 %v5005
    %8064 = vmatmul.bf16.gmra.mxu0 %v1696
    %v8065 = vpop.f32.mrf.mxu0
    %v8066 = vadd.f32 %v8017, %v8065
    %v8067 = vpop.f32.mrf.mxu0
    %v8068 = vadd.f32 %v8019, %v8067
    %8069 = vmatmul.bf16.gmra.mxu0 %v1720
    %v8070 = vpop.f32.mrf.mxu0
    %v8071 = vadd.f32 %v8022, %v8070
    %v8072 = vpop.f32.mrf.mxu0
    %v8073 = vadd.f32 %v8024, %v8072
    %8074 = vmatmul.bf16.gmra.mxu0 %v1744
    %v8075 = vpop.f32.mrf.mxu0
    %v8076 = vadd.f32 %v8027, %v8075
    %v8077 = vpop.f32.mrf.mxu0
    %v8078 = vadd.f32 %v8029, %v8077
    %8079 = vmatmul.bf16.gmra.mxu0 %v1768
    %v8080 = vpop.f32.mrf.mxu0
    %v8081 = vadd.f32 %v8032, %v8080
    %v8082 = vpop.f32.mrf.mxu0
    %v8083 = vadd.f32 %v8034, %v8082
    %8084 = vmatmul.bf16.gmra.mxu0 %v1792
    %v8085 = vpop.f32.mrf.mxu0
    %v8086 = vadd.f32 %v8037, %v8085
    %v8087 = vpop.f32.mrf.mxu0
    %v8088 = vadd.f32 %v8039, %v8087
    %8089 = vmatmul.bf16.gmra.mxu0 %v1816
    %v8090 = vpop.f32.mrf.mxu0
    %v8091 = vadd.f32 %v8042, %v8090
    %v8092 = vpop.f32.mrf.mxu0
    %v8093 = vadd.f32 %v8044, %v8092
    %8094 = vmatmul.bf16.gmra.mxu0 %v1840
    %v8095 = vpop.f32.mrf.mxu0
    %v8096 = vadd.f32 %v8047, %v8095
    %v8097 = vpop.f32.mrf.mxu0
    %v8098 = vadd.f32 %v8049, %v8097
    %8099 = vmatmul.bf16.gmra.mxu0 %v1864
    %v8100 = vpop.f32.mrf.mxu0
    %v8101 = vadd.f32 %v8052, %v8100
    %v8102 = vpop.f32.mrf.mxu0
    %v8103 = vadd.f32 %v8054, %v8102
    %8104 = vdwg.mxu0
    %8105 = vmatpush.bf16.msra.mxu0 %v5065
    %8106 = vmatpush.bf16.msra.mxu0 %v5061
    %8107 = vmatpush.bf16.msra.mxu0 %v5057
    %8108 = vmatpush.bf16.msra.mxu0 %v5053
    %8109 = vmatpush.bf16.msra.mxu0 %v5049
    %8110 = vmatpush.bf16.msra.mxu0 %v5045
    %8111 = vmatpush.bf16.msra.mxu0 %v5041
    %8112 = vmatpush.bf16.msra.mxu0 %v5037
    %8113 = vmatmul.bf16.gmra.mxu0 %v1697
    %v8114 = vpop.f32.mrf.mxu0
    %v8115 = vadd.f32 %v8066, %v8114
    %v8116 = vpop.f32.mrf.mxu0
    %v8117 = vadd.f32 %v8068, %v8116
    %8118 = vmatmul.bf16.gmra.mxu0 %v1721
    %v8119 = vpop.f32.mrf.mxu0
    %v8120 = vadd.f32 %v8071, %v8119
    %v8121 = vpop.f32.mrf.mxu0
    %v8122 = vadd.f32 %v8073, %v8121
    %8123 = vmatmul.bf16.gmra.mxu0 %v1745
    %v8124 = vpop.f32.mrf.mxu0
    %v8125 = vadd.f32 %v8076, %v8124
    %v8126 = vpop.f32.mrf.mxu0
    %v8127 = vadd.f32 %v8078, %v8126
    %8128 = vmatmul.bf16.gmra.mxu0 %v1769
    %v8129 = vpop.f32.mrf.mxu0
    %v8130 = vadd.f32 %v8081, %v8129
    %v8131 = vpop.f32.mrf.mxu0
    %v8132 = vadd.f32 %v8083, %v8131
    %8133 = vmatmul.bf16.gmra.mxu0 %v1793
    %v8134 = vpop.f32.mrf.mxu0
    %v8135 = vadd.f32 %v8086, %v8134
    %v8136 = vpop.f32.mrf.mxu0
    %v8137 = vadd.f32 %v8088, %v8136
    %8138 = vmatmul.bf16.gmra.mxu0 %v1817
    %v8139 = vpop.f32.mrf.mxu0
    %v8140 = vadd.f32 %v8091, %v8139
    %v8141 = vpop.f32.mrf.mxu0
    %v8142 = vadd.f32 %v8093, %v8141
    %8143 = vmatmul.bf16.gmra.mxu0 %v1841
    %v8144 = vpop.f32.mrf.mxu0
    %v8145 = vadd.f32 %v8096, %v8144
    %v8146 = vpop.f32.mrf.mxu0
    %v8147 = vadd.f32 %v8098, %v8146
    %8148 = vmatmul.bf16.gmra.mxu0 %v1865
    %v8149 = vpop.f32.mrf.mxu0
    %v8150 = vadd.f32 %v8101, %v8149
    %v8151 = vpop.f32.mrf.mxu0
    %v8152 = vadd.f32 %v8103, %v8151
    %8153 = vdwg.mxu0
    %8154 = vmatpush.bf16.msra.mxu0 %v5097
    %8155 = vmatpush.bf16.msra.mxu0 %v5093
    %8156 = vmatpush.bf16.msra.mxu0 %v5089
    %8157 = vmatpush.bf16.msra.mxu0 %v5085
    %8158 = vmatpush.bf16.msra.mxu0 %v5081
    %8159 = vmatpush.bf16.msra.mxu0 %v5077
    %8160 = vmatpush.bf16.msra.mxu0 %v5073
    %8161 = vmatpush.bf16.msra.mxu0 %v5069
    %8162 = vmatmul.bf16.gmra.mxu0 %v1698
    %v8163 = vpop.f32.mrf.mxu0
    %v8164 = vadd.f32 %v8115, %v8163
    %v8165 = vpop.f32.mrf.mxu0
    %v8166 = vadd.f32 %v8117, %v8165
    %8167 = vmatmul.bf16.gmra.mxu0 %v1722
    %v8168 = vpop.f32.mrf.mxu0
    %v8169 = vadd.f32 %v8120, %v8168
    %v8170 = vpop.f32.mrf.mxu0
    %v8171 = vadd.f32 %v8122, %v8170
    %8172 = vmatmul.bf16.gmra.mxu0 %v1746
    %v8173 = vpop.f32.mrf.mxu0
    %v8174 = vadd.f32 %v8125, %v8173
    %v8175 = vpop.f32.mrf.mxu0
    %v8176 = vadd.f32 %v8127, %v8175
    %8177 = vmatmul.bf16.gmra.mxu0 %v1770
    %v8178 = vpop.f32.mrf.mxu0
    %v8179 = vadd.f32 %v8130, %v8178
    %v8180 = vpop.f32.mrf.mxu0
    %v8181 = vadd.f32 %v8132, %v8180
    %8182 = vmatmul.bf16.gmra.mxu0 %v1794
    %v8183 = vpop.f32.mrf.mxu0
    %v8184 = vadd.f32 %v8135, %v8183
    %v8185 = vpop.f32.mrf.mxu0
    %v8186 = vadd.f32 %v8137, %v8185
    %8187 = vmatmul.bf16.gmra.mxu0 %v1818
    %v8188 = vpop.f32.mrf.mxu0
    %v8189 = vadd.f32 %v8140, %v8188
    %v8190 = vpop.f32.mrf.mxu0
    %v8191 = vadd.f32 %v8142, %v8190
    %8192 = vmatmul.bf16.gmra.mxu0 %v1842
    %v8193 = vpop.f32.mrf.mxu0
    %v8194 = vadd.f32 %v8145, %v8193
    %v8195 = vpop.f32.mrf.mxu0
    %v8196 = vadd.f32 %v8147, %v8195
    %8197 = vmatmul.bf16.gmra.mxu0 %v1866
    %v8198 = vpop.f32.mrf.mxu0
    %v8199 = vadd.f32 %v8150, %v8198
    %v8200 = vpop.f32.mrf.mxu0
    %v8201 = vadd.f32 %v8152, %v8200
    %8202 = vdwg.mxu0
    %8203 = vmatpush.bf16.msra.mxu0 %v5129
    %8204 = vmatpush.bf16.msra.mxu0 %v5125
    %8205 = vmatpush.bf16.msra.mxu0 %v5121
    %8206 = vmatpush.bf16.msra.mxu0 %v5117
    %8207 = vmatpush.bf16.msra.mxu0 %v5113
    %8208 = vmatpush.bf16.msra.mxu0 %v5109
    %8209 = vmatpush.bf16.msra.mxu0 %v5105
    %8210 = vmatpush.bf16.msra.mxu0 %v5101
    %8211 = vmatmul.bf16.gmra.mxu0 %v1699
    %v8212 = vpop.f32.mrf.mxu0
    %v8213 = vadd.f32 %v8164, %v8212
    %v8214 = vpop.f32.mrf.mxu0
    %v8215 = vadd.f32 %v8166, %v8214
    %8216 = vmatmul.bf16.gmra.mxu0 %v1723
    %v8217 = vpop.f32.mrf.mxu0
    %v8218 = vadd.f32 %v8169, %v8217
    %v8219 = vpop.f32.mrf.mxu0
    %v8220 = vadd.f32 %v8171, %v8219
    %8221 = vmatmul.bf16.gmra.mxu0 %v1747
    %v8222 = vpop.f32.mrf.mxu0
    %v8223 = vadd.f32 %v8174, %v8222
    %v8224 = vpop.f32.mrf.mxu0
    %v8225 = vadd.f32 %v8176, %v8224
    %8226 = vmatmul.bf16.gmra.mxu0 %v1771
    %v8227 = vpop.f32.mrf.mxu0
    %v8228 = vadd.f32 %v8179, %v8227
    %v8229 = vpop.f32.mrf.mxu0
    %v8230 = vadd.f32 %v8181, %v8229
    %8231 = vmatmul.bf16.gmra.mxu0 %v1795
    %v8232 = vpop.f32.mrf.mxu0
    %v8233 = vadd.f32 %v8184, %v8232
    %v8234 = vpop.f32.mrf.mxu0
    %v8235 = vadd.f32 %v8186, %v8234
    %8236 = vmatmul.bf16.gmra.mxu0 %v1819
    %v8237 = vpop.f32.mrf.mxu0
    %v8238 = vadd.f32 %v8189, %v8237
    %v8239 = vpop.f32.mrf.mxu0
    %v8240 = vadd.f32 %v8191, %v8239
    %8241 = vmatmul.bf16.gmra.mxu0 %v1843
    %v8242 = vpop.f32.mrf.mxu0
    %v8243 = vadd.f32 %v8194, %v8242
    %v8244 = vpop.f32.mrf.mxu0
    %v8245 = vadd.f32 %v8196, %v8244
    %8246 = vmatmul.bf16.gmra.mxu0 %v1867
    %v8247 = vpop.f32.mrf.mxu0
    %v8248 = vadd.f32 %v8199, %v8247
    %v8249 = vpop.f32.mrf.mxu0
    %v8250 = vadd.f32 %v8201, %v8249
    %8251 = vdwg.mxu0
    %8252 = vmatpush.bf16.msra.mxu0 %v4394
    %8253 = vmatpush.bf16.msra.mxu0 %v4390
    %8254 = vmatpush.bf16.msra.mxu0 %v4386
    %8255 = vmatpush.bf16.msra.mxu0 %v4382
    %8256 = vmatpush.bf16.msra.mxu0 %v4378
    %8257 = vmatpush.bf16.msra.mxu0 %v4374
    %8258 = vmatpush.bf16.msra.mxu0 %v4370
    %8259 = vmatpush.bf16.msra.mxu0 %v4366
    %8260 = vmatmul.bf16.gmra.mxu0 %v1676
    %v8261 = vpop.f32.mrf.mxu0
    %v8262 = vadd.f32 %v1094, %v8261
    %v8263 = vpop.f32.mrf.mxu0
    %v8264 = vadd.f32 %v1094, %v8263
    %8265 = vmatmul.bf16.gmra.mxu0 %v1700
    %v8266 = vpop.f32.mrf.mxu0
    %v8267 = vadd.f32 %v1094, %v8266
    %v8268 = vpop.f32.mrf.mxu0
    %v8269 = vadd.f32 %v1094, %v8268
    %8270 = vmatmul.bf16.gmra.mxu0 %v1724
    %v8271 = vpop.f32.mrf.mxu0
    %v8272 = vadd.f32 %v1094, %v8271
    %v8273 = vpop.f32.mrf.mxu0
    %v8274 = vadd.f32 %v1094, %v8273
    %8275 = vmatmul.bf16.gmra.mxu0 %v1748
    %v8276 = vpop.f32.mrf.mxu0
    %v8277 = vadd.f32 %v1094, %v8276
    %v8278 = vpop.f32.mrf.mxu0
    %v8279 = vadd.f32 %v1094, %v8278
    %8280 = vmatmul.bf16.gmra.mxu0 %v1772
    %v8281 = vpop.f32.mrf.mxu0
    %v8282 = vadd.f32 %v1094, %v8281
    %v8283 = vpop.f32.mrf.mxu0
    %v8284 = vadd.f32 %v1094, %v8283
    %8285 = vmatmul.bf16.gmra.mxu0 %v1796
    %v8286 = vpop.f32.mrf.mxu0
    %v8287 = vadd.f32 %v1094, %v8286
    %v8288 = vpop.f32.mrf.mxu0
    %v8289 = vadd.f32 %v1094, %v8288
    %8290 = vmatmul.bf16.gmra.mxu0 %v1820
    %v8291 = vpop.f32.mrf.mxu0
    %v8292 = vadd.f32 %v1094, %v8291
    %v8293 = vpop.f32.mrf.mxu0
    %v8294 = vadd.f32 %v1094, %v8293
    %8295 = vmatmul.bf16.gmra.mxu0 %v1844
    %v8296 = vpop.f32.mrf.mxu0
    %v8297 = vadd.f32 %v1094, %v8296
    %v8298 = vpop.f32.mrf.mxu0
    %v8299 = vadd.f32 %v1094, %v8298
    %8300 = vdwg.mxu0
    %8301 = vmatpush.bf16.msra.mxu0 %v4426
    %8302 = vmatpush.bf16.msra.mxu0 %v4422
    %8303 = vmatpush.bf16.msra.mxu0 %v4418
    %8304 = vmatpush.bf16.msra.mxu0 %v4414
    %8305 = vmatpush.bf16.msra.mxu0 %v4410
    %8306 = vmatpush.bf16.msra.mxu0 %v4406
    %8307 = vmatpush.bf16.msra.mxu0 %v4402
    %8308 = vmatpush.bf16.msra.mxu0 %v4398
    %8309 = vmatmul.bf16.gmra.mxu0 %v1677
    %v8310 = vpop.f32.mrf.mxu0
    %v8311 = vadd.f32 %v8262, %v8310
    %v8312 = vpop.f32.mrf.mxu0
    %v8313 = vadd.f32 %v8264, %v8312
    %8314 = vmatmul.bf16.gmra.mxu0 %v1701
    %v8315 = vpop.f32.mrf.mxu0
    %v8316 = vadd.f32 %v8267, %v8315
    %v8317 = vpop.f32.mrf.mxu0
    %v8318 = vadd.f32 %v8269, %v8317
    %8319 = vmatmul.bf16.gmra.mxu0 %v1725
    %v8320 = vpop.f32.mrf.mxu0
    %v8321 = vadd.f32 %v8272, %v8320
    %v8322 = vpop.f32.mrf.mxu0
    %v8323 = vadd.f32 %v8274, %v8322
    %8324 = vmatmul.bf16.gmra.mxu0 %v1749
    %v8325 = vpop.f32.mrf.mxu0
    %v8326 = vadd.f32 %v8277, %v8325
    %v8327 = vpop.f32.mrf.mxu0
    %v8328 = vadd.f32 %v8279, %v8327
    %8329 = vmatmul.bf16.gmra.mxu0 %v1773
    %v8330 = vpop.f32.mrf.mxu0
    %v8331 = vadd.f32 %v8282, %v8330
    %v8332 = vpop.f32.mrf.mxu0
    %v8333 = vadd.f32 %v8284, %v8332
    %8334 = vmatmul.bf16.gmra.mxu0 %v1797
    %v8335 = vpop.f32.mrf.mxu0
    %v8336 = vadd.f32 %v8287, %v8335
    %v8337 = vpop.f32.mrf.mxu0
    %v8338 = vadd.f32 %v8289, %v8337
    %8339 = vmatmul.bf16.gmra.mxu0 %v1821
    %v8340 = vpop.f32.mrf.mxu0
    %v8341 = vadd.f32 %v8292, %v8340
    %v8342 = vpop.f32.mrf.mxu0
    %v8343 = vadd.f32 %v8294, %v8342
    %8344 = vmatmul.bf16.gmra.mxu0 %v1845
    %v8345 = vpop.f32.mrf.mxu0
    %v8346 = vadd.f32 %v8297, %v8345
    %v8347 = vpop.f32.mrf.mxu0
    %v8348 = vadd.f32 %v8299, %v8347
    %8349 = vdwg.mxu0
    %8350 = vmatpush.bf16.msra.mxu0 %v4458
    %8351 = vmatpush.bf16.msra.mxu0 %v4454
    %8352 = vmatpush.bf16.msra.mxu0 %v4450
    %8353 = vmatpush.bf16.msra.mxu0 %v4446
    %8354 = vmatpush.bf16.msra.mxu0 %v4442
    %8355 = vmatpush.bf16.msra.mxu0 %v4438
    %8356 = vmatpush.bf16.msra.mxu0 %v4434
    %8357 = vmatpush.bf16.msra.mxu0 %v4430
    %8358 = vmatmul.bf16.gmra.mxu0 %v1678
    %v8359 = vpop.f32.mrf.mxu0
    %v8360 = vadd.f32 %v8311, %v8359
    %v8361 = vpop.f32.mrf.mxu0
    %v8362 = vadd.f32 %v8313, %v8361
    %8363 = vmatmul.bf16.gmra.mxu0 %v1702
    %v8364 = vpop.f32.mrf.mxu0
    %v8365 = vadd.f32 %v8316, %v8364
    %v8366 = vpop.f32.mrf.mxu0
    %v8367 = vadd.f32 %v8318, %v8366
    %8368 = vmatmul.bf16.gmra.mxu0 %v1726
    %v8369 = vpop.f32.mrf.mxu0
    %v8370 = vadd.f32 %v8321, %v8369
    %v8371 = vpop.f32.mrf.mxu0
    %v8372 = vadd.f32 %v8323, %v8371
    %8373 = vmatmul.bf16.gmra.mxu0 %v1750
    %v8374 = vpop.f32.mrf.mxu0
    %v8375 = vadd.f32 %v8326, %v8374
    %v8376 = vpop.f32.mrf.mxu0
    %v8377 = vadd.f32 %v8328, %v8376
    %8378 = vmatmul.bf16.gmra.mxu0 %v1774
    %v8379 = vpop.f32.mrf.mxu0
    %v8380 = vadd.f32 %v8331, %v8379
    %v8381 = vpop.f32.mrf.mxu0
    %v8382 = vadd.f32 %v8333, %v8381
    %8383 = vmatmul.bf16.gmra.mxu0 %v1798
    %v8384 = vpop.f32.mrf.mxu0
    %v8385 = vadd.f32 %v8336, %v8384
    %v8386 = vpop.f32.mrf.mxu0
    %v8387 = vadd.f32 %v8338, %v8386
    %8388 = vmatmul.bf16.gmra.mxu0 %v1822
    %v8389 = vpop.f32.mrf.mxu0
    %v8390 = vadd.f32 %v8341, %v8389
    %v8391 = vpop.f32.mrf.mxu0
    %v8392 = vadd.f32 %v8343, %v8391
    %8393 = vmatmul.bf16.gmra.mxu0 %v1846
    %v8394 = vpop.f32.mrf.mxu0
    %v8395 = vadd.f32 %v8346, %v8394
    %v8396 = vpop.f32.mrf.mxu0
    %v8397 = vadd.f32 %v8348, %v8396
    %8398 = vdwg.mxu0
    %8399 = vmatpush.bf16.msra.mxu0 %v4490
    %8400 = vmatpush.bf16.msra.mxu0 %v4486
    %8401 = vmatpush.bf16.msra.mxu0 %v4482
    %8402 = vmatpush.bf16.msra.mxu0 %v4478
    %8403 = vmatpush.bf16.msra.mxu0 %v4474
    %8404 = vmatpush.bf16.msra.mxu0 %v4470
    %8405 = vmatpush.bf16.msra.mxu0 %v4466
    %8406 = vmatpush.bf16.msra.mxu0 %v4462
    %8407 = vmatmul.bf16.gmra.mxu0 %v1679
    %v8408 = vpop.f32.mrf.mxu0
    %v8409 = vadd.f32 %v8360, %v8408
    %v8410 = vpop.f32.mrf.mxu0
    %v8411 = vadd.f32 %v8362, %v8410
    %8412 = vmatmul.bf16.gmra.mxu0 %v1703
    %v8413 = vpop.f32.mrf.mxu0
    %v8414 = vadd.f32 %v8365, %v8413
    %v8415 = vpop.f32.mrf.mxu0
    %v8416 = vadd.f32 %v8367, %v8415
    %8417 = vmatmul.bf16.gmra.mxu0 %v1727
    %v8418 = vpop.f32.mrf.mxu0
    %v8419 = vadd.f32 %v8370, %v8418
    %v8420 = vpop.f32.mrf.mxu0
    %v8421 = vadd.f32 %v8372, %v8420
    %8422 = vmatmul.bf16.gmra.mxu0 %v1751
    %v8423 = vpop.f32.mrf.mxu0
    %v8424 = vadd.f32 %v8375, %v8423
    %v8425 = vpop.f32.mrf.mxu0
    %v8426 = vadd.f32 %v8377, %v8425
    %8427 = vmatmul.bf16.gmra.mxu0 %v1775
    %v8428 = vpop.f32.mrf.mxu0
    %v8429 = vadd.f32 %v8380, %v8428
    %v8430 = vpop.f32.mrf.mxu0
    %v8431 = vadd.f32 %v8382, %v8430
    %8432 = vmatmul.bf16.gmra.mxu0 %v1799
    %v8433 = vpop.f32.mrf.mxu0
    %v8434 = vadd.f32 %v8385, %v8433
    %v8435 = vpop.f32.mrf.mxu0
    %v8436 = vadd.f32 %v8387, %v8435
    %8437 = vmatmul.bf16.gmra.mxu0 %v1823
    %v8438 = vpop.f32.mrf.mxu0
    %v8439 = vadd.f32 %v8390, %v8438
    %v8440 = vpop.f32.mrf.mxu0
    %v8441 = vadd.f32 %v8392, %v8440
    %8442 = vmatmul.bf16.gmra.mxu0 %v1847
    %v8443 = vpop.f32.mrf.mxu0
    %v8444 = vadd.f32 %v8395, %v8443
    %v8445 = vpop.f32.mrf.mxu0
    %v8446 = vadd.f32 %v8397, %v8445
    %8447 = vdwg.mxu0
    %8448 = vmatpush.bf16.msra.mxu0 %v4522
    %8449 = vmatpush.bf16.msra.mxu0 %v4518
    %8450 = vmatpush.bf16.msra.mxu0 %v4514
    %8451 = vmatpush.bf16.msra.mxu0 %v4510
    %8452 = vmatpush.bf16.msra.mxu0 %v4506
    %8453 = vmatpush.bf16.msra.mxu0 %v4502
    %8454 = vmatpush.bf16.msra.mxu0 %v4498
    %8455 = vmatpush.bf16.msra.mxu0 %v4494
    %8456 = vmatmul.bf16.gmra.mxu0 %v1680
    %v8457 = vpop.f32.mrf.mxu0
    %v8458 = vadd.f32 %v8409, %v8457
    %v8459 = vpop.f32.mrf.mxu0
    %v8460 = vadd.f32 %v8411, %v8459
    %8461 = vmatmul.bf16.gmra.mxu0 %v1704
    %v8462 = vpop.f32.mrf.mxu0
    %v8463 = vadd.f32 %v8414, %v8462
    %v8464 = vpop.f32.mrf.mxu0
    %v8465 = vadd.f32 %v8416, %v8464
    %8466 = vmatmul.bf16.gmra.mxu0 %v1728
    %v8467 = vpop.f32.mrf.mxu0
    %v8468 = vadd.f32 %v8419, %v8467
    %v8469 = vpop.f32.mrf.mxu0
    %v8470 = vadd.f32 %v8421, %v8469
    %8471 = vmatmul.bf16.gmra.mxu0 %v1752
    %v8472 = vpop.f32.mrf.mxu0
    %v8473 = vadd.f32 %v8424, %v8472
    %v8474 = vpop.f32.mrf.mxu0
    %v8475 = vadd.f32 %v8426, %v8474
    %8476 = vmatmul.bf16.gmra.mxu0 %v1776
    %v8477 = vpop.f32.mrf.mxu0
    %v8478 = vadd.f32 %v8429, %v8477
    %v8479 = vpop.f32.mrf.mxu0
    %v8480 = vadd.f32 %v8431, %v8479
    %8481 = vmatmul.bf16.gmra.mxu0 %v1800
    %v8482 = vpop.f32.mrf.mxu0
    %v8483 = vadd.f32 %v8434, %v8482
    %v8484 = vpop.f32.mrf.mxu0
    %v8485 = vadd.f32 %v8436, %v8484
    %8486 = vmatmul.bf16.gmra.mxu0 %v1824
    %v8487 = vpop.f32.mrf.mxu0
    %v8488 = vadd.f32 %v8439, %v8487
    %v8489 = vpop.f32.mrf.mxu0
    %v8490 = vadd.f32 %v8441, %v8489
    %8491 = vmatmul.bf16.gmra.mxu0 %v1848
    %v8492 = vpop.f32.mrf.mxu0
    %v8493 = vadd.f32 %v8444, %v8492
    %v8494 = vpop.f32.mrf.mxu0
    %v8495 = vadd.f32 %v8446, %v8494
    %8496 = vdwg.mxu0
    %8497 = vmatpush.bf16.msra.mxu0 %v4554
    %8498 = vmatpush.bf16.msra.mxu0 %v4550
    %8499 = vmatpush.bf16.msra.mxu0 %v4546
    %8500 = vmatpush.bf16.msra.mxu0 %v4542
    %8501 = vmatpush.bf16.msra.mxu0 %v4538
    %8502 = vmatpush.bf16.msra.mxu0 %v4534
    %8503 = vmatpush.bf16.msra.mxu0 %v4530
    %8504 = vmatpush.bf16.msra.mxu0 %v4526
    %8505 = vmatmul.bf16.gmra.mxu0 %v1681
    %v8506 = vpop.f32.mrf.mxu0
    %v8507 = vadd.f32 %v8458, %v8506
    %v8508 = vpop.f32.mrf.mxu0
    %v8509 = vadd.f32 %v8460, %v8508
    %8510 = vmatmul.bf16.gmra.mxu0 %v1705
    %v8511 = vpop.f32.mrf.mxu0
    %v8512 = vadd.f32 %v8463, %v8511
    %v8513 = vpop.f32.mrf.mxu0
    %v8514 = vadd.f32 %v8465, %v8513
    %8515 = vmatmul.bf16.gmra.mxu0 %v1729
    %v8516 = vpop.f32.mrf.mxu0
    %v8517 = vadd.f32 %v8468, %v8516
    %v8518 = vpop.f32.mrf.mxu0
    %v8519 = vadd.f32 %v8470, %v8518
    %8520 = vmatmul.bf16.gmra.mxu0 %v1753
    %v8521 = vpop.f32.mrf.mxu0
    %v8522 = vadd.f32 %v8473, %v8521
    %v8523 = vpop.f32.mrf.mxu0
    %v8524 = vadd.f32 %v8475, %v8523
    %8525 = vmatmul.bf16.gmra.mxu0 %v1777
    %v8526 = vpop.f32.mrf.mxu0
    %v8527 = vadd.f32 %v8478, %v8526
    %v8528 = vpop.f32.mrf.mxu0
    %v8529 = vadd.f32 %v8480, %v8528
    %8530 = vmatmul.bf16.gmra.mxu0 %v1801
    %v8531 = vpop.f32.mrf.mxu0
    %v8532 = vadd.f32 %v8483, %v8531
    %v8533 = vpop.f32.mrf.mxu0
    %v8534 = vadd.f32 %v8485, %v8533
    %8535 = vmatmul.bf16.gmra.mxu0 %v1825
    %v8536 = vpop.f32.mrf.mxu0
    %v8537 = vadd.f32 %v8488, %v8536
    %v8538 = vpop.f32.mrf.mxu0
    %v8539 = vadd.f32 %v8490, %v8538
    %8540 = vmatmul.bf16.gmra.mxu0 %v1849
    %v8541 = vpop.f32.mrf.mxu0
    %v8542 = vadd.f32 %v8493, %v8541
    %v8543 = vpop.f32.mrf.mxu0
    %v8544 = vadd.f32 %v8495, %v8543
    %8545 = vdwg.mxu0
    %8546 = vmatpush.bf16.msra.mxu0 %v4586
    %8547 = vmatpush.bf16.msra.mxu0 %v4582
    %8548 = vmatpush.bf16.msra.mxu0 %v4578
    %8549 = vmatpush.bf16.msra.mxu0 %v4574
    %8550 = vmatpush.bf16.msra.mxu0 %v4570
    %8551 = vmatpush.bf16.msra.mxu0 %v4566
    %8552 = vmatpush.bf16.msra.mxu0 %v4562
    %8553 = vmatpush.bf16.msra.mxu0 %v4558
    %8554 = vmatmul.bf16.gmra.mxu0 %v1682
    %v8555 = vpop.f32.mrf.mxu0
    %v8556 = vadd.f32 %v8507, %v8555
    %v8557 = vpop.f32.mrf.mxu0
    %v8558 = vadd.f32 %v8509, %v8557
    %8559 = vmatmul.bf16.gmra.mxu0 %v1706
    %v8560 = vpop.f32.mrf.mxu0
    %v8561 = vadd.f32 %v8512, %v8560
    %v8562 = vpop.f32.mrf.mxu0
    %v8563 = vadd.f32 %v8514, %v8562
    %8564 = vmatmul.bf16.gmra.mxu0 %v1730
    %v8565 = vpop.f32.mrf.mxu0
    %v8566 = vadd.f32 %v8517, %v8565
    %v8567 = vpop.f32.mrf.mxu0
    %v8568 = vadd.f32 %v8519, %v8567
    %8569 = vmatmul.bf16.gmra.mxu0 %v1754
    %v8570 = vpop.f32.mrf.mxu0
    %v8571 = vadd.f32 %v8522, %v8570
    %v8572 = vpop.f32.mrf.mxu0
    %v8573 = vadd.f32 %v8524, %v8572
    %8574 = vmatmul.bf16.gmra.mxu0 %v1778
    %v8575 = vpop.f32.mrf.mxu0
    %v8576 = vadd.f32 %v8527, %v8575
    %v8577 = vpop.f32.mrf.mxu0
    %v8578 = vadd.f32 %v8529, %v8577
    %8579 = vmatmul.bf16.gmra.mxu0 %v1802
    %v8580 = vpop.f32.mrf.mxu0
    %v8581 = vadd.f32 %v8532, %v8580
    %v8582 = vpop.f32.mrf.mxu0
    %v8583 = vadd.f32 %v8534, %v8582
    %8584 = vmatmul.bf16.gmra.mxu0 %v1826
    %v8585 = vpop.f32.mrf.mxu0
    %v8586 = vadd.f32 %v8537, %v8585
    %v8587 = vpop.f32.mrf.mxu0
    %v8588 = vadd.f32 %v8539, %v8587
    %8589 = vmatmul.bf16.gmra.mxu0 %v1850
    %v8590 = vpop.f32.mrf.mxu0
    %v8591 = vadd.f32 %v8542, %v8590
    %v8592 = vpop.f32.mrf.mxu0
    %v8593 = vadd.f32 %v8544, %v8592
    %8594 = vdwg.mxu0
    %8595 = vmatpush.bf16.msra.mxu0 %v4618
    %8596 = vmatpush.bf16.msra.mxu0 %v4614
    %8597 = vmatpush.bf16.msra.mxu0 %v4610
    %8598 = vmatpush.bf16.msra.mxu0 %v4606
    %8599 = vmatpush.bf16.msra.mxu0 %v4602
    %8600 = vmatpush.bf16.msra.mxu0 %v4598
    %8601 = vmatpush.bf16.msra.mxu0 %v4594
    %8602 = vmatpush.bf16.msra.mxu0 %v4590
    %8603 = vmatmul.bf16.gmra.mxu0 %v1683
    %v8604 = vpop.f32.mrf.mxu0
    %v8605 = vadd.f32 %v8556, %v8604
    %v8606 = vpop.f32.mrf.mxu0
    %v8607 = vadd.f32 %v8558, %v8606
    %8608 = vmatmul.bf16.gmra.mxu0 %v1707
    %v8609 = vpop.f32.mrf.mxu0
    %v8610 = vadd.f32 %v8561, %v8609
    %v8611 = vpop.f32.mrf.mxu0
    %v8612 = vadd.f32 %v8563, %v8611
    %8613 = vmatmul.bf16.gmra.mxu0 %v1731
    %v8614 = vpop.f32.mrf.mxu0
    %v8615 = vadd.f32 %v8566, %v8614
    %v8616 = vpop.f32.mrf.mxu0
    %v8617 = vadd.f32 %v8568, %v8616
    %8618 = vmatmul.bf16.gmra.mxu0 %v1755
    %v8619 = vpop.f32.mrf.mxu0
    %v8620 = vadd.f32 %v8571, %v8619
    %v8621 = vpop.f32.mrf.mxu0
    %v8622 = vadd.f32 %v8573, %v8621
    %8623 = vmatmul.bf16.gmra.mxu0 %v1779
    %v8624 = vpop.f32.mrf.mxu0
    %v8625 = vadd.f32 %v8576, %v8624
    %v8626 = vpop.f32.mrf.mxu0
    %v8627 = vadd.f32 %v8578, %v8626
    %8628 = vmatmul.bf16.gmra.mxu0 %v1803
    %v8629 = vpop.f32.mrf.mxu0
    %v8630 = vadd.f32 %v8581, %v8629
    %v8631 = vpop.f32.mrf.mxu0
    %v8632 = vadd.f32 %v8583, %v8631
    %8633 = vmatmul.bf16.gmra.mxu0 %v1827
    %v8634 = vpop.f32.mrf.mxu0
    %v8635 = vadd.f32 %v8586, %v8634
    %v8636 = vpop.f32.mrf.mxu0
    %v8637 = vadd.f32 %v8588, %v8636
    %8638 = vmatmul.bf16.gmra.mxu0 %v1851
    %v8639 = vpop.f32.mrf.mxu0
    %v8640 = vadd.f32 %v8591, %v8639
    %v8641 = vpop.f32.mrf.mxu0
    %v8642 = vadd.f32 %v8593, %v8641
    %8643 = vdwg.mxu0
    %8644 = vmatpush.bf16.msra.mxu0 %v4650
    %8645 = vmatpush.bf16.msra.mxu0 %v4646
    %8646 = vmatpush.bf16.msra.mxu0 %v4642
    %8647 = vmatpush.bf16.msra.mxu0 %v4638
    %8648 = vmatpush.bf16.msra.mxu0 %v4634
    %8649 = vmatpush.bf16.msra.mxu0 %v4630
    %8650 = vmatpush.bf16.msra.mxu0 %v4626
    %8651 = vmatpush.bf16.msra.mxu0 %v4622
    %8652 = vmatmul.bf16.gmra.mxu0 %v1684
    %v8653 = vpop.f32.mrf.mxu0
    %v8654 = vadd.f32 %v8605, %v8653
    %v8655 = vpop.f32.mrf.mxu0
    %v8656 = vadd.f32 %v8607, %v8655
    %8657 = vmatmul.bf16.gmra.mxu0 %v1708
    %v8658 = vpop.f32.mrf.mxu0
    %v8659 = vadd.f32 %v8610, %v8658
    %v8660 = vpop.f32.mrf.mxu0
    %v8661 = vadd.f32 %v8612, %v8660
    %8662 = vmatmul.bf16.gmra.mxu0 %v1732
    %v8663 = vpop.f32.mrf.mxu0
    %v8664 = vadd.f32 %v8615, %v8663
    %v8665 = vpop.f32.mrf.mxu0
    %v8666 = vadd.f32 %v8617, %v8665
    %8667 = vmatmul.bf16.gmra.mxu0 %v1756
    %v8668 = vpop.f32.mrf.mxu0
    %v8669 = vadd.f32 %v8620, %v8668
    %v8670 = vpop.f32.mrf.mxu0
    %v8671 = vadd.f32 %v8622, %v8670
    %8672 = vmatmul.bf16.gmra.mxu0 %v1780
    %v8673 = vpop.f32.mrf.mxu0
    %v8674 = vadd.f32 %v8625, %v8673
    %v8675 = vpop.f32.mrf.mxu0
    %v8676 = vadd.f32 %v8627, %v8675
    %8677 = vmatmul.bf16.gmra.mxu0 %v1804
    %v8678 = vpop.f32.mrf.mxu0
    %v8679 = vadd.f32 %v8630, %v8678
    %v8680 = vpop.f32.mrf.mxu0
    %v8681 = vadd.f32 %v8632, %v8680
    %8682 = vmatmul.bf16.gmra.mxu0 %v1828
    %v8683 = vpop.f32.mrf.mxu0
    %v8684 = vadd.f32 %v8635, %v8683
    %v8685 = vpop.f32.mrf.mxu0
    %v8686 = vadd.f32 %v8637, %v8685
    %8687 = vmatmul.bf16.gmra.mxu0 %v1852
    %v8688 = vpop.f32.mrf.mxu0
    %v8689 = vadd.f32 %v8640, %v8688
    %v8690 = vpop.f32.mrf.mxu0
    %v8691 = vadd.f32 %v8642, %v8690
    %8692 = vdwg.mxu0
    %8693 = vmatpush.bf16.msra.mxu0 %v4682
    %8694 = vmatpush.bf16.msra.mxu0 %v4678
    %8695 = vmatpush.bf16.msra.mxu0 %v4674
    %8696 = vmatpush.bf16.msra.mxu0 %v4670
    %8697 = vmatpush.bf16.msra.mxu0 %v4666
    %8698 = vmatpush.bf16.msra.mxu0 %v4662
    %8699 = vmatpush.bf16.msra.mxu0 %v4658
    %8700 = vmatpush.bf16.msra.mxu0 %v4654
    %8701 = vmatmul.bf16.gmra.mxu0 %v1685
    %v8702 = vpop.f32.mrf.mxu0
    %v8703 = vadd.f32 %v8654, %v8702
    %v8704 = vpop.f32.mrf.mxu0
    %v8705 = vadd.f32 %v8656, %v8704
    %8706 = vmatmul.bf16.gmra.mxu0 %v1709
    %v8707 = vpop.f32.mrf.mxu0
    %v8708 = vadd.f32 %v8659, %v8707
    %v8709 = vpop.f32.mrf.mxu0
    %v8710 = vadd.f32 %v8661, %v8709
    %8711 = vmatmul.bf16.gmra.mxu0 %v1733
    %v8712 = vpop.f32.mrf.mxu0
    %v8713 = vadd.f32 %v8664, %v8712
    %v8714 = vpop.f32.mrf.mxu0
    %v8715 = vadd.f32 %v8666, %v8714
    %8716 = vmatmul.bf16.gmra.mxu0 %v1757
    %v8717 = vpop.f32.mrf.mxu0
    %v8718 = vadd.f32 %v8669, %v8717
    %v8719 = vpop.f32.mrf.mxu0
    %v8720 = vadd.f32 %v8671, %v8719
    %8721 = vmatmul.bf16.gmra.mxu0 %v1781
    %v8722 = vpop.f32.mrf.mxu0
    %v8723 = vadd.f32 %v8674, %v8722
    %v8724 = vpop.f32.mrf.mxu0
    %v8725 = vadd.f32 %v8676, %v8724
    %8726 = vmatmul.bf16.gmra.mxu0 %v1805
    %v8727 = vpop.f32.mrf.mxu0
    %v8728 = vadd.f32 %v8679, %v8727
    %v8729 = vpop.f32.mrf.mxu0
    %v8730 = vadd.f32 %v8681, %v8729
    %8731 = vmatmul.bf16.gmra.mxu0 %v1829
    %v8732 = vpop.f32.mrf.mxu0
    %v8733 = vadd.f32 %v8684, %v8732
    %v8734 = vpop.f32.mrf.mxu0
    %v8735 = vadd.f32 %v8686, %v8734
    %8736 = vmatmul.bf16.gmra.mxu0 %v1853
    %v8737 = vpop.f32.mrf.mxu0
    %v8738 = vadd.f32 %v8689, %v8737
    %v8739 = vpop.f32.mrf.mxu0
    %v8740 = vadd.f32 %v8691, %v8739
    %8741 = vdwg.mxu0
    %8742 = vmatpush.bf16.msra.mxu0 %v4714
    %8743 = vmatpush.bf16.msra.mxu0 %v4710
    %8744 = vmatpush.bf16.msra.mxu0 %v4706
    %8745 = vmatpush.bf16.msra.mxu0 %v4702
    %8746 = vmatpush.bf16.msra.mxu0 %v4698
    %8747 = vmatpush.bf16.msra.mxu0 %v4694
    %8748 = vmatpush.bf16.msra.mxu0 %v4690
    %8749 = vmatpush.bf16.msra.mxu0 %v4686
    %8750 = vmatmul.bf16.gmra.mxu0 %v1686
    %v8751 = vpop.f32.mrf.mxu0
    %v8752 = vadd.f32 %v8703, %v8751
    %v8753 = vpop.f32.mrf.mxu0
    %v8754 = vadd.f32 %v8705, %v8753
    %8755 = vmatmul.bf16.gmra.mxu0 %v1710
    %v8756 = vpop.f32.mrf.mxu0
    %v8757 = vadd.f32 %v8708, %v8756
    %v8758 = vpop.f32.mrf.mxu0
    %v8759 = vadd.f32 %v8710, %v8758
    %8760 = vmatmul.bf16.gmra.mxu0 %v1734
    %v8761 = vpop.f32.mrf.mxu0
    %v8762 = vadd.f32 %v8713, %v8761
    %v8763 = vpop.f32.mrf.mxu0
    %v8764 = vadd.f32 %v8715, %v8763
    %8765 = vmatmul.bf16.gmra.mxu0 %v1758
    %v8766 = vpop.f32.mrf.mxu0
    %v8767 = vadd.f32 %v8718, %v8766
    %v8768 = vpop.f32.mrf.mxu0
    %v8769 = vadd.f32 %v8720, %v8768
    %8770 = vmatmul.bf16.gmra.mxu0 %v1782
    %v8771 = vpop.f32.mrf.mxu0
    %v8772 = vadd.f32 %v8723, %v8771
    %v8773 = vpop.f32.mrf.mxu0
    %v8774 = vadd.f32 %v8725, %v8773
    %8775 = vmatmul.bf16.gmra.mxu0 %v1806
    %v8776 = vpop.f32.mrf.mxu0
    %v8777 = vadd.f32 %v8728, %v8776
    %v8778 = vpop.f32.mrf.mxu0
    %v8779 = vadd.f32 %v8730, %v8778
    %8780 = vmatmul.bf16.gmra.mxu0 %v1830
    %v8781 = vpop.f32.mrf.mxu0
    %v8782 = vadd.f32 %v8733, %v8781
    %v8783 = vpop.f32.mrf.mxu0
    %v8784 = vadd.f32 %v8735, %v8783
    %8785 = vmatmul.bf16.gmra.mxu0 %v1854
    %v8786 = vpop.f32.mrf.mxu0
    %v8787 = vadd.f32 %v8738, %v8786
    %v8788 = vpop.f32.mrf.mxu0
    %v8789 = vadd.f32 %v8740, %v8788
    %8790 = vdwg.mxu0
    %8791 = vmatpush.bf16.msra.mxu0 %v4746
    %8792 = vmatpush.bf16.msra.mxu0 %v4742
    %8793 = vmatpush.bf16.msra.mxu0 %v4738
    %8794 = vmatpush.bf16.msra.mxu0 %v4734
    %8795 = vmatpush.bf16.msra.mxu0 %v4730
    %8796 = vmatpush.bf16.msra.mxu0 %v4726
    %8797 = vmatpush.bf16.msra.mxu0 %v4722
    %8798 = vmatpush.bf16.msra.mxu0 %v4718
    %8799 = vmatmul.bf16.gmra.mxu0 %v1687
    %v8800 = vpop.f32.mrf.mxu0
    %v8801 = vadd.f32 %v8752, %v8800
    %v8802 = vpop.f32.mrf.mxu0
    %v8803 = vadd.f32 %v8754, %v8802
    %8804 = vmatmul.bf16.gmra.mxu0 %v1711
    %v8805 = vpop.f32.mrf.mxu0
    %v8806 = vadd.f32 %v8757, %v8805
    %v8807 = vpop.f32.mrf.mxu0
    %v8808 = vadd.f32 %v8759, %v8807
    %8809 = vmatmul.bf16.gmra.mxu0 %v1735
    %v8810 = vpop.f32.mrf.mxu0
    %v8811 = vadd.f32 %v8762, %v8810
    %v8812 = vpop.f32.mrf.mxu0
    %v8813 = vadd.f32 %v8764, %v8812
    %8814 = vmatmul.bf16.gmra.mxu0 %v1759
    %v8815 = vpop.f32.mrf.mxu0
    %v8816 = vadd.f32 %v8767, %v8815
    %v8817 = vpop.f32.mrf.mxu0
    %v8818 = vadd.f32 %v8769, %v8817
    %8819 = vmatmul.bf16.gmra.mxu0 %v1783
    %v8820 = vpop.f32.mrf.mxu0
    %v8821 = vadd.f32 %v8772, %v8820
    %v8822 = vpop.f32.mrf.mxu0
    %v8823 = vadd.f32 %v8774, %v8822
    %8824 = vmatmul.bf16.gmra.mxu0 %v1807
    %v8825 = vpop.f32.mrf.mxu0
    %v8826 = vadd.f32 %v8777, %v8825
    %v8827 = vpop.f32.mrf.mxu0
    %v8828 = vadd.f32 %v8779, %v8827
    %8829 = vmatmul.bf16.gmra.mxu0 %v1831
    %v8830 = vpop.f32.mrf.mxu0
    %v8831 = vadd.f32 %v8782, %v8830
    %v8832 = vpop.f32.mrf.mxu0
    %v8833 = vadd.f32 %v8784, %v8832
    %8834 = vmatmul.bf16.gmra.mxu0 %v1855
    %v8835 = vpop.f32.mrf.mxu0
    %v8836 = vadd.f32 %v8787, %v8835
    %v8837 = vpop.f32.mrf.mxu0
    %v8838 = vadd.f32 %v8789, %v8837
    %8839 = vdwg.mxu0
    %8840 = vmatpush.bf16.msra.mxu0 %v4778
    %8841 = vmatpush.bf16.msra.mxu0 %v4774
    %8842 = vmatpush.bf16.msra.mxu0 %v4770
    %8843 = vmatpush.bf16.msra.mxu0 %v4766
    %8844 = vmatpush.bf16.msra.mxu0 %v4762
    %8845 = vmatpush.bf16.msra.mxu0 %v4758
    %8846 = vmatpush.bf16.msra.mxu0 %v4754
    %8847 = vmatpush.bf16.msra.mxu0 %v4750
    %8848 = vmatmul.bf16.gmra.mxu0 %v1688
    %v8849 = vpop.f32.mrf.mxu0
    %v8850 = vadd.f32 %v8801, %v8849
    %v8851 = vpop.f32.mrf.mxu0
    %v8852 = vadd.f32 %v8803, %v8851
    %8853 = vmatmul.bf16.gmra.mxu0 %v1712
    %v8854 = vpop.f32.mrf.mxu0
    %v8855 = vadd.f32 %v8806, %v8854
    %v8856 = vpop.f32.mrf.mxu0
    %v8857 = vadd.f32 %v8808, %v8856
    %8858 = vmatmul.bf16.gmra.mxu0 %v1736
    %v8859 = vpop.f32.mrf.mxu0
    %v8860 = vadd.f32 %v8811, %v8859
    %v8861 = vpop.f32.mrf.mxu0
    %v8862 = vadd.f32 %v8813, %v8861
    %8863 = vmatmul.bf16.gmra.mxu0 %v1760
    %v8864 = vpop.f32.mrf.mxu0
    %v8865 = vadd.f32 %v8816, %v8864
    %v8866 = vpop.f32.mrf.mxu0
    %v8867 = vadd.f32 %v8818, %v8866
    %8868 = vmatmul.bf16.gmra.mxu0 %v1784
    %v8869 = vpop.f32.mrf.mxu0
    %v8870 = vadd.f32 %v8821, %v8869
    %v8871 = vpop.f32.mrf.mxu0
    %v8872 = vadd.f32 %v8823, %v8871
    %8873 = vmatmul.bf16.gmra.mxu0 %v1808
    %v8874 = vpop.f32.mrf.mxu0
    %v8875 = vadd.f32 %v8826, %v8874
    %v8876 = vpop.f32.mrf.mxu0
    %v8877 = vadd.f32 %v8828, %v8876
    %8878 = vmatmul.bf16.gmra.mxu0 %v1832
    %v8879 = vpop.f32.mrf.mxu0
    %v8880 = vadd.f32 %v8831, %v8879
    %v8881 = vpop.f32.mrf.mxu0
    %v8882 = vadd.f32 %v8833, %v8881
    %8883 = vmatmul.bf16.gmra.mxu0 %v1856
    %v8884 = vpop.f32.mrf.mxu0
    %v8885 = vadd.f32 %v8836, %v8884
    %v8886 = vpop.f32.mrf.mxu0
    %v8887 = vadd.f32 %v8838, %v8886
    %8888 = vdwg.mxu0
    %8889 = vmatpush.bf16.msra.mxu0 %v4810
    %8890 = vmatpush.bf16.msra.mxu0 %v4806
    %8891 = vmatpush.bf16.msra.mxu0 %v4802
    %8892 = vmatpush.bf16.msra.mxu0 %v4798
    %8893 = vmatpush.bf16.msra.mxu0 %v4794
    %8894 = vmatpush.bf16.msra.mxu0 %v4790
    %8895 = vmatpush.bf16.msra.mxu0 %v4786
    %8896 = vmatpush.bf16.msra.mxu0 %v4782
    %8897 = vmatmul.bf16.gmra.mxu0 %v1689
    %v8898 = vpop.f32.mrf.mxu0
    %v8899 = vadd.f32 %v8850, %v8898
    %v8900 = vpop.f32.mrf.mxu0
    %v8901 = vadd.f32 %v8852, %v8900
    %8902 = vmatmul.bf16.gmra.mxu0 %v1713
    %v8903 = vpop.f32.mrf.mxu0
    %v8904 = vadd.f32 %v8855, %v8903
    %v8905 = vpop.f32.mrf.mxu0
    %v8906 = vadd.f32 %v8857, %v8905
    %8907 = vmatmul.bf16.gmra.mxu0 %v1737
    %v8908 = vpop.f32.mrf.mxu0
    %v8909 = vadd.f32 %v8860, %v8908
    %v8910 = vpop.f32.mrf.mxu0
    %v8911 = vadd.f32 %v8862, %v8910
    %8912 = vmatmul.bf16.gmra.mxu0 %v1761
    %v8913 = vpop.f32.mrf.mxu0
    %v8914 = vadd.f32 %v8865, %v8913
    %v8915 = vpop.f32.mrf.mxu0
    %v8916 = vadd.f32 %v8867, %v8915
    %8917 = vmatmul.bf16.gmra.mxu0 %v1785
    %v8918 = vpop.f32.mrf.mxu0
    %v8919 = vadd.f32 %v8870, %v8918
    %v8920 = vpop.f32.mrf.mxu0
    %v8921 = vadd.f32 %v8872, %v8920
    %8922 = vmatmul.bf16.gmra.mxu0 %v1809
    %v8923 = vpop.f32.mrf.mxu0
    %v8924 = vadd.f32 %v8875, %v8923
    %v8925 = vpop.f32.mrf.mxu0
    %v8926 = vadd.f32 %v8877, %v8925
    %8927 = vmatmul.bf16.gmra.mxu0 %v1833
    %v8928 = vpop.f32.mrf.mxu0
    %v8929 = vadd.f32 %v8880, %v8928
    %v8930 = vpop.f32.mrf.mxu0
    %v8931 = vadd.f32 %v8882, %v8930
    %8932 = vmatmul.bf16.gmra.mxu0 %v1857
    %v8933 = vpop.f32.mrf.mxu0
    %v8934 = vadd.f32 %v8885, %v8933
    %v8935 = vpop.f32.mrf.mxu0
    %v8936 = vadd.f32 %v8887, %v8935
    %8937 = vdwg.mxu0
    %8938 = vmatpush.bf16.msra.mxu0 %v4842
    %8939 = vmatpush.bf16.msra.mxu0 %v4838
    %8940 = vmatpush.bf16.msra.mxu0 %v4834
    %8941 = vmatpush.bf16.msra.mxu0 %v4830
    %8942 = vmatpush.bf16.msra.mxu0 %v4826
    %8943 = vmatpush.bf16.msra.mxu0 %v4822
    %8944 = vmatpush.bf16.msra.mxu0 %v4818
    %8945 = vmatpush.bf16.msra.mxu0 %v4814
    %8946 = vmatmul.bf16.gmra.mxu0 %v1690
    %v8947 = vpop.f32.mrf.mxu0
    %v8948 = vadd.f32 %v8899, %v8947
    %v8949 = vpop.f32.mrf.mxu0
    %v8950 = vadd.f32 %v8901, %v8949
    %8951 = vmatmul.bf16.gmra.mxu0 %v1714
    %v8952 = vpop.f32.mrf.mxu0
    %v8953 = vadd.f32 %v8904, %v8952
    %v8954 = vpop.f32.mrf.mxu0
    %v8955 = vadd.f32 %v8906, %v8954
    %8956 = vmatmul.bf16.gmra.mxu0 %v1738
    %v8957 = vpop.f32.mrf.mxu0
    %v8958 = vadd.f32 %v8909, %v8957
    %v8959 = vpop.f32.mrf.mxu0
    %v8960 = vadd.f32 %v8911, %v8959
    %8961 = vmatmul.bf16.gmra.mxu0 %v1762
    %v8962 = vpop.f32.mrf.mxu0
    %v8963 = vadd.f32 %v8914, %v8962
    %v8964 = vpop.f32.mrf.mxu0
    %v8965 = vadd.f32 %v8916, %v8964
    %8966 = vmatmul.bf16.gmra.mxu0 %v1786
    %v8967 = vpop.f32.mrf.mxu0
    %v8968 = vadd.f32 %v8919, %v8967
    %v8969 = vpop.f32.mrf.mxu0
    %v8970 = vadd.f32 %v8921, %v8969
    %8971 = vmatmul.bf16.gmra.mxu0 %v1810
    %v8972 = vpop.f32.mrf.mxu0
    %v8973 = vadd.f32 %v8924, %v8972
    %v8974 = vpop.f32.mrf.mxu0
    %v8975 = vadd.f32 %v8926, %v8974
    %8976 = vmatmul.bf16.gmra.mxu0 %v1834
    %v8977 = vpop.f32.mrf.mxu0
    %v8978 = vadd.f32 %v8929, %v8977
    %v8979 = vpop.f32.mrf.mxu0
    %v8980 = vadd.f32 %v8931, %v8979
    %8981 = vmatmul.bf16.gmra.mxu0 %v1858
    %v8982 = vpop.f32.mrf.mxu0
    %v8983 = vadd.f32 %v8934, %v8982
    %v8984 = vpop.f32.mrf.mxu0
    %v8985 = vadd.f32 %v8936, %v8984
    %8986 = vdwg.mxu0
    %8987 = vmatpush.bf16.msra.mxu0 %v4874
    %8988 = vmatpush.bf16.msra.mxu0 %v4870
    %8989 = vmatpush.bf16.msra.mxu0 %v4866
    %8990 = vmatpush.bf16.msra.mxu0 %v4862
    %8991 = vmatpush.bf16.msra.mxu0 %v4858
    %8992 = vmatpush.bf16.msra.mxu0 %v4854
    %8993 = vmatpush.bf16.msra.mxu0 %v4850
    %8994 = vmatpush.bf16.msra.mxu0 %v4846
    %8995 = vmatmul.bf16.gmra.mxu0 %v1691
    %v8996 = vpop.f32.mrf.mxu0
    %v8997 = vadd.f32 %v8948, %v8996
    %v8998 = vpop.f32.mrf.mxu0
    %v8999 = vadd.f32 %v8950, %v8998
    %9000 = vmatmul.bf16.gmra.mxu0 %v1715
    %v9001 = vpop.f32.mrf.mxu0
    %v9002 = vadd.f32 %v8953, %v9001
    %v9003 = vpop.f32.mrf.mxu0
    %v9004 = vadd.f32 %v8955, %v9003
    %9005 = vmatmul.bf16.gmra.mxu0 %v1739
    %v9006 = vpop.f32.mrf.mxu0
    %v9007 = vadd.f32 %v8958, %v9006
    %v9008 = vpop.f32.mrf.mxu0
    %v9009 = vadd.f32 %v8960, %v9008
    %9010 = vmatmul.bf16.gmra.mxu0 %v1763
    %v9011 = vpop.f32.mrf.mxu0
    %v9012 = vadd.f32 %v8963, %v9011
    %v9013 = vpop.f32.mrf.mxu0
    %v9014 = vadd.f32 %v8965, %v9013
    %9015 = vmatmul.bf16.gmra.mxu0 %v1787
    %v9016 = vpop.f32.mrf.mxu0
    %v9017 = vadd.f32 %v8968, %v9016
    %v9018 = vpop.f32.mrf.mxu0
    %v9019 = vadd.f32 %v8970, %v9018
    %9020 = vmatmul.bf16.gmra.mxu0 %v1811
    %v9021 = vpop.f32.mrf.mxu0
    %v9022 = vadd.f32 %v8973, %v9021
    %v9023 = vpop.f32.mrf.mxu0
    %v9024 = vadd.f32 %v8975, %v9023
    %9025 = vmatmul.bf16.gmra.mxu0 %v1835
    %v9026 = vpop.f32.mrf.mxu0
    %v9027 = vadd.f32 %v8978, %v9026
    %v9028 = vpop.f32.mrf.mxu0
    %v9029 = vadd.f32 %v8980, %v9028
    %9030 = vmatmul.bf16.gmra.mxu0 %v1859
    %v9031 = vpop.f32.mrf.mxu0
    %v9032 = vadd.f32 %v8983, %v9031
    %v9033 = vpop.f32.mrf.mxu0
    %v9034 = vadd.f32 %v8985, %v9033
    %9035 = vdwg.mxu0
    %9036 = vmatpush.bf16.msra.mxu0 %v4906
    %9037 = vmatpush.bf16.msra.mxu0 %v4902
    %9038 = vmatpush.bf16.msra.mxu0 %v4898
    %9039 = vmatpush.bf16.msra.mxu0 %v4894
    %9040 = vmatpush.bf16.msra.mxu0 %v4890
    %9041 = vmatpush.bf16.msra.mxu0 %v4886
    %9042 = vmatpush.bf16.msra.mxu0 %v4882
    %9043 = vmatpush.bf16.msra.mxu0 %v4878
    %9044 = vmatmul.bf16.gmra.mxu0 %v1692
    %v9045 = vpop.f32.mrf.mxu0
    %v9046 = vadd.f32 %v8997, %v9045
    %v9047 = vpop.f32.mrf.mxu0
    %v9048 = vadd.f32 %v8999, %v9047
    %9049 = vmatmul.bf16.gmra.mxu0 %v1716
    %v9050 = vpop.f32.mrf.mxu0
    %v9051 = vadd.f32 %v9002, %v9050
    %v9052 = vpop.f32.mrf.mxu0
    %v9053 = vadd.f32 %v9004, %v9052
    %9054 = vmatmul.bf16.gmra.mxu0 %v1740
    %v9055 = vpop.f32.mrf.mxu0
    %v9056 = vadd.f32 %v9007, %v9055
    %v9057 = vpop.f32.mrf.mxu0
    %v9058 = vadd.f32 %v9009, %v9057
    %9059 = vmatmul.bf16.gmra.mxu0 %v1764
    %v9060 = vpop.f32.mrf.mxu0
    %v9061 = vadd.f32 %v9012, %v9060
    %v9062 = vpop.f32.mrf.mxu0
    %v9063 = vadd.f32 %v9014, %v9062
    %9064 = vmatmul.bf16.gmra.mxu0 %v1788
    %v9065 = vpop.f32.mrf.mxu0
    %v9066 = vadd.f32 %v9017, %v9065
    %v9067 = vpop.f32.mrf.mxu0
    %v9068 = vadd.f32 %v9019, %v9067
    %9069 = vmatmul.bf16.gmra.mxu0 %v1812
    %v9070 = vpop.f32.mrf.mxu0
    %v9071 = vadd.f32 %v9022, %v9070
    %v9072 = vpop.f32.mrf.mxu0
    %v9073 = vadd.f32 %v9024, %v9072
    %9074 = vmatmul.bf16.gmra.mxu0 %v1836
    %v9075 = vpop.f32.mrf.mxu0
    %v9076 = vadd.f32 %v9027, %v9075
    %v9077 = vpop.f32.mrf.mxu0
    %v9078 = vadd.f32 %v9029, %v9077
    %9079 = vmatmul.bf16.gmra.mxu0 %v1860
    %v9080 = vpop.f32.mrf.mxu0
    %v9081 = vadd.f32 %v9032, %v9080
    %v9082 = vpop.f32.mrf.mxu0
    %v9083 = vadd.f32 %v9034, %v9082
    %9084 = vdwg.mxu0
    %9085 = vmatpush.bf16.msra.mxu0 %v4938
    %9086 = vmatpush.bf16.msra.mxu0 %v4934
    %9087 = vmatpush.bf16.msra.mxu0 %v4930
    %9088 = vmatpush.bf16.msra.mxu0 %v4926
    %9089 = vmatpush.bf16.msra.mxu0 %v4922
    %9090 = vmatpush.bf16.msra.mxu0 %v4918
    %9091 = vmatpush.bf16.msra.mxu0 %v4914
    %9092 = vmatpush.bf16.msra.mxu0 %v4910
    %9093 = vmatmul.bf16.gmra.mxu0 %v1693
    %v9094 = vpop.f32.mrf.mxu0
    %v9095 = vadd.f32 %v9046, %v9094
    %v9096 = vpop.f32.mrf.mxu0
    %v9097 = vadd.f32 %v9048, %v9096
    %9098 = vmatmul.bf16.gmra.mxu0 %v1717
    %v9099 = vpop.f32.mrf.mxu0
    %v9100 = vadd.f32 %v9051, %v9099
    %v9101 = vpop.f32.mrf.mxu0
    %v9102 = vadd.f32 %v9053, %v9101
    %9103 = vmatmul.bf16.gmra.mxu0 %v1741
    %v9104 = vpop.f32.mrf.mxu0
    %v9105 = vadd.f32 %v9056, %v9104
    %v9106 = vpop.f32.mrf.mxu0
    %v9107 = vadd.f32 %v9058, %v9106
    %9108 = vmatmul.bf16.gmra.mxu0 %v1765
    %v9109 = vpop.f32.mrf.mxu0
    %v9110 = vadd.f32 %v9061, %v9109
    %v9111 = vpop.f32.mrf.mxu0
    %v9112 = vadd.f32 %v9063, %v9111
    %9113 = vmatmul.bf16.gmra.mxu0 %v1789
    %v9114 = vpop.f32.mrf.mxu0
    %v9115 = vadd.f32 %v9066, %v9114
    %v9116 = vpop.f32.mrf.mxu0
    %v9117 = vadd.f32 %v9068, %v9116
    %9118 = vmatmul.bf16.gmra.mxu0 %v1813
    %v9119 = vpop.f32.mrf.mxu0
    %v9120 = vadd.f32 %v9071, %v9119
    %v9121 = vpop.f32.mrf.mxu0
    %v9122 = vadd.f32 %v9073, %v9121
    %9123 = vmatmul.bf16.gmra.mxu0 %v1837
    %v9124 = vpop.f32.mrf.mxu0
    %v9125 = vadd.f32 %v9076, %v9124
    %v9126 = vpop.f32.mrf.mxu0
    %v9127 = vadd.f32 %v9078, %v9126
    %9128 = vmatmul.bf16.gmra.mxu0 %v1861
    %v9129 = vpop.f32.mrf.mxu0
    %v9130 = vadd.f32 %v9081, %v9129
    %v9131 = vpop.f32.mrf.mxu0
    %v9132 = vadd.f32 %v9083, %v9131
    %9133 = vdwg.mxu0
    %9134 = vmatpush.bf16.msra.mxu0 %v4970
    %9135 = vmatpush.bf16.msra.mxu0 %v4966
    %9136 = vmatpush.bf16.msra.mxu0 %v4962
    %9137 = vmatpush.bf16.msra.mxu0 %v4958
    %9138 = vmatpush.bf16.msra.mxu0 %v4954
    %9139 = vmatpush.bf16.msra.mxu0 %v4950
    %9140 = vmatpush.bf16.msra.mxu0 %v4946
    %9141 = vmatpush.bf16.msra.mxu0 %v4942
    %9142 = vmatmul.bf16.gmra.mxu0 %v1694
    %v9143 = vpop.f32.mrf.mxu0
    %v9144 = vadd.f32 %v9095, %v9143
    %v9145 = vpop.f32.mrf.mxu0
    %v9146 = vadd.f32 %v9097, %v9145
    %9147 = vmatmul.bf16.gmra.mxu0 %v1718
    %v9148 = vpop.f32.mrf.mxu0
    %v9149 = vadd.f32 %v9100, %v9148
    %v9150 = vpop.f32.mrf.mxu0
    %v9151 = vadd.f32 %v9102, %v9150
    %9152 = vmatmul.bf16.gmra.mxu0 %v1742
    %v9153 = vpop.f32.mrf.mxu0
    %v9154 = vadd.f32 %v9105, %v9153
    %v9155 = vpop.f32.mrf.mxu0
    %v9156 = vadd.f32 %v9107, %v9155
    %9157 = vmatmul.bf16.gmra.mxu0 %v1766
    %v9158 = vpop.f32.mrf.mxu0
    %v9159 = vadd.f32 %v9110, %v9158
    %v9160 = vpop.f32.mrf.mxu0
    %v9161 = vadd.f32 %v9112, %v9160
    %9162 = vmatmul.bf16.gmra.mxu0 %v1790
    %v9163 = vpop.f32.mrf.mxu0
    %v9164 = vadd.f32 %v9115, %v9163
    %v9165 = vpop.f32.mrf.mxu0
    %v9166 = vadd.f32 %v9117, %v9165
    %9167 = vmatmul.bf16.gmra.mxu0 %v1814
    %v9168 = vpop.f32.mrf.mxu0
    %v9169 = vadd.f32 %v9120, %v9168
    %v9170 = vpop.f32.mrf.mxu0
    %v9171 = vadd.f32 %v9122, %v9170
    %9172 = vmatmul.bf16.gmra.mxu0 %v1838
    %v9173 = vpop.f32.mrf.mxu0
    %v9174 = vadd.f32 %v9125, %v9173
    %v9175 = vpop.f32.mrf.mxu0
    %v9176 = vadd.f32 %v9127, %v9175
    %9177 = vmatmul.bf16.gmra.mxu0 %v1862
    %v9178 = vpop.f32.mrf.mxu0
    %v9179 = vadd.f32 %v9130, %v9178
    %v9180 = vpop.f32.mrf.mxu0
    %v9181 = vadd.f32 %v9132, %v9180
    %9182 = vdwg.mxu0
    %9183 = vmatpush.bf16.msra.mxu0 %v5002
    %9184 = vmatpush.bf16.msra.mxu0 %v4998
    %9185 = vmatpush.bf16.msra.mxu0 %v4994
    %9186 = vmatpush.bf16.msra.mxu0 %v4990
    %9187 = vmatpush.bf16.msra.mxu0 %v4986
    %9188 = vmatpush.bf16.msra.mxu0 %v4982
    %9189 = vmatpush.bf16.msra.mxu0 %v4978
    %9190 = vmatpush.bf16.msra.mxu0 %v4974
    %9191 = vmatmul.bf16.gmra.mxu0 %v1695
    %v9192 = vpop.f32.mrf.mxu0
    %v9193 = vadd.f32 %v9144, %v9192
    %v9194 = vpop.f32.mrf.mxu0
    %v9195 = vadd.f32 %v9146, %v9194
    %9196 = vmatmul.bf16.gmra.mxu0 %v1719
    %v9197 = vpop.f32.mrf.mxu0
    %v9198 = vadd.f32 %v9149, %v9197
    %v9199 = vpop.f32.mrf.mxu0
    %v9200 = vadd.f32 %v9151, %v9199
    %9201 = vmatmul.bf16.gmra.mxu0 %v1743
    %v9202 = vpop.f32.mrf.mxu0
    %v9203 = vadd.f32 %v9154, %v9202
    %v9204 = vpop.f32.mrf.mxu0
    %v9205 = vadd.f32 %v9156, %v9204
    %9206 = vmatmul.bf16.gmra.mxu0 %v1767
    %v9207 = vpop.f32.mrf.mxu0
    %v9208 = vadd.f32 %v9159, %v9207
    %v9209 = vpop.f32.mrf.mxu0
    %v9210 = vadd.f32 %v9161, %v9209
    %9211 = vmatmul.bf16.gmra.mxu0 %v1791
    %v9212 = vpop.f32.mrf.mxu0
    %v9213 = vadd.f32 %v9164, %v9212
    %v9214 = vpop.f32.mrf.mxu0
    %v9215 = vadd.f32 %v9166, %v9214
    %9216 = vmatmul.bf16.gmra.mxu0 %v1815
    %v9217 = vpop.f32.mrf.mxu0
    %v9218 = vadd.f32 %v9169, %v9217
    %v9219 = vpop.f32.mrf.mxu0
    %v9220 = vadd.f32 %v9171, %v9219
    %9221 = vmatmul.bf16.gmra.mxu0 %v1839
    %v9222 = vpop.f32.mrf.mxu0
    %v9223 = vadd.f32 %v9174, %v9222
    %v9224 = vpop.f32.mrf.mxu0
    %v9225 = vadd.f32 %v9176, %v9224
    %9226 = vmatmul.bf16.gmra.mxu0 %v1863
    %v9227 = vpop.f32.mrf.mxu0
    %v9228 = vadd.f32 %v9179, %v9227
    %v9229 = vpop.f32.mrf.mxu0
    %v9230 = vadd.f32 %v9181, %v9229
    %9231 = vdwg.mxu0
    %9232 = vmatpush.bf16.msra.mxu0 %v5034
    %9233 = vmatpush.bf16.msra.mxu0 %v5030
    %9234 = vmatpush.bf16.msra.mxu0 %v5026
    %9235 = vmatpush.bf16.msra.mxu0 %v5022
    %9236 = vmatpush.bf16.msra.mxu0 %v5018
    %9237 = vmatpush.bf16.msra.mxu0 %v5014
    %9238 = vmatpush.bf16.msra.mxu0 %v5010
    %9239 = vmatpush.bf16.msra.mxu0 %v5006
    %9240 = vmatmul.bf16.gmra.mxu0 %v1696
    %v9241 = vpop.f32.mrf.mxu0
    %v9242 = vadd.f32 %v9193, %v9241
    %v9243 = vpop.f32.mrf.mxu0
    %v9244 = vadd.f32 %v9195, %v9243
    %9245 = vmatmul.bf16.gmra.mxu0 %v1720
    %v9246 = vpop.f32.mrf.mxu0
    %v9247 = vadd.f32 %v9198, %v9246
    %v9248 = vpop.f32.mrf.mxu0
    %v9249 = vadd.f32 %v9200, %v9248
    %9250 = vmatmul.bf16.gmra.mxu0 %v1744
    %v9251 = vpop.f32.mrf.mxu0
    %v9252 = vadd.f32 %v9203, %v9251
    %v9253 = vpop.f32.mrf.mxu0
    %v9254 = vadd.f32 %v9205, %v9253
    %9255 = vmatmul.bf16.gmra.mxu0 %v1768
    %v9256 = vpop.f32.mrf.mxu0
    %v9257 = vadd.f32 %v9208, %v9256
    %v9258 = vpop.f32.mrf.mxu0
    %v9259 = vadd.f32 %v9210, %v9258
    %9260 = vmatmul.bf16.gmra.mxu0 %v1792
    %v9261 = vpop.f32.mrf.mxu0
    %v9262 = vadd.f32 %v9213, %v9261
    %v9263 = vpop.f32.mrf.mxu0
    %v9264 = vadd.f32 %v9215, %v9263
    %9265 = vmatmul.bf16.gmra.mxu0 %v1816
    %v9266 = vpop.f32.mrf.mxu0
    %v9267 = vadd.f32 %v9218, %v9266
    %v9268 = vpop.f32.mrf.mxu0
    %v9269 = vadd.f32 %v9220, %v9268
    %9270 = vmatmul.bf16.gmra.mxu0 %v1840
    %v9271 = vpop.f32.mrf.mxu0
    %v9272 = vadd.f32 %v9223, %v9271
    %v9273 = vpop.f32.mrf.mxu0
    %v9274 = vadd.f32 %v9225, %v9273
    %9275 = vmatmul.bf16.gmra.mxu0 %v1864
    %v9276 = vpop.f32.mrf.mxu0
    %v9277 = vadd.f32 %v9228, %v9276
    %v9278 = vpop.f32.mrf.mxu0
    %v9279 = vadd.f32 %v9230, %v9278
    %9280 = vdwg.mxu0
    %9281 = vmatpush.bf16.msra.mxu0 %v5066
    %9282 = vmatpush.bf16.msra.mxu0 %v5062
    %9283 = vmatpush.bf16.msra.mxu0 %v5058
    %9284 = vmatpush.bf16.msra.mxu0 %v5054
    %9285 = vmatpush.bf16.msra.mxu0 %v5050
    %9286 = vmatpush.bf16.msra.mxu0 %v5046
    %9287 = vmatpush.bf16.msra.mxu0 %v5042
    %9288 = vmatpush.bf16.msra.mxu0 %v5038
    %9289 = vmatmul.bf16.gmra.mxu0 %v1697
    %v9290 = vpop.f32.mrf.mxu0
    %v9291 = vadd.f32 %v9242, %v9290
    %v9292 = vpop.f32.mrf.mxu0
    %v9293 = vadd.f32 %v9244, %v9292
    %9294 = vmatmul.bf16.gmra.mxu0 %v1721
    %v9295 = vpop.f32.mrf.mxu0
    %v9296 = vadd.f32 %v9247, %v9295
    %v9297 = vpop.f32.mrf.mxu0
    %v9298 = vadd.f32 %v9249, %v9297
    %9299 = vmatmul.bf16.gmra.mxu0 %v1745
    %v9300 = vpop.f32.mrf.mxu0
    %v9301 = vadd.f32 %v9252, %v9300
    %v9302 = vpop.f32.mrf.mxu0
    %v9303 = vadd.f32 %v9254, %v9302
    %9304 = vmatmul.bf16.gmra.mxu0 %v1769
    %v9305 = vpop.f32.mrf.mxu0
    %v9306 = vadd.f32 %v9257, %v9305
    %v9307 = vpop.f32.mrf.mxu0
    %v9308 = vadd.f32 %v9259, %v9307
    %9309 = vmatmul.bf16.gmra.mxu0 %v1793
    %v9310 = vpop.f32.mrf.mxu0
    %v9311 = vadd.f32 %v9262, %v9310
    %v9312 = vpop.f32.mrf.mxu0
    %v9313 = vadd.f32 %v9264, %v9312
    %9314 = vmatmul.bf16.gmra.mxu0 %v1817
    %v9315 = vpop.f32.mrf.mxu0
    %v9316 = vadd.f32 %v9267, %v9315
    %v9317 = vpop.f32.mrf.mxu0
    %v9318 = vadd.f32 %v9269, %v9317
    %9319 = vmatmul.bf16.gmra.mxu0 %v1841
    %v9320 = vpop.f32.mrf.mxu0
    %v9321 = vadd.f32 %v9272, %v9320
    %v9322 = vpop.f32.mrf.mxu0
    %v9323 = vadd.f32 %v9274, %v9322
    %9324 = vmatmul.bf16.gmra.mxu0 %v1865
    %v9325 = vpop.f32.mrf.mxu0
    %v9326 = vadd.f32 %v9277, %v9325
    %v9327 = vpop.f32.mrf.mxu0
    %v9328 = vadd.f32 %v9279, %v9327
    %9329 = vdwg.mxu0
    %9330 = vmatpush.bf16.msra.mxu0 %v5098
    %9331 = vmatpush.bf16.msra.mxu0 %v5094
    %9332 = vmatpush.bf16.msra.mxu0 %v5090
    %9333 = vmatpush.bf16.msra.mxu0 %v5086
    %9334 = vmatpush.bf16.msra.mxu0 %v5082
    %9335 = vmatpush.bf16.msra.mxu0 %v5078
    %9336 = vmatpush.bf16.msra.mxu0 %v5074
    %9337 = vmatpush.bf16.msra.mxu0 %v5070
    %9338 = vmatmul.bf16.gmra.mxu0 %v1698
    %v9339 = vpop.f32.mrf.mxu0
    %v9340 = vadd.f32 %v9291, %v9339
    %v9341 = vpop.f32.mrf.mxu0
    %v9342 = vadd.f32 %v9293, %v9341
    %9343 = vmatmul.bf16.gmra.mxu0 %v1722
    %v9344 = vpop.f32.mrf.mxu0
    %v9345 = vadd.f32 %v9296, %v9344
    %v9346 = vpop.f32.mrf.mxu0
    %v9347 = vadd.f32 %v9298, %v9346
    %9348 = vmatmul.bf16.gmra.mxu0 %v1746
    %v9349 = vpop.f32.mrf.mxu0
    %v9350 = vadd.f32 %v9301, %v9349
    %v9351 = vpop.f32.mrf.mxu0
    %v9352 = vadd.f32 %v9303, %v9351
    %9353 = vmatmul.bf16.gmra.mxu0 %v1770
    %v9354 = vpop.f32.mrf.mxu0
    %v9355 = vadd.f32 %v9306, %v9354
    %v9356 = vpop.f32.mrf.mxu0
    %v9357 = vadd.f32 %v9308, %v9356
    %9358 = vmatmul.bf16.gmra.mxu0 %v1794
    %v9359 = vpop.f32.mrf.mxu0
    %v9360 = vadd.f32 %v9311, %v9359
    %v9361 = vpop.f32.mrf.mxu0
    %v9362 = vadd.f32 %v9313, %v9361
    %9363 = vmatmul.bf16.gmra.mxu0 %v1818
    %v9364 = vpop.f32.mrf.mxu0
    %v9365 = vadd.f32 %v9316, %v9364
    %v9366 = vpop.f32.mrf.mxu0
    %v9367 = vadd.f32 %v9318, %v9366
    %9368 = vmatmul.bf16.gmra.mxu0 %v1842
    %v9369 = vpop.f32.mrf.mxu0
    %v9370 = vadd.f32 %v9321, %v9369
    %v9371 = vpop.f32.mrf.mxu0
    %v9372 = vadd.f32 %v9323, %v9371
    %9373 = vmatmul.bf16.gmra.mxu0 %v1866
    %v9374 = vpop.f32.mrf.mxu0
    %v9375 = vadd.f32 %v9326, %v9374
    %v9376 = vpop.f32.mrf.mxu0
    %v9377 = vadd.f32 %v9328, %v9376
    %9378 = vdwg.mxu0
    %9379 = vmatpush.bf16.msra.mxu0 %v5130
    %9380 = vmatpush.bf16.msra.mxu0 %v5126
    %9381 = vmatpush.bf16.msra.mxu0 %v5122
    %9382 = vmatpush.bf16.msra.mxu0 %v5118
    %9383 = vmatpush.bf16.msra.mxu0 %v5114
    %9384 = vmatpush.bf16.msra.mxu0 %v5110
    %9385 = vmatpush.bf16.msra.mxu0 %v5106
    %9386 = vmatpush.bf16.msra.mxu0 %v5102
    %9387 = vmatmul.bf16.gmra.mxu0 %v1699
    %v9388 = vpop.f32.mrf.mxu0
    %v9389 = vadd.f32 %v9340, %v9388
    %v9390 = vpop.f32.mrf.mxu0
    %v9391 = vadd.f32 %v9342, %v9390
    %9392 = vmatmul.bf16.gmra.mxu0 %v1723
    %v9393 = vpop.f32.mrf.mxu0
    %v9394 = vadd.f32 %v9345, %v9393
    %v9395 = vpop.f32.mrf.mxu0
    %v9396 = vadd.f32 %v9347, %v9395
    %9397 = vmatmul.bf16.gmra.mxu0 %v1747
    %v9398 = vpop.f32.mrf.mxu0
    %v9399 = vadd.f32 %v9350, %v9398
    %v9400 = vpop.f32.mrf.mxu0
    %v9401 = vadd.f32 %v9352, %v9400
    %9402 = vmatmul.bf16.gmra.mxu0 %v1771
    %v9403 = vpop.f32.mrf.mxu0
    %v9404 = vadd.f32 %v9355, %v9403
    %v9405 = vpop.f32.mrf.mxu0
    %v9406 = vadd.f32 %v9357, %v9405
    %9407 = vmatmul.bf16.gmra.mxu0 %v1795
    %v9408 = vpop.f32.mrf.mxu0
    %v9409 = vadd.f32 %v9360, %v9408
    %v9410 = vpop.f32.mrf.mxu0
    %v9411 = vadd.f32 %v9362, %v9410
    %9412 = vmatmul.bf16.gmra.mxu0 %v1819
    %v9413 = vpop.f32.mrf.mxu0
    %v9414 = vadd.f32 %v9365, %v9413
    %v9415 = vpop.f32.mrf.mxu0
    %v9416 = vadd.f32 %v9367, %v9415
    %9417 = vmatmul.bf16.gmra.mxu0 %v1843
    %v9418 = vpop.f32.mrf.mxu0
    %v9419 = vadd.f32 %v9370, %v9418
    %v9420 = vpop.f32.mrf.mxu0
    %v9421 = vadd.f32 %v9372, %v9420
    %9422 = vmatmul.bf16.gmra.mxu0 %v1867
    %v9423 = vpop.f32.mrf.mxu0
    %v9424 = vadd.f32 %v9375, %v9423
    %v9425 = vpop.f32.mrf.mxu0
    %v9426 = vadd.f32 %v9377, %v9425
    %9427 = vdwg.mxu0
    %9428 = vmatpush.bf16.msra.mxu0 %v4395
    %9429 = vmatpush.bf16.msra.mxu0 %v4391
    %9430 = vmatpush.bf16.msra.mxu0 %v4387
    %9431 = vmatpush.bf16.msra.mxu0 %v4383
    %9432 = vmatpush.bf16.msra.mxu0 %v4379
    %9433 = vmatpush.bf16.msra.mxu0 %v4375
    %9434 = vmatpush.bf16.msra.mxu0 %v4371
    %9435 = vmatpush.bf16.msra.mxu0 %v4367
    %9436 = vmatmul.bf16.gmra.mxu0 %v1676
    %v9437 = vpop.f32.mrf.mxu0
    %v9438 = vadd.f32 %v1095, %v9437
    %v9439 = vpop.f32.mrf.mxu0
    %v9440 = vadd.f32 %v1095, %v9439
    %9441 = vmatmul.bf16.gmra.mxu0 %v1700
    %v9442 = vpop.f32.mrf.mxu0
    %v9443 = vadd.f32 %v1095, %v9442
    %v9444 = vpop.f32.mrf.mxu0
    %v9445 = vadd.f32 %v1095, %v9444
    %9446 = vmatmul.bf16.gmra.mxu0 %v1724
    %v9447 = vpop.f32.mrf.mxu0
    %v9448 = vadd.f32 %v1095, %v9447
    %v9449 = vpop.f32.mrf.mxu0
    %v9450 = vadd.f32 %v1095, %v9449
    %9451 = vmatmul.bf16.gmra.mxu0 %v1748
    %v9452 = vpop.f32.mrf.mxu0
    %v9453 = vadd.f32 %v1095, %v9452
    %v9454 = vpop.f32.mrf.mxu0
    %v9455 = vadd.f32 %v1095, %v9454
    %9456 = vmatmul.bf16.gmra.mxu0 %v1772
    %v9457 = vpop.f32.mrf.mxu0
    %v9458 = vadd.f32 %v1095, %v9457
    %v9459 = vpop.f32.mrf.mxu0
    %v9460 = vadd.f32 %v1095, %v9459
    %9461 = vmatmul.bf16.gmra.mxu0 %v1796
    %v9462 = vpop.f32.mrf.mxu0
    %v9463 = vadd.f32 %v1095, %v9462
    %v9464 = vpop.f32.mrf.mxu0
    %v9465 = vadd.f32 %v1095, %v9464
    %9466 = vmatmul.bf16.gmra.mxu0 %v1820
    %v9467 = vpop.f32.mrf.mxu0
    %v9468 = vadd.f32 %v1095, %v9467
    %v9469 = vpop.f32.mrf.mxu0
    %v9470 = vadd.f32 %v1095, %v9469
    %9471 = vmatmul.bf16.gmra.mxu0 %v1844
    %v9472 = vpop.f32.mrf.mxu0
    %v9473 = vadd.f32 %v1095, %v9472
    %v9474 = vpop.f32.mrf.mxu0
    %v9475 = vadd.f32 %v1095, %v9474
    %9476 = vdwg.mxu0
    %9477 = vmatpush.bf16.msra.mxu0 %v4427
    %9478 = vmatpush.bf16.msra.mxu0 %v4423
    %9479 = vmatpush.bf16.msra.mxu0 %v4419
    %9480 = vmatpush.bf16.msra.mxu0 %v4415
    %9481 = vmatpush.bf16.msra.mxu0 %v4411
    %9482 = vmatpush.bf16.msra.mxu0 %v4407
    %9483 = vmatpush.bf16.msra.mxu0 %v4403
    %9484 = vmatpush.bf16.msra.mxu0 %v4399
    %9485 = vmatmul.bf16.gmra.mxu0 %v1677
    %v9486 = vpop.f32.mrf.mxu0
    %v9487 = vadd.f32 %v9438, %v9486
    %v9488 = vpop.f32.mrf.mxu0
    %v9489 = vadd.f32 %v9440, %v9488
    %9490 = vmatmul.bf16.gmra.mxu0 %v1701
    %v9491 = vpop.f32.mrf.mxu0
    %v9492 = vadd.f32 %v9443, %v9491
    %v9493 = vpop.f32.mrf.mxu0
    %v9494 = vadd.f32 %v9445, %v9493
    %9495 = vmatmul.bf16.gmra.mxu0 %v1725
    %v9496 = vpop.f32.mrf.mxu0
    %v9497 = vadd.f32 %v9448, %v9496
    %v9498 = vpop.f32.mrf.mxu0
    %v9499 = vadd.f32 %v9450, %v9498
    %9500 = vmatmul.bf16.gmra.mxu0 %v1749
    %v9501 = vpop.f32.mrf.mxu0
    %v9502 = vadd.f32 %v9453, %v9501
    %v9503 = vpop.f32.mrf.mxu0
    %v9504 = vadd.f32 %v9455, %v9503
    %9505 = vmatmul.bf16.gmra.mxu0 %v1773
    %v9506 = vpop.f32.mrf.mxu0
    %v9507 = vadd.f32 %v9458, %v9506
    %v9508 = vpop.f32.mrf.mxu0
    %v9509 = vadd.f32 %v9460, %v9508
    %9510 = vmatmul.bf16.gmra.mxu0 %v1797
    %v9511 = vpop.f32.mrf.mxu0
    %v9512 = vadd.f32 %v9463, %v9511
    %v9513 = vpop.f32.mrf.mxu0
    %v9514 = vadd.f32 %v9465, %v9513
    %9515 = vmatmul.bf16.gmra.mxu0 %v1821
    %v9516 = vpop.f32.mrf.mxu0
    %v9517 = vadd.f32 %v9468, %v9516
    %v9518 = vpop.f32.mrf.mxu0
    %v9519 = vadd.f32 %v9470, %v9518
    %9520 = vmatmul.bf16.gmra.mxu0 %v1845
    %v9521 = vpop.f32.mrf.mxu0
    %v9522 = vadd.f32 %v9473, %v9521
    %v9523 = vpop.f32.mrf.mxu0
    %v9524 = vadd.f32 %v9475, %v9523
    %9525 = vdwg.mxu0
    %9526 = vmatpush.bf16.msra.mxu0 %v4459
    %9527 = vmatpush.bf16.msra.mxu0 %v4455
    %9528 = vmatpush.bf16.msra.mxu0 %v4451
    %9529 = vmatpush.bf16.msra.mxu0 %v4447
    %9530 = vmatpush.bf16.msra.mxu0 %v4443
    %9531 = vmatpush.bf16.msra.mxu0 %v4439
    %9532 = vmatpush.bf16.msra.mxu0 %v4435
    %9533 = vmatpush.bf16.msra.mxu0 %v4431
    %9534 = vmatmul.bf16.gmra.mxu0 %v1678
    %v9535 = vpop.f32.mrf.mxu0
    %v9536 = vadd.f32 %v9487, %v9535
    %v9537 = vpop.f32.mrf.mxu0
    %v9538 = vadd.f32 %v9489, %v9537
    %9539 = vmatmul.bf16.gmra.mxu0 %v1702
    %v9540 = vpop.f32.mrf.mxu0
    %v9541 = vadd.f32 %v9492, %v9540
    %v9542 = vpop.f32.mrf.mxu0
    %v9543 = vadd.f32 %v9494, %v9542
    %9544 = vmatmul.bf16.gmra.mxu0 %v1726
    %v9545 = vpop.f32.mrf.mxu0
    %v9546 = vadd.f32 %v9497, %v9545
    %v9547 = vpop.f32.mrf.mxu0
    %v9548 = vadd.f32 %v9499, %v9547
    %9549 = vmatmul.bf16.gmra.mxu0 %v1750
    %v9550 = vpop.f32.mrf.mxu0
    %v9551 = vadd.f32 %v9502, %v9550
    %v9552 = vpop.f32.mrf.mxu0
    %v9553 = vadd.f32 %v9504, %v9552
    %9554 = vmatmul.bf16.gmra.mxu0 %v1774
    %v9555 = vpop.f32.mrf.mxu0
    %v9556 = vadd.f32 %v9507, %v9555
    %v9557 = vpop.f32.mrf.mxu0
    %v9558 = vadd.f32 %v9509, %v9557
    %9559 = vmatmul.bf16.gmra.mxu0 %v1798
    %v9560 = vpop.f32.mrf.mxu0
    %v9561 = vadd.f32 %v9512, %v9560
    %v9562 = vpop.f32.mrf.mxu0
    %v9563 = vadd.f32 %v9514, %v9562
    %9564 = vmatmul.bf16.gmra.mxu0 %v1822
    %v9565 = vpop.f32.mrf.mxu0
    %v9566 = vadd.f32 %v9517, %v9565
    %v9567 = vpop.f32.mrf.mxu0
    %v9568 = vadd.f32 %v9519, %v9567
    %9569 = vmatmul.bf16.gmra.mxu0 %v1846
    %v9570 = vpop.f32.mrf.mxu0
    %v9571 = vadd.f32 %v9522, %v9570
    %v9572 = vpop.f32.mrf.mxu0
    %v9573 = vadd.f32 %v9524, %v9572
    %9574 = vdwg.mxu0
    %9575 = vmatpush.bf16.msra.mxu0 %v4491
    %9576 = vmatpush.bf16.msra.mxu0 %v4487
    %9577 = vmatpush.bf16.msra.mxu0 %v4483
    %9578 = vmatpush.bf16.msra.mxu0 %v4479
    %9579 = vmatpush.bf16.msra.mxu0 %v4475
    %9580 = vmatpush.bf16.msra.mxu0 %v4471
    %9581 = vmatpush.bf16.msra.mxu0 %v4467
    %9582 = vmatpush.bf16.msra.mxu0 %v4463
    %9583 = vmatmul.bf16.gmra.mxu0 %v1679
    %v9584 = vpop.f32.mrf.mxu0
    %v9585 = vadd.f32 %v9536, %v9584
    %v9586 = vpop.f32.mrf.mxu0
    %v9587 = vadd.f32 %v9538, %v9586
    %9588 = vmatmul.bf16.gmra.mxu0 %v1703
    %v9589 = vpop.f32.mrf.mxu0
    %v9590 = vadd.f32 %v9541, %v9589
    %v9591 = vpop.f32.mrf.mxu0
    %v9592 = vadd.f32 %v9543, %v9591
    %9593 = vmatmul.bf16.gmra.mxu0 %v1727
    %v9594 = vpop.f32.mrf.mxu0
    %v9595 = vadd.f32 %v9546, %v9594
    %v9596 = vpop.f32.mrf.mxu0
    %v9597 = vadd.f32 %v9548, %v9596
    %9598 = vmatmul.bf16.gmra.mxu0 %v1751
    %v9599 = vpop.f32.mrf.mxu0
    %v9600 = vadd.f32 %v9551, %v9599
    %v9601 = vpop.f32.mrf.mxu0
    %v9602 = vadd.f32 %v9553, %v9601
    %9603 = vmatmul.bf16.gmra.mxu0 %v1775
    %v9604 = vpop.f32.mrf.mxu0
    %v9605 = vadd.f32 %v9556, %v9604
    %v9606 = vpop.f32.mrf.mxu0
    %v9607 = vadd.f32 %v9558, %v9606
    %9608 = vmatmul.bf16.gmra.mxu0 %v1799
    %v9609 = vpop.f32.mrf.mxu0
    %v9610 = vadd.f32 %v9561, %v9609
    %v9611 = vpop.f32.mrf.mxu0
    %v9612 = vadd.f32 %v9563, %v9611
    %9613 = vmatmul.bf16.gmra.mxu0 %v1823
    %v9614 = vpop.f32.mrf.mxu0
    %v9615 = vadd.f32 %v9566, %v9614
    %v9616 = vpop.f32.mrf.mxu0
    %v9617 = vadd.f32 %v9568, %v9616
    %9618 = vmatmul.bf16.gmra.mxu0 %v1847
    %v9619 = vpop.f32.mrf.mxu0
    %v9620 = vadd.f32 %v9571, %v9619
    %v9621 = vpop.f32.mrf.mxu0
    %v9622 = vadd.f32 %v9573, %v9621
    %9623 = vdwg.mxu0
    %9624 = vmatpush.bf16.msra.mxu0 %v4523
    %9625 = vmatpush.bf16.msra.mxu0 %v4519
    %9626 = vmatpush.bf16.msra.mxu0 %v4515
    %9627 = vmatpush.bf16.msra.mxu0 %v4511
    %9628 = vmatpush.bf16.msra.mxu0 %v4507
    %9629 = vmatpush.bf16.msra.mxu0 %v4503
    %9630 = vmatpush.bf16.msra.mxu0 %v4499
    %9631 = vmatpush.bf16.msra.mxu0 %v4495
    %9632 = vmatmul.bf16.gmra.mxu0 %v1680
    %v9633 = vpop.f32.mrf.mxu0
    %v9634 = vadd.f32 %v9585, %v9633
    %v9635 = vpop.f32.mrf.mxu0
    %v9636 = vadd.f32 %v9587, %v9635
    %9637 = vmatmul.bf16.gmra.mxu0 %v1704
    %v9638 = vpop.f32.mrf.mxu0
    %v9639 = vadd.f32 %v9590, %v9638
    %v9640 = vpop.f32.mrf.mxu0
    %v9641 = vadd.f32 %v9592, %v9640
    %9642 = vmatmul.bf16.gmra.mxu0 %v1728
    %v9643 = vpop.f32.mrf.mxu0
    %v9644 = vadd.f32 %v9595, %v9643
    %v9645 = vpop.f32.mrf.mxu0
    %v9646 = vadd.f32 %v9597, %v9645
    %9647 = vmatmul.bf16.gmra.mxu0 %v1752
    %v9648 = vpop.f32.mrf.mxu0
    %v9649 = vadd.f32 %v9600, %v9648
    %v9650 = vpop.f32.mrf.mxu0
    %v9651 = vadd.f32 %v9602, %v9650
    %9652 = vmatmul.bf16.gmra.mxu0 %v1776
    %v9653 = vpop.f32.mrf.mxu0
    %v9654 = vadd.f32 %v9605, %v9653
    %v9655 = vpop.f32.mrf.mxu0
    %v9656 = vadd.f32 %v9607, %v9655
    %9657 = vmatmul.bf16.gmra.mxu0 %v1800
    %v9658 = vpop.f32.mrf.mxu0
    %v9659 = vadd.f32 %v9610, %v9658
    %v9660 = vpop.f32.mrf.mxu0
    %v9661 = vadd.f32 %v9612, %v9660
    %9662 = vmatmul.bf16.gmra.mxu0 %v1824
    %v9663 = vpop.f32.mrf.mxu0
    %v9664 = vadd.f32 %v9615, %v9663
    %v9665 = vpop.f32.mrf.mxu0
    %v9666 = vadd.f32 %v9617, %v9665
    %9667 = vmatmul.bf16.gmra.mxu0 %v1848
    %v9668 = vpop.f32.mrf.mxu0
    %v9669 = vadd.f32 %v9620, %v9668
    %v9670 = vpop.f32.mrf.mxu0
    %v9671 = vadd.f32 %v9622, %v9670
    %9672 = vdwg.mxu0
    %9673 = vmatpush.bf16.msra.mxu0 %v4555
    %9674 = vmatpush.bf16.msra.mxu0 %v4551
    %9675 = vmatpush.bf16.msra.mxu0 %v4547
    %9676 = vmatpush.bf16.msra.mxu0 %v4543
    %9677 = vmatpush.bf16.msra.mxu0 %v4539
    %9678 = vmatpush.bf16.msra.mxu0 %v4535
    %9679 = vmatpush.bf16.msra.mxu0 %v4531
    %9680 = vmatpush.bf16.msra.mxu0 %v4527
    %9681 = vmatmul.bf16.gmra.mxu0 %v1681
    %v9682 = vpop.f32.mrf.mxu0
    %v9683 = vadd.f32 %v9634, %v9682
    %v9684 = vpop.f32.mrf.mxu0
    %v9685 = vadd.f32 %v9636, %v9684
    %9686 = vmatmul.bf16.gmra.mxu0 %v1705
    %v9687 = vpop.f32.mrf.mxu0
    %v9688 = vadd.f32 %v9639, %v9687
    %v9689 = vpop.f32.mrf.mxu0
    %v9690 = vadd.f32 %v9641, %v9689
    %9691 = vmatmul.bf16.gmra.mxu0 %v1729
    %v9692 = vpop.f32.mrf.mxu0
    %v9693 = vadd.f32 %v9644, %v9692
    %v9694 = vpop.f32.mrf.mxu0
    %v9695 = vadd.f32 %v9646, %v9694
    %9696 = vmatmul.bf16.gmra.mxu0 %v1753
    %v9697 = vpop.f32.mrf.mxu0
    %v9698 = vadd.f32 %v9649, %v9697
    %v9699 = vpop.f32.mrf.mxu0
    %v9700 = vadd.f32 %v9651, %v9699
    %9701 = vmatmul.bf16.gmra.mxu0 %v1777
    %v9702 = vpop.f32.mrf.mxu0
    %v9703 = vadd.f32 %v9654, %v9702
    %v9704 = vpop.f32.mrf.mxu0
    %v9705 = vadd.f32 %v9656, %v9704
    %9706 = vmatmul.bf16.gmra.mxu0 %v1801
    %v9707 = vpop.f32.mrf.mxu0
    %v9708 = vadd.f32 %v9659, %v9707
    %v9709 = vpop.f32.mrf.mxu0
    %v9710 = vadd.f32 %v9661, %v9709
    %9711 = vmatmul.bf16.gmra.mxu0 %v1825
    %v9712 = vpop.f32.mrf.mxu0
    %v9713 = vadd.f32 %v9664, %v9712
    %v9714 = vpop.f32.mrf.mxu0
    %v9715 = vadd.f32 %v9666, %v9714
    %9716 = vmatmul.bf16.gmra.mxu0 %v1849
    %v9717 = vpop.f32.mrf.mxu0
    %v9718 = vadd.f32 %v9669, %v9717
    %v9719 = vpop.f32.mrf.mxu0
    %v9720 = vadd.f32 %v9671, %v9719
    %9721 = vdwg.mxu0
    %9722 = vmatpush.bf16.msra.mxu0 %v4587
    %9723 = vmatpush.bf16.msra.mxu0 %v4583
    %9724 = vmatpush.bf16.msra.mxu0 %v4579
    %9725 = vmatpush.bf16.msra.mxu0 %v4575
    %9726 = vmatpush.bf16.msra.mxu0 %v4571
    %9727 = vmatpush.bf16.msra.mxu0 %v4567
    %9728 = vmatpush.bf16.msra.mxu0 %v4563
    %9729 = vmatpush.bf16.msra.mxu0 %v4559
    %9730 = vmatmul.bf16.gmra.mxu0 %v1682
    %v9731 = vpop.f32.mrf.mxu0
    %v9732 = vadd.f32 %v9683, %v9731
    %v9733 = vpop.f32.mrf.mxu0
    %v9734 = vadd.f32 %v9685, %v9733
    %9735 = vmatmul.bf16.gmra.mxu0 %v1706
    %v9736 = vpop.f32.mrf.mxu0
    %v9737 = vadd.f32 %v9688, %v9736
    %v9738 = vpop.f32.mrf.mxu0
    %v9739 = vadd.f32 %v9690, %v9738
    %9740 = vmatmul.bf16.gmra.mxu0 %v1730
    %v9741 = vpop.f32.mrf.mxu0
    %v9742 = vadd.f32 %v9693, %v9741
    %v9743 = vpop.f32.mrf.mxu0
    %v9744 = vadd.f32 %v9695, %v9743
    %9745 = vmatmul.bf16.gmra.mxu0 %v1754
    %v9746 = vpop.f32.mrf.mxu0
    %v9747 = vadd.f32 %v9698, %v9746
    %v9748 = vpop.f32.mrf.mxu0
    %v9749 = vadd.f32 %v9700, %v9748
    %9750 = vmatmul.bf16.gmra.mxu0 %v1778
    %v9751 = vpop.f32.mrf.mxu0
    %v9752 = vadd.f32 %v9703, %v9751
    %v9753 = vpop.f32.mrf.mxu0
    %v9754 = vadd.f32 %v9705, %v9753
    %9755 = vmatmul.bf16.gmra.mxu0 %v1802
    %v9756 = vpop.f32.mrf.mxu0
    %v9757 = vadd.f32 %v9708, %v9756
    %v9758 = vpop.f32.mrf.mxu0
    %v9759 = vadd.f32 %v9710, %v9758
    %9760 = vmatmul.bf16.gmra.mxu0 %v1826
    %v9761 = vpop.f32.mrf.mxu0
    %v9762 = vadd.f32 %v9713, %v9761
    %v9763 = vpop.f32.mrf.mxu0
    %v9764 = vadd.f32 %v9715, %v9763
    %9765 = vmatmul.bf16.gmra.mxu0 %v1850
    %v9766 = vpop.f32.mrf.mxu0
    %v9767 = vadd.f32 %v9718, %v9766
    %v9768 = vpop.f32.mrf.mxu0
    %v9769 = vadd.f32 %v9720, %v9768
    %9770 = vdwg.mxu0
    %9771 = vmatpush.bf16.msra.mxu0 %v4619
    %9772 = vmatpush.bf16.msra.mxu0 %v4615
    %9773 = vmatpush.bf16.msra.mxu0 %v4611
    %9774 = vmatpush.bf16.msra.mxu0 %v4607
    %9775 = vmatpush.bf16.msra.mxu0 %v4603
    %9776 = vmatpush.bf16.msra.mxu0 %v4599
    %9777 = vmatpush.bf16.msra.mxu0 %v4595
    %9778 = vmatpush.bf16.msra.mxu0 %v4591
    %9779 = vmatmul.bf16.gmra.mxu0 %v1683
    %v9780 = vpop.f32.mrf.mxu0
    %v9781 = vadd.f32 %v9732, %v9780
    %v9782 = vpop.f32.mrf.mxu0
    %v9783 = vadd.f32 %v9734, %v9782
    %9784 = vmatmul.bf16.gmra.mxu0 %v1707
    %v9785 = vpop.f32.mrf.mxu0
    %v9786 = vadd.f32 %v9737, %v9785
    %v9787 = vpop.f32.mrf.mxu0
    %v9788 = vadd.f32 %v9739, %v9787
    %9789 = vmatmul.bf16.gmra.mxu0 %v1731
    %v9790 = vpop.f32.mrf.mxu0
    %v9791 = vadd.f32 %v9742, %v9790
    %v9792 = vpop.f32.mrf.mxu0
    %v9793 = vadd.f32 %v9744, %v9792
    %9794 = vmatmul.bf16.gmra.mxu0 %v1755
    %v9795 = vpop.f32.mrf.mxu0
    %v9796 = vadd.f32 %v9747, %v9795
    %v9797 = vpop.f32.mrf.mxu0
    %v9798 = vadd.f32 %v9749, %v9797
    %9799 = vmatmul.bf16.gmra.mxu0 %v1779
    %v9800 = vpop.f32.mrf.mxu0
    %v9801 = vadd.f32 %v9752, %v9800
    %v9802 = vpop.f32.mrf.mxu0
    %v9803 = vadd.f32 %v9754, %v9802
    %9804 = vmatmul.bf16.gmra.mxu0 %v1803
    %v9805 = vpop.f32.mrf.mxu0
    %v9806 = vadd.f32 %v9757, %v9805
    %v9807 = vpop.f32.mrf.mxu0
    %v9808 = vadd.f32 %v9759, %v9807
    %9809 = vmatmul.bf16.gmra.mxu0 %v1827
    %v9810 = vpop.f32.mrf.mxu0
    %v9811 = vadd.f32 %v9762, %v9810
    %v9812 = vpop.f32.mrf.mxu0
    %v9813 = vadd.f32 %v9764, %v9812
    %9814 = vmatmul.bf16.gmra.mxu0 %v1851
    %v9815 = vpop.f32.mrf.mxu0
    %v9816 = vadd.f32 %v9767, %v9815
    %v9817 = vpop.f32.mrf.mxu0
    %v9818 = vadd.f32 %v9769, %v9817
    %9819 = vdwg.mxu0
    %9820 = vmatpush.bf16.msra.mxu0 %v4651
    %9821 = vmatpush.bf16.msra.mxu0 %v4647
    %9822 = vmatpush.bf16.msra.mxu0 %v4643
    %9823 = vmatpush.bf16.msra.mxu0 %v4639
    %9824 = vmatpush.bf16.msra.mxu0 %v4635
    %9825 = vmatpush.bf16.msra.mxu0 %v4631
    %9826 = vmatpush.bf16.msra.mxu0 %v4627
    %9827 = vmatpush.bf16.msra.mxu0 %v4623
    %9828 = vmatmul.bf16.gmra.mxu0 %v1684
    %v9829 = vpop.f32.mrf.mxu0
    %v9830 = vadd.f32 %v9781, %v9829
    %v9831 = vpop.f32.mrf.mxu0
    %v9832 = vadd.f32 %v9783, %v9831
    %9833 = vmatmul.bf16.gmra.mxu0 %v1708
    %v9834 = vpop.f32.mrf.mxu0
    %v9835 = vadd.f32 %v9786, %v9834
    %v9836 = vpop.f32.mrf.mxu0
    %v9837 = vadd.f32 %v9788, %v9836
    %9838 = vmatmul.bf16.gmra.mxu0 %v1732
    %v9839 = vpop.f32.mrf.mxu0
    %v9840 = vadd.f32 %v9791, %v9839
    %v9841 = vpop.f32.mrf.mxu0
    %v9842 = vadd.f32 %v9793, %v9841
    %9843 = vmatmul.bf16.gmra.mxu0 %v1756
    %v9844 = vpop.f32.mrf.mxu0
    %v9845 = vadd.f32 %v9796, %v9844
    %v9846 = vpop.f32.mrf.mxu0
    %v9847 = vadd.f32 %v9798, %v9846
    %9848 = vmatmul.bf16.gmra.mxu0 %v1780
    %v9849 = vpop.f32.mrf.mxu0
    %v9850 = vadd.f32 %v9801, %v9849
    %v9851 = vpop.f32.mrf.mxu0
    %v9852 = vadd.f32 %v9803, %v9851
    %9853 = vmatmul.bf16.gmra.mxu0 %v1804
    %v9854 = vpop.f32.mrf.mxu0
    %v9855 = vadd.f32 %v9806, %v9854
    %v9856 = vpop.f32.mrf.mxu0
    %v9857 = vadd.f32 %v9808, %v9856
    %9858 = vmatmul.bf16.gmra.mxu0 %v1828
    %v9859 = vpop.f32.mrf.mxu0
    %v9860 = vadd.f32 %v9811, %v9859
    %v9861 = vpop.f32.mrf.mxu0
    %v9862 = vadd.f32 %v9813, %v9861
    %9863 = vmatmul.bf16.gmra.mxu0 %v1852
    %v9864 = vpop.f32.mrf.mxu0
    %v9865 = vadd.f32 %v9816, %v9864
    %v9866 = vpop.f32.mrf.mxu0
    %v9867 = vadd.f32 %v9818, %v9866
    %9868 = vdwg.mxu0
    %9869 = vmatpush.bf16.msra.mxu0 %v4683
    %9870 = vmatpush.bf16.msra.mxu0 %v4679
    %9871 = vmatpush.bf16.msra.mxu0 %v4675
    %9872 = vmatpush.bf16.msra.mxu0 %v4671
    %9873 = vmatpush.bf16.msra.mxu0 %v4667
    %9874 = vmatpush.bf16.msra.mxu0 %v4663
    %9875 = vmatpush.bf16.msra.mxu0 %v4659
    %9876 = vmatpush.bf16.msra.mxu0 %v4655
    %9877 = vmatmul.bf16.gmra.mxu0 %v1685
    %v9878 = vpop.f32.mrf.mxu0
    %v9879 = vadd.f32 %v9830, %v9878
    %v9880 = vpop.f32.mrf.mxu0
    %v9881 = vadd.f32 %v9832, %v9880
    %9882 = vmatmul.bf16.gmra.mxu0 %v1709
    %v9883 = vpop.f32.mrf.mxu0
    %v9884 = vadd.f32 %v9835, %v9883
    %v9885 = vpop.f32.mrf.mxu0
    %v9886 = vadd.f32 %v9837, %v9885
    %9887 = vmatmul.bf16.gmra.mxu0 %v1733
    %v9888 = vpop.f32.mrf.mxu0
    %v9889 = vadd.f32 %v9840, %v9888
    %v9890 = vpop.f32.mrf.mxu0
    %v9891 = vadd.f32 %v9842, %v9890
    %9892 = vmatmul.bf16.gmra.mxu0 %v1757
    %v9893 = vpop.f32.mrf.mxu0
    %v9894 = vadd.f32 %v9845, %v9893
    %v9895 = vpop.f32.mrf.mxu0
    %v9896 = vadd.f32 %v9847, %v9895
    %9897 = vmatmul.bf16.gmra.mxu0 %v1781
    %v9898 = vpop.f32.mrf.mxu0
    %v9899 = vadd.f32 %v9850, %v9898
    %v9900 = vpop.f32.mrf.mxu0
    %v9901 = vadd.f32 %v9852, %v9900
    %9902 = vmatmul.bf16.gmra.mxu0 %v1805
    %v9903 = vpop.f32.mrf.mxu0
    %v9904 = vadd.f32 %v9855, %v9903
    %v9905 = vpop.f32.mrf.mxu0
    %v9906 = vadd.f32 %v9857, %v9905
    %9907 = vmatmul.bf16.gmra.mxu0 %v1829
    %v9908 = vpop.f32.mrf.mxu0
    %v9909 = vadd.f32 %v9860, %v9908
    %v9910 = vpop.f32.mrf.mxu0
    %v9911 = vadd.f32 %v9862, %v9910
    %9912 = vmatmul.bf16.gmra.mxu0 %v1853
    %v9913 = vpop.f32.mrf.mxu0
    %v9914 = vadd.f32 %v9865, %v9913
    %v9915 = vpop.f32.mrf.mxu0
    %v9916 = vadd.f32 %v9867, %v9915
    %9917 = vdwg.mxu0
    %9918 = vmatpush.bf16.msra.mxu0 %v4715
    %9919 = vmatpush.bf16.msra.mxu0 %v4711
    %9920 = vmatpush.bf16.msra.mxu0 %v4707
    %9921 = vmatpush.bf16.msra.mxu0 %v4703
    %9922 = vmatpush.bf16.msra.mxu0 %v4699
    %9923 = vmatpush.bf16.msra.mxu0 %v4695
    %9924 = vmatpush.bf16.msra.mxu0 %v4691
    %9925 = vmatpush.bf16.msra.mxu0 %v4687
    %9926 = vmatmul.bf16.gmra.mxu0 %v1686
    %v9927 = vpop.f32.mrf.mxu0
    %v9928 = vadd.f32 %v9879, %v9927
    %v9929 = vpop.f32.mrf.mxu0
    %v9930 = vadd.f32 %v9881, %v9929
    %9931 = vmatmul.bf16.gmra.mxu0 %v1710
    %v9932 = vpop.f32.mrf.mxu0
    %v9933 = vadd.f32 %v9884, %v9932
    %v9934 = vpop.f32.mrf.mxu0
    %v9935 = vadd.f32 %v9886, %v9934
    %9936 = vmatmul.bf16.gmra.mxu0 %v1734
    %v9937 = vpop.f32.mrf.mxu0
    %v9938 = vadd.f32 %v9889, %v9937
    %v9939 = vpop.f32.mrf.mxu0
    %v9940 = vadd.f32 %v9891, %v9939
    %9941 = vmatmul.bf16.gmra.mxu0 %v1758
    %v9942 = vpop.f32.mrf.mxu0
    %v9943 = vadd.f32 %v9894, %v9942
    %v9944 = vpop.f32.mrf.mxu0
    %v9945 = vadd.f32 %v9896, %v9944
    %9946 = vmatmul.bf16.gmra.mxu0 %v1782
    %v9947 = vpop.f32.mrf.mxu0
    %v9948 = vadd.f32 %v9899, %v9947
    %v9949 = vpop.f32.mrf.mxu0
    %v9950 = vadd.f32 %v9901, %v9949
    %9951 = vmatmul.bf16.gmra.mxu0 %v1806
    %v9952 = vpop.f32.mrf.mxu0
    %v9953 = vadd.f32 %v9904, %v9952
    %v9954 = vpop.f32.mrf.mxu0
    %v9955 = vadd.f32 %v9906, %v9954
    %9956 = vmatmul.bf16.gmra.mxu0 %v1830
    %v9957 = vpop.f32.mrf.mxu0
    %v9958 = vadd.f32 %v9909, %v9957
    %v9959 = vpop.f32.mrf.mxu0
    %v9960 = vadd.f32 %v9911, %v9959
    %9961 = vmatmul.bf16.gmra.mxu0 %v1854
    %v9962 = vpop.f32.mrf.mxu0
    %v9963 = vadd.f32 %v9914, %v9962
    %v9964 = vpop.f32.mrf.mxu0
    %v9965 = vadd.f32 %v9916, %v9964
    %9966 = vdwg.mxu0
    %9967 = vmatpush.bf16.msra.mxu0 %v4747
    %9968 = vmatpush.bf16.msra.mxu0 %v4743
    %9969 = vmatpush.bf16.msra.mxu0 %v4739
    %9970 = vmatpush.bf16.msra.mxu0 %v4735
    %9971 = vmatpush.bf16.msra.mxu0 %v4731
    %9972 = vmatpush.bf16.msra.mxu0 %v4727
    %9973 = vmatpush.bf16.msra.mxu0 %v4723
    %9974 = vmatpush.bf16.msra.mxu0 %v4719
    %9975 = vmatmul.bf16.gmra.mxu0 %v1687
    %v9976 = vpop.f32.mrf.mxu0
    %v9977 = vadd.f32 %v9928, %v9976
    %v9978 = vpop.f32.mrf.mxu0
    %v9979 = vadd.f32 %v9930, %v9978
    %9980 = vmatmul.bf16.gmra.mxu0 %v1711
    %v9981 = vpop.f32.mrf.mxu0
    %v9982 = vadd.f32 %v9933, %v9981
    %v9983 = vpop.f32.mrf.mxu0
    %v9984 = vadd.f32 %v9935, %v9983
    %9985 = vmatmul.bf16.gmra.mxu0 %v1735
    %v9986 = vpop.f32.mrf.mxu0
    %v9987 = vadd.f32 %v9938, %v9986
    %v9988 = vpop.f32.mrf.mxu0
    %v9989 = vadd.f32 %v9940, %v9988
    %9990 = vmatmul.bf16.gmra.mxu0 %v1759
    %v9991 = vpop.f32.mrf.mxu0
    %v9992 = vadd.f32 %v9943, %v9991
    %v9993 = vpop.f32.mrf.mxu0
    %v9994 = vadd.f32 %v9945, %v9993
    %9995 = vmatmul.bf16.gmra.mxu0 %v1783
    %v9996 = vpop.f32.mrf.mxu0
    %v9997 = vadd.f32 %v9948, %v9996
    %v9998 = vpop.f32.mrf.mxu0
    %v9999 = vadd.f32 %v9950, %v9998
    %10000 = vmatmul.bf16.gmra.mxu0 %v1807
    %v10001 = vpop.f32.mrf.mxu0
    %v10002 = vadd.f32 %v9953, %v10001
    %v10003 = vpop.f32.mrf.mxu0
    %v10004 = vadd.f32 %v9955, %v10003
    %10005 = vmatmul.bf16.gmra.mxu0 %v1831
    %v10006 = vpop.f32.mrf.mxu0
    %v10007 = vadd.f32 %v9958, %v10006
    %v10008 = vpop.f32.mrf.mxu0
    %v10009 = vadd.f32 %v9960, %v10008
    %10010 = vmatmul.bf16.gmra.mxu0 %v1855
    %v10011 = vpop.f32.mrf.mxu0
    %v10012 = vadd.f32 %v9963, %v10011
    %v10013 = vpop.f32.mrf.mxu0
    %v10014 = vadd.f32 %v9965, %v10013
    %10015 = vdwg.mxu0
    %10016 = vmatpush.bf16.msra.mxu0 %v4779
    %10017 = vmatpush.bf16.msra.mxu0 %v4775
    %10018 = vmatpush.bf16.msra.mxu0 %v4771
    %10019 = vmatpush.bf16.msra.mxu0 %v4767
    %10020 = vmatpush.bf16.msra.mxu0 %v4763
    %10021 = vmatpush.bf16.msra.mxu0 %v4759
    %10022 = vmatpush.bf16.msra.mxu0 %v4755
    %10023 = vmatpush.bf16.msra.mxu0 %v4751
    %10024 = vmatmul.bf16.gmra.mxu0 %v1688
    %v10025 = vpop.f32.mrf.mxu0
    %v10026 = vadd.f32 %v9977, %v10025
    %v10027 = vpop.f32.mrf.mxu0
    %v10028 = vadd.f32 %v9979, %v10027
    %10029 = vmatmul.bf16.gmra.mxu0 %v1712
    %v10030 = vpop.f32.mrf.mxu0
    %v10031 = vadd.f32 %v9982, %v10030
    %v10032 = vpop.f32.mrf.mxu0
    %v10033 = vadd.f32 %v9984, %v10032
    %10034 = vmatmul.bf16.gmra.mxu0 %v1736
    %v10035 = vpop.f32.mrf.mxu0
    %v10036 = vadd.f32 %v9987, %v10035
    %v10037 = vpop.f32.mrf.mxu0
    %v10038 = vadd.f32 %v9989, %v10037
    %10039 = vmatmul.bf16.gmra.mxu0 %v1760
    %v10040 = vpop.f32.mrf.mxu0
    %v10041 = vadd.f32 %v9992, %v10040
    %v10042 = vpop.f32.mrf.mxu0
    %v10043 = vadd.f32 %v9994, %v10042
    %10044 = vmatmul.bf16.gmra.mxu0 %v1784
    %v10045 = vpop.f32.mrf.mxu0
    %v10046 = vadd.f32 %v9997, %v10045
    %v10047 = vpop.f32.mrf.mxu0
    %v10048 = vadd.f32 %v9999, %v10047
    %10049 = vmatmul.bf16.gmra.mxu0 %v1808
    %v10050 = vpop.f32.mrf.mxu0
    %v10051 = vadd.f32 %v10002, %v10050
    %v10052 = vpop.f32.mrf.mxu0
    %v10053 = vadd.f32 %v10004, %v10052
    %10054 = vmatmul.bf16.gmra.mxu0 %v1832
    %v10055 = vpop.f32.mrf.mxu0
    %v10056 = vadd.f32 %v10007, %v10055
    %v10057 = vpop.f32.mrf.mxu0
    %v10058 = vadd.f32 %v10009, %v10057
    %10059 = vmatmul.bf16.gmra.mxu0 %v1856
    %v10060 = vpop.f32.mrf.mxu0
    %v10061 = vadd.f32 %v10012, %v10060
    %v10062 = vpop.f32.mrf.mxu0
    %v10063 = vadd.f32 %v10014, %v10062
    %10064 = vdwg.mxu0
    %10065 = vmatpush.bf16.msra.mxu0 %v4811
    %10066 = vmatpush.bf16.msra.mxu0 %v4807
    %10067 = vmatpush.bf16.msra.mxu0 %v4803
    %10068 = vmatpush.bf16.msra.mxu0 %v4799
    %10069 = vmatpush.bf16.msra.mxu0 %v4795
    %10070 = vmatpush.bf16.msra.mxu0 %v4791
    %10071 = vmatpush.bf16.msra.mxu0 %v4787
    %10072 = vmatpush.bf16.msra.mxu0 %v4783
    %10073 = vmatmul.bf16.gmra.mxu0 %v1689
    %v10074 = vpop.f32.mrf.mxu0
    %v10075 = vadd.f32 %v10026, %v10074
    %v10076 = vpop.f32.mrf.mxu0
    %v10077 = vadd.f32 %v10028, %v10076
    %10078 = vmatmul.bf16.gmra.mxu0 %v1713
    %v10079 = vpop.f32.mrf.mxu0
    %v10080 = vadd.f32 %v10031, %v10079
    %v10081 = vpop.f32.mrf.mxu0
    %v10082 = vadd.f32 %v10033, %v10081
    %10083 = vmatmul.bf16.gmra.mxu0 %v1737
    %v10084 = vpop.f32.mrf.mxu0
    %v10085 = vadd.f32 %v10036, %v10084
    %v10086 = vpop.f32.mrf.mxu0
    %v10087 = vadd.f32 %v10038, %v10086
    %10088 = vmatmul.bf16.gmra.mxu0 %v1761
    %v10089 = vpop.f32.mrf.mxu0
    %v10090 = vadd.f32 %v10041, %v10089
    %v10091 = vpop.f32.mrf.mxu0
    %v10092 = vadd.f32 %v10043, %v10091
    %10093 = vmatmul.bf16.gmra.mxu0 %v1785
    %v10094 = vpop.f32.mrf.mxu0
    %v10095 = vadd.f32 %v10046, %v10094
    %v10096 = vpop.f32.mrf.mxu0
    %v10097 = vadd.f32 %v10048, %v10096
    %10098 = vmatmul.bf16.gmra.mxu0 %v1809
    %v10099 = vpop.f32.mrf.mxu0
    %v10100 = vadd.f32 %v10051, %v10099
    %v10101 = vpop.f32.mrf.mxu0
    %v10102 = vadd.f32 %v10053, %v10101
    %10103 = vmatmul.bf16.gmra.mxu0 %v1833
    %v10104 = vpop.f32.mrf.mxu0
    %v10105 = vadd.f32 %v10056, %v10104
    %v10106 = vpop.f32.mrf.mxu0
    %v10107 = vadd.f32 %v10058, %v10106
    %10108 = vmatmul.bf16.gmra.mxu0 %v1857
    %v10109 = vpop.f32.mrf.mxu0
    %v10110 = vadd.f32 %v10061, %v10109
    %v10111 = vpop.f32.mrf.mxu0
    %v10112 = vadd.f32 %v10063, %v10111
    %10113 = vdwg.mxu0
    %10114 = vmatpush.bf16.msra.mxu0 %v4843
    %10115 = vmatpush.bf16.msra.mxu0 %v4839
    %10116 = vmatpush.bf16.msra.mxu0 %v4835
    %10117 = vmatpush.bf16.msra.mxu0 %v4831
    %10118 = vmatpush.bf16.msra.mxu0 %v4827
    %10119 = vmatpush.bf16.msra.mxu0 %v4823
    %10120 = vmatpush.bf16.msra.mxu0 %v4819
    %10121 = vmatpush.bf16.msra.mxu0 %v4815
    %10122 = vmatmul.bf16.gmra.mxu0 %v1690
    %v10123 = vpop.f32.mrf.mxu0
    %v10124 = vadd.f32 %v10075, %v10123
    %v10125 = vpop.f32.mrf.mxu0
    %v10126 = vadd.f32 %v10077, %v10125
    %10127 = vmatmul.bf16.gmra.mxu0 %v1714
    %v10128 = vpop.f32.mrf.mxu0
    %v10129 = vadd.f32 %v10080, %v10128
    %v10130 = vpop.f32.mrf.mxu0
    %v10131 = vadd.f32 %v10082, %v10130
    %10132 = vmatmul.bf16.gmra.mxu0 %v1738
    %v10133 = vpop.f32.mrf.mxu0
    %v10134 = vadd.f32 %v10085, %v10133
    %v10135 = vpop.f32.mrf.mxu0
    %v10136 = vadd.f32 %v10087, %v10135
    %10137 = vmatmul.bf16.gmra.mxu0 %v1762
    %v10138 = vpop.f32.mrf.mxu0
    %v10139 = vadd.f32 %v10090, %v10138
    %v10140 = vpop.f32.mrf.mxu0
    %v10141 = vadd.f32 %v10092, %v10140
    %10142 = vmatmul.bf16.gmra.mxu0 %v1786
    %v10143 = vpop.f32.mrf.mxu0
    %v10144 = vadd.f32 %v10095, %v10143
    %v10145 = vpop.f32.mrf.mxu0
    %v10146 = vadd.f32 %v10097, %v10145
    %10147 = vmatmul.bf16.gmra.mxu0 %v1810
    %v10148 = vpop.f32.mrf.mxu0
    %v10149 = vadd.f32 %v10100, %v10148
    %v10150 = vpop.f32.mrf.mxu0
    %v10151 = vadd.f32 %v10102, %v10150
    %10152 = vmatmul.bf16.gmra.mxu0 %v1834
    %v10153 = vpop.f32.mrf.mxu0
    %v10154 = vadd.f32 %v10105, %v10153
    %v10155 = vpop.f32.mrf.mxu0
    %v10156 = vadd.f32 %v10107, %v10155
    %10157 = vmatmul.bf16.gmra.mxu0 %v1858
    %v10158 = vpop.f32.mrf.mxu0
    %v10159 = vadd.f32 %v10110, %v10158
    %v10160 = vpop.f32.mrf.mxu0
    %v10161 = vadd.f32 %v10112, %v10160
    %10162 = vdwg.mxu0
    %10163 = vmatpush.bf16.msra.mxu0 %v4875
    %10164 = vmatpush.bf16.msra.mxu0 %v4871
    %10165 = vmatpush.bf16.msra.mxu0 %v4867
    %10166 = vmatpush.bf16.msra.mxu0 %v4863
    %10167 = vmatpush.bf16.msra.mxu0 %v4859
    %10168 = vmatpush.bf16.msra.mxu0 %v4855
    %10169 = vmatpush.bf16.msra.mxu0 %v4851
    %10170 = vmatpush.bf16.msra.mxu0 %v4847
    %10171 = vmatmul.bf16.gmra.mxu0 %v1691
    %v10172 = vpop.f32.mrf.mxu0
    %v10173 = vadd.f32 %v10124, %v10172
    %v10174 = vpop.f32.mrf.mxu0
    %v10175 = vadd.f32 %v10126, %v10174
    %10176 = vmatmul.bf16.gmra.mxu0 %v1715
    %v10177 = vpop.f32.mrf.mxu0
    %v10178 = vadd.f32 %v10129, %v10177
    %v10179 = vpop.f32.mrf.mxu0
    %v10180 = vadd.f32 %v10131, %v10179
    %10181 = vmatmul.bf16.gmra.mxu0 %v1739
    %v10182 = vpop.f32.mrf.mxu0
    %v10183 = vadd.f32 %v10134, %v10182
    %v10184 = vpop.f32.mrf.mxu0
    %v10185 = vadd.f32 %v10136, %v10184
    %10186 = vmatmul.bf16.gmra.mxu0 %v1763
    %v10187 = vpop.f32.mrf.mxu0
    %v10188 = vadd.f32 %v10139, %v10187
    %v10189 = vpop.f32.mrf.mxu0
    %v10190 = vadd.f32 %v10141, %v10189
    %10191 = vmatmul.bf16.gmra.mxu0 %v1787
    %v10192 = vpop.f32.mrf.mxu0
    %v10193 = vadd.f32 %v10144, %v10192
    %v10194 = vpop.f32.mrf.mxu0
    %v10195 = vadd.f32 %v10146, %v10194
    %10196 = vmatmul.bf16.gmra.mxu0 %v1811
    %v10197 = vpop.f32.mrf.mxu0
    %v10198 = vadd.f32 %v10149, %v10197
    %v10199 = vpop.f32.mrf.mxu0
    %v10200 = vadd.f32 %v10151, %v10199
    %10201 = vmatmul.bf16.gmra.mxu0 %v1835
    %v10202 = vpop.f32.mrf.mxu0
    %v10203 = vadd.f32 %v10154, %v10202
    %v10204 = vpop.f32.mrf.mxu0
    %v10205 = vadd.f32 %v10156, %v10204
    %10206 = vmatmul.bf16.gmra.mxu0 %v1859
    %v10207 = vpop.f32.mrf.mxu0
    %v10208 = vadd.f32 %v10159, %v10207
    %v10209 = vpop.f32.mrf.mxu0
    %v10210 = vadd.f32 %v10161, %v10209
    %10211 = vdwg.mxu0
    %10212 = vmatpush.bf16.msra.mxu0 %v4907
    %10213 = vmatpush.bf16.msra.mxu0 %v4903
    %10214 = vmatpush.bf16.msra.mxu0 %v4899
    %10215 = vmatpush.bf16.msra.mxu0 %v4895
    %10216 = vmatpush.bf16.msra.mxu0 %v4891
    %10217 = vmatpush.bf16.msra.mxu0 %v4887
    %10218 = vmatpush.bf16.msra.mxu0 %v4883
    %10219 = vmatpush.bf16.msra.mxu0 %v4879
    %10220 = vmatmul.bf16.gmra.mxu0 %v1692
    %v10221 = vpop.f32.mrf.mxu0
    %v10222 = vadd.f32 %v10173, %v10221
    %v10223 = vpop.f32.mrf.mxu0
    %v10224 = vadd.f32 %v10175, %v10223
    %10225 = vmatmul.bf16.gmra.mxu0 %v1716
    %v10226 = vpop.f32.mrf.mxu0
    %v10227 = vadd.f32 %v10178, %v10226
    %v10228 = vpop.f32.mrf.mxu0
    %v10229 = vadd.f32 %v10180, %v10228
    %10230 = vmatmul.bf16.gmra.mxu0 %v1740
    %v10231 = vpop.f32.mrf.mxu0
    %v10232 = vadd.f32 %v10183, %v10231
    %v10233 = vpop.f32.mrf.mxu0
    %v10234 = vadd.f32 %v10185, %v10233
    %10235 = vmatmul.bf16.gmra.mxu0 %v1764
    %v10236 = vpop.f32.mrf.mxu0
    %v10237 = vadd.f32 %v10188, %v10236
    %v10238 = vpop.f32.mrf.mxu0
    %v10239 = vadd.f32 %v10190, %v10238
    %10240 = vmatmul.bf16.gmra.mxu0 %v1788
    %v10241 = vpop.f32.mrf.mxu0
    %v10242 = vadd.f32 %v10193, %v10241
    %v10243 = vpop.f32.mrf.mxu0
    %v10244 = vadd.f32 %v10195, %v10243
    %10245 = vmatmul.bf16.gmra.mxu0 %v1812
    %v10246 = vpop.f32.mrf.mxu0
    %v10247 = vadd.f32 %v10198, %v10246
    %v10248 = vpop.f32.mrf.mxu0
    %v10249 = vadd.f32 %v10200, %v10248
    %10250 = vmatmul.bf16.gmra.mxu0 %v1836
    %v10251 = vpop.f32.mrf.mxu0
    %v10252 = vadd.f32 %v10203, %v10251
    %v10253 = vpop.f32.mrf.mxu0
    %v10254 = vadd.f32 %v10205, %v10253
    %10255 = vmatmul.bf16.gmra.mxu0 %v1860
    %v10256 = vpop.f32.mrf.mxu0
    %v10257 = vadd.f32 %v10208, %v10256
    %v10258 = vpop.f32.mrf.mxu0
    %v10259 = vadd.f32 %v10210, %v10258
    %10260 = vdwg.mxu0
    %10261 = vmatpush.bf16.msra.mxu0 %v4939
    %10262 = vmatpush.bf16.msra.mxu0 %v4935
    %10263 = vmatpush.bf16.msra.mxu0 %v4931
    %10264 = vmatpush.bf16.msra.mxu0 %v4927
    %10265 = vmatpush.bf16.msra.mxu0 %v4923
    %10266 = vmatpush.bf16.msra.mxu0 %v4919
    %10267 = vmatpush.bf16.msra.mxu0 %v4915
    %10268 = vmatpush.bf16.msra.mxu0 %v4911
    %10269 = vmatmul.bf16.gmra.mxu0 %v1693
    %v10270 = vpop.f32.mrf.mxu0
    %v10271 = vadd.f32 %v10222, %v10270
    %v10272 = vpop.f32.mrf.mxu0
    %v10273 = vadd.f32 %v10224, %v10272
    %10274 = vmatmul.bf16.gmra.mxu0 %v1717
    %v10275 = vpop.f32.mrf.mxu0
    %v10276 = vadd.f32 %v10227, %v10275
    %v10277 = vpop.f32.mrf.mxu0
    %v10278 = vadd.f32 %v10229, %v10277
    %10279 = vmatmul.bf16.gmra.mxu0 %v1741
    %v10280 = vpop.f32.mrf.mxu0
    %v10281 = vadd.f32 %v10232, %v10280
    %v10282 = vpop.f32.mrf.mxu0
    %v10283 = vadd.f32 %v10234, %v10282
    %10284 = vmatmul.bf16.gmra.mxu0 %v1765
    %v10285 = vpop.f32.mrf.mxu0
    %v10286 = vadd.f32 %v10237, %v10285
    %v10287 = vpop.f32.mrf.mxu0
    %v10288 = vadd.f32 %v10239, %v10287
    %10289 = vmatmul.bf16.gmra.mxu0 %v1789
    %v10290 = vpop.f32.mrf.mxu0
    %v10291 = vadd.f32 %v10242, %v10290
    %v10292 = vpop.f32.mrf.mxu0
    %v10293 = vadd.f32 %v10244, %v10292
    %10294 = vmatmul.bf16.gmra.mxu0 %v1813
    %v10295 = vpop.f32.mrf.mxu0
    %v10296 = vadd.f32 %v10247, %v10295
    %v10297 = vpop.f32.mrf.mxu0
    %v10298 = vadd.f32 %v10249, %v10297
    %10299 = vmatmul.bf16.gmra.mxu0 %v1837
    %v10300 = vpop.f32.mrf.mxu0
    %v10301 = vadd.f32 %v10252, %v10300
    %v10302 = vpop.f32.mrf.mxu0
    %v10303 = vadd.f32 %v10254, %v10302
    %10304 = vmatmul.bf16.gmra.mxu0 %v1861
    %v10305 = vpop.f32.mrf.mxu0
    %v10306 = vadd.f32 %v10257, %v10305
    %v10307 = vpop.f32.mrf.mxu0
    %v10308 = vadd.f32 %v10259, %v10307
    %10309 = vdwg.mxu0
    %10310 = vmatpush.bf16.msra.mxu0 %v4971
    %10311 = vmatpush.bf16.msra.mxu0 %v4967
    %10312 = vmatpush.bf16.msra.mxu0 %v4963
    %10313 = vmatpush.bf16.msra.mxu0 %v4959
    %10314 = vmatpush.bf16.msra.mxu0 %v4955
    %10315 = vmatpush.bf16.msra.mxu0 %v4951
    %10316 = vmatpush.bf16.msra.mxu0 %v4947
    %10317 = vmatpush.bf16.msra.mxu0 %v4943
    %10318 = vmatmul.bf16.gmra.mxu0 %v1694
    %v10319 = vpop.f32.mrf.mxu0
    %v10320 = vadd.f32 %v10271, %v10319
    %v10321 = vpop.f32.mrf.mxu0
    %v10322 = vadd.f32 %v10273, %v10321
    %10323 = vmatmul.bf16.gmra.mxu0 %v1718
    %v10324 = vpop.f32.mrf.mxu0
    %v10325 = vadd.f32 %v10276, %v10324
    %v10326 = vpop.f32.mrf.mxu0
    %v10327 = vadd.f32 %v10278, %v10326
    %10328 = vmatmul.bf16.gmra.mxu0 %v1742
    %v10329 = vpop.f32.mrf.mxu0
    %v10330 = vadd.f32 %v10281, %v10329
    %v10331 = vpop.f32.mrf.mxu0
    %v10332 = vadd.f32 %v10283, %v10331
    %10333 = vmatmul.bf16.gmra.mxu0 %v1766
    %v10334 = vpop.f32.mrf.mxu0
    %v10335 = vadd.f32 %v10286, %v10334
    %v10336 = vpop.f32.mrf.mxu0
    %v10337 = vadd.f32 %v10288, %v10336
    %10338 = vmatmul.bf16.gmra.mxu0 %v1790
    %v10339 = vpop.f32.mrf.mxu0
    %v10340 = vadd.f32 %v10291, %v10339
    %v10341 = vpop.f32.mrf.mxu0
    %v10342 = vadd.f32 %v10293, %v10341
    %10343 = vmatmul.bf16.gmra.mxu0 %v1814
    %v10344 = vpop.f32.mrf.mxu0
    %v10345 = vadd.f32 %v10296, %v10344
    %v10346 = vpop.f32.mrf.mxu0
    %v10347 = vadd.f32 %v10298, %v10346
    %10348 = vmatmul.bf16.gmra.mxu0 %v1838
    %v10349 = vpop.f32.mrf.mxu0
    %v10350 = vadd.f32 %v10301, %v10349
    %v10351 = vpop.f32.mrf.mxu0
    %v10352 = vadd.f32 %v10303, %v10351
    %10353 = vmatmul.bf16.gmra.mxu0 %v1862
    %v10354 = vpop.f32.mrf.mxu0
    %v10355 = vadd.f32 %v10306, %v10354
    %v10356 = vpop.f32.mrf.mxu0
    %v10357 = vadd.f32 %v10308, %v10356
    %10358 = vdwg.mxu0
    %10359 = vmatpush.bf16.msra.mxu0 %v5003
    %10360 = vmatpush.bf16.msra.mxu0 %v4999
    %10361 = vmatpush.bf16.msra.mxu0 %v4995
    %10362 = vmatpush.bf16.msra.mxu0 %v4991
    %10363 = vmatpush.bf16.msra.mxu0 %v4987
    %10364 = vmatpush.bf16.msra.mxu0 %v4983
    %10365 = vmatpush.bf16.msra.mxu0 %v4979
    %10366 = vmatpush.bf16.msra.mxu0 %v4975
    %10367 = vmatmul.bf16.gmra.mxu0 %v1695
    %v10368 = vpop.f32.mrf.mxu0
    %v10369 = vadd.f32 %v10320, %v10368
    %v10370 = vpop.f32.mrf.mxu0
    %v10371 = vadd.f32 %v10322, %v10370
    %10372 = vmatmul.bf16.gmra.mxu0 %v1719
    %v10373 = vpop.f32.mrf.mxu0
    %v10374 = vadd.f32 %v10325, %v10373
    %v10375 = vpop.f32.mrf.mxu0
    %v10376 = vadd.f32 %v10327, %v10375
    %10377 = vmatmul.bf16.gmra.mxu0 %v1743
    %v10378 = vpop.f32.mrf.mxu0
    %v10379 = vadd.f32 %v10330, %v10378
    %v10380 = vpop.f32.mrf.mxu0
    %v10381 = vadd.f32 %v10332, %v10380
    %10382 = vmatmul.bf16.gmra.mxu0 %v1767
    %v10383 = vpop.f32.mrf.mxu0
    %v10384 = vadd.f32 %v10335, %v10383
    %v10385 = vpop.f32.mrf.mxu0
    %v10386 = vadd.f32 %v10337, %v10385
    %10387 = vmatmul.bf16.gmra.mxu0 %v1791
    %v10388 = vpop.f32.mrf.mxu0
    %v10389 = vadd.f32 %v10340, %v10388
    %v10390 = vpop.f32.mrf.mxu0
    %v10391 = vadd.f32 %v10342, %v10390
    %10392 = vmatmul.bf16.gmra.mxu0 %v1815
    %v10393 = vpop.f32.mrf.mxu0
    %v10394 = vadd.f32 %v10345, %v10393
    %v10395 = vpop.f32.mrf.mxu0
    %v10396 = vadd.f32 %v10347, %v10395
    %10397 = vmatmul.bf16.gmra.mxu0 %v1839
    %v10398 = vpop.f32.mrf.mxu0
    %v10399 = vadd.f32 %v10350, %v10398
    %v10400 = vpop.f32.mrf.mxu0
    %v10401 = vadd.f32 %v10352, %v10400
    %10402 = vmatmul.bf16.gmra.mxu0 %v1863
    %v10403 = vpop.f32.mrf.mxu0
    %v10404 = vadd.f32 %v10355, %v10403
    %v10405 = vpop.f32.mrf.mxu0
    %v10406 = vadd.f32 %v10357, %v10405
    %10407 = vdwg.mxu0
    %10408 = vmatpush.bf16.msra.mxu0 %v5035
    %10409 = vmatpush.bf16.msra.mxu0 %v5031
    %10410 = vmatpush.bf16.msra.mxu0 %v5027
    %10411 = vmatpush.bf16.msra.mxu0 %v5023
    %10412 = vmatpush.bf16.msra.mxu0 %v5019
    %10413 = vmatpush.bf16.msra.mxu0 %v5015
    %10414 = vmatpush.bf16.msra.mxu0 %v5011
    %10415 = vmatpush.bf16.msra.mxu0 %v5007
    %10416 = vmatmul.bf16.gmra.mxu0 %v1696
    %v10417 = vpop.f32.mrf.mxu0
    %v10418 = vadd.f32 %v10369, %v10417
    %v10419 = vpop.f32.mrf.mxu0
    %v10420 = vadd.f32 %v10371, %v10419
    %10421 = vmatmul.bf16.gmra.mxu0 %v1720
    %v10422 = vpop.f32.mrf.mxu0
    %v10423 = vadd.f32 %v10374, %v10422
    %v10424 = vpop.f32.mrf.mxu0
    %v10425 = vadd.f32 %v10376, %v10424
    %10426 = vmatmul.bf16.gmra.mxu0 %v1744
    %v10427 = vpop.f32.mrf.mxu0
    %v10428 = vadd.f32 %v10379, %v10427
    %v10429 = vpop.f32.mrf.mxu0
    %v10430 = vadd.f32 %v10381, %v10429
    %10431 = vmatmul.bf16.gmra.mxu0 %v1768
    %v10432 = vpop.f32.mrf.mxu0
    %v10433 = vadd.f32 %v10384, %v10432
    %v10434 = vpop.f32.mrf.mxu0
    %v10435 = vadd.f32 %v10386, %v10434
    %10436 = vmatmul.bf16.gmra.mxu0 %v1792
    %v10437 = vpop.f32.mrf.mxu0
    %v10438 = vadd.f32 %v10389, %v10437
    %v10439 = vpop.f32.mrf.mxu0
    %v10440 = vadd.f32 %v10391, %v10439
    %10441 = vmatmul.bf16.gmra.mxu0 %v1816
    %v10442 = vpop.f32.mrf.mxu0
    %v10443 = vadd.f32 %v10394, %v10442
    %v10444 = vpop.f32.mrf.mxu0
    %v10445 = vadd.f32 %v10396, %v10444
    %10446 = vmatmul.bf16.gmra.mxu0 %v1840
    %v10447 = vpop.f32.mrf.mxu0
    %v10448 = vadd.f32 %v10399, %v10447
    %v10449 = vpop.f32.mrf.mxu0
    %v10450 = vadd.f32 %v10401, %v10449
    %10451 = vmatmul.bf16.gmra.mxu0 %v1864
    %v10452 = vpop.f32.mrf.mxu0
    %v10453 = vadd.f32 %v10404, %v10452
    %v10454 = vpop.f32.mrf.mxu0
    %v10455 = vadd.f32 %v10406, %v10454
    %10456 = vdwg.mxu0
    %10457 = vmatpush.bf16.msra.mxu0 %v5067
    %10458 = vmatpush.bf16.msra.mxu0 %v5063
    %10459 = vmatpush.bf16.msra.mxu0 %v5059
    %10460 = vmatpush.bf16.msra.mxu0 %v5055
    %10461 = vmatpush.bf16.msra.mxu0 %v5051
    %10462 = vmatpush.bf16.msra.mxu0 %v5047
    %10463 = vmatpush.bf16.msra.mxu0 %v5043
    %10464 = vmatpush.bf16.msra.mxu0 %v5039
    %10465 = vmatmul.bf16.gmra.mxu0 %v1697
    %v10466 = vpop.f32.mrf.mxu0
    %v10467 = vadd.f32 %v10418, %v10466
    %v10468 = vpop.f32.mrf.mxu0
    %v10469 = vadd.f32 %v10420, %v10468
    %10470 = vmatmul.bf16.gmra.mxu0 %v1721
    %v10471 = vpop.f32.mrf.mxu0
    %v10472 = vadd.f32 %v10423, %v10471
    %v10473 = vpop.f32.mrf.mxu0
    %v10474 = vadd.f32 %v10425, %v10473
    %10475 = vmatmul.bf16.gmra.mxu0 %v1745
    %v10476 = vpop.f32.mrf.mxu0
    %v10477 = vadd.f32 %v10428, %v10476
    %v10478 = vpop.f32.mrf.mxu0
    %v10479 = vadd.f32 %v10430, %v10478
    %10480 = vmatmul.bf16.gmra.mxu0 %v1769
    %v10481 = vpop.f32.mrf.mxu0
    %v10482 = vadd.f32 %v10433, %v10481
    %v10483 = vpop.f32.mrf.mxu0
    %v10484 = vadd.f32 %v10435, %v10483
    %10485 = vmatmul.bf16.gmra.mxu0 %v1793
    %v10486 = vpop.f32.mrf.mxu0
    %v10487 = vadd.f32 %v10438, %v10486
    %v10488 = vpop.f32.mrf.mxu0
    %v10489 = vadd.f32 %v10440, %v10488
    %10490 = vmatmul.bf16.gmra.mxu0 %v1817
    %v10491 = vpop.f32.mrf.mxu0
    %v10492 = vadd.f32 %v10443, %v10491
    %v10493 = vpop.f32.mrf.mxu0
    %v10494 = vadd.f32 %v10445, %v10493
    %10495 = vmatmul.bf16.gmra.mxu0 %v1841
    %v10496 = vpop.f32.mrf.mxu0
    %v10497 = vadd.f32 %v10448, %v10496
    %v10498 = vpop.f32.mrf.mxu0
    %v10499 = vadd.f32 %v10450, %v10498
    %10500 = vmatmul.bf16.gmra.mxu0 %v1865
    %v10501 = vpop.f32.mrf.mxu0
    %v10502 = vadd.f32 %v10453, %v10501
    %v10503 = vpop.f32.mrf.mxu0
    %v10504 = vadd.f32 %v10455, %v10503
    %10505 = vdwg.mxu0
    %10506 = vmatpush.bf16.msra.mxu0 %v5099
    %10507 = vmatpush.bf16.msra.mxu0 %v5095
    %10508 = vmatpush.bf16.msra.mxu0 %v5091
    %10509 = vmatpush.bf16.msra.mxu0 %v5087
    %10510 = vmatpush.bf16.msra.mxu0 %v5083
    %10511 = vmatpush.bf16.msra.mxu0 %v5079
    %10512 = vmatpush.bf16.msra.mxu0 %v5075
    %10513 = vmatpush.bf16.msra.mxu0 %v5071
    %10514 = vmatmul.bf16.gmra.mxu0 %v1698
    %v10515 = vpop.f32.mrf.mxu0
    %v10516 = vadd.f32 %v10467, %v10515
    %v10517 = vpop.f32.mrf.mxu0
    %v10518 = vadd.f32 %v10469, %v10517
    %10519 = vmatmul.bf16.gmra.mxu0 %v1722
    %v10520 = vpop.f32.mrf.mxu0
    %v10521 = vadd.f32 %v10472, %v10520
    %v10522 = vpop.f32.mrf.mxu0
    %v10523 = vadd.f32 %v10474, %v10522
    %10524 = vmatmul.bf16.gmra.mxu0 %v1746
    %v10525 = vpop.f32.mrf.mxu0
    %v10526 = vadd.f32 %v10477, %v10525
    %v10527 = vpop.f32.mrf.mxu0
    %v10528 = vadd.f32 %v10479, %v10527
    %10529 = vmatmul.bf16.gmra.mxu0 %v1770
    %v10530 = vpop.f32.mrf.mxu0
    %v10531 = vadd.f32 %v10482, %v10530
    %v10532 = vpop.f32.mrf.mxu0
    %v10533 = vadd.f32 %v10484, %v10532
    %10534 = vmatmul.bf16.gmra.mxu0 %v1794
    %v10535 = vpop.f32.mrf.mxu0
    %v10536 = vadd.f32 %v10487, %v10535
    %v10537 = vpop.f32.mrf.mxu0
    %v10538 = vadd.f32 %v10489, %v10537
    %10539 = vmatmul.bf16.gmra.mxu0 %v1818
    %v10540 = vpop.f32.mrf.mxu0
    %v10541 = vadd.f32 %v10492, %v10540
    %v10542 = vpop.f32.mrf.mxu0
    %v10543 = vadd.f32 %v10494, %v10542
    %10544 = vmatmul.bf16.gmra.mxu0 %v1842
    %v10545 = vpop.f32.mrf.mxu0
    %v10546 = vadd.f32 %v10497, %v10545
    %v10547 = vpop.f32.mrf.mxu0
    %v10548 = vadd.f32 %v10499, %v10547
    %10549 = vmatmul.bf16.gmra.mxu0 %v1866
    %v10550 = vpop.f32.mrf.mxu0
    %v10551 = vadd.f32 %v10502, %v10550
    %v10552 = vpop.f32.mrf.mxu0
    %v10553 = vadd.f32 %v10504, %v10552
    %10554 = vdwg.mxu0
    %10555 = vmatpush.bf16.msra.mxu0 %v5131
    %10556 = vmatpush.bf16.msra.mxu0 %v5127
    %10557 = vmatpush.bf16.msra.mxu0 %v5123
    %10558 = vmatpush.bf16.msra.mxu0 %v5119
    %10559 = vmatpush.bf16.msra.mxu0 %v5115
    %10560 = vmatpush.bf16.msra.mxu0 %v5111
    %10561 = vmatpush.bf16.msra.mxu0 %v5107
    %10562 = vmatpush.bf16.msra.mxu0 %v5103
    %10563 = vmatmul.bf16.gmra.mxu0 %v1699
    %v10564 = vpop.f32.mrf.mxu0
    %v10565 = vadd.f32 %v10516, %v10564
    %v10566 = vpop.f32.mrf.mxu0
    %v10567 = vadd.f32 %v10518, %v10566
    %10568 = vmatmul.bf16.gmra.mxu0 %v1723
    %v10569 = vpop.f32.mrf.mxu0
    %v10570 = vadd.f32 %v10521, %v10569
    %v10571 = vpop.f32.mrf.mxu0
    %v10572 = vadd.f32 %v10523, %v10571
    %10573 = vmatmul.bf16.gmra.mxu0 %v1747
    %v10574 = vpop.f32.mrf.mxu0
    %v10575 = vadd.f32 %v10526, %v10574
    %v10576 = vpop.f32.mrf.mxu0
    %v10577 = vadd.f32 %v10528, %v10576
    %10578 = vmatmul.bf16.gmra.mxu0 %v1771
    %v10579 = vpop.f32.mrf.mxu0
    %v10580 = vadd.f32 %v10531, %v10579
    %v10581 = vpop.f32.mrf.mxu0
    %v10582 = vadd.f32 %v10533, %v10581
    %10583 = vmatmul.bf16.gmra.mxu0 %v1795
    %v10584 = vpop.f32.mrf.mxu0
    %v10585 = vadd.f32 %v10536, %v10584
    %v10586 = vpop.f32.mrf.mxu0
    %v10587 = vadd.f32 %v10538, %v10586
    %10588 = vmatmul.bf16.gmra.mxu0 %v1819
    %v10589 = vpop.f32.mrf.mxu0
    %v10590 = vadd.f32 %v10541, %v10589
    %v10591 = vpop.f32.mrf.mxu0
    %v10592 = vadd.f32 %v10543, %v10591
    %10593 = vmatmul.bf16.gmra.mxu0 %v1843
    %v10594 = vpop.f32.mrf.mxu0
    %v10595 = vadd.f32 %v10546, %v10594
    %v10596 = vpop.f32.mrf.mxu0
    %v10597 = vadd.f32 %v10548, %v10596
    %10598 = vmatmul.bf16.gmra.mxu0 %v1867
    %v10599 = vpop.f32.mrf.mxu0
    %v10600 = vadd.f32 %v10551, %v10599
    %v10601 = vpop.f32.mrf.mxu0
    %v10602 = vadd.f32 %v10553, %v10601
    %10603 = vdwg.mxu0
    %v10604 = vsub.f32 0.0, %v7037
    %v10605 = vsub.f32 0.0, %v8213
    %v10606 = vsub.f32 0.0, %v9389
    %v10607 = vsub.f32 0.0, %v10565
    %v10608 = vsub.f32 0.0, %v7039
    %v10609 = vsub.f32 0.0, %v8215
    %v10610 = vsub.f32 0.0, %v9391
    %v10611 = vsub.f32 0.0, %v10567
    %v10612 = vsub.f32 0.0, %v7042
    %v10613 = vsub.f32 0.0, %v8218
    %v10614 = vsub.f32 0.0, %v9394
    %v10615 = vsub.f32 0.0, %v10570
    %v10616 = vsub.f32 0.0, %v7044
    %v10617 = vsub.f32 0.0, %v8220
    %v10618 = vsub.f32 0.0, %v9396
    %v10619 = vsub.f32 0.0, %v10572
    %v10620 = vsub.f32 0.0, %v7047
    %v10621 = vsub.f32 0.0, %v8223
    %v10622 = vsub.f32 0.0, %v9399
    %v10623 = vsub.f32 0.0, %v10575
    %v10624 = vsub.f32 0.0, %v7049
    %v10625 = vsub.f32 0.0, %v8225
    %v10626 = vsub.f32 0.0, %v9401
    %v10627 = vsub.f32 0.0, %v10577
    %v10628 = vsub.f32 0.0, %v7052
    %v10629 = vsub.f32 0.0, %v8228
    %v10630 = vsub.f32 0.0, %v9404
    %v10631 = vsub.f32 0.0, %v10580
    %v10632 = vsub.f32 0.0, %v7054
    %v10633 = vsub.f32 0.0, %v8230
    %v10634 = vsub.f32 0.0, %v9406
    %v10635 = vsub.f32 0.0, %v10582
    %v10636 = vsub.f32 0.0, %v7057
    %v10637 = vsub.f32 0.0, %v8233
    %v10638 = vsub.f32 0.0, %v9409
    %v10639 = vsub.f32 0.0, %v10585
    %v10640 = vsub.f32 0.0, %v7059
    %v10641 = vsub.f32 0.0, %v8235
    %v10642 = vsub.f32 0.0, %v9411
    %v10643 = vsub.f32 0.0, %v10587
    %v10644 = vsub.f32 0.0, %v7062
    %v10645 = vsub.f32 0.0, %v8238
    %v10646 = vsub.f32 0.0, %v9414
    %v10647 = vsub.f32 0.0, %v10590
    %v10648 = vsub.f32 0.0, %v7064
    %v10649 = vsub.f32 0.0, %v8240
    %v10650 = vsub.f32 0.0, %v9416
    %v10651 = vsub.f32 0.0, %v10592
    %v10652 = vsub.f32 0.0, %v7067
    %v10653 = vsub.f32 0.0, %v8243
    %v10654 = vsub.f32 0.0, %v9419
    %v10655 = vsub.f32 0.0, %v10595
    %v10656 = vsub.f32 0.0, %v7069
    %v10657 = vsub.f32 0.0, %v8245
    %v10658 = vsub.f32 0.0, %v9421
    %v10659 = vsub.f32 0.0, %v10597
    %v10660 = vsub.f32 0.0, %v7072
    %v10661 = vsub.f32 0.0, %v8248
    %v10662 = vsub.f32 0.0, %v9424
    %v10663 = vsub.f32 0.0, %v10600
    %v10664 = vsub.f32 0.0, %v7074
    %v10665 = vsub.f32 0.0, %v8250
    %v10666 = vsub.f32 0.0, %v9426
    %v10667 = vsub.f32 0.0, %v10602
    %v10668 = vmul.f32 %v10604, 1.442695
    %v10669 = vpow.pop %v10668
    %v10670 = vmul.f32 %v10605, 1.442695
    %v10671 = vpow.pop %v10670
    %v10672 = vmul.f32 %v10606, 1.442695
    %v10673 = vpow.pop %v10672
    %v10674 = vmul.f32 %v10607, 1.442695
    %v10675 = vpow.pop %v10674
    %v10676 = vmul.f32 %v10608, 1.442695
    %v10677 = vpow.pop %v10676
    %v10678 = vmul.f32 %v10609, 1.442695
    %v10679 = vpow.pop %v10678
    %v10680 = vmul.f32 %v10610, 1.442695
    %v10681 = vpow.pop %v10680
    %v10682 = vmul.f32 %v10611, 1.442695
    %v10683 = vpow.pop %v10682
    %v10684 = vmul.f32 %v10612, 1.442695
    %v10685 = vpow.pop %v10684
    %v10686 = vmul.f32 %v10613, 1.442695
    %v10687 = vpow.pop %v10686
    %v10688 = vmul.f32 %v10614, 1.442695
    %v10689 = vpow.pop %v10688
    %v10690 = vmul.f32 %v10615, 1.442695
    %v10691 = vpow.pop %v10690
    %v10692 = vmul.f32 %v10616, 1.442695
    %v10693 = vpow.pop %v10692
    %v10694 = vmul.f32 %v10617, 1.442695
    %v10695 = vpow.pop %v10694
    %v10696 = vmul.f32 %v10618, 1.442695
    %v10697 = vpow.pop %v10696
    %v10698 = vmul.f32 %v10619, 1.442695
    %v10699 = vpow.pop %v10698
    %v10700 = vmul.f32 %v10620, 1.442695
    %v10701 = vpow.pop %v10700
    %v10702 = vmul.f32 %v10621, 1.442695
    %v10703 = vpow.pop %v10702
    %v10704 = vmul.f32 %v10622, 1.442695
    %v10705 = vpow.pop %v10704
    %v10706 = vmul.f32 %v10623, 1.442695
    %v10707 = vpow.pop %v10706
    %v10708 = vmul.f32 %v10624, 1.442695
    %v10709 = vpow.pop %v10708
    %v10710 = vmul.f32 %v10625, 1.442695
    %v10711 = vpow.pop %v10710
    %v10712 = vmul.f32 %v10626, 1.442695
    %v10713 = vpow.pop %v10712
    %v10714 = vmul.f32 %v10627, 1.442695
    %v10715 = vpow.pop %v10714
    %v10716 = vmul.f32 %v10628, 1.442695
    %v10717 = vpow.pop %v10716
    %v10718 = vmul.f32 %v10629, 1.442695
    %v10719 = vpow.pop %v10718
    %v10720 = vmul.f32 %v10630, 1.442695
    %v10721 = vpow.pop %v10720
    %v10722 = vmul.f32 %v10631, 1.442695
    %v10723 = vpow.pop %v10722
    %v10724 = vmul.f32 %v10632, 1.442695
    %v10725 = vpow.pop %v10724
    %v10726 = vmul.f32 %v10633, 1.442695
    %v10727 = vpow.pop %v10726
    %v10728 = vmul.f32 %v10634, 1.442695
    %v10729 = vpow.pop %v10728
    %v10730 = vmul.f32 %v10635, 1.442695
    %v10731 = vpow.pop %v10730
    %v10732 = vmul.f32 %v10636, 1.442695
    %v10733 = vpow.pop %v10732
    %v10734 = vmul.f32 %v10637, 1.442695
    %v10735 = vpow.pop %v10734
    %v10736 = vmul.f32 %v10638, 1.442695
    %v10737 = vpow.pop %v10736
    %v10738 = vmul.f32 %v10639, 1.442695
    %v10739 = vpow.pop %v10738
    %v10740 = vmul.f32 %v10640, 1.442695
    %v10741 = vpow.pop %v10740
    %v10742 = vmul.f32 %v10641, 1.442695
    %v10743 = vpow.pop %v10742
    %v10744 = vmul.f32 %v10642, 1.442695
    %v10745 = vpow.pop %v10744
    %v10746 = vmul.f32 %v10643, 1.442695
    %v10747 = vpow.pop %v10746
    %v10748 = vmul.f32 %v10644, 1.442695
    %v10749 = vpow.pop %v10748
    %v10750 = vmul.f32 %v10645, 1.442695
    %v10751 = vpow.pop %v10750
    %v10752 = vmul.f32 %v10646, 1.442695
    %v10753 = vpow.pop %v10752
    %v10754 = vmul.f32 %v10647, 1.442695
    %v10755 = vpow.pop %v10754
    %v10756 = vmul.f32 %v10648, 1.442695
    %v10757 = vpow.pop %v10756
    %v10758 = vmul.f32 %v10649, 1.442695
    %v10759 = vpow.pop %v10758
    %v10760 = vmul.f32 %v10650, 1.442695
    %v10761 = vpow.pop %v10760
    %v10762 = vmul.f32 %v10651, 1.442695
    %v10763 = vpow.pop %v10762
    %v10764 = vmul.f32 %v10652, 1.442695
    %v10765 = vpow.pop %v10764
    %v10766 = vmul.f32 %v10653, 1.442695
    %v10767 = vpow.pop %v10766
    %v10768 = vmul.f32 %v10654, 1.442695
    %v10769 = vpow.pop %v10768
    %v10770 = vmul.f32 %v10655, 1.442695
    %v10771 = vpow.pop %v10770
    %v10772 = vmul.f32 %v10656, 1.442695
    %v10773 = vpow.pop %v10772
    %v10774 = vmul.f32 %v10657, 1.442695
    %v10775 = vpow.pop %v10774
    %v10776 = vmul.f32 %v10658, 1.442695
    %v10777 = vpow.pop %v10776
    %v10778 = vmul.f32 %v10659, 1.442695
    %v10779 = vpow.pop %v10778
    %v10780 = vmul.f32 %v10660, 1.442695
    %v10781 = vpow.pop %v10780
    %v10782 = vmul.f32 %v10661, 1.442695
    %v10783 = vpow.pop %v10782
    %v10784 = vmul.f32 %v10662, 1.442695
    %v10785 = vpow.pop %v10784
    %v10786 = vmul.f32 %v10663, 1.442695
    %v10787 = vpow.pop %v10786
    %v10788 = vmul.f32 %v10664, 1.442695
    %v10789 = vpow.pop %v10788
    %v10790 = vmul.f32 %v10665, 1.442695
    %v10791 = vpow.pop %v10790
    %v10792 = vmul.f32 %v10666, 1.442695
    %v10793 = vpow.pop %v10792
    %v10794 = vmul.f32 %v10667, 1.442695
    %v10795 = vpow.pop %v10794
    %v10796 = vadd.f32 %v10669, 1.0
    %v10797 = vadd.f32 %v10671, 1.0
    %v10798 = vadd.f32 %v10673, 1.0
    %v10799 = vadd.f32 %v10675, 1.0
    %v10800 = vadd.f32 %v10677, 1.0
    %v10801 = vadd.f32 %v10679, 1.0
    %v10802 = vadd.f32 %v10681, 1.0
    %v10803 = vadd.f32 %v10683, 1.0
    %v10804 = vadd.f32 %v10685, 1.0
    %v10805 = vadd.f32 %v10687, 1.0
    %v10806 = vadd.f32 %v10689, 1.0
    %v10807 = vadd.f32 %v10691, 1.0
    %v10808 = vadd.f32 %v10693, 1.0
    %v10809 = vadd.f32 %v10695, 1.0
    %v10810 = vadd.f32 %v10697, 1.0
    %v10811 = vadd.f32 %v10699, 1.0
    %v10812 = vadd.f32 %v10701, 1.0
    %v10813 = vadd.f32 %v10703, 1.0
    %v10814 = vadd.f32 %v10705, 1.0
    %v10815 = vadd.f32 %v10707, 1.0
    %v10816 = vadd.f32 %v10709, 1.0
    %v10817 = vadd.f32 %v10711, 1.0
    %v10818 = vadd.f32 %v10713, 1.0
    %v10819 = vadd.f32 %v10715, 1.0
    %v10820 = vadd.f32 %v10717, 1.0
    %v10821 = vadd.f32 %v10719, 1.0
    %v10822 = vadd.f32 %v10721, 1.0
    %v10823 = vadd.f32 %v10723, 1.0
    %v10824 = vadd.f32 %v10725, 1.0
    %v10825 = vadd.f32 %v10727, 1.0
    %v10826 = vadd.f32 %v10729, 1.0
    %v10827 = vadd.f32 %v10731, 1.0
    %v10828 = vadd.f32 %v10733, 1.0
    %v10829 = vadd.f32 %v10735, 1.0
    %v10830 = vadd.f32 %v10737, 1.0
    %v10831 = vadd.f32 %v10739, 1.0
    %v10832 = vadd.f32 %v10741, 1.0
    %v10833 = vadd.f32 %v10743, 1.0
    %v10834 = vadd.f32 %v10745, 1.0
    %v10835 = vadd.f32 %v10747, 1.0
    %v10836 = vadd.f32 %v10749, 1.0
    %v10837 = vadd.f32 %v10751, 1.0
    %v10838 = vadd.f32 %v10753, 1.0
    %v10839 = vadd.f32 %v10755, 1.0
    %v10840 = vadd.f32 %v10757, 1.0
    %v10841 = vadd.f32 %v10759, 1.0
    %v10842 = vadd.f32 %v10761, 1.0
    %v10843 = vadd.f32 %v10763, 1.0
    %v10844 = vadd.f32 %v10765, 1.0
    %v10845 = vadd.f32 %v10767, 1.0
    %v10846 = vadd.f32 %v10769, 1.0
    %v10847 = vadd.f32 %v10771, 1.0
    %v10848 = vadd.f32 %v10773, 1.0
    %v10849 = vadd.f32 %v10775, 1.0
    %v10850 = vadd.f32 %v10777, 1.0
    %v10851 = vadd.f32 %v10779, 1.0
    %v10852 = vadd.f32 %v10781, 1.0
    %v10853 = vadd.f32 %v10783, 1.0
    %v10854 = vadd.f32 %v10785, 1.0
    %v10855 = vadd.f32 %v10787, 1.0
    %v10856 = vadd.f32 %v10789, 1.0
    %v10857 = vadd.f32 %v10791, 1.0
    %v10858 = vadd.f32 %v10793, 1.0
    %v10859 = vadd.f32 %v10795, 1.0
    %v10860 = vrcp.pop %v10796
    %v10861 = vrcp.pop %v10797
    %v10862 = vrcp.pop %v10798
    %v10863 = vrcp.pop %v10799
    %v10864 = vrcp.pop %v10800
    %v10865 = vrcp.pop %v10801
    %v10866 = vrcp.pop %v10802
    %v10867 = vrcp.pop %v10803
    %v10868 = vrcp.pop %v10804
    %v10869 = vrcp.pop %v10805
    %v10870 = vrcp.pop %v10806
    %v10871 = vrcp.pop %v10807
    %v10872 = vrcp.pop %v10808
    %v10873 = vrcp.pop %v10809
    %v10874 = vrcp.pop %v10810
    %v10875 = vrcp.pop %v10811
    %v10876 = vrcp.pop %v10812
    %v10877 = vrcp.pop %v10813
    %v10878 = vrcp.pop %v10814
    %v10879 = vrcp.pop %v10815
    %v10880 = vrcp.pop %v10816
    %v10881 = vrcp.pop %v10817
    %v10882 = vrcp.pop %v10818
    %v10883 = vrcp.pop %v10819
    %v10884 = vrcp.pop %v10820
    %v10885 = vrcp.pop %v10821
    %v10886 = vrcp.pop %v10822
    %v10887 = vrcp.pop %v10823
    %v10888 = vrcp.pop %v10824
    %v10889 = vrcp.pop %v10825
    %v10890 = vrcp.pop %v10826
    %v10891 = vrcp.pop %v10827
    %v10892 = vrcp.pop %v10828
    %v10893 = vrcp.pop %v10829
    %v10894 = vrcp.pop %v10830
    %v10895 = vrcp.pop %v10831
    %v10896 = vrcp.pop %v10832
    %v10897 = vrcp.pop %v10833
    %v10898 = vrcp.pop %v10834
    %v10899 = vrcp.pop %v10835
    %v10900 = vrcp.pop %v10836
    %v10901 = vrcp.pop %v10837
    %v10902 = vrcp.pop %v10838
    %v10903 = vrcp.pop %v10839
    %v10904 = vrcp.pop %v10840
    %v10905 = vrcp.pop %v10841
    %v10906 = vrcp.pop %v10842
    %v10907 = vrcp.pop %v10843
    %v10908 = vrcp.pop %v10844
    %v10909 = vrcp.pop %v10845
    %v10910 = vrcp.pop %v10846
    %v10911 = vrcp.pop %v10847
    %v10912 = vrcp.pop %v10848
    %v10913 = vrcp.pop %v10849
    %v10914 = vrcp.pop %v10850
    %v10915 = vrcp.pop %v10851
    %v10916 = vrcp.pop %v10852
    %v10917 = vrcp.pop %v10853
    %v10918 = vrcp.pop %v10854
    %v10919 = vrcp.pop %v10855
    %v10920 = vrcp.pop %v10856
    %v10921 = vrcp.pop %v10857
    %v10922 = vrcp.pop %v10858
    %v10923 = vrcp.pop %v10859
    %v10924 = vpack.c.bf16 %v10864, %v10860
    %v10925 = vpack.c.bf16 %v10865, %v10861
    %v10926 = vpack.c.bf16 %v10866, %v10862
    %v10927 = vpack.c.bf16 %v10867, %v10863
    %v10928 = vpack.c.bf16 %v10872, %v10868
    %v10929 = vpack.c.bf16 %v10873, %v10869
    %v10930 = vpack.c.bf16 %v10874, %v10870
    %v10931 = vpack.c.bf16 %v10875, %v10871
    %v10932 = vpack.c.bf16 %v10880, %v10876
    %v10933 = vpack.c.bf16 %v10881, %v10877
    %v10934 = vpack.c.bf16 %v10882, %v10878
    %v10935 = vpack.c.bf16 %v10883, %v10879
    %v10936 = vpack.c.bf16 %v10888, %v10884
    %v10937 = vpack.c.bf16 %v10889, %v10885
    %v10938 = vpack.c.bf16 %v10890, %v10886
    %v10939 = vpack.c.bf16 %v10891, %v10887
    %v10940 = vpack.c.bf16 %v10896, %v10892
    %v10941 = vpack.c.bf16 %v10897, %v10893
    %v10942 = vpack.c.bf16 %v10898, %v10894
    %v10943 = vpack.c.bf16 %v10899, %v10895
    %v10944 = vpack.c.bf16 %v10904, %v10900
    %v10945 = vpack.c.bf16 %v10905, %v10901
    %v10946 = vpack.c.bf16 %v10906, %v10902
    %v10947 = vpack.c.bf16 %v10907, %v10903
    %v10948 = vpack.c.bf16 %v10912, %v10908
    %v10949 = vpack.c.bf16 %v10913, %v10909
    %v10950 = vpack.c.bf16 %v10914, %v10910
    %v10951 = vpack.c.bf16 %v10915, %v10911
    %v10952 = vpack.c.bf16 %v10920, %v10916
    %v10953 = vpack.c.bf16 %v10921, %v10917
    %v10954 = vpack.c.bf16 %v10922, %v10918
    %v10955 = vpack.c.bf16 %v10923, %v10919
    %v10956 = vld [vmem:[#allocation8] sm:$0xff]
    %v10957 = vld [vmem:[#allocation8 + $0x8] sm:$0xff]
    %v10958 = vld [vmem:[#allocation8 + $0x10] sm:$0xff]
    %v10959 = vld [vmem:[#allocation8 + $0x18] sm:$0xff]
    %v10960 = vld [vmem:[#allocation8 + $0x20] sm:$0xff]
    %v10961 = vld [vmem:[#allocation8 + $0x28] sm:$0xff]
    %v10962 = vld [vmem:[#allocation8 + $0x30] sm:$0xff]
    %v10963 = vld [vmem:[#allocation8 + $0x38] sm:$0xff]
    %v10964 = vld [vmem:[#allocation8 + $0x40] sm:$0xff]
    %v10965 = vld [vmem:[#allocation8 + $0x48] sm:$0xff]
    %v10966 = vld [vmem:[#allocation8 + $0x50] sm:$0xff]
    %v10967 = vld [vmem:[#allocation8 + $0x58] sm:$0xff]
    %v10968 = vld [vmem:[#allocation8 + $0x60] sm:$0xff]
    %v10969 = vld [vmem:[#allocation8 + $0x68] sm:$0xff]
    %v10970 = vld [vmem:[#allocation8 + $0x70] sm:$0xff]
    %v10971 = vld [vmem:[#allocation8 + $0x78] sm:$0xff]
    %v10972 = vld [vmem:[#allocation8 + $0x80] sm:$0xff]
    %v10973 = vld [vmem:[#allocation8 + $0x88] sm:$0xff]
    %v10974 = vld [vmem:[#allocation8 + $0x90] sm:$0xff]
    %v10975 = vld [vmem:[#allocation8 + $0x98] sm:$0xff]
    %v10976 = vld [vmem:[#allocation8 + $0xa0] sm:$0xff]
    %v10977 = vld [vmem:[#allocation8 + $0xa8] sm:$0xff]
    %v10978 = vld [vmem:[#allocation8 + $0xb0] sm:$0xff]
    %v10979 = vld [vmem:[#allocation8 + $0xb8] sm:$0xff]
    %v10980 = vld [vmem:[#allocation8 + $0xc0] sm:$0xff]
    %v10981 = vld [vmem:[#allocation8 + $0xc8] sm:$0xff]
    %v10982 = vld [vmem:[#allocation8 + $0xd0] sm:$0xff]
    %v10983 = vld [vmem:[#allocation8 + $0xd8] sm:$0xff]
    %v10984 = vld [vmem:[#allocation8 + $0xe0] sm:$0xff]
    %v10985 = vld [vmem:[#allocation8 + $0xe8] sm:$0xff]
    %v10986 = vld [vmem:[#allocation8 + $0xf0] sm:$0xff]
    %v10987 = vld [vmem:[#allocation8 + $0xf8] sm:$0xff]
    %v10988 = vld [vmem:[#allocation8 + $0x100] sm:$0xff]
    %v10989 = vld [vmem:[#allocation8 + $0x108] sm:$0xff]
    %v10990 = vld [vmem:[#allocation8 + $0x110] sm:$0xff]
    %v10991 = vld [vmem:[#allocation8 + $0x118] sm:$0xff]
    %v10992 = vld [vmem:[#allocation8 + $0x120] sm:$0xff]
    %v10993 = vld [vmem:[#allocation8 + $0x128] sm:$0xff]
    %v10994 = vld [vmem:[#allocation8 + $0x130] sm:$0xff]
    %v10995 = vld [vmem:[#allocation8 + $0x138] sm:$0xff]
    %v10996 = vld [vmem:[#allocation8 + $0x140] sm:$0xff]
    %v10997 = vld [vmem:[#allocation8 + $0x148] sm:$0xff]
    %v10998 = vld [vmem:[#allocation8 + $0x150] sm:$0xff]
    %v10999 = vld [vmem:[#allocation8 + $0x158] sm:$0xff]
    %v11000 = vld [vmem:[#allocation8 + $0x160] sm:$0xff]
    %v11001 = vld [vmem:[#allocation8 + $0x168] sm:$0xff]
    %v11002 = vld [vmem:[#allocation8 + $0x170] sm:$0xff]
    %v11003 = vld [vmem:[#allocation8 + $0x178] sm:$0xff]
    %v11004 = vld [vmem:[#allocation8 + $0x180] sm:$0xff]
    %v11005 = vld [vmem:[#allocation8 + $0x188] sm:$0xff]
    %v11006 = vld [vmem:[#allocation8 + $0x190] sm:$0xff]
    %v11007 = vld [vmem:[#allocation8 + $0x198] sm:$0xff]
    %v11008 = vld [vmem:[#allocation8 + $0x1a0] sm:$0xff]
    %v11009 = vld [vmem:[#allocation8 + $0x1a8] sm:$0xff]
    %v11010 = vld [vmem:[#allocation8 + $0x1b0] sm:$0xff]
    %v11011 = vld [vmem:[#allocation8 + $0x1b8] sm:$0xff]
    %v11012 = vld [vmem:[#allocation8 + $0x1c0] sm:$0xff]
    %v11013 = vld [vmem:[#allocation8 + $0x1c8] sm:$0xff]
    %v11014 = vld [vmem:[#allocation8 + $0x1d0] sm:$0xff]
    %v11015 = vld [vmem:[#allocation8 + $0x1d8] sm:$0xff]
    %v11016 = vld [vmem:[#allocation8 + $0x1e0] sm:$0xff]
    %v11017 = vld [vmem:[#allocation8 + $0x1e8] sm:$0xff]
    %v11018 = vld [vmem:[#allocation8 + $0x1f0] sm:$0xff]
    %v11019 = vld [vmem:[#allocation8 + $0x1f8] sm:$0xff]
    %v11020 = vld [vmem:[#allocation8 + $0x200] sm:$0xff]
    %v11021 = vld [vmem:[#allocation8 + $0x208] sm:$0xff]
    %v11022 = vld [vmem:[#allocation8 + $0x210] sm:$0xff]
    %v11023 = vld [vmem:[#allocation8 + $0x218] sm:$0xff]
    %v11024 = vld [vmem:[#allocation8 + $0x220] sm:$0xff]
    %v11025 = vld [vmem:[#allocation8 + $0x228] sm:$0xff]
    %v11026 = vld [vmem:[#allocation8 + $0x230] sm:$0xff]
    %v11027 = vld [vmem:[#allocation8 + $0x238] sm:$0xff]
    %v11028 = vld [vmem:[#allocation8 + $0x240] sm:$0xff]
    %v11029 = vld [vmem:[#allocation8 + $0x248] sm:$0xff]
    %v11030 = vld [vmem:[#allocation8 + $0x250] sm:$0xff]
    %v11031 = vld [vmem:[#allocation8 + $0x258] sm:$0xff]
    %v11032 = vld [vmem:[#allocation8 + $0x260] sm:$0xff]
    %v11033 = vld [vmem:[#allocation8 + $0x268] sm:$0xff]
    %v11034 = vld [vmem:[#allocation8 + $0x270] sm:$0xff]
    %v11035 = vld [vmem:[#allocation8 + $0x278] sm:$0xff]
    %v11036 = vld [vmem:[#allocation8 + $0x280] sm:$0xff]
    %v11037 = vld [vmem:[#allocation8 + $0x288] sm:$0xff]
    %v11038 = vld [vmem:[#allocation8 + $0x290] sm:$0xff]
    %v11039 = vld [vmem:[#allocation8 + $0x298] sm:$0xff]
    %v11040 = vld [vmem:[#allocation8 + $0x2a0] sm:$0xff]
    %v11041 = vld [vmem:[#allocation8 + $0x2a8] sm:$0xff]
    %v11042 = vld [vmem:[#allocation8 + $0x2b0] sm:$0xff]
    %v11043 = vld [vmem:[#allocation8 + $0x2b8] sm:$0xff]
    %v11044 = vld [vmem:[#allocation8 + $0x2c0] sm:$0xff]
    %v11045 = vld [vmem:[#allocation8 + $0x2c8] sm:$0xff]
    %v11046 = vld [vmem:[#allocation8 + $0x2d0] sm:$0xff]
    %v11047 = vld [vmem:[#allocation8 + $0x2d8] sm:$0xff]
    %v11048 = vld [vmem:[#allocation8 + $0x2e0] sm:$0xff]
    %v11049 = vld [vmem:[#allocation8 + $0x2e8] sm:$0xff]
    %v11050 = vld [vmem:[#allocation8 + $0x2f0] sm:$0xff]
    %v11051 = vld [vmem:[#allocation8 + $0x2f8] sm:$0xff]
    %v11052 = vld [vmem:[#allocation8 + $0x300] sm:$0xff]
    %v11053 = vld [vmem:[#allocation8 + $0x308] sm:$0xff]
    %v11054 = vld [vmem:[#allocation8 + $0x310] sm:$0xff]
    %v11055 = vld [vmem:[#allocation8 + $0x318] sm:$0xff]
    %v11056 = vld [vmem:[#allocation8 + $0x320] sm:$0xff]
    %v11057 = vld [vmem:[#allocation8 + $0x328] sm:$0xff]
    %v11058 = vld [vmem:[#allocation8 + $0x330] sm:$0xff]
    %v11059 = vld [vmem:[#allocation8 + $0x338] sm:$0xff]
    %v11060 = vld [vmem:[#allocation8 + $0x340] sm:$0xff]
    %v11061 = vld [vmem:[#allocation8 + $0x348] sm:$0xff]
    %v11062 = vld [vmem:[#allocation8 + $0x350] sm:$0xff]
    %v11063 = vld [vmem:[#allocation8 + $0x358] sm:$0xff]
    %v11064 = vld [vmem:[#allocation8 + $0x360] sm:$0xff]
    %v11065 = vld [vmem:[#allocation8 + $0x368] sm:$0xff]
    %v11066 = vld [vmem:[#allocation8 + $0x370] sm:$0xff]
    %v11067 = vld [vmem:[#allocation8 + $0x378] sm:$0xff]
    %v11068 = vld [vmem:[#allocation8 + $0x380] sm:$0xff]
    %v11069 = vld [vmem:[#allocation8 + $0x388] sm:$0xff]
    %v11070 = vld [vmem:[#allocation8 + $0x390] sm:$0xff]
    %v11071 = vld [vmem:[#allocation8 + $0x398] sm:$0xff]
    %v11072 = vld [vmem:[#allocation8 + $0x3a0] sm:$0xff]
    %v11073 = vld [vmem:[#allocation8 + $0x3a8] sm:$0xff]
    %v11074 = vld [vmem:[#allocation8 + $0x3b0] sm:$0xff]
    %v11075 = vld [vmem:[#allocation8 + $0x3b8] sm:$0xff]
    %v11076 = vld [vmem:[#allocation8 + $0x3c0] sm:$0xff]
    %v11077 = vld [vmem:[#allocation8 + $0x3c8] sm:$0xff]
    %v11078 = vld [vmem:[#allocation8 + $0x3d0] sm:$0xff]
    %v11079 = vld [vmem:[#allocation8 + $0x3d8] sm:$0xff]
    %v11080 = vld [vmem:[#allocation8 + $0x3e0] sm:$0xff]
    %v11081 = vld [vmem:[#allocation8 + $0x3e8] sm:$0xff]
    %v11082 = vld [vmem:[#allocation8 + $0x3f0] sm:$0xff]
    %v11083 = vld [vmem:[#allocation8 + $0x3f8] sm:$0xff]
    %v11084 = vld [vmem:[#allocation10] sm:$0xf]
    %v11086 = vperm.slane %v11084, 0
    %v11087 = vperm.slane %v11084, 1
    %v11088 = vperm.slane %v11084, 2
    %v11089 = vperm.slane %v11084, 3
    %v11222 = vunpack.c.l.b16 %v10956
    %v11223 = vunpack.c.h.b16 %v10956
    %v11224 = vunpack.c.l.b16 %v10957
    %v11225 = vunpack.c.h.b16 %v10957
    %v11226 = vunpack.c.l.b16 %v10958
    %v11227 = vunpack.c.h.b16 %v10958
    %v11228 = vunpack.c.l.b16 %v10959
    %v11229 = vunpack.c.h.b16 %v10959
    %v11230 = vunpack.c.l.b16 %v10960
    %v11231 = vunpack.c.h.b16 %v10960
    %v11232 = vunpack.c.l.b16 %v10961
    %v11233 = vunpack.c.h.b16 %v10961
    %v11234 = vunpack.c.l.b16 %v10962
    %v11235 = vunpack.c.h.b16 %v10962
    %v11236 = vunpack.c.l.b16 %v10963
    %v11237 = vunpack.c.h.b16 %v10963
    %v11238 = vunpack.c.l.b16 %v10964
    %v11239 = vunpack.c.h.b16 %v10964
    %v11240 = vunpack.c.l.b16 %v10965
    %v11241 = vunpack.c.h.b16 %v10965
    %v11242 = vunpack.c.l.b16 %v10966
    %v11243 = vunpack.c.h.b16 %v10966
    %v11244 = vunpack.c.l.b16 %v10967
    %v11245 = vunpack.c.h.b16 %v10967
    %v11246 = vunpack.c.l.b16 %v10968
    %v11247 = vunpack.c.h.b16 %v10968
    %v11248 = vunpack.c.l.b16 %v10969
    %v11249 = vunpack.c.h.b16 %v10969
    %v11250 = vunpack.c.l.b16 %v10970
    %v11251 = vunpack.c.h.b16 %v10970
    %v11252 = vunpack.c.l.b16 %v10971
    %v11253 = vunpack.c.h.b16 %v10971
    %v11254 = vunpack.c.l.b16 %v10972
    %v11255 = vunpack.c.h.b16 %v10972
    %v11256 = vunpack.c.l.b16 %v10973
    %v11257 = vunpack.c.h.b16 %v10973
    %v11258 = vunpack.c.l.b16 %v10974
    %v11259 = vunpack.c.h.b16 %v10974
    %v11260 = vunpack.c.l.b16 %v10975
    %v11261 = vunpack.c.h.b16 %v10975
    %v11262 = vunpack.c.l.b16 %v10976
    %v11263 = vunpack.c.h.b16 %v10976
    %v11264 = vunpack.c.l.b16 %v10977
    %v11265 = vunpack.c.h.b16 %v10977
    %v11266 = vunpack.c.l.b16 %v10978
    %v11267 = vunpack.c.h.b16 %v10978
    %v11268 = vunpack.c.l.b16 %v10979
    %v11269 = vunpack.c.h.b16 %v10979
    %v11270 = vunpack.c.l.b16 %v10980
    %v11271 = vunpack.c.h.b16 %v10980
    %v11272 = vunpack.c.l.b16 %v10981
    %v11273 = vunpack.c.h.b16 %v10981
    %v11274 = vunpack.c.l.b16 %v10982
    %v11275 = vunpack.c.h.b16 %v10982
    %v11276 = vunpack.c.l.b16 %v10983
    %v11277 = vunpack.c.h.b16 %v10983
    %v11278 = vunpack.c.l.b16 %v10984
    %v11279 = vunpack.c.h.b16 %v10984
    %v11280 = vunpack.c.l.b16 %v10985
    %v11281 = vunpack.c.h.b16 %v10985
    %v11282 = vunpack.c.l.b16 %v10986
    %v11283 = vunpack.c.h.b16 %v10986
    %v11284 = vunpack.c.l.b16 %v10987
    %v11285 = vunpack.c.h.b16 %v10987
    %v11286 = vunpack.c.l.b16 %v10988
    %v11287 = vunpack.c.h.b16 %v10988
    %v11288 = vunpack.c.l.b16 %v10989
    %v11289 = vunpack.c.h.b16 %v10989
    %v11290 = vunpack.c.l.b16 %v10990
    %v11291 = vunpack.c.h.b16 %v10990
    %v11292 = vunpack.c.l.b16 %v10991
    %v11293 = vunpack.c.h.b16 %v10991
    %v11294 = vunpack.c.l.b16 %v10992
    %v11295 = vunpack.c.h.b16 %v10992
    %v11296 = vunpack.c.l.b16 %v10993
    %v11297 = vunpack.c.h.b16 %v10993
    %v11298 = vunpack.c.l.b16 %v10994
    %v11299 = vunpack.c.h.b16 %v10994
    %v11300 = vunpack.c.l.b16 %v10995
    %v11301 = vunpack.c.h.b16 %v10995
    %v11302 = vunpack.c.l.b16 %v10996
    %v11303 = vunpack.c.h.b16 %v10996
    %v11304 = vunpack.c.l.b16 %v10997
    %v11305 = vunpack.c.h.b16 %v10997
    %v11306 = vunpack.c.l.b16 %v10998
    %v11307 = vunpack.c.h.b16 %v10998
    %v11308 = vunpack.c.l.b16 %v10999
    %v11309 = vunpack.c.h.b16 %v10999
    %v11310 = vunpack.c.l.b16 %v11000
    %v11311 = vunpack.c.h.b16 %v11000
    %v11312 = vunpack.c.l.b16 %v11001
    %v11313 = vunpack.c.h.b16 %v11001
    %v11314 = vunpack.c.l.b16 %v11002
    %v11315 = vunpack.c.h.b16 %v11002
    %v11316 = vunpack.c.l.b16 %v11003
    %v11317 = vunpack.c.h.b16 %v11003
    %v11318 = vunpack.c.l.b16 %v11004
    %v11319 = vunpack.c.h.b16 %v11004
    %v11320 = vunpack.c.l.b16 %v11005
    %v11321 = vunpack.c.h.b16 %v11005
    %v11322 = vunpack.c.l.b16 %v11006
    %v11323 = vunpack.c.h.b16 %v11006
    %v11324 = vunpack.c.l.b16 %v11007
    %v11325 = vunpack.c.h.b16 %v11007
    %v11326 = vunpack.c.l.b16 %v11008
    %v11327 = vunpack.c.h.b16 %v11008
    %v11328 = vunpack.c.l.b16 %v11009
    %v11329 = vunpack.c.h.b16 %v11009
    %v11330 = vunpack.c.l.b16 %v11010
    %v11331 = vunpack.c.h.b16 %v11010
    %v11332 = vunpack.c.l.b16 %v11011
    %v11333 = vunpack.c.h.b16 %v11011
    %v11334 = vunpack.c.l.b16 %v11012
    %v11335 = vunpack.c.h.b16 %v11012
    %v11336 = vunpack.c.l.b16 %v11013
    %v11337 = vunpack.c.h.b16 %v11013
    %v11338 = vunpack.c.l.b16 %v11014
    %v11339 = vunpack.c.h.b16 %v11014
    %v11340 = vunpack.c.l.b16 %v11015
    %v11341 = vunpack.c.h.b16 %v11015
    %v11342 = vunpack.c.l.b16 %v11016
    %v11343 = vunpack.c.h.b16 %v11016
    %v11344 = vunpack.c.l.b16 %v11017
    %v11345 = vunpack.c.h.b16 %v11017
    %v11346 = vunpack.c.l.b16 %v11018
    %v11347 = vunpack.c.h.b16 %v11018
    %v11348 = vunpack.c.l.b16 %v11019
    %v11349 = vunpack.c.h.b16 %v11019
    %v11350 = vunpack.c.l.b16 %v11020
    %v11351 = vunpack.c.h.b16 %v11020
    %v11352 = vunpack.c.l.b16 %v11021
    %v11353 = vunpack.c.h.b16 %v11021
    %v11354 = vunpack.c.l.b16 %v11022
    %v11355 = vunpack.c.h.b16 %v11022
    %v11356 = vunpack.c.l.b16 %v11023
    %v11357 = vunpack.c.h.b16 %v11023
    %v11358 = vunpack.c.l.b16 %v11024
    %v11359 = vunpack.c.h.b16 %v11024
    %v11360 = vunpack.c.l.b16 %v11025
    %v11361 = vunpack.c.h.b16 %v11025
    %v11362 = vunpack.c.l.b16 %v11026
    %v11363 = vunpack.c.h.b16 %v11026
    %v11364 = vunpack.c.l.b16 %v11027
    %v11365 = vunpack.c.h.b16 %v11027
    %v11366 = vunpack.c.l.b16 %v11028
    %v11367 = vunpack.c.h.b16 %v11028
    %v11368 = vunpack.c.l.b16 %v11029
    %v11369 = vunpack.c.h.b16 %v11029
    %v11370 = vunpack.c.l.b16 %v11030
    %v11371 = vunpack.c.h.b16 %v11030
    %v11372 = vunpack.c.l.b16 %v11031
    %v11373 = vunpack.c.h.b16 %v11031
    %v11374 = vunpack.c.l.b16 %v11032
    %v11375 = vunpack.c.h.b16 %v11032
    %v11376 = vunpack.c.l.b16 %v11033
    %v11377 = vunpack.c.h.b16 %v11033
    %v11378 = vunpack.c.l.b16 %v11034
    %v11379 = vunpack.c.h.b16 %v11034
    %v11380 = vunpack.c.l.b16 %v11035
    %v11381 = vunpack.c.h.b16 %v11035
    %v11382 = vunpack.c.l.b16 %v11036
    %v11383 = vunpack.c.h.b16 %v11036
    %v11384 = vunpack.c.l.b16 %v11037
    %v11385 = vunpack.c.h.b16 %v11037
    %v11386 = vunpack.c.l.b16 %v11038
    %v11387 = vunpack.c.h.b16 %v11038
    %v11388 = vunpack.c.l.b16 %v11039
    %v11389 = vunpack.c.h.b16 %v11039
    %v11390 = vunpack.c.l.b16 %v11040
    %v11391 = vunpack.c.h.b16 %v11040
    %v11392 = vunpack.c.l.b16 %v11041
    %v11393 = vunpack.c.h.b16 %v11041
    %v11394 = vunpack.c.l.b16 %v11042
    %v11395 = vunpack.c.h.b16 %v11042
    %v11396 = vunpack.c.l.b16 %v11043
    %v11397 = vunpack.c.h.b16 %v11043
    %v11398 = vunpack.c.l.b16 %v11044
    %v11399 = vunpack.c.h.b16 %v11044
    %v11400 = vunpack.c.l.b16 %v11045
    %v11401 = vunpack.c.h.b16 %v11045
    %v11402 = vunpack.c.l.b16 %v11046
    %v11403 = vunpack.c.h.b16 %v11046
    %v11404 = vunpack.c.l.b16 %v11047
    %v11405 = vunpack.c.h.b16 %v11047
    %v11406 = vunpack.c.l.b16 %v11048
    %v11407 = vunpack.c.h.b16 %v11048
    %v11408 = vunpack.c.l.b16 %v11049
    %v11409 = vunpack.c.h.b16 %v11049
    %v11410 = vunpack.c.l.b16 %v11050
    %v11411 = vunpack.c.h.b16 %v11050
    %v11412 = vunpack.c.l.b16 %v11051
    %v11413 = vunpack.c.h.b16 %v11051
    %v11414 = vunpack.c.l.b16 %v11052
    %v11415 = vunpack.c.h.b16 %v11052
    %v11416 = vunpack.c.l.b16 %v11053
    %v11417 = vunpack.c.h.b16 %v11053
    %v11418 = vunpack.c.l.b16 %v11054
    %v11419 = vunpack.c.h.b16 %v11054
    %v11420 = vunpack.c.l.b16 %v11055
    %v11421 = vunpack.c.h.b16 %v11055
    %v11422 = vunpack.c.l.b16 %v11056
    %v11423 = vunpack.c.h.b16 %v11056
    %v11424 = vunpack.c.l.b16 %v11057
    %v11425 = vunpack.c.h.b16 %v11057
    %v11426 = vunpack.c.l.b16 %v11058
    %v11427 = vunpack.c.h.b16 %v11058
    %v11428 = vunpack.c.l.b16 %v11059
    %v11429 = vunpack.c.h.b16 %v11059
    %v11430 = vunpack.c.l.b16 %v11060
    %v11431 = vunpack.c.h.b16 %v11060
    %v11432 = vunpack.c.l.b16 %v11061
    %v11433 = vunpack.c.h.b16 %v11061
    %v11434 = vunpack.c.l.b16 %v11062
    %v11435 = vunpack.c.h.b16 %v11062
    %v11436 = vunpack.c.l.b16 %v11063
    %v11437 = vunpack.c.h.b16 %v11063
    %v11438 = vunpack.c.l.b16 %v11064
    %v11439 = vunpack.c.h.b16 %v11064
    %v11440 = vunpack.c.l.b16 %v11065
    %v11441 = vunpack.c.h.b16 %v11065
    %v11442 = vunpack.c.l.b16 %v11066
    %v11443 = vunpack.c.h.b16 %v11066
    %v11444 = vunpack.c.l.b16 %v11067
    %v11445 = vunpack.c.h.b16 %v11067
    %v11446 = vunpack.c.l.b16 %v11068
    %v11447 = vunpack.c.h.b16 %v11068
    %v11448 = vunpack.c.l.b16 %v11069
    %v11449 = vunpack.c.h.b16 %v11069
    %v11450 = vunpack.c.l.b16 %v11070
    %v11451 = vunpack.c.h.b16 %v11070
    %v11452 = vunpack.c.l.b16 %v11071
    %v11453 = vunpack.c.h.b16 %v11071
    %v11454 = vunpack.c.l.b16 %v11072
    %v11455 = vunpack.c.h.b16 %v11072
    %v11456 = vunpack.c.l.b16 %v11073
    %v11457 = vunpack.c.h.b16 %v11073
    %v11458 = vunpack.c.l.b16 %v11074
    %v11459 = vunpack.c.h.b16 %v11074
    %v11460 = vunpack.c.l.b16 %v11075
    %v11461 = vunpack.c.h.b16 %v11075
    %v11462 = vunpack.c.l.b16 %v11076
    %v11463 = vunpack.c.h.b16 %v11076
    %v11464 = vunpack.c.l.b16 %v11077
    %v11465 = vunpack.c.h.b16 %v11077
    %v11466 = vunpack.c.l.b16 %v11078
    %v11467 = vunpack.c.h.b16 %v11078
    %v11468 = vunpack.c.l.b16 %v11079
    %v11469 = vunpack.c.h.b16 %v11079
    %v11470 = vunpack.c.l.b16 %v11080
    %v11471 = vunpack.c.h.b16 %v11080
    %v11472 = vunpack.c.l.b16 %v11081
    %v11473 = vunpack.c.h.b16 %v11081
    %v11474 = vunpack.c.l.b16 %v11082
    %v11475 = vunpack.c.h.b16 %v11082
    %v11476 = vunpack.c.l.b16 %v11083
    %v11477 = vunpack.c.h.b16 %v11083
    %v11478 = vpack.c.b16 %v11226, %v11222
    %v11479 = vpack.c.b16 %v11227, %v11223
    %v11480 = vpack.c.b16 %v11228, %v11224
    %v11481 = vpack.c.b16 %v11229, %v11225
    %v11482 = vpack.c.b16 %v11234, %v11230
    %v11483 = vpack.c.b16 %v11235, %v11231
    %v11484 = vpack.c.b16 %v11236, %v11232
    %v11485 = vpack.c.b16 %v11237, %v11233
    %v11486 = vpack.c.b16 %v11242, %v11238
    %v11487 = vpack.c.b16 %v11243, %v11239
    %v11488 = vpack.c.b16 %v11244, %v11240
    %v11489 = vpack.c.b16 %v11245, %v11241
    %v11490 = vpack.c.b16 %v11250, %v11246
    %v11491 = vpack.c.b16 %v11251, %v11247
    %v11492 = vpack.c.b16 %v11252, %v11248
    %v11493 = vpack.c.b16 %v11253, %v11249
    %v11494 = vpack.c.b16 %v11258, %v11254
    %v11495 = vpack.c.b16 %v11259, %v11255
    %v11496 = vpack.c.b16 %v11260, %v11256
    %v11497 = vpack.c.b16 %v11261, %v11257
    %v11498 = vpack.c.b16 %v11266, %v11262
    %v11499 = vpack.c.b16 %v11267, %v11263
    %v11500 = vpack.c.b16 %v11268, %v11264
    %v11501 = vpack.c.b16 %v11269, %v11265
    %v11502 = vpack.c.b16 %v11274, %v11270
    %v11503 = vpack.c.b16 %v11275, %v11271
    %v11504 = vpack.c.b16 %v11276, %v11272
    %v11505 = vpack.c.b16 %v11277, %v11273
    %v11506 = vpack.c.b16 %v11282, %v11278
    %v11507 = vpack.c.b16 %v11283, %v11279
    %v11508 = vpack.c.b16 %v11284, %v11280
    %v11509 = vpack.c.b16 %v11285, %v11281
    %v11510 = vpack.c.b16 %v11290, %v11286
    %v11511 = vpack.c.b16 %v11291, %v11287
    %v11512 = vpack.c.b16 %v11292, %v11288
    %v11513 = vpack.c.b16 %v11293, %v11289
    %v11514 = vpack.c.b16 %v11298, %v11294
    %v11515 = vpack.c.b16 %v11299, %v11295
    %v11516 = vpack.c.b16 %v11300, %v11296
    %v11517 = vpack.c.b16 %v11301, %v11297
    %v11518 = vpack.c.b16 %v11306, %v11302
    %v11519 = vpack.c.b16 %v11307, %v11303
    %v11520 = vpack.c.b16 %v11308, %v11304
    %v11521 = vpack.c.b16 %v11309, %v11305
    %v11522 = vpack.c.b16 %v11314, %v11310
    %v11523 = vpack.c.b16 %v11315, %v11311
    %v11524 = vpack.c.b16 %v11316, %v11312
    %v11525 = vpack.c.b16 %v11317, %v11313
    %v11526 = vpack.c.b16 %v11322, %v11318
    %v11527 = vpack.c.b16 %v11323, %v11319
    %v11528 = vpack.c.b16 %v11324, %v11320
    %v11529 = vpack.c.b16 %v11325, %v11321
    %v11530 = vpack.c.b16 %v11330, %v11326
    %v11531 = vpack.c.b16 %v11331, %v11327
    %v11532 = vpack.c.b16 %v11332, %v11328
    %v11533 = vpack.c.b16 %v11333, %v11329
    %v11534 = vpack.c.b16 %v11338, %v11334
    %v11535 = vpack.c.b16 %v11339, %v11335
    %v11536 = vpack.c.b16 %v11340, %v11336
    %v11537 = vpack.c.b16 %v11341, %v11337
    %v11538 = vpack.c.b16 %v11346, %v11342
    %v11539 = vpack.c.b16 %v11347, %v11343
    %v11540 = vpack.c.b16 %v11348, %v11344
    %v11541 = vpack.c.b16 %v11349, %v11345
    %v11542 = vpack.c.b16 %v11354, %v11350
    %v11543 = vpack.c.b16 %v11355, %v11351
    %v11544 = vpack.c.b16 %v11356, %v11352
    %v11545 = vpack.c.b16 %v11357, %v11353
    %v11546 = vpack.c.b16 %v11362, %v11358
    %v11547 = vpack.c.b16 %v11363, %v11359
    %v11548 = vpack.c.b16 %v11364, %v11360
    %v11549 = vpack.c.b16 %v11365, %v11361
    %v11550 = vpack.c.b16 %v11370, %v11366
    %v11551 = vpack.c.b16 %v11371, %v11367
    %v11552 = vpack.c.b16 %v11372, %v11368
    %v11553 = vpack.c.b16 %v11373, %v11369
    %v11554 = vpack.c.b16 %v11378, %v11374
    %v11555 = vpack.c.b16 %v11379, %v11375
    %v11556 = vpack.c.b16 %v11380, %v11376
    %v11557 = vpack.c.b16 %v11381, %v11377
    %v11558 = vpack.c.b16 %v11386, %v11382
    %v11559 = vpack.c.b16 %v11387, %v11383
    %v11560 = vpack.c.b16 %v11388, %v11384
    %v11561 = vpack.c.b16 %v11389, %v11385
    %v11562 = vpack.c.b16 %v11394, %v11390
    %v11563 = vpack.c.b16 %v11395, %v11391
    %v11564 = vpack.c.b16 %v11396, %v11392
    %v11565 = vpack.c.b16 %v11397, %v11393
    %v11566 = vpack.c.b16 %v11402, %v11398
    %v11567 = vpack.c.b16 %v11403, %v11399
    %v11568 = vpack.c.b16 %v11404, %v11400
    %v11569 = vpack.c.b16 %v11405, %v11401
    %v11570 = vpack.c.b16 %v11410, %v11406
    %v11571 = vpack.c.b16 %v11411, %v11407
    %v11572 = vpack.c.b16 %v11412, %v11408
    %v11573 = vpack.c.b16 %v11413, %v11409
    %v11574 = vpack.c.b16 %v11418, %v11414
    %v11575 = vpack.c.b16 %v11419, %v11415
    %v11576 = vpack.c.b16 %v11420, %v11416
    %v11577 = vpack.c.b16 %v11421, %v11417
    %v11578 = vpack.c.b16 %v11426, %v11422
    %v11579 = vpack.c.b16 %v11427, %v11423
    %v11580 = vpack.c.b16 %v11428, %v11424
    %v11581 = vpack.c.b16 %v11429, %v11425
    %v11582 = vpack.c.b16 %v11434, %v11430
    %v11583 = vpack.c.b16 %v11435, %v11431
    %v11584 = vpack.c.b16 %v11436, %v11432
    %v11585 = vpack.c.b16 %v11437, %v11433
    %v11586 = vpack.c.b16 %v11442, %v11438
    %v11587 = vpack.c.b16 %v11443, %v11439
    %v11588 = vpack.c.b16 %v11444, %v11440
    %v11589 = vpack.c.b16 %v11445, %v11441
    %v11590 = vpack.c.b16 %v11450, %v11446
    %v11591 = vpack.c.b16 %v11451, %v11447
    %v11592 = vpack.c.b16 %v11452, %v11448
    %v11593 = vpack.c.b16 %v11453, %v11449
    %v11594 = vpack.c.b16 %v11458, %v11454
    %v11595 = vpack.c.b16 %v11459, %v11455
    %v11596 = vpack.c.b16 %v11460, %v11456
    %v11597 = vpack.c.b16 %v11461, %v11457
    %v11598 = vpack.c.b16 %v11466, %v11462
    %v11599 = vpack.c.b16 %v11467, %v11463
    %v11600 = vpack.c.b16 %v11468, %v11464
    %v11601 = vpack.c.b16 %v11469, %v11465
    %v11602 = vpack.c.b16 %v11474, %v11470
    %v11603 = vpack.c.b16 %v11475, %v11471
    %v11604 = vpack.c.b16 %v11476, %v11472
    %v11605 = vpack.c.b16 %v11477, %v11473
    %11734 = vmatpush.bf16.msra.mxu0 %v11506
    %11735 = vmatpush.bf16.msra.mxu0 %v11502
    %11736 = vmatpush.bf16.msra.mxu0 %v11498
    %11737 = vmatpush.bf16.msra.mxu0 %v11494
    %11738 = vmatpush.bf16.msra.mxu0 %v11490
    %11739 = vmatpush.bf16.msra.mxu0 %v11486
    %11740 = vmatpush.bf16.msra.mxu0 %v11482
    %11741 = vmatpush.bf16.msra.mxu0 %v11478
    %11742 = vmatmul.bf16.gmra.mxu0 %v10924
    %v11743 = vpop.f32.mrf.mxu0
    %v11744 = vadd.f32 %v11086, %v11743
    %v11745 = vpop.f32.mrf.mxu0
    %v11746 = vadd.f32 %v11086, %v11745
    %11747 = vmatmul.bf16.gmra.mxu0 %v10928
    %v11748 = vpop.f32.mrf.mxu0
    %v11749 = vadd.f32 %v11086, %v11748
    %v11750 = vpop.f32.mrf.mxu0
    %v11751 = vadd.f32 %v11086, %v11750
    %11752 = vmatmul.bf16.gmra.mxu0 %v10932
    %v11753 = vpop.f32.mrf.mxu0
    %v11754 = vadd.f32 %v11086, %v11753
    %v11755 = vpop.f32.mrf.mxu0
    %v11756 = vadd.f32 %v11086, %v11755
    %11757 = vmatmul.bf16.gmra.mxu0 %v10936
    %v11758 = vpop.f32.mrf.mxu0
    %v11759 = vadd.f32 %v11086, %v11758
    %v11760 = vpop.f32.mrf.mxu0
    %v11761 = vadd.f32 %v11086, %v11760
    %11762 = vmatmul.bf16.gmra.mxu0 %v10940
    %v11763 = vpop.f32.mrf.mxu0
    %v11764 = vadd.f32 %v11086, %v11763
    %v11765 = vpop.f32.mrf.mxu0
    %v11766 = vadd.f32 %v11086, %v11765
    %11767 = vmatmul.bf16.gmra.mxu0 %v10944
    %v11768 = vpop.f32.mrf.mxu0
    %v11769 = vadd.f32 %v11086, %v11768
    %v11770 = vpop.f32.mrf.mxu0
    %v11771 = vadd.f32 %v11086, %v11770
    %11772 = vmatmul.bf16.gmra.mxu0 %v10948
    %v11773 = vpop.f32.mrf.mxu0
    %v11774 = vadd.f32 %v11086, %v11773
    %v11775 = vpop.f32.mrf.mxu0
    %v11776 = vadd.f32 %v11086, %v11775
    %11777 = vmatmul.bf16.gmra.mxu0 %v10952
    %v11778 = vpop.f32.mrf.mxu0
    %v11779 = vadd.f32 %v11086, %v11778
    %v11780 = vpop.f32.mrf.mxu0
    %v11781 = vadd.f32 %v11086, %v11780
    %11782 = vdwg.mxu0
    %11783 = vmatpush.bf16.msra.mxu0 %v11538
    %11784 = vmatpush.bf16.msra.mxu0 %v11534
    %11785 = vmatpush.bf16.msra.mxu0 %v11530
    %11786 = vmatpush.bf16.msra.mxu0 %v11526
    %11787 = vmatpush.bf16.msra.mxu0 %v11522
    %11788 = vmatpush.bf16.msra.mxu0 %v11518
    %11789 = vmatpush.bf16.msra.mxu0 %v11514
    %11790 = vmatpush.bf16.msra.mxu0 %v11510
    %11791 = vmatmul.bf16.gmra.mxu0 %v10925
    %v11792 = vpop.f32.mrf.mxu0
    %v11793 = vadd.f32 %v11744, %v11792
    %v11794 = vpop.f32.mrf.mxu0
    %v11795 = vadd.f32 %v11746, %v11794
    %11796 = vmatmul.bf16.gmra.mxu0 %v10929
    %v11797 = vpop.f32.mrf.mxu0
    %v11798 = vadd.f32 %v11749, %v11797
    %v11799 = vpop.f32.mrf.mxu0
    %v11800 = vadd.f32 %v11751, %v11799
    %11801 = vmatmul.bf16.gmra.mxu0 %v10933
    %v11802 = vpop.f32.mrf.mxu0
    %v11803 = vadd.f32 %v11754, %v11802
    %v11804 = vpop.f32.mrf.mxu0
    %v11805 = vadd.f32 %v11756, %v11804
    %11806 = vmatmul.bf16.gmra.mxu0 %v10937
    %v11807 = vpop.f32.mrf.mxu0
    %v11808 = vadd.f32 %v11759, %v11807
    %v11809 = vpop.f32.mrf.mxu0
    %v11810 = vadd.f32 %v11761, %v11809
    %11811 = vmatmul.bf16.gmra.mxu0 %v10941
    %v11812 = vpop.f32.mrf.mxu0
    %v11813 = vadd.f32 %v11764, %v11812
    %v11814 = vpop.f32.mrf.mxu0
    %v11815 = vadd.f32 %v11766, %v11814
    %11816 = vmatmul.bf16.gmra.mxu0 %v10945
    %v11817 = vpop.f32.mrf.mxu0
    %v11818 = vadd.f32 %v11769, %v11817
    %v11819 = vpop.f32.mrf.mxu0
    %v11820 = vadd.f32 %v11771, %v11819
    %11821 = vmatmul.bf16.gmra.mxu0 %v10949
    %v11822 = vpop.f32.mrf.mxu0
    %v11823 = vadd.f32 %v11774, %v11822
    %v11824 = vpop.f32.mrf.mxu0
    %v11825 = vadd.f32 %v11776, %v11824
    %11826 = vmatmul.bf16.gmra.mxu0 %v10953
    %v11827 = vpop.f32.mrf.mxu0
    %v11828 = vadd.f32 %v11779, %v11827
    %v11829 = vpop.f32.mrf.mxu0
    %v11830 = vadd.f32 %v11781, %v11829
    %11831 = vdwg.mxu0
    %11832 = vmatpush.bf16.msra.mxu0 %v11570
    %11833 = vmatpush.bf16.msra.mxu0 %v11566
    %11834 = vmatpush.bf16.msra.mxu0 %v11562
    %11835 = vmatpush.bf16.msra.mxu0 %v11558
    %11836 = vmatpush.bf16.msra.mxu0 %v11554
    %11837 = vmatpush.bf16.msra.mxu0 %v11550
    %11838 = vmatpush.bf16.msra.mxu0 %v11546
    %11839 = vmatpush.bf16.msra.mxu0 %v11542
    %11840 = vmatmul.bf16.gmra.mxu0 %v10926
    %v11841 = vpop.f32.mrf.mxu0
    %v11842 = vadd.f32 %v11793, %v11841
    %v11843 = vpop.f32.mrf.mxu0
    %v11844 = vadd.f32 %v11795, %v11843
    %11845 = vmatmul.bf16.gmra.mxu0 %v10930
    %v11846 = vpop.f32.mrf.mxu0
    %v11847 = vadd.f32 %v11798, %v11846
    %v11848 = vpop.f32.mrf.mxu0
    %v11849 = vadd.f32 %v11800, %v11848
    %11850 = vmatmul.bf16.gmra.mxu0 %v10934
    %v11851 = vpop.f32.mrf.mxu0
    %v11852 = vadd.f32 %v11803, %v11851
    %v11853 = vpop.f32.mrf.mxu0
    %v11854 = vadd.f32 %v11805, %v11853
    %11855 = vmatmul.bf16.gmra.mxu0 %v10938
    %v11856 = vpop.f32.mrf.mxu0
    %v11857 = vadd.f32 %v11808, %v11856
    %v11858 = vpop.f32.mrf.mxu0
    %v11859 = vadd.f32 %v11810, %v11858
    %11860 = vmatmul.bf16.gmra.mxu0 %v10942
    %v11861 = vpop.f32.mrf.mxu0
    %v11862 = vadd.f32 %v11813, %v11861
    %v11863 = vpop.f32.mrf.mxu0
    %v11864 = vadd.f32 %v11815, %v11863
    %11865 = vmatmul.bf16.gmra.mxu0 %v10946
    %v11866 = vpop.f32.mrf.mxu0
    %v11867 = vadd.f32 %v11818, %v11866
    %v11868 = vpop.f32.mrf.mxu0
    %v11869 = vadd.f32 %v11820, %v11868
    %11870 = vmatmul.bf16.gmra.mxu0 %v10950
    %v11871 = vpop.f32.mrf.mxu0
    %v11872 = vadd.f32 %v11823, %v11871
    %v11873 = vpop.f32.mrf.mxu0
    %v11874 = vadd.f32 %v11825, %v11873
    %11875 = vmatmul.bf16.gmra.mxu0 %v10954
    %v11876 = vpop.f32.mrf.mxu0
    %v11877 = vadd.f32 %v11828, %v11876
    %v11878 = vpop.f32.mrf.mxu0
    %v11879 = vadd.f32 %v11830, %v11878
    %11880 = vdwg.mxu0
    %11881 = vmatpush.bf16.msra.mxu0 %v11602
    %11882 = vmatpush.bf16.msra.mxu0 %v11598
    %11883 = vmatpush.bf16.msra.mxu0 %v11594
    %11884 = vmatpush.bf16.msra.mxu0 %v11590
    %11885 = vmatpush.bf16.msra.mxu0 %v11586
    %11886 = vmatpush.bf16.msra.mxu0 %v11582
    %11887 = vmatpush.bf16.msra.mxu0 %v11578
    %11888 = vmatpush.bf16.msra.mxu0 %v11574
    %11889 = vmatmul.bf16.gmra.mxu0 %v10927
    %v11890 = vpop.f32.mrf.mxu0
    %v11891 = vadd.f32 %v11842, %v11890
    %v11892 = vpop.f32.mrf.mxu0
    %v11893 = vadd.f32 %v11844, %v11892
    %11894 = vmatmul.bf16.gmra.mxu0 %v10931
    %v11895 = vpop.f32.mrf.mxu0
    %v11896 = vadd.f32 %v11847, %v11895
    %v11897 = vpop.f32.mrf.mxu0
    %v11898 = vadd.f32 %v11849, %v11897
    %11899 = vmatmul.bf16.gmra.mxu0 %v10935
    %v11900 = vpop.f32.mrf.mxu0
    %v11901 = vadd.f32 %v11852, %v11900
    %v11902 = vpop.f32.mrf.mxu0
    %v11903 = vadd.f32 %v11854, %v11902
    %11904 = vmatmul.bf16.gmra.mxu0 %v10939
    %v11905 = vpop.f32.mrf.mxu0
    %v11906 = vadd.f32 %v11857, %v11905
    %v11907 = vpop.f32.mrf.mxu0
    %v11908 = vadd.f32 %v11859, %v11907
    %11909 = vmatmul.bf16.gmra.mxu0 %v10943
    %v11910 = vpop.f32.mrf.mxu0
    %v11911 = vadd.f32 %v11862, %v11910
    %v11912 = vpop.f32.mrf.mxu0
    %v11913 = vadd.f32 %v11864, %v11912
    %11914 = vmatmul.bf16.gmra.mxu0 %v10947
    %v11915 = vpop.f32.mrf.mxu0
    %v11916 = vadd.f32 %v11867, %v11915
    %v11917 = vpop.f32.mrf.mxu0
    %v11918 = vadd.f32 %v11869, %v11917
    %11919 = vmatmul.bf16.gmra.mxu0 %v10951
    %v11920 = vpop.f32.mrf.mxu0
    %v11921 = vadd.f32 %v11872, %v11920
    %v11922 = vpop.f32.mrf.mxu0
    %v11923 = vadd.f32 %v11874, %v11922
    %11924 = vmatmul.bf16.gmra.mxu0 %v10955
    %v11925 = vpop.f32.mrf.mxu0
    %v11926 = vadd.f32 %v11877, %v11925
    %v11927 = vpop.f32.mrf.mxu0
    %v11928 = vadd.f32 %v11879, %v11927
    %11929 = vdwg.mxu0
    %11930 = vmatpush.bf16.msra.mxu0 %v11507
    %11931 = vmatpush.bf16.msra.mxu0 %v11503
    %11932 = vmatpush.bf16.msra.mxu0 %v11499
    %11933 = vmatpush.bf16.msra.mxu0 %v11495
    %11934 = vmatpush.bf16.msra.mxu0 %v11491
    %11935 = vmatpush.bf16.msra.mxu0 %v11487
    %11936 = vmatpush.bf16.msra.mxu0 %v11483
    %11937 = vmatpush.bf16.msra.mxu0 %v11479
    %11938 = vmatmul.bf16.gmra.mxu0 %v10924
    %v11939 = vpop.f32.mrf.mxu0
    %v11940 = vadd.f32 %v11087, %v11939
    %v11941 = vpop.f32.mrf.mxu0
    %v11942 = vadd.f32 %v11087, %v11941
    %11943 = vmatmul.bf16.gmra.mxu0 %v10928
    %v11944 = vpop.f32.mrf.mxu0
    %v11945 = vadd.f32 %v11087, %v11944
    %v11946 = vpop.f32.mrf.mxu0
    %v11947 = vadd.f32 %v11087, %v11946
    %11948 = vmatmul.bf16.gmra.mxu0 %v10932
    %v11949 = vpop.f32.mrf.mxu0
    %v11950 = vadd.f32 %v11087, %v11949
    %v11951 = vpop.f32.mrf.mxu0
    %v11952 = vadd.f32 %v11087, %v11951
    %11953 = vmatmul.bf16.gmra.mxu0 %v10936
    %v11954 = vpop.f32.mrf.mxu0
    %v11955 = vadd.f32 %v11087, %v11954
    %v11956 = vpop.f32.mrf.mxu0
    %v11957 = vadd.f32 %v11087, %v11956
    %11958 = vmatmul.bf16.gmra.mxu0 %v10940
    %v11959 = vpop.f32.mrf.mxu0
    %v11960 = vadd.f32 %v11087, %v11959
    %v11961 = vpop.f32.mrf.mxu0
    %v11962 = vadd.f32 %v11087, %v11961
    %11963 = vmatmul.bf16.gmra.mxu0 %v10944
    %v11964 = vpop.f32.mrf.mxu0
    %v11965 = vadd.f32 %v11087, %v11964
    %v11966 = vpop.f32.mrf.mxu0
    %v11967 = vadd.f32 %v11087, %v11966
    %11968 = vmatmul.bf16.gmra.mxu0 %v10948
    %v11969 = vpop.f32.mrf.mxu0
    %v11970 = vadd.f32 %v11087, %v11969
    %v11971 = vpop.f32.mrf.mxu0
    %v11972 = vadd.f32 %v11087, %v11971
    %11973 = vmatmul.bf16.gmra.mxu0 %v10952
    %v11974 = vpop.f32.mrf.mxu0
    %v11975 = vadd.f32 %v11087, %v11974
    %v11976 = vpop.f32.mrf.mxu0
    %v11977 = vadd.f32 %v11087, %v11976
    %11978 = vdwg.mxu0
    %11979 = vmatpush.bf16.msra.mxu0 %v11539
    %11980 = vmatpush.bf16.msra.mxu0 %v11535
    %11981 = vmatpush.bf16.msra.mxu0 %v11531
    %11982 = vmatpush.bf16.msra.mxu0 %v11527
    %11983 = vmatpush.bf16.msra.mxu0 %v11523
    %11984 = vmatpush.bf16.msra.mxu0 %v11519
    %11985 = vmatpush.bf16.msra.mxu0 %v11515
    %11986 = vmatpush.bf16.msra.mxu0 %v11511
    %11987 = vmatmul.bf16.gmra.mxu0 %v10925
    %v11988 = vpop.f32.mrf.mxu0
    %v11989 = vadd.f32 %v11940, %v11988
    %v11990 = vpop.f32.mrf.mxu0
    %v11991 = vadd.f32 %v11942, %v11990
    %11992 = vmatmul.bf16.gmra.mxu0 %v10929
    %v11993 = vpop.f32.mrf.mxu0
    %v11994 = vadd.f32 %v11945, %v11993
    %v11995 = vpop.f32.mrf.mxu0
    %v11996 = vadd.f32 %v11947, %v11995
    %11997 = vmatmul.bf16.gmra.mxu0 %v10933
    %v11998 = vpop.f32.mrf.mxu0
    %v11999 = vadd.f32 %v11950, %v11998
    %v12000 = vpop.f32.mrf.mxu0
    %v12001 = vadd.f32 %v11952, %v12000
    %12002 = vmatmul.bf16.gmra.mxu0 %v10937
    %v12003 = vpop.f32.mrf.mxu0
    %v12004 = vadd.f32 %v11955, %v12003
    %v12005 = vpop.f32.mrf.mxu0
    %v12006 = vadd.f32 %v11957, %v12005
    %12007 = vmatmul.bf16.gmra.mxu0 %v10941
    %v12008 = vpop.f32.mrf.mxu0
    %v12009 = vadd.f32 %v11960, %v12008
    %v12010 = vpop.f32.mrf.mxu0
    %v12011 = vadd.f32 %v11962, %v12010
    %12012 = vmatmul.bf16.gmra.mxu0 %v10945
    %v12013 = vpop.f32.mrf.mxu0
    %v12014 = vadd.f32 %v11965, %v12013
    %v12015 = vpop.f32.mrf.mxu0
    %v12016 = vadd.f32 %v11967, %v12015
    %12017 = vmatmul.bf16.gmra.mxu0 %v10949
    %v12018 = vpop.f32.mrf.mxu0
    %v12019 = vadd.f32 %v11970, %v12018
    %v12020 = vpop.f32.mrf.mxu0
    %v12021 = vadd.f32 %v11972, %v12020
    %12022 = vmatmul.bf16.gmra.mxu0 %v10953
    %v12023 = vpop.f32.mrf.mxu0
    %v12024 = vadd.f32 %v11975, %v12023
    %v12025 = vpop.f32.mrf.mxu0
    %v12026 = vadd.f32 %v11977, %v12025
    %12027 = vdwg.mxu0
    %12028 = vmatpush.bf16.msra.mxu0 %v11571
    %12029 = vmatpush.bf16.msra.mxu0 %v11567
    %12030 = vmatpush.bf16.msra.mxu0 %v11563
    %12031 = vmatpush.bf16.msra.mxu0 %v11559
    %12032 = vmatpush.bf16.msra.mxu0 %v11555
    %12033 = vmatpush.bf16.msra.mxu0 %v11551
    %12034 = vmatpush.bf16.msra.mxu0 %v11547
    %12035 = vmatpush.bf16.msra.mxu0 %v11543
    %12036 = vmatmul.bf16.gmra.mxu0 %v10926
    %v12037 = vpop.f32.mrf.mxu0
    %v12038 = vadd.f32 %v11989, %v12037
    %v12039 = vpop.f32.mrf.mxu0
    %v12040 = vadd.f32 %v11991, %v12039
    %12041 = vmatmul.bf16.gmra.mxu0 %v10930
    %v12042 = vpop.f32.mrf.mxu0
    %v12043 = vadd.f32 %v11994, %v12042
    %v12044 = vpop.f32.mrf.mxu0
    %v12045 = vadd.f32 %v11996, %v12044
    %12046 = vmatmul.bf16.gmra.mxu0 %v10934
    %v12047 = vpop.f32.mrf.mxu0
    %v12048 = vadd.f32 %v11999, %v12047
    %v12049 = vpop.f32.mrf.mxu0
    %v12050 = vadd.f32 %v12001, %v12049
    %12051 = vmatmul.bf16.gmra.mxu0 %v10938
    %v12052 = vpop.f32.mrf.mxu0
    %v12053 = vadd.f32 %v12004, %v12052
    %v12054 = vpop.f32.mrf.mxu0
    %v12055 = vadd.f32 %v12006, %v12054
    %12056 = vmatmul.bf16.gmra.mxu0 %v10942
    %v12057 = vpop.f32.mrf.mxu0
    %v12058 = vadd.f32 %v12009, %v12057
    %v12059 = vpop.f32.mrf.mxu0
    %v12060 = vadd.f32 %v12011, %v12059
    %12061 = vmatmul.bf16.gmra.mxu0 %v10946
    %v12062 = vpop.f32.mrf.mxu0
    %v12063 = vadd.f32 %v12014, %v12062
    %v12064 = vpop.f32.mrf.mxu0
    %v12065 = vadd.f32 %v12016, %v12064
    %12066 = vmatmul.bf16.gmra.mxu0 %v10950
    %v12067 = vpop.f32.mrf.mxu0
    %v12068 = vadd.f32 %v12019, %v12067
    %v12069 = vpop.f32.mrf.mxu0
    %v12070 = vadd.f32 %v12021, %v12069
    %12071 = vmatmul.bf16.gmra.mxu0 %v10954
    %v12072 = vpop.f32.mrf.mxu0
    %v12073 = vadd.f32 %v12024, %v12072
    %v12074 = vpop.f32.mrf.mxu0
    %v12075 = vadd.f32 %v12026, %v12074
    %12076 = vdwg.mxu0
    %12077 = vmatpush.bf16.msra.mxu0 %v11603
    %12078 = vmatpush.bf16.msra.mxu0 %v11599
    %12079 = vmatpush.bf16.msra.mxu0 %v11595
    %12080 = vmatpush.bf16.msra.mxu0 %v11591
    %12081 = vmatpush.bf16.msra.mxu0 %v11587
    %12082 = vmatpush.bf16.msra.mxu0 %v11583
    %12083 = vmatpush.bf16.msra.mxu0 %v11579
    %12084 = vmatpush.bf16.msra.mxu0 %v11575
    %12085 = vmatmul.bf16.gmra.mxu0 %v10927
    %v12086 = vpop.f32.mrf.mxu0
    %v12087 = vadd.f32 %v12038, %v12086
    %v12088 = vpop.f32.mrf.mxu0
    %v12089 = vadd.f32 %v12040, %v12088
    %12090 = vmatmul.bf16.gmra.mxu0 %v10931
    %v12091 = vpop.f32.mrf.mxu0
    %v12092 = vadd.f32 %v12043, %v12091
    %v12093 = vpop.f32.mrf.mxu0
    %v12094 = vadd.f32 %v12045, %v12093
    %12095 = vmatmul.bf16.gmra.mxu0 %v10935
    %v12096 = vpop.f32.mrf.mxu0
    %v12097 = vadd.f32 %v12048, %v12096
    %v12098 = vpop.f32.mrf.mxu0
    %v12099 = vadd.f32 %v12050, %v12098
    %12100 = vmatmul.bf16.gmra.mxu0 %v10939
    %v12101 = vpop.f32.mrf.mxu0
    %v12102 = vadd.f32 %v12053, %v12101
    %v12103 = vpop.f32.mrf.mxu0
    %v12104 = vadd.f32 %v12055, %v12103
    %12105 = vmatmul.bf16.gmra.mxu0 %v10943
    %v12106 = vpop.f32.mrf.mxu0
    %v12107 = vadd.f32 %v12058, %v12106
    %v12108 = vpop.f32.mrf.mxu0
    %v12109 = vadd.f32 %v12060, %v12108
    %12110 = vmatmul.bf16.gmra.mxu0 %v10947
    %v12111 = vpop.f32.mrf.mxu0
    %v12112 = vadd.f32 %v12063, %v12111
    %v12113 = vpop.f32.mrf.mxu0
    %v12114 = vadd.f32 %v12065, %v12113
    %12115 = vmatmul.bf16.gmra.mxu0 %v10951
    %v12116 = vpop.f32.mrf.mxu0
    %v12117 = vadd.f32 %v12068, %v12116
    %v12118 = vpop.f32.mrf.mxu0
    %v12119 = vadd.f32 %v12070, %v12118
    %12120 = vmatmul.bf16.gmra.mxu0 %v10955
    %v12121 = vpop.f32.mrf.mxu0
    %v12122 = vadd.f32 %v12073, %v12121
    %v12123 = vpop.f32.mrf.mxu0
    %v12124 = vadd.f32 %v12075, %v12123
    %12125 = vdwg.mxu0
    %12126 = vmatpush.bf16.msra.mxu0 %v11508
    %12127 = vmatpush.bf16.msra.mxu0 %v11504
    %12128 = vmatpush.bf16.msra.mxu0 %v11500
    %12129 = vmatpush.bf16.msra.mxu0 %v11496
    %12130 = vmatpush.bf16.msra.mxu0 %v11492
    %12131 = vmatpush.bf16.msra.mxu0 %v11488
    %12132 = vmatpush.bf16.msra.mxu0 %v11484
    %12133 = vmatpush.bf16.msra.mxu0 %v11480
    %12134 = vmatmul.bf16.gmra.mxu0 %v10924
    %v12135 = vpop.f32.mrf.mxu0
    %v12136 = vadd.f32 %v11088, %v12135
    %v12137 = vpop.f32.mrf.mxu0
    %v12138 = vadd.f32 %v11088, %v12137
    %12139 = vmatmul.bf16.gmra.mxu0 %v10928
    %v12140 = vpop.f32.mrf.mxu0
    %v12141 = vadd.f32 %v11088, %v12140
    %v12142 = vpop.f32.mrf.mxu0
    %v12143 = vadd.f32 %v11088, %v12142
    %12144 = vmatmul.bf16.gmra.mxu0 %v10932
    %v12145 = vpop.f32.mrf.mxu0
    %v12146 = vadd.f32 %v11088, %v12145
    %v12147 = vpop.f32.mrf.mxu0
    %v12148 = vadd.f32 %v11088, %v12147
    %12149 = vmatmul.bf16.gmra.mxu0 %v10936
    %v12150 = vpop.f32.mrf.mxu0
    %v12151 = vadd.f32 %v11088, %v12150
    %v12152 = vpop.f32.mrf.mxu0
    %v12153 = vadd.f32 %v11088, %v12152
    %12154 = vmatmul.bf16.gmra.mxu0 %v10940
    %v12155 = vpop.f32.mrf.mxu0
    %v12156 = vadd.f32 %v11088, %v12155
    %v12157 = vpop.f32.mrf.mxu0
    %v12158 = vadd.f32 %v11088, %v12157
    %12159 = vmatmul.bf16.gmra.mxu0 %v10944
    %v12160 = vpop.f32.mrf.mxu0
    %v12161 = vadd.f32 %v11088, %v12160
    %v12162 = vpop.f32.mrf.mxu0
    %v12163 = vadd.f32 %v11088, %v12162
    %12164 = vmatmul.bf16.gmra.mxu0 %v10948
    %v12165 = vpop.f32.mrf.mxu0
    %v12166 = vadd.f32 %v11088, %v12165
    %v12167 = vpop.f32.mrf.mxu0
    %v12168 = vadd.f32 %v11088, %v12167
    %12169 = vmatmul.bf16.gmra.mxu0 %v10952
    %v12170 = vpop.f32.mrf.mxu0
    %v12171 = vadd.f32 %v11088, %v12170
    %v12172 = vpop.f32.mrf.mxu0
    %v12173 = vadd.f32 %v11088, %v12172
    %12174 = vdwg.mxu0
    %12175 = vmatpush.bf16.msra.mxu0 %v11540
    %12176 = vmatpush.bf16.msra.mxu0 %v11536
    %12177 = vmatpush.bf16.msra.mxu0 %v11532
    %12178 = vmatpush.bf16.msra.mxu0 %v11528
    %12179 = vmatpush.bf16.msra.mxu0 %v11524
    %12180 = vmatpush.bf16.msra.mxu0 %v11520
    %12181 = vmatpush.bf16.msra.mxu0 %v11516
    %12182 = vmatpush.bf16.msra.mxu0 %v11512
    %12183 = vmatmul.bf16.gmra.mxu0 %v10925
    %v12184 = vpop.f32.mrf.mxu0
    %v12185 = vadd.f32 %v12136, %v12184
    %v12186 = vpop.f32.mrf.mxu0
    %v12187 = vadd.f32 %v12138, %v12186
    %12188 = vmatmul.bf16.gmra.mxu0 %v10929
    %v12189 = vpop.f32.mrf.mxu0
    %v12190 = vadd.f32 %v12141, %v12189
    %v12191 = vpop.f32.mrf.mxu0
    %v12192 = vadd.f32 %v12143, %v12191
    %12193 = vmatmul.bf16.gmra.mxu0 %v10933
    %v12194 = vpop.f32.mrf.mxu0
    %v12195 = vadd.f32 %v12146, %v12194
    %v12196 = vpop.f32.mrf.mxu0
    %v12197 = vadd.f32 %v12148, %v12196
    %12198 = vmatmul.bf16.gmra.mxu0 %v10937
    %v12199 = vpop.f32.mrf.mxu0
    %v12200 = vadd.f32 %v12151, %v12199
    %v12201 = vpop.f32.mrf.mxu0
    %v12202 = vadd.f32 %v12153, %v12201
    %12203 = vmatmul.bf16.gmra.mxu0 %v10941
    %v12204 = vpop.f32.mrf.mxu0
    %v12205 = vadd.f32 %v12156, %v12204
    %v12206 = vpop.f32.mrf.mxu0
    %v12207 = vadd.f32 %v12158, %v12206
    %12208 = vmatmul.bf16.gmra.mxu0 %v10945
    %v12209 = vpop.f32.mrf.mxu0
    %v12210 = vadd.f32 %v12161, %v12209
    %v12211 = vpop.f32.mrf.mxu0
    %v12212 = vadd.f32 %v12163, %v12211
    %12213 = vmatmul.bf16.gmra.mxu0 %v10949
    %v12214 = vpop.f32.mrf.mxu0
    %v12215 = vadd.f32 %v12166, %v12214
    %v12216 = vpop.f32.mrf.mxu0
    %v12217 = vadd.f32 %v12168, %v12216
    %12218 = vmatmul.bf16.gmra.mxu0 %v10953
    %v12219 = vpop.f32.mrf.mxu0
    %v12220 = vadd.f32 %v12171, %v12219
    %v12221 = vpop.f32.mrf.mxu0
    %v12222 = vadd.f32 %v12173, %v12221
    %12223 = vdwg.mxu0
    %12224 = vmatpush.bf16.msra.mxu0 %v11572
    %12225 = vmatpush.bf16.msra.mxu0 %v11568
    %12226 = vmatpush.bf16.msra.mxu0 %v11564
    %12227 = vmatpush.bf16.msra.mxu0 %v11560
    %12228 = vmatpush.bf16.msra.mxu0 %v11556
    %12229 = vmatpush.bf16.msra.mxu0 %v11552
    %12230 = vmatpush.bf16.msra.mxu0 %v11548
    %12231 = vmatpush.bf16.msra.mxu0 %v11544
    %12232 = vmatmul.bf16.gmra.mxu0 %v10926
    %v12233 = vpop.f32.mrf.mxu0
    %v12234 = vadd.f32 %v12185, %v12233
    %v12235 = vpop.f32.mrf.mxu0
    %v12236 = vadd.f32 %v12187, %v12235
    %12237 = vmatmul.bf16.gmra.mxu0 %v10930
    %v12238 = vpop.f32.mrf.mxu0
    %v12239 = vadd.f32 %v12190, %v12238
    %v12240 = vpop.f32.mrf.mxu0
    %v12241 = vadd.f32 %v12192, %v12240
    %12242 = vmatmul.bf16.gmra.mxu0 %v10934
    %v12243 = vpop.f32.mrf.mxu0
    %v12244 = vadd.f32 %v12195, %v12243
    %v12245 = vpop.f32.mrf.mxu0
    %v12246 = vadd.f32 %v12197, %v12245
    %12247 = vmatmul.bf16.gmra.mxu0 %v10938
    %v12248 = vpop.f32.mrf.mxu0
    %v12249 = vadd.f32 %v12200, %v12248
    %v12250 = vpop.f32.mrf.mxu0
    %v12251 = vadd.f32 %v12202, %v12250
    %12252 = vmatmul.bf16.gmra.mxu0 %v10942
    %v12253 = vpop.f32.mrf.mxu0
    %v12254 = vadd.f32 %v12205, %v12253
    %v12255 = vpop.f32.mrf.mxu0
    %v12256 = vadd.f32 %v12207, %v12255
    %12257 = vmatmul.bf16.gmra.mxu0 %v10946
    %v12258 = vpop.f32.mrf.mxu0
    %v12259 = vadd.f32 %v12210, %v12258
    %v12260 = vpop.f32.mrf.mxu0
    %v12261 = vadd.f32 %v12212, %v12260
    %12262 = vmatmul.bf16.gmra.mxu0 %v10950
    %v12263 = vpop.f32.mrf.mxu0
    %v12264 = vadd.f32 %v12215, %v12263
    %v12265 = vpop.f32.mrf.mxu0
    %v12266 = vadd.f32 %v12217, %v12265
    %12267 = vmatmul.bf16.gmra.mxu0 %v10954
    %v12268 = vpop.f32.mrf.mxu0
    %v12269 = vadd.f32 %v12220, %v12268
    %v12270 = vpop.f32.mrf.mxu0
    %v12271 = vadd.f32 %v12222, %v12270
    %12272 = vdwg.mxu0
    %12273 = vmatpush.bf16.msra.mxu0 %v11604
    %12274 = vmatpush.bf16.msra.mxu0 %v11600
    %12275 = vmatpush.bf16.msra.mxu0 %v11596
    %12276 = vmatpush.bf16.msra.mxu0 %v11592
    %12277 = vmatpush.bf16.msra.mxu0 %v11588
    %12278 = vmatpush.bf16.msra.mxu0 %v11584
    %12279 = vmatpush.bf16.msra.mxu0 %v11580
    %12280 = vmatpush.bf16.msra.mxu0 %v11576
    %12281 = vmatmul.bf16.gmra.mxu0 %v10927
    %v12282 = vpop.f32.mrf.mxu0
    %v12283 = vadd.f32 %v12234, %v12282
    %v12284 = vpop.f32.mrf.mxu0
    %v12285 = vadd.f32 %v12236, %v12284
    %12286 = vmatmul.bf16.gmra.mxu0 %v10931
    %v12287 = vpop.f32.mrf.mxu0
    %v12288 = vadd.f32 %v12239, %v12287
    %v12289 = vpop.f32.mrf.mxu0
    %v12290 = vadd.f32 %v12241, %v12289
    %12291 = vmatmul.bf16.gmra.mxu0 %v10935
    %v12292 = vpop.f32.mrf.mxu0
    %v12293 = vadd.f32 %v12244, %v12292
    %v12294 = vpop.f32.mrf.mxu0
    %v12295 = vadd.f32 %v12246, %v12294
    %12296 = vmatmul.bf16.gmra.mxu0 %v10939
    %v12297 = vpop.f32.mrf.mxu0
    %v12298 = vadd.f32 %v12249, %v12297
    %v12299 = vpop.f32.mrf.mxu0
    %v12300 = vadd.f32 %v12251, %v12299
    %12301 = vmatmul.bf16.gmra.mxu0 %v10943
    %v12302 = vpop.f32.mrf.mxu0
    %v12303 = vadd.f32 %v12254, %v12302
    %v12304 = vpop.f32.mrf.mxu0
    %v12305 = vadd.f32 %v12256, %v12304
    %12306 = vmatmul.bf16.gmra.mxu0 %v10947
    %v12307 = vpop.f32.mrf.mxu0
    %v12308 = vadd.f32 %v12259, %v12307
    %v12309 = vpop.f32.mrf.mxu0
    %v12310 = vadd.f32 %v12261, %v12309
    %12311 = vmatmul.bf16.gmra.mxu0 %v10951
    %v12312 = vpop.f32.mrf.mxu0
    %v12313 = vadd.f32 %v12264, %v12312
    %v12314 = vpop.f32.mrf.mxu0
    %v12315 = vadd.f32 %v12266, %v12314
    %12316 = vmatmul.bf16.gmra.mxu0 %v10955
    %v12317 = vpop.f32.mrf.mxu0
    %v12318 = vadd.f32 %v12269, %v12317
    %v12319 = vpop.f32.mrf.mxu0
    %v12320 = vadd.f32 %v12271, %v12319
    %12321 = vdwg.mxu0
    %12322 = vmatpush.bf16.msra.mxu0 %v11509
    %12323 = vmatpush.bf16.msra.mxu0 %v11505
    %12324 = vmatpush.bf16.msra.mxu0 %v11501
    %12325 = vmatpush.bf16.msra.mxu0 %v11497
    %12326 = vmatpush.bf16.msra.mxu0 %v11493
    %12327 = vmatpush.bf16.msra.mxu0 %v11489
    %12328 = vmatpush.bf16.msra.mxu0 %v11485
    %12329 = vmatpush.bf16.msra.mxu0 %v11481
    %12330 = vmatmul.bf16.gmra.mxu0 %v10924
    %v12331 = vpop.f32.mrf.mxu0
    %v12332 = vadd.f32 %v11089, %v12331
    %v12333 = vpop.f32.mrf.mxu0
    %v12334 = vadd.f32 %v11089, %v12333
    %12335 = vmatmul.bf16.gmra.mxu0 %v10928
    %v12336 = vpop.f32.mrf.mxu0
    %v12337 = vadd.f32 %v11089, %v12336
    %v12338 = vpop.f32.mrf.mxu0
    %v12339 = vadd.f32 %v11089, %v12338
    %12340 = vmatmul.bf16.gmra.mxu0 %v10932
    %v12341 = vpop.f32.mrf.mxu0
    %v12342 = vadd.f32 %v11089, %v12341
    %v12343 = vpop.f32.mrf.mxu0
    %v12344 = vadd.f32 %v11089, %v12343
    %12345 = vmatmul.bf16.gmra.mxu0 %v10936
    %v12346 = vpop.f32.mrf.mxu0
    %v12347 = vadd.f32 %v11089, %v12346
    %v12348 = vpop.f32.mrf.mxu0
    %v12349 = vadd.f32 %v11089, %v12348
    %12350 = vmatmul.bf16.gmra.mxu0 %v10940
    %v12351 = vpop.f32.mrf.mxu0
    %v12352 = vadd.f32 %v11089, %v12351
    %v12353 = vpop.f32.mrf.mxu0
    %v12354 = vadd.f32 %v11089, %v12353
    %12355 = vmatmul.bf16.gmra.mxu0 %v10944
    %v12356 = vpop.f32.mrf.mxu0
    %v12357 = vadd.f32 %v11089, %v12356
    %v12358 = vpop.f32.mrf.mxu0
    %v12359 = vadd.f32 %v11089, %v12358
    %12360 = vmatmul.bf16.gmra.mxu0 %v10948
    %v12361 = vpop.f32.mrf.mxu0
    %v12362 = vadd.f32 %v11089, %v12361
    %v12363 = vpop.f32.mrf.mxu0
    %v12364 = vadd.f32 %v11089, %v12363
    %12365 = vmatmul.bf16.gmra.mxu0 %v10952
    %v12366 = vpop.f32.mrf.mxu0
    %v12367 = vadd.f32 %v11089, %v12366
    %v12368 = vpop.f32.mrf.mxu0
    %v12369 = vadd.f32 %v11089, %v12368
    %12370 = vdwg.mxu0
    %12371 = vmatpush.bf16.msra.mxu0 %v11541
    %12372 = vmatpush.bf16.msra.mxu0 %v11537
    %12373 = vmatpush.bf16.msra.mxu0 %v11533
    %12374 = vmatpush.bf16.msra.mxu0 %v11529
    %12375 = vmatpush.bf16.msra.mxu0 %v11525
    %12376 = vmatpush.bf16.msra.mxu0 %v11521
    %12377 = vmatpush.bf16.msra.mxu0 %v11517
    %12378 = vmatpush.bf16.msra.mxu0 %v11513
    %12379 = vmatmul.bf16.gmra.mxu0 %v10925
    %v12380 = vpop.f32.mrf.mxu0
    %v12381 = vadd.f32 %v12332, %v12380
    %v12382 = vpop.f32.mrf.mxu0
    %v12383 = vadd.f32 %v12334, %v12382
    %12384 = vmatmul.bf16.gmra.mxu0 %v10929
    %v12385 = vpop.f32.mrf.mxu0
    %v12386 = vadd.f32 %v12337, %v12385
    %v12387 = vpop.f32.mrf.mxu0
    %v12388 = vadd.f32 %v12339, %v12387
    %12389 = vmatmul.bf16.gmra.mxu0 %v10933
    %v12390 = vpop.f32.mrf.mxu0
    %v12391 = vadd.f32 %v12342, %v12390
    %v12392 = vpop.f32.mrf.mxu0
    %v12393 = vadd.f32 %v12344, %v12392
    %12394 = vmatmul.bf16.gmra.mxu0 %v10937
    %v12395 = vpop.f32.mrf.mxu0
    %v12396 = vadd.f32 %v12347, %v12395
    %v12397 = vpop.f32.mrf.mxu0
    %v12398 = vadd.f32 %v12349, %v12397
    %12399 = vmatmul.bf16.gmra.mxu0 %v10941
    %v12400 = vpop.f32.mrf.mxu0
    %v12401 = vadd.f32 %v12352, %v12400
    %v12402 = vpop.f32.mrf.mxu0
    %v12403 = vadd.f32 %v12354, %v12402
    %12404 = vmatmul.bf16.gmra.mxu0 %v10945
    %v12405 = vpop.f32.mrf.mxu0
    %v12406 = vadd.f32 %v12357, %v12405
    %v12407 = vpop.f32.mrf.mxu0
    %v12408 = vadd.f32 %v12359, %v12407
    %12409 = vmatmul.bf16.gmra.mxu0 %v10949
    %v12410 = vpop.f32.mrf.mxu0
    %v12411 = vadd.f32 %v12362, %v12410
    %v12412 = vpop.f32.mrf.mxu0
    %v12413 = vadd.f32 %v12364, %v12412
    %12414 = vmatmul.bf16.gmra.mxu0 %v10953
    %v12415 = vpop.f32.mrf.mxu0
    %v12416 = vadd.f32 %v12367, %v12415
    %v12417 = vpop.f32.mrf.mxu0
    %v12418 = vadd.f32 %v12369, %v12417
    %12419 = vdwg.mxu0
    %12420 = vmatpush.bf16.msra.mxu0 %v11573
    %12421 = vmatpush.bf16.msra.mxu0 %v11569
    %12422 = vmatpush.bf16.msra.mxu0 %v11565
    %12423 = vmatpush.bf16.msra.mxu0 %v11561
    %12424 = vmatpush.bf16.msra.mxu0 %v11557
    %12425 = vmatpush.bf16.msra.mxu0 %v11553
    %12426 = vmatpush.bf16.msra.mxu0 %v11549
    %12427 = vmatpush.bf16.msra.mxu0 %v11545
    %12428 = vmatmul.bf16.gmra.mxu0 %v10926
    %v12429 = vpop.f32.mrf.mxu0
    %v12430 = vadd.f32 %v12381, %v12429
    %v12431 = vpop.f32.mrf.mxu0
    %v12432 = vadd.f32 %v12383, %v12431
    %12433 = vmatmul.bf16.gmra.mxu0 %v10930
    %v12434 = vpop.f32.mrf.mxu0
    %v12435 = vadd.f32 %v12386, %v12434
    %v12436 = vpop.f32.mrf.mxu0
    %v12437 = vadd.f32 %v12388, %v12436
    %12438 = vmatmul.bf16.gmra.mxu0 %v10934
    %v12439 = vpop.f32.mrf.mxu0
    %v12440 = vadd.f32 %v12391, %v12439
    %v12441 = vpop.f32.mrf.mxu0
    %v12442 = vadd.f32 %v12393, %v12441
    %12443 = vmatmul.bf16.gmra.mxu0 %v10938
    %v12444 = vpop.f32.mrf.mxu0
    %v12445 = vadd.f32 %v12396, %v12444
    %v12446 = vpop.f32.mrf.mxu0
    %v12447 = vadd.f32 %v12398, %v12446
    %12448 = vmatmul.bf16.gmra.mxu0 %v10942
    %v12449 = vpop.f32.mrf.mxu0
    %v12450 = vadd.f32 %v12401, %v12449
    %v12451 = vpop.f32.mrf.mxu0
    %v12452 = vadd.f32 %v12403, %v12451
    %12453 = vmatmul.bf16.gmra.mxu0 %v10946
    %v12454 = vpop.f32.mrf.mxu0
    %v12455 = vadd.f32 %v12406, %v12454
    %v12456 = vpop.f32.mrf.mxu0
    %v12457 = vadd.f32 %v12408, %v12456
    %12458 = vmatmul.bf16.gmra.mxu0 %v10950
    %v12459 = vpop.f32.mrf.mxu0
    %v12460 = vadd.f32 %v12411, %v12459
    %v12461 = vpop.f32.mrf.mxu0
    %v12462 = vadd.f32 %v12413, %v12461
    %12463 = vmatmul.bf16.gmra.mxu0 %v10954
    %v12464 = vpop.f32.mrf.mxu0
    %v12465 = vadd.f32 %v12416, %v12464
    %v12466 = vpop.f32.mrf.mxu0
    %v12467 = vadd.f32 %v12418, %v12466
    %12468 = vdwg.mxu0
    %12469 = vmatpush.bf16.msra.mxu0 %v11605
    %12470 = vmatpush.bf16.msra.mxu0 %v11601
    %12471 = vmatpush.bf16.msra.mxu0 %v11597
    %12472 = vmatpush.bf16.msra.mxu0 %v11593
    %12473 = vmatpush.bf16.msra.mxu0 %v11589
    %12474 = vmatpush.bf16.msra.mxu0 %v11585
    %12475 = vmatpush.bf16.msra.mxu0 %v11581
    %12476 = vmatpush.bf16.msra.mxu0 %v11577
    %12477 = vmatmul.bf16.gmra.mxu0 %v10927
    %v12478 = vpop.f32.mrf.mxu0
    %v12479 = vadd.f32 %v12430, %v12478
    %v12480 = vpop.f32.mrf.mxu0
    %v12481 = vadd.f32 %v12432, %v12480
    %12482 = vmatmul.bf16.gmra.mxu0 %v10931
    %v12483 = vpop.f32.mrf.mxu0
    %v12484 = vadd.f32 %v12435, %v12483
    %v12485 = vpop.f32.mrf.mxu0
    %v12486 = vadd.f32 %v12437, %v12485
    %12487 = vmatmul.bf16.gmra.mxu0 %v10935
    %v12488 = vpop.f32.mrf.mxu0
    %v12489 = vadd.f32 %v12440, %v12488
    %v12490 = vpop.f32.mrf.mxu0
    %v12491 = vadd.f32 %v12442, %v12490
    %12492 = vmatmul.bf16.gmra.mxu0 %v10939
    %v12493 = vpop.f32.mrf.mxu0
    %v12494 = vadd.f32 %v12445, %v12493
    %v12495 = vpop.f32.mrf.mxu0
    %v12496 = vadd.f32 %v12447, %v12495
    %12497 = vmatmul.bf16.gmra.mxu0 %v10943
    %v12498 = vpop.f32.mrf.mxu0
    %v12499 = vadd.f32 %v12450, %v12498
    %v12500 = vpop.f32.mrf.mxu0
    %v12501 = vadd.f32 %v12452, %v12500
    %12502 = vmatmul.bf16.gmra.mxu0 %v10947
    %v12503 = vpop.f32.mrf.mxu0
    %v12504 = vadd.f32 %v12455, %v12503
    %v12505 = vpop.f32.mrf.mxu0
    %v12506 = vadd.f32 %v12457, %v12505
    %12507 = vmatmul.bf16.gmra.mxu0 %v10951
    %v12508 = vpop.f32.mrf.mxu0
    %v12509 = vadd.f32 %v12460, %v12508
    %v12510 = vpop.f32.mrf.mxu0
    %v12511 = vadd.f32 %v12462, %v12510
    %12512 = vmatmul.bf16.gmra.mxu0 %v10955
    %v12513 = vpop.f32.mrf.mxu0
    %v12514 = vadd.f32 %v12465, %v12513
    %v12515 = vpop.f32.mrf.mxu0
    %v12516 = vadd.f32 %v12467, %v12515
    %12517 = vdwg.mxu0
    %v12518 = vsub.f32 0.0, %v11891
    %v12519 = vsub.f32 0.0, %v12087
    %v12520 = vsub.f32 0.0, %v12283
    %v12521 = vsub.f32 0.0, %v12479
    %v12522 = vsub.f32 0.0, %v11893
    %v12523 = vsub.f32 0.0, %v12089
    %v12524 = vsub.f32 0.0, %v12285
    %v12525 = vsub.f32 0.0, %v12481
    %v12526 = vsub.f32 0.0, %v11896
    %v12527 = vsub.f32 0.0, %v12092
    %v12528 = vsub.f32 0.0, %v12288
    %v12529 = vsub.f32 0.0, %v12484
    %v12530 = vsub.f32 0.0, %v11898
    %v12531 = vsub.f32 0.0, %v12094
    %v12532 = vsub.f32 0.0, %v12290
    %v12533 = vsub.f32 0.0, %v12486
    %v12534 = vsub.f32 0.0, %v11901
    %v12535 = vsub.f32 0.0, %v12097
    %v12536 = vsub.f32 0.0, %v12293
    %v12537 = vsub.f32 0.0, %v12489
    %v12538 = vsub.f32 0.0, %v11903
    %v12539 = vsub.f32 0.0, %v12099
    %v12540 = vsub.f32 0.0, %v12295
    %v12541 = vsub.f32 0.0, %v12491
    %v12542 = vsub.f32 0.0, %v11906
    %v12543 = vsub.f32 0.0, %v12102
    %v12544 = vsub.f32 0.0, %v12298
    %v12545 = vsub.f32 0.0, %v12494
    %v12546 = vsub.f32 0.0, %v11908
    %v12547 = vsub.f32 0.0, %v12104
    %v12548 = vsub.f32 0.0, %v12300
    %v12549 = vsub.f32 0.0, %v12496
    %v12550 = vsub.f32 0.0, %v11911
    %v12551 = vsub.f32 0.0, %v12107
    %v12552 = vsub.f32 0.0, %v12303
    %v12553 = vsub.f32 0.0, %v12499
    %v12554 = vsub.f32 0.0, %v11913
    %v12555 = vsub.f32 0.0, %v12109
    %v12556 = vsub.f32 0.0, %v12305
    %v12557 = vsub.f32 0.0, %v12501
    %v12558 = vsub.f32 0.0, %v11916
    %v12559 = vsub.f32 0.0, %v12112
    %v12560 = vsub.f32 0.0, %v12308
    %v12561 = vsub.f32 0.0, %v12504
    %v12562 = vsub.f32 0.0, %v11918
    %v12563 = vsub.f32 0.0, %v12114
    %v12564 = vsub.f32 0.0, %v12310
    %v12565 = vsub.f32 0.0, %v12506
    %v12566 = vsub.f32 0.0, %v11921
    %v12567 = vsub.f32 0.0, %v12117
    %v12568 = vsub.f32 0.0, %v12313
    %v12569 = vsub.f32 0.0, %v12509
    %v12570 = vsub.f32 0.0, %v11923
    %v12571 = vsub.f32 0.0, %v12119
    %v12572 = vsub.f32 0.0, %v12315
    %v12573 = vsub.f32 0.0, %v12511
    %v12574 = vsub.f32 0.0, %v11926
    %v12575 = vsub.f32 0.0, %v12122
    %v12576 = vsub.f32 0.0, %v12318
    %v12577 = vsub.f32 0.0, %v12514
    %v12578 = vsub.f32 0.0, %v11928
    %v12579 = vsub.f32 0.0, %v12124
    %v12580 = vsub.f32 0.0, %v12320
    %v12581 = vsub.f32 0.0, %v12516
    %v12582 = vmul.f32 %v12518, 1.442695
    %v12583 = vpow.pop %v12582
    %v12584 = vmul.f32 %v12519, 1.442695
    %v12585 = vpow.pop %v12584
    %v12586 = vmul.f32 %v12520, 1.442695
    %v12587 = vpow.pop %v12586
    %v12588 = vmul.f32 %v12521, 1.442695
    %v12589 = vpow.pop %v12588
    %v12590 = vmul.f32 %v12522, 1.442695
    %v12591 = vpow.pop %v12590
    %v12592 = vmul.f32 %v12523, 1.442695
    %v12593 = vpow.pop %v12592
    %v12594 = vmul.f32 %v12524, 1.442695
    %v12595 = vpow.pop %v12594
    %v12596 = vmul.f32 %v12525, 1.442695
    %v12597 = vpow.pop %v12596
    %v12598 = vmul.f32 %v12526, 1.442695
    %v12599 = vpow.pop %v12598
    %v12600 = vmul.f32 %v12527, 1.442695
    %v12601 = vpow.pop %v12600
    %v12602 = vmul.f32 %v12528, 1.442695
    %v12603 = vpow.pop %v12602
    %v12604 = vmul.f32 %v12529, 1.442695
    %v12605 = vpow.pop %v12604
    %v12606 = vmul.f32 %v12530, 1.442695
    %v12607 = vpow.pop %v12606
    %v12608 = vmul.f32 %v12531, 1.442695
    %v12609 = vpow.pop %v12608
    %v12610 = vmul.f32 %v12532, 1.442695
    %v12611 = vpow.pop %v12610
    %v12612 = vmul.f32 %v12533, 1.442695
    %v12613 = vpow.pop %v12612
    %v12614 = vmul.f32 %v12534, 1.442695
    %v12615 = vpow.pop %v12614
    %v12616 = vmul.f32 %v12535, 1.442695
    %v12617 = vpow.pop %v12616
    %v12618 = vmul.f32 %v12536, 1.442695
    %v12619 = vpow.pop %v12618
    %v12620 = vmul.f32 %v12537, 1.442695
    %v12621 = vpow.pop %v12620
    %v12622 = vmul.f32 %v12538, 1.442695
    %v12623 = vpow.pop %v12622
    %v12624 = vmul.f32 %v12539, 1.442695
    %v12625 = vpow.pop %v12624
    %v12626 = vmul.f32 %v12540, 1.442695
    %v12627 = vpow.pop %v12626
    %v12628 = vmul.f32 %v12541, 1.442695
    %v12629 = vpow.pop %v12628
    %v12630 = vmul.f32 %v12542, 1.442695
    %v12631 = vpow.pop %v12630
    %v12632 = vmul.f32 %v12543, 1.442695
    %v12633 = vpow.pop %v12632
    %v12634 = vmul.f32 %v12544, 1.442695
    %v12635 = vpow.pop %v12634
    %v12636 = vmul.f32 %v12545, 1.442695
    %v12637 = vpow.pop %v12636
    %v12638 = vmul.f32 %v12546, 1.442695
    %v12639 = vpow.pop %v12638
    %v12640 = vmul.f32 %v12547, 1.442695
    %v12641 = vpow.pop %v12640
    %v12642 = vmul.f32 %v12548, 1.442695
    %v12643 = vpow.pop %v12642
    %v12644 = vmul.f32 %v12549, 1.442695
    %v12645 = vpow.pop %v12644
    %v12646 = vmul.f32 %v12550, 1.442695
    %v12647 = vpow.pop %v12646
    %v12648 = vmul.f32 %v12551, 1.442695
    %v12649 = vpow.pop %v12648
    %v12650 = vmul.f32 %v12552, 1.442695
    %v12651 = vpow.pop %v12650
    %v12652 = vmul.f32 %v12553, 1.442695
    %v12653 = vpow.pop %v12652
    %v12654 = vmul.f32 %v12554, 1.442695
    %v12655 = vpow.pop %v12654
    %v12656 = vmul.f32 %v12555, 1.442695
    %v12657 = vpow.pop %v12656
    %v12658 = vmul.f32 %v12556, 1.442695
    %v12659 = vpow.pop %v12658
    %v12660 = vmul.f32 %v12557, 1.442695
    %v12661 = vpow.pop %v12660
    %v12662 = vmul.f32 %v12558, 1.442695
    %v12663 = vpow.pop %v12662
    %v12664 = vmul.f32 %v12559, 1.442695
    %v12665 = vpow.pop %v12664
    %v12666 = vmul.f32 %v12560, 1.442695
    %v12667 = vpow.pop %v12666
    %v12668 = vmul.f32 %v12561, 1.442695
    %v12669 = vpow.pop %v12668
    %v12670 = vmul.f32 %v12562, 1.442695
    %v12671 = vpow.pop %v12670
    %v12672 = vmul.f32 %v12563, 1.442695
    %v12673 = vpow.pop %v12672
    %v12674 = vmul.f32 %v12564, 1.442695
    %v12675 = vpow.pop %v12674
    %v12676 = vmul.f32 %v12565, 1.442695
    %v12677 = vpow.pop %v12676
    %v12678 = vmul.f32 %v12566, 1.442695
    %v12679 = vpow.pop %v12678
    %v12680 = vmul.f32 %v12567, 1.442695
    %v12681 = vpow.pop %v12680
    %v12682 = vmul.f32 %v12568, 1.442695
    %v12683 = vpow.pop %v12682
    %v12684 = vmul.f32 %v12569, 1.442695
    %v12685 = vpow.pop %v12684
    %v12686 = vmul.f32 %v12570, 1.442695
    %v12687 = vpow.pop %v12686
    %v12688 = vmul.f32 %v12571, 1.442695
    %v12689 = vpow.pop %v12688
    %v12690 = vmul.f32 %v12572, 1.442695
    %v12691 = vpow.pop %v12690
    %v12692 = vmul.f32 %v12573, 1.442695
    %v12693 = vpow.pop %v12692
    %v12694 = vmul.f32 %v12574, 1.442695
    %v12695 = vpow.pop %v12694
    %v12696 = vmul.f32 %v12575, 1.442695
    %v12697 = vpow.pop %v12696
    %v12698 = vmul.f32 %v12576, 1.442695
    %v12699 = vpow.pop %v12698
    %v12700 = vmul.f32 %v12577, 1.442695
    %v12701 = vpow.pop %v12700
    %v12702 = vmul.f32 %v12578, 1.442695
    %v12703 = vpow.pop %v12702
    %v12704 = vmul.f32 %v12579, 1.442695
    %v12705 = vpow.pop %v12704
    %v12706 = vmul.f32 %v12580, 1.442695
    %v12707 = vpow.pop %v12706
    %v12708 = vmul.f32 %v12581, 1.442695
    %v12709 = vpow.pop %v12708
    %v12710 = vadd.f32 %v12583, 1.0
    %v12711 = vadd.f32 %v12585, 1.0
    %v12712 = vadd.f32 %v12587, 1.0
    %v12713 = vadd.f32 %v12589, 1.0
    %v12714 = vadd.f32 %v12591, 1.0
    %v12715 = vadd.f32 %v12593, 1.0
    %v12716 = vadd.f32 %v12595, 1.0
    %v12717 = vadd.f32 %v12597, 1.0
    %v12718 = vadd.f32 %v12599, 1.0
    %v12719 = vadd.f32 %v12601, 1.0
    %v12720 = vadd.f32 %v12603, 1.0
    %v12721 = vadd.f32 %v12605, 1.0
    %v12722 = vadd.f32 %v12607, 1.0
    %v12723 = vadd.f32 %v12609, 1.0
    %v12724 = vadd.f32 %v12611, 1.0
    %v12725 = vadd.f32 %v12613, 1.0
    %v12726 = vadd.f32 %v12615, 1.0
    %v12727 = vadd.f32 %v12617, 1.0
    %v12728 = vadd.f32 %v12619, 1.0
    %v12729 = vadd.f32 %v12621, 1.0
    %v12730 = vadd.f32 %v12623, 1.0
    %v12731 = vadd.f32 %v12625, 1.0
    %v12732 = vadd.f32 %v12627, 1.0
    %v12733 = vadd.f32 %v12629, 1.0
    %v12734 = vadd.f32 %v12631, 1.0
    %v12735 = vadd.f32 %v12633, 1.0
    %v12736 = vadd.f32 %v12635, 1.0
    %v12737 = vadd.f32 %v12637, 1.0
    %v12738 = vadd.f32 %v12639, 1.0
    %v12739 = vadd.f32 %v12641, 1.0
    %v12740 = vadd.f32 %v12643, 1.0
    %v12741 = vadd.f32 %v12645, 1.0
    %v12742 = vadd.f32 %v12647, 1.0
    %v12743 = vadd.f32 %v12649, 1.0
    %v12744 = vadd.f32 %v12651, 1.0
    %v12745 = vadd.f32 %v12653, 1.0
    %v12746 = vadd.f32 %v12655, 1.0
    %v12747 = vadd.f32 %v12657, 1.0
    %v12748 = vadd.f32 %v12659, 1.0
    %v12749 = vadd.f32 %v12661, 1.0
    %v12750 = vadd.f32 %v12663, 1.0
    %v12751 = vadd.f32 %v12665, 1.0
    %v12752 = vadd.f32 %v12667, 1.0
    %v12753 = vadd.f32 %v12669, 1.0
    %v12754 = vadd.f32 %v12671, 1.0
    %v12755 = vadd.f32 %v12673, 1.0
    %v12756 = vadd.f32 %v12675, 1.0
    %v12757 = vadd.f32 %v12677, 1.0
    %v12758 = vadd.f32 %v12679, 1.0
    %v12759 = vadd.f32 %v12681, 1.0
    %v12760 = vadd.f32 %v12683, 1.0
    %v12761 = vadd.f32 %v12685, 1.0
    %v12762 = vadd.f32 %v12687, 1.0
    %v12763 = vadd.f32 %v12689, 1.0
    %v12764 = vadd.f32 %v12691, 1.0
    %v12765 = vadd.f32 %v12693, 1.0
    %v12766 = vadd.f32 %v12695, 1.0
    %v12767 = vadd.f32 %v12697, 1.0
    %v12768 = vadd.f32 %v12699, 1.0
    %v12769 = vadd.f32 %v12701, 1.0
    %v12770 = vadd.f32 %v12703, 1.0
    %v12771 = vadd.f32 %v12705, 1.0
    %v12772 = vadd.f32 %v12707, 1.0
    %v12773 = vadd.f32 %v12709, 1.0
    %v12774 = vrcp.pop %v12710
    %v12775 = vrcp.pop %v12711
    %v12776 = vrcp.pop %v12712
    %v12777 = vrcp.pop %v12713
    %v12778 = vrcp.pop %v12714
    %v12779 = vrcp.pop %v12715
    %v12780 = vrcp.pop %v12716
    %v12781 = vrcp.pop %v12717
    %v12782 = vrcp.pop %v12718
    %v12783 = vrcp.pop %v12719
    %v12784 = vrcp.pop %v12720
    %v12785 = vrcp.pop %v12721
    %v12786 = vrcp.pop %v12722
    %v12787 = vrcp.pop %v12723
    %v12788 = vrcp.pop %v12724
    %v12789 = vrcp.pop %v12725
    %v12790 = vrcp.pop %v12726
    %v12791 = vrcp.pop %v12727
    %v12792 = vrcp.pop %v12728
    %v12793 = vrcp.pop %v12729
    %v12794 = vrcp.pop %v12730
    %v12795 = vrcp.pop %v12731
    %v12796 = vrcp.pop %v12732
    %v12797 = vrcp.pop %v12733
    %v12798 = vrcp.pop %v12734
    %v12799 = vrcp.pop %v12735
    %v12800 = vrcp.pop %v12736
    %v12801 = vrcp.pop %v12737
    %v12802 = vrcp.pop %v12738
    %v12803 = vrcp.pop %v12739
    %v12804 = vrcp.pop %v12740
    %v12805 = vrcp.pop %v12741
    %v12806 = vrcp.pop %v12742
    %v12807 = vrcp.pop %v12743
    %v12808 = vrcp.pop %v12744
    %v12809 = vrcp.pop %v12745
    %v12810 = vrcp.pop %v12746
    %v12811 = vrcp.pop %v12747
    %v12812 = vrcp.pop %v12748
    %v12813 = vrcp.pop %v12749
    %v12814 = vrcp.pop %v12750
    %v12815 = vrcp.pop %v12751
    %v12816 = vrcp.pop %v12752
    %v12817 = vrcp.pop %v12753
    %v12818 = vrcp.pop %v12754
    %v12819 = vrcp.pop %v12755
    %v12820 = vrcp.pop %v12756
    %v12821 = vrcp.pop %v12757
    %v12822 = vrcp.pop %v12758
    %v12823 = vrcp.pop %v12759
    %v12824 = vrcp.pop %v12760
    %v12825 = vrcp.pop %v12761
    %v12826 = vrcp.pop %v12762
    %v12827 = vrcp.pop %v12763
    %v12828 = vrcp.pop %v12764
    %v12829 = vrcp.pop %v12765
    %v12830 = vrcp.pop %v12766
    %v12831 = vrcp.pop %v12767
    %v12832 = vrcp.pop %v12768
    %v12833 = vrcp.pop %v12769
    %v12834 = vrcp.pop %v12770
    %v12835 = vrcp.pop %v12771
    %v12836 = vrcp.pop %v12772
    %v12837 = vrcp.pop %v12773
    %v12838 = vpack.c.bf16 %v12778, %v12774
    %v12839 = vpack.c.bf16 %v12779, %v12775
    %v12840 = vpack.c.bf16 %v12780, %v12776
    %v12841 = vpack.c.bf16 %v12781, %v12777
    %v12842 = vpack.c.bf16 %v12786, %v12782
    %v12843 = vpack.c.bf16 %v12787, %v12783
    %v12844 = vpack.c.bf16 %v12788, %v12784
    %v12845 = vpack.c.bf16 %v12789, %v12785
    %v12846 = vpack.c.bf16 %v12794, %v12790
    %v12847 = vpack.c.bf16 %v12795, %v12791
    %v12848 = vpack.c.bf16 %v12796, %v12792
    %v12849 = vpack.c.bf16 %v12797, %v12793
    %v12850 = vpack.c.bf16 %v12802, %v12798
    %v12851 = vpack.c.bf16 %v12803, %v12799
    %v12852 = vpack.c.bf16 %v12804, %v12800
    %v12853 = vpack.c.bf16 %v12805, %v12801
    %v12854 = vpack.c.bf16 %v12810, %v12806
    %v12855 = vpack.c.bf16 %v12811, %v12807
    %v12856 = vpack.c.bf16 %v12812, %v12808
    %v12857 = vpack.c.bf16 %v12813, %v12809
    %v12858 = vpack.c.bf16 %v12818, %v12814
    %v12859 = vpack.c.bf16 %v12819, %v12815
    %v12860 = vpack.c.bf16 %v12820, %v12816
    %v12861 = vpack.c.bf16 %v12821, %v12817
    %v12862 = vpack.c.bf16 %v12826, %v12822
    %v12863 = vpack.c.bf16 %v12827, %v12823
    %v12864 = vpack.c.bf16 %v12828, %v12824
    %v12865 = vpack.c.bf16 %v12829, %v12825
    %v12866 = vpack.c.bf16 %v12834, %v12830
    %v12867 = vpack.c.bf16 %v12835, %v12831
    %v12868 = vpack.c.bf16 %v12836, %v12832
    %v12869 = vpack.c.bf16 %v12837, %v12833
    %v12870 = vld [vmem:[#allocation11] sm:$0xf]
    %v12871 = vld [vmem:[#allocation11 + $0x4] sm:$0xf]
    %v12872 = vld [vmem:[#allocation11 + $0x8] sm:$0xf]
    %v12873 = vld [vmem:[#allocation11 + $0xc] sm:$0xf]
    %v12874 = vld [vmem:[#allocation11 + $0x10] sm:$0xf]
    %v12875 = vld [vmem:[#allocation11 + $0x14] sm:$0xf]
    %v12876 = vld [vmem:[#allocation11 + $0x18] sm:$0xf]
    %v12877 = vld [vmem:[#allocation11 + $0x1c] sm:$0xf]
    %v12878 = vld [vmem:[#allocation11 + $0x20] sm:$0xf]
    %v12879 = vld [vmem:[#allocation11 + $0x24] sm:$0xf]
    %v12880 = vld [vmem:[#allocation11 + $0x28] sm:$0xf]
    %v12881 = vld [vmem:[#allocation11 + $0x2c] sm:$0xf]
    %v12882 = vld [vmem:[#allocation11 + $0x30] sm:$0xf]
    %v12883 = vld [vmem:[#allocation11 + $0x34] sm:$0xf]
    %v12884 = vld [vmem:[#allocation11 + $0x38] sm:$0xf]
    %v12885 = vld [vmem:[#allocation11 + $0x3c] sm:$0xf]
    %v12886 = vld [vmem:[#allocation11 + $0x40] sm:$0xf]
    %v12887 = vld [vmem:[#allocation11 + $0x44] sm:$0xf]
    %v12888 = vld [vmem:[#allocation11 + $0x48] sm:$0xf]
    %v12889 = vld [vmem:[#allocation11 + $0x4c] sm:$0xf]
    %v12890 = vld [vmem:[#allocation11 + $0x50] sm:$0xf]
    %v12891 = vld [vmem:[#allocation11 + $0x54] sm:$0xf]
    %v12892 = vld [vmem:[#allocation11 + $0x58] sm:$0xf]
    %v12893 = vld [vmem:[#allocation11 + $0x5c] sm:$0xf]
    %v12894 = vld [vmem:[#allocation11 + $0x60] sm:$0xf]
    %v12895 = vld [vmem:[#allocation11 + $0x64] sm:$0xf]
    %v12896 = vld [vmem:[#allocation11 + $0x68] sm:$0xf]
    %v12897 = vld [vmem:[#allocation11 + $0x6c] sm:$0xf]
    %v12898 = vld [vmem:[#allocation11 + $0x70] sm:$0xf]
    %v12899 = vld [vmem:[#allocation11 + $0x74] sm:$0xf]
    %v12900 = vld [vmem:[#allocation11 + $0x78] sm:$0xf]
    %v12901 = vld [vmem:[#allocation11 + $0x7c] sm:$0xf]
    %v12902 = vld [vmem:[#allocation11 + $0x80] sm:$0xf]
    %v12903 = vld [vmem:[#allocation11 + $0x84] sm:$0xf]
    %v12904 = vld [vmem:[#allocation11 + $0x88] sm:$0xf]
    %v12905 = vld [vmem:[#allocation11 + $0x8c] sm:$0xf]
    %v12906 = vld [vmem:[#allocation11 + $0x90] sm:$0xf]
    %v12907 = vld [vmem:[#allocation11 + $0x94] sm:$0xf]
    %v12908 = vld [vmem:[#allocation11 + $0x98] sm:$0xf]
    %v12909 = vld [vmem:[#allocation11 + $0x9c] sm:$0xf]
    %v12910 = vld [vmem:[#allocation11 + $0xa0] sm:$0xf]
    %v12911 = vld [vmem:[#allocation11 + $0xa4] sm:$0xf]
    %v12912 = vld [vmem:[#allocation11 + $0xa8] sm:$0xf]
    %v12913 = vld [vmem:[#allocation11 + $0xac] sm:$0xf]
    %v12914 = vld [vmem:[#allocation11 + $0xb0] sm:$0xf]
    %v12915 = vld [vmem:[#allocation11 + $0xb4] sm:$0xf]
    %v12916 = vld [vmem:[#allocation11 + $0xb8] sm:$0xf]
    %v12917 = vld [vmem:[#allocation11 + $0xbc] sm:$0xf]
    %v12918 = vld [vmem:[#allocation11 + $0xc0] sm:$0xf]
    %v12919 = vld [vmem:[#allocation11 + $0xc4] sm:$0xf]
    %v12920 = vld [vmem:[#allocation11 + $0xc8] sm:$0xf]
    %v12921 = vld [vmem:[#allocation11 + $0xcc] sm:$0xf]
    %v12922 = vld [vmem:[#allocation11 + $0xd0] sm:$0xf]
    %v12923 = vld [vmem:[#allocation11 + $0xd4] sm:$0xf]
    %v12924 = vld [vmem:[#allocation11 + $0xd8] sm:$0xf]
    %v12925 = vld [vmem:[#allocation11 + $0xdc] sm:$0xf]
    %v12926 = vld [vmem:[#allocation11 + $0xe0] sm:$0xf]
    %v12927 = vld [vmem:[#allocation11 + $0xe4] sm:$0xf]
    %v12928 = vld [vmem:[#allocation11 + $0xe8] sm:$0xf]
    %v12929 = vld [vmem:[#allocation11 + $0xec] sm:$0xf]
    %v12930 = vld [vmem:[#allocation11 + $0xf0] sm:$0xf]
    %v12931 = vld [vmem:[#allocation11 + $0xf4] sm:$0xf]
    %v12932 = vld [vmem:[#allocation11 + $0xf8] sm:$0xf]
    %v12933 = vld [vmem:[#allocation11 + $0xfc] sm:$0xf]
    %v12934 = vld [vmem:[#allocation13] sm:$0x1]
    %v12936 = vperm.slane %v12934, 0
    %v13002 = vunpack.c.l.b16 %v12870
    %v13003 = vunpack.c.l.b16 %v12871
    %v13004 = vunpack.c.l.b16 %v12872
    %v13005 = vunpack.c.l.b16 %v12873
    %v13006 = vunpack.c.l.b16 %v12874
    %v13007 = vunpack.c.l.b16 %v12875
    %v13008 = vunpack.c.l.b16 %v12876
    %v13009 = vunpack.c.l.b16 %v12877
    %v13010 = vunpack.c.l.b16 %v12878
    %v13011 = vunpack.c.l.b16 %v12879
    %v13012 = vunpack.c.l.b16 %v12880
    %v13013 = vunpack.c.l.b16 %v12881
    %v13014 = vunpack.c.l.b16 %v12882
    %v13015 = vunpack.c.l.b16 %v12883
    %v13016 = vunpack.c.l.b16 %v12884
    %v13017 = vunpack.c.l.b16 %v12885
    %v13018 = vunpack.c.l.b16 %v12886
    %v13019 = vunpack.c.l.b16 %v12887
    %v13020 = vunpack.c.l.b16 %v12888
    %v13021 = vunpack.c.l.b16 %v12889
    %v13022 = vunpack.c.l.b16 %v12890
    %v13023 = vunpack.c.l.b16 %v12891
    %v13024 = vunpack.c.l.b16 %v12892
    %v13025 = vunpack.c.l.b16 %v12893
    %v13026 = vunpack.c.l.b16 %v12894
    %v13027 = vunpack.c.l.b16 %v12895
    %v13028 = vunpack.c.l.b16 %v12896
    %v13029 = vunpack.c.l.b16 %v12897
    %v13030 = vunpack.c.l.b16 %v12898
    %v13031 = vunpack.c.l.b16 %v12899
    %v13032 = vunpack.c.l.b16 %v12900
    %v13033 = vunpack.c.l.b16 %v12901
    %v13034 = vunpack.c.l.b16 %v12902
    %v13035 = vunpack.c.l.b16 %v12903
    %v13036 = vunpack.c.l.b16 %v12904
    %v13037 = vunpack.c.l.b16 %v12905
    %v13038 = vunpack.c.l.b16 %v12906
    %v13039 = vunpack.c.l.b16 %v12907
    %v13040 = vunpack.c.l.b16 %v12908
    %v13041 = vunpack.c.l.b16 %v12909
    %v13042 = vunpack.c.l.b16 %v12910
    %v13043 = vunpack.c.l.b16 %v12911
    %v13044 = vunpack.c.l.b16 %v12912
    %v13045 = vunpack.c.l.b16 %v12913
    %v13046 = vunpack.c.l.b16 %v12914
    %v13047 = vunpack.c.l.b16 %v12915
    %v13048 = vunpack.c.l.b16 %v12916
    %v13049 = vunpack.c.l.b16 %v12917
    %v13050 = vunpack.c.l.b16 %v12918
    %v13051 = vunpack.c.l.b16 %v12919
    %v13052 = vunpack.c.l.b16 %v12920
    %v13053 = vunpack.c.l.b16 %v12921
    %v13054 = vunpack.c.l.b16 %v12922
    %v13055 = vunpack.c.l.b16 %v12923
    %v13056 = vunpack.c.l.b16 %v12924
    %v13057 = vunpack.c.l.b16 %v12925
    %v13058 = vunpack.c.l.b16 %v12926
    %v13059 = vunpack.c.l.b16 %v12927
    %v13060 = vunpack.c.l.b16 %v12928
    %v13061 = vunpack.c.l.b16 %v12929
    %v13062 = vunpack.c.l.b16 %v12930
    %v13063 = vunpack.c.l.b16 %v12931
    %v13064 = vunpack.c.l.b16 %v12932
    %v13065 = vunpack.c.l.b16 %v12933
    %v13066 = vpack.c.b16 %v13003, %v13002
    %v13067 = vpack.c.b16 %v13005, %v13004
    %v13068 = vpack.c.b16 %v13007, %v13006
    %v13069 = vpack.c.b16 %v13009, %v13008
    %v13070 = vpack.c.b16 %v13011, %v13010
    %v13071 = vpack.c.b16 %v13013, %v13012
    %v13072 = vpack.c.b16 %v13015, %v13014
    %v13073 = vpack.c.b16 %v13017, %v13016
    %v13074 = vpack.c.b16 %v13019, %v13018
    %v13075 = vpack.c.b16 %v13021, %v13020
    %v13076 = vpack.c.b16 %v13023, %v13022
    %v13077 = vpack.c.b16 %v13025, %v13024
    %v13078 = vpack.c.b16 %v13027, %v13026
    %v13079 = vpack.c.b16 %v13029, %v13028
    %v13080 = vpack.c.b16 %v13031, %v13030
    %v13081 = vpack.c.b16 %v13033, %v13032
    %v13082 = vpack.c.b16 %v13035, %v13034
    %v13083 = vpack.c.b16 %v13037, %v13036
    %v13084 = vpack.c.b16 %v13039, %v13038
    %v13085 = vpack.c.b16 %v13041, %v13040
    %v13086 = vpack.c.b16 %v13043, %v13042
    %v13087 = vpack.c.b16 %v13045, %v13044
    %v13088 = vpack.c.b16 %v13047, %v13046
    %v13089 = vpack.c.b16 %v13049, %v13048
    %v13090 = vpack.c.b16 %v13051, %v13050
    %v13091 = vpack.c.b16 %v13053, %v13052
    %v13092 = vpack.c.b16 %v13055, %v13054
    %v13093 = vpack.c.b16 %v13057, %v13056
    %v13094 = vpack.c.b16 %v13059, %v13058
    %v13095 = vpack.c.b16 %v13061, %v13060
    %v13096 = vpack.c.b16 %v13063, %v13062
    %v13097 = vpack.c.b16 %v13065, %v13064
    %13130 = vmatpush.bf16.msra.mxu0 %v13073
    %13131 = vmatpush.bf16.msra.mxu0 %v13072
    %13132 = vmatpush.bf16.msra.mxu0 %v13071
    %13133 = vmatpush.bf16.msra.mxu0 %v13070
    %13134 = vmatpush.bf16.msra.mxu0 %v13069
    %13135 = vmatpush.bf16.msra.mxu0 %v13068
    %13136 = vmatpush.bf16.msra.mxu0 %v13067
    %13137 = vmatpush.bf16.msra.mxu0 %v13066
    %13138 = vmatmul.bf16.gmra.mxu0 %v12838
    %v13139 = vpop.f32.mrf.mxu0
    %v13140 = vadd.f32 %v12936, %v13139
    %v13141 = vpop.f32.mrf.mxu0
    %v13142 = vadd.f32 %v12936, %v13141
    %13143 = vmatmul.bf16.gmra.mxu0 %v12842
    %v13144 = vpop.f32.mrf.mxu0
    %v13145 = vadd.f32 %v12936, %v13144
    %v13146 = vpop.f32.mrf.mxu0
    %v13147 = vadd.f32 %v12936, %v13146
    %13148 = vmatmul.bf16.gmra.mxu0 %v12846
    %v13149 = vpop.f32.mrf.mxu0
    %v13150 = vadd.f32 %v12936, %v13149
    %v13151 = vpop.f32.mrf.mxu0
    %v13152 = vadd.f32 %v12936, %v13151
    %13153 = vmatmul.bf16.gmra.mxu0 %v12850
    %v13154 = vpop.f32.mrf.mxu0
    %v13155 = vadd.f32 %v12936, %v13154
    %v13156 = vpop.f32.mrf.mxu0
    %v13157 = vadd.f32 %v12936, %v13156
    %13158 = vmatmul.bf16.gmra.mxu0 %v12854
    %v13159 = vpop.f32.mrf.mxu0
    %v13160 = vadd.f32 %v12936, %v13159
    %v13161 = vpop.f32.mrf.mxu0
    %v13162 = vadd.f32 %v12936, %v13161
    %13163 = vmatmul.bf16.gmra.mxu0 %v12858
    %v13164 = vpop.f32.mrf.mxu0
    %v13165 = vadd.f32 %v12936, %v13164
    %v13166 = vpop.f32.mrf.mxu0
    %v13167 = vadd.f32 %v12936, %v13166
    %13168 = vmatmul.bf16.gmra.mxu0 %v12862
    %v13169 = vpop.f32.mrf.mxu0
    %v13170 = vadd.f32 %v12936, %v13169
    %v13171 = vpop.f32.mrf.mxu0
    %v13172 = vadd.f32 %v12936, %v13171
    %13173 = vmatmul.bf16.gmra.mxu0 %v12866
    %v13174 = vpop.f32.mrf.mxu0
    %v13175 = vadd.f32 %v12936, %v13174
    %v13176 = vpop.f32.mrf.mxu0
    %v13177 = vadd.f32 %v12936, %v13176
    %13178 = vdwg.mxu0
    %13179 = vmatpush.bf16.msra.mxu0 %v13081
    %13180 = vmatpush.bf16.msra.mxu0 %v13080
    %13181 = vmatpush.bf16.msra.mxu0 %v13079
    %13182 = vmatpush.bf16.msra.mxu0 %v13078
    %13183 = vmatpush.bf16.msra.mxu0 %v13077
    %13184 = vmatpush.bf16.msra.mxu0 %v13076
    %13185 = vmatpush.bf16.msra.mxu0 %v13075
    %13186 = vmatpush.bf16.msra.mxu0 %v13074
    %13187 = vmatmul.bf16.gmra.mxu0 %v12839
    %v13188 = vpop.f32.mrf.mxu0
    %v13189 = vadd.f32 %v13140, %v13188
    %v13190 = vpop.f32.mrf.mxu0
    %v13191 = vadd.f32 %v13142, %v13190
    %13192 = vmatmul.bf16.gmra.mxu0 %v12843
    %v13193 = vpop.f32.mrf.mxu0
    %v13194 = vadd.f32 %v13145, %v13193
    %v13195 = vpop.f32.mrf.mxu0
    %v13196 = vadd.f32 %v13147, %v13195
    %13197 = vmatmul.bf16.gmra.mxu0 %v12847
    %v13198 = vpop.f32.mrf.mxu0
    %v13199 = vadd.f32 %v13150, %v13198
    %v13200 = vpop.f32.mrf.mxu0
    %v13201 = vadd.f32 %v13152, %v13200
    %13202 = vmatmul.bf16.gmra.mxu0 %v12851
    %v13203 = vpop.f32.mrf.mxu0
    %v13204 = vadd.f32 %v13155, %v13203
    %v13205 = vpop.f32.mrf.mxu0
    %v13206 = vadd.f32 %v13157, %v13205
    %13207 = vmatmul.bf16.gmra.mxu0 %v12855
    %v13208 = vpop.f32.mrf.mxu0
    %v13209 = vadd.f32 %v13160, %v13208
    %v13210 = vpop.f32.mrf.mxu0
    %v13211 = vadd.f32 %v13162, %v13210
    %13212 = vmatmul.bf16.gmra.mxu0 %v12859
    %v13213 = vpop.f32.mrf.mxu0
    %v13214 = vadd.f32 %v13165, %v13213
    %v13215 = vpop.f32.mrf.mxu0
    %v13216 = vadd.f32 %v13167, %v13215
    %13217 = vmatmul.bf16.gmra.mxu0 %v12863
    %v13218 = vpop.f32.mrf.mxu0
    %v13219 = vadd.f32 %v13170, %v13218
    %v13220 = vpop.f32.mrf.mxu0
    %v13221 = vadd.f32 %v13172, %v13220
    %13222 = vmatmul.bf16.gmra.mxu0 %v12867
    %v13223 = vpop.f32.mrf.mxu0
    %v13224 = vadd.f32 %v13175, %v13223
    %v13225 = vpop.f32.mrf.mxu0
    %v13226 = vadd.f32 %v13177, %v13225
    %13227 = vdwg.mxu0
    %13228 = vmatpush.bf16.msra.mxu0 %v13089
    %13229 = vmatpush.bf16.msra.mxu0 %v13088
    %13230 = vmatpush.bf16.msra.mxu0 %v13087
    %13231 = vmatpush.bf16.msra.mxu0 %v13086
    %13232 = vmatpush.bf16.msra.mxu0 %v13085
    %13233 = vmatpush.bf16.msra.mxu0 %v13084
    %13234 = vmatpush.bf16.msra.mxu0 %v13083
    %13235 = vmatpush.bf16.msra.mxu0 %v13082
    %13236 = vmatmul.bf16.gmra.mxu0 %v12840
    %v13237 = vpop.f32.mrf.mxu0
    %v13238 = vadd.f32 %v13189, %v13237
    %v13239 = vpop.f32.mrf.mxu0
    %v13240 = vadd.f32 %v13191, %v13239
    %13241 = vmatmul.bf16.gmra.mxu0 %v12844
    %v13242 = vpop.f32.mrf.mxu0
    %v13243 = vadd.f32 %v13194, %v13242
    %v13244 = vpop.f32.mrf.mxu0
    %v13245 = vadd.f32 %v13196, %v13244
    %13246 = vmatmul.bf16.gmra.mxu0 %v12848
    %v13247 = vpop.f32.mrf.mxu0
    %v13248 = vadd.f32 %v13199, %v13247
    %v13249 = vpop.f32.mrf.mxu0
    %v13250 = vadd.f32 %v13201, %v13249
    %13251 = vmatmul.bf16.gmra.mxu0 %v12852
    %v13252 = vpop.f32.mrf.mxu0
    %v13253 = vadd.f32 %v13204, %v13252
    %v13254 = vpop.f32.mrf.mxu0
    %v13255 = vadd.f32 %v13206, %v13254
    %13256 = vmatmul.bf16.gmra.mxu0 %v12856
    %v13257 = vpop.f32.mrf.mxu0
    %v13258 = vadd.f32 %v13209, %v13257
    %v13259 = vpop.f32.mrf.mxu0
    %v13260 = vadd.f32 %v13211, %v13259
    %13261 = vmatmul.bf16.gmra.mxu0 %v12860
    %v13262 = vpop.f32.mrf.mxu0
    %v13263 = vadd.f32 %v13214, %v13262
    %v13264 = vpop.f32.mrf.mxu0
    %v13265 = vadd.f32 %v13216, %v13264
    %13266 = vmatmul.bf16.gmra.mxu0 %v12864
    %v13267 = vpop.f32.mrf.mxu0
    %v13268 = vadd.f32 %v13219, %v13267
    %v13269 = vpop.f32.mrf.mxu0
    %v13270 = vadd.f32 %v13221, %v13269
    %13271 = vmatmul.bf16.gmra.mxu0 %v12868
    %v13272 = vpop.f32.mrf.mxu0
    %v13273 = vadd.f32 %v13224, %v13272
    %v13274 = vpop.f32.mrf.mxu0
    %v13275 = vadd.f32 %v13226, %v13274
    %13276 = vdwg.mxu0
    %13277 = vmatpush.bf16.msra.mxu0 %v13097
    %13278 = vmatpush.bf16.msra.mxu0 %v13096
    %13279 = vmatpush.bf16.msra.mxu0 %v13095
    %13280 = vmatpush.bf16.msra.mxu0 %v13094
    %13281 = vmatpush.bf16.msra.mxu0 %v13093
    %13282 = vmatpush.bf16.msra.mxu0 %v13092
    %13283 = vmatpush.bf16.msra.mxu0 %v13091
    %13284 = vmatpush.bf16.msra.mxu0 %v13090
    %13285 = vmatmul.bf16.gmra.mxu0 %v12841
    %v13286 = vpop.f32.mrf.mxu0
    %v13287 = vadd.f32 %v13238, %v13286
    %v13288 = vpop.f32.mrf.mxu0
    %v13289 = vadd.f32 %v13240, %v13288
    %13290 = vmatmul.bf16.gmra.mxu0 %v12845
    %v13291 = vpop.f32.mrf.mxu0
    %v13292 = vadd.f32 %v13243, %v13291
    %v13293 = vpop.f32.mrf.mxu0
    %v13294 = vadd.f32 %v13245, %v13293
    %13295 = vmatmul.bf16.gmra.mxu0 %v12849
    %v13296 = vpop.f32.mrf.mxu0
    %v13297 = vadd.f32 %v13248, %v13296
    %v13298 = vpop.f32.mrf.mxu0
    %v13299 = vadd.f32 %v13250, %v13298
    %13300 = vmatmul.bf16.gmra.mxu0 %v12853
    %v13301 = vpop.f32.mrf.mxu0
    %v13302 = vadd.f32 %v13253, %v13301
    %v13303 = vpop.f32.mrf.mxu0
    %v13304 = vadd.f32 %v13255, %v13303
    %13305 = vmatmul.bf16.gmra.mxu0 %v12857
    %v13306 = vpop.f32.mrf.mxu0
    %v13307 = vadd.f32 %v13258, %v13306
    %v13308 = vpop.f32.mrf.mxu0
    %v13309 = vadd.f32 %v13260, %v13308
    %13310 = vmatmul.bf16.gmra.mxu0 %v12861
    %v13311 = vpop.f32.mrf.mxu0
    %v13312 = vadd.f32 %v13263, %v13311
    %v13313 = vpop.f32.mrf.mxu0
    %v13314 = vadd.f32 %v13265, %v13313
    %13315 = vmatmul.bf16.gmra.mxu0 %v12865
    %v13316 = vpop.f32.mrf.mxu0
    %v13317 = vadd.f32 %v13268, %v13316
    %v13318 = vpop.f32.mrf.mxu0
    %v13319 = vadd.f32 %v13270, %v13318
    %13320 = vmatmul.bf16.gmra.mxu0 %v12869
    %v13321 = vpop.f32.mrf.mxu0
    %v13322 = vadd.f32 %v13273, %v13321
    %v13323 = vpop.f32.mrf.mxu0
    %v13324 = vadd.f32 %v13275, %v13323
    %13325 = vdwg.mxu0
    %v13326 = vsub.f32 0.0, %v13287
    %v13327 = vsub.f32 0.0, %v13289
    %v13328 = vsub.f32 0.0, %v13292
    %v13329 = vsub.f32 0.0, %v13294
    %v13330 = vsub.f32 0.0, %v13297
    %v13331 = vsub.f32 0.0, %v13299
    %v13332 = vsub.f32 0.0, %v13302
    %v13333 = vsub.f32 0.0, %v13304
    %v13334 = vsub.f32 0.0, %v13307
    %v13335 = vsub.f32 0.0, %v13309
    %v13336 = vsub.f32 0.0, %v13312
    %v13337 = vsub.f32 0.0, %v13314
    %v13338 = vsub.f32 0.0, %v13317
    %v13339 = vsub.f32 0.0, %v13319
    %v13340 = vsub.f32 0.0, %v13322
    %v13341 = vsub.f32 0.0, %v13324
    %v13342 = vmul.f32 %v13326, 1.442695
    %v13343 = vpow.pop %v13342
    %v13344 = vmul.f32 %v13327, 1.442695
    %v13345 = vpow.pop %v13344
    %v13346 = vmul.f32 %v13328, 1.442695
    %v13347 = vpow.pop %v13346
    %v13348 = vmul.f32 %v13329, 1.442695
    %v13349 = vpow.pop %v13348
    %v13350 = vmul.f32 %v13330, 1.442695
    %v13351 = vpow.pop %v13350
    %v13352 = vmul.f32 %v13331, 1.442695
    %v13353 = vpow.pop %v13352
    %v13354 = vmul.f32 %v13332, 1.442695
    %v13355 = vpow.pop %v13354
    %v13356 = vmul.f32 %v13333, 1.442695
    %v13357 = vpow.pop %v13356
    %v13358 = vmul.f32 %v13334, 1.442695
    %v13359 = vpow.pop %v13358
    %v13360 = vmul.f32 %v13335, 1.442695
    %v13361 = vpow.pop %v13360
    %v13362 = vmul.f32 %v13336, 1.442695
    %v13363 = vpow.pop %v13362
    %v13364 = vmul.f32 %v13337, 1.442695
    %v13365 = vpow.pop %v13364
    %v13366 = vmul.f32 %v13338, 1.442695
    %v13367 = vpow.pop %v13366
    %v13368 = vmul.f32 %v13339, 1.442695
    %v13369 = vpow.pop %v13368
    %v13370 = vmul.f32 %v13340, 1.442695
    %v13371 = vpow.pop %v13370
    %v13372 = vmul.f32 %v13341, 1.442695
    %v13373 = vpow.pop %v13372
    %v13374 = vadd.f32 %v13343, 1.0
    %v13375 = vadd.f32 %v13345, 1.0
    %v13376 = vadd.f32 %v13347, 1.0
    %v13377 = vadd.f32 %v13349, 1.0
    %v13378 = vadd.f32 %v13351, 1.0
    %v13379 = vadd.f32 %v13353, 1.0
    %v13380 = vadd.f32 %v13355, 1.0
    %v13381 = vadd.f32 %v13357, 1.0
    %v13382 = vadd.f32 %v13359, 1.0
    %v13383 = vadd.f32 %v13361, 1.0
    %v13384 = vadd.f32 %v13363, 1.0
    %v13385 = vadd.f32 %v13365, 1.0
    %v13386 = vadd.f32 %v13367, 1.0
    %v13387 = vadd.f32 %v13369, 1.0
    %v13388 = vadd.f32 %v13371, 1.0
    %v13389 = vadd.f32 %v13373, 1.0
    %v13390 = vrcp.pop %v13374
    %v13391 = vrcp.pop %v13375
    %v13392 = vrcp.pop %v13376
    %v13393 = vrcp.pop %v13377
    %v13394 = vrcp.pop %v13378
    %v13395 = vrcp.pop %v13379
    %v13396 = vrcp.pop %v13380
    %v13397 = vrcp.pop %v13381
    %v13398 = vrcp.pop %v13382
    %v13399 = vrcp.pop %v13383
    %v13400 = vrcp.pop %v13384
    %v13401 = vrcp.pop %v13385
    %v13402 = vrcp.pop %v13386
    %v13403 = vrcp.pop %v13387
    %v13404 = vrcp.pop %v13388
    %v13405 = vrcp.pop %v13389
    %13406 = vst [vmem:[#allocation14] sm:$0xff] %v13390
    %13407 = vst [vmem:[#allocation14 + $0x8] sm:$0xff] %v13391
    %13408 = vst [vmem:[#allocation14 + $0x10] sm:$0xff] %v13392
    %13409 = vst [vmem:[#allocation14 + $0x18] sm:$0xff] %v13393
    %13410 = vst [vmem:[#allocation14 + $0x20] sm:$0xff] %v13394
    %13411 = vst [vmem:[#allocation14 + $0x28] sm:$0xff] %v13395
    %13412 = vst [vmem:[#allocation14 + $0x30] sm:$0xff] %v13396
    %13413 = vst [vmem:[#allocation14 + $0x38] sm:$0xff] %v13397
    %13414 = vst [vmem:[#allocation14 + $0x40] sm:$0xff] %v13398
    %13415 = vst [vmem:[#allocation14 + $0x48] sm:$0xff] %v13399
    %13416 = vst [vmem:[#allocation14 + $0x50] sm:$0xff] %v13400
    %13417 = vst [vmem:[#allocation14 + $0x58] sm:$0xff] %v13401
    %13418 = vst [vmem:[#allocation14 + $0x60] sm:$0xff] %v13402
    %13419 = vst [vmem:[#allocation14 + $0x68] sm:$0xff] %v13403
    %13420 = vst [vmem:[#allocation14 + $0x70] sm:$0xff] %v13404
    %13421 = vst [vmem:[#allocation14 + $0x78] sm:$0xff] %v13405
    // Predicated region
    $region58: #{tpu_custom_call.1} parent=1 // pred_check
      _
    $region59: #{tpu_custom_call.1} parent=1 // pred_check_branch
      %13423 = sbr.rel (0) target = $region61
    $region60: #{tpu_custom_call.1} parent=1 // pred_region
      %13425 = vsyncadd [#allocation4], 0
      %s13426 = sshll.u32 [#allocation14], 4
      %s13427 = int_to_ptr.vmem [resolvable:$true] %s13426
      %s13428 = sshll.u32 %s7, 4
      %s13429 = int_to_ptr.hbm [resolvable:$true] %s13428
      %13434 = dma.vmem_to_hbm [thread:$0]  %s13427, 2048, %s13429, [#allocation4], 128, 128, 8
    $region61: #{tpu_custom_call.1} parent=1 // pred_fallthru
      _
    // Predicated region
    $region62: #{tpu_custom_call.1} parent=1 // pred_check
      _
    $region63: #{tpu_custom_call.1} parent=1 // pred_check_branch
      %13436 = sbr.rel (0) target = $region65
    $region64: #{tpu_custom_call.1} parent=1 // pred_region
      %13438 = dma.done [#allocation4], 2048
    $region65: #{tpu_custom_call.1} parent=1 // pred_fallthru
      _
    %13439 = vsyncpa [#allocation3], 1
    %13440 = vsyncpa [#allocation6], 1
    %13441 = vsyncpa [#allocation9], 1
    %13442 = vsyncpa [#allocation12], 1
    %13443 = vsyncpa [#allocation4], 1

</llo_original>
